<compile_context>
chip_gen: v5e
topology: v5e:2x2
jax: 0.10.0
libtpu: 0.0.40
codegen_flags: <defaults>
</compile_context>

<pallas_src>
import functools

import jax
import jax.numpy as jnp
import numpy as np
from jax.experimental import pallas as pl
from jax.experimental.pallas import tpu as pltpu

BN_EPS = 1e-5
KH = KW = 5
PAD = 2


def _round_up(x, m):
    return ((x + m - 1) // m) * m


# ----------------------------------------------------------------------------
# In-kernel 5x5 conv of one halo'd row tile: 25 shifted slices + MXU matmuls.
# ----------------------------------------------------------------------------
def _conv_tile(x_ref, w_ref, *, tile_h, width, n_rows):
    """x_ref: (1, tile_h+4, width+4, Cin_p) bf16 (spatially pre-padded rows)
       w_ref: (25, Cin_p, cblk) bf16, tap k = i*5 + j
       returns (n_rows, cblk) f32 conv output, rows ordered r = h*width + w."""
    cblk = w_ref.shape[-1]
    acc = jnp.zeros((n_rows, cblk), jnp.float32)
    for i in range(KH):                                   # static unroll (25 taps)
        for j in range(KW):
            xs = x_ref[0, i:i + tile_h, j:j + width, :]   # (tile_h, width, Cin_p)
            xs = xs.reshape(n_rows, xs.shape[-1])         # (tile_h*width, Cin_p)
            acc = acc + jnp.dot(xs, w_ref[i * KW + j],
                                preferred_element_type=jnp.float32)
    return acc


# ----------------------------------------------------------------------------
# Pass 1: batch-norm statistics (training mode), finalized into scale / shift.
# ----------------------------------------------------------------------------
def _stats_kernel(x_ref, w_ref, gamma_ref, beta_ref, scale_ref, shift_ref,
                  *, tile_h, width, n_rows, inv_m):
    t = pl.program_id(1)
    n_t = pl.num_programs(1)

    @pl.when(t == 0)
    def _init():
        scale_ref[...] = jnp.zeros_like(scale_ref)   # accumulates sum(y)
        shift_ref[...] = jnp.zeros_like(shift_ref)   # accumulates sum(y*y)

    y = _conv_tile(x_ref, w_ref, tile_h=tile_h, width=width, n_rows=n_rows)
    scale_ref[...] += jnp.sum(y, axis=0, keepdims=True)
    shift_ref[...] += jnp.sum(y * y, axis=0, keepdims=True)

    @pl.when(t == n_t - 1)
    def _finalize():
        mean = scale_ref[...] * inv_m
        var = shift_ref[...] * inv_m - mean * mean          # biased, like torch BN
        inv_std = jax.lax.rsqrt(jnp.maximum(var, 0.0) + BN_EPS)
        s = gamma_ref[...] * inv_std
        scale_ref[...] = s
        shift_ref[...] = beta_ref[...] - mean * s


# ----------------------------------------------------------------------------
# Pass 2: conv (recomputed) + folded BN affine + ReLU + 2x2 avg pool.
# ----------------------------------------------------------------------------
def _norm_pool_kernel(x_ref, w_ref, scale_ref, shift_ref, out_ref,
                      acc_ref, z_ref, *, tile_h, width, n_rows):
    y = _conv_tile(x_ref, w_ref, tile_h=tile_h, width=width, n_rows=n_rows)
    y = jnp.maximum(y * scale_ref[...] + shift_ref[...], 0.0)   # BN affine + ReLU
    acc_ref[...] = y                                            # rows (h, w)

    # w-pool: even/odd w rows are interleaved -> stride-2 ref loads.
    half = n_rows // 2
    zw = acc_ref[pl.ds(0, half, 2), :] + acc_ref[pl.ds(1, half, 2), :]
    z_ref[...] = zw.reshape(tile_h, width // 2, zw.shape[-1])   # rows (h, wo)

    # h-pool: adjacent row slabs; unrolled pair-sum, lane-dense bf16 stores.
    for a in range(tile_h // 2):                                # static unroll
        out_ref[0, a] = ((z_ref[2 * a] + z_ref[2 * a + 1]) * 0.25
                         ).astype(out_ref.dtype)


# ----------------------------------------------------------------------------
# Sizing helpers (review items 4-7: budget-driven tiles, honest VMEM accounting)
# ----------------------------------------------------------------------------
def _vmem_budget():
    cap = 64 << 20
    try:
        info = pltpu.get_tpu_info()
        cap = int(getattr(info, "vmem_capacity_bytes", cap) or cap)
    except Exception:
        pass
    # ~40 MiB on v7x (64 MiB VMEM), ~96 MiB on v5e / v6e (128 MiB VMEM).
    return max(min(int(0.75 * cap), cap - (24 << 20)), 32 << 20)


def _vmem_footprint(tile_h, width, cin_p, cblk):
    """Per-call VMEM estimate: double-buffered blocks + resident weight +
    scratch + in-kernel value temporaries, with lane/sublane layout padding."""
    n_rows = tile_h * width
    xb = 2 * (tile_h + 2 * PAD) * _round_up(width + 2 * PAD, 16) * _round_up(cin_p, 128) * 2
    wb = 2 * KH * KW * _round_up(cin_p, 16) * cblk * 2
    ob = 2 * (tile_h // 2) * _round_up(width // 2, 16) * cblk * 2
    scratch = n_rows * cblk * 4 + tile_h * (width // 2) * cblk * 4
    temps = 3 * n_rows * cblk * 4 + n_rows * _round_up(cin_p, 128) * 2
    return xb + wb + ob + scratch + temps


def _pick_cblk(cpad, cin_p, weight_block_budget=8 << 20):
    """Largest multiple-of-128 divisor of cpad whose weight block fits budget."""
    k = cpad // 128
    for d in range(k, 0, -1):
        if k % d == 0 and KH * KW * cin_p * (d * 128) * 2 <= weight_block_budget:
            return d * 128
    return 128


def _pick_tile_h(H, width, cin_p, cblk, budget, max_tile_h=None):
    cands = [h for h in range(H, 1, -1) if H % h == 0 and h % 2 == 0]
    if max_tile_h is not None:
        limited = [h for h in cands if h <= max_tile_h]
        cands = limited or cands[-1:]
    for th in cands:
        if _vmem_footprint(th, width, cin_p, cblk) <= budget:
            return th
    return cands[-1]


# ----------------------------------------------------------------------------
# Wrapper
# ----------------------------------------------------------------------------
def conv_block5x5_forward(x_nchw, weight, gamma, beta,
                          pool_size=(2, 2), pool_type="avg",
                          out_layout="NCHW", max_tile_h=None):
    """Forward of ConvBlock5x5. x_nchw: (N, Cin, H, W); weight: (Cout, Cin, 5, 5)."""
    if pool_type != "avg":
        raise NotImplementedError("only pool_type='avg' is implemented")
    if tuple(pool_size) != (2, 2):
        raise NotImplementedError("only pool_size=(2, 2) is implemented")

    N, Cin, H, W = x_nchw.shape
    Cout = weight.shape[0]
    assert weight.shape == (Cout, Cin, KH, KW)
    assert H % 2 == 0 and W % 2 == 0

    cin_p = max(16, _round_up(Cin, 16))        # sublane/packing friendly contraction
    cpad = _round_up(Cout, 128)                # lane-dense output channels
    cblk = _pick_cblk(cpad, cin_p)
    n_cb = cpad // cblk

    budget = _vmem_budget()
    tile_h = _pick_tile_h(H, W, cin_p, cblk, budget, max_tile_h)
    n_th = H // tile_h
    n_rows = tile_h * W
    n_tiles = N * n_th
    ho_t, wo = tile_h // 2, W // 2

    # --- glue (single cheap pass over the small x): NCHW -> padded NHWC tiles --
    x_nhwc = jnp.transpose(x_nchw, (0, 2, 3, 1)).astype(jnp.bfloat16)
    x_pad = jnp.pad(x_nhwc, ((0, 0), (PAD, PAD), (PAD, PAD), (0, cin_p - Cin)))
    if n_th == 1:
        x_halo = x_pad                                    # (N, H+4, W+4, cin_p)
    else:                                                 # overlapping row windows
        x_halo = jnp.stack(
            [x_pad[:, k * tile_h:k * tile_h + tile_h + 2 * PAD]
             for k in range(n_th)], axis=1,
        ).reshape(n_tiles, tile_h + 2 * PAD, W + 2 * PAD, cin_p)

    # weight: (Cout, Cin, 5, 5) -> (25, Cin_p, Cpad), tap k = i*5 + j
    wmat = jnp.transpose(weight, (2, 3, 1, 0)).reshape(KH * KW, Cin, Cout)
    wmat = jnp.pad(wmat, ((0, 0), (0, cin_p - Cin), (0, cpad - Cout))).astype(jnp.bfloat16)
    gamma_p = jnp.pad(gamma.astype(jnp.float32), (0, cpad - Cout)).reshape(1, cpad)
    beta_p = jnp.pad(beta.astype(jnp.float32), (0, cpad - Cout)).reshape(1, cpad)

    footprint = _vmem_footprint(tile_h, W, cin_p, cblk)
    vmem_limit = int(min(max(int(1.5 * footprint) + (8 << 20), 32 << 20), budget))

    x_spec = pl.BlockSpec((1, tile_h + 2 * PAD, W + 2 * PAD, cin_p),
                          lambda c, t: (t, 0, 0, 0))
    w_spec = pl.BlockSpec((KH * KW, cin_p, cblk), lambda c, t: (0, 0, c))
    vec_spec = pl.BlockSpec((1, cblk), lambda c, t: (0, c))

    conv_flops = int(2 * n_tiles * n_rows * cin_p * KH * KW * cpad)
    x_bytes = int(x_halo.size * 2)
    w_bytes = int(wmat.size * 2)

    # ---------------- pass 1: batch statistics -> BN scale / shift -----------
    stats_kernel = functools.partial(_stats_kernel, tile_h=tile_h, width=W,
                                     n_rows=n_rows, inv_m=1.0 / float(N * H * W))
    scale, shift = pl.pallas_call(
        stats_kernel,
        out_shape=(jax.ShapeDtypeStruct((1, cpad), jnp.float32),
                   jax.ShapeDtypeStruct((1, cpad), jnp.float32)),
        grid_spec=pltpu.PrefetchScalarGridSpec(
            num_scalar_prefetch=0,
            grid=(n_cb, n_tiles),
            in_specs=[x_spec, w_spec, vec_spec, vec_spec],
            out_specs=(vec_spec, vec_spec),
        ),
        compiler_params=pltpu.CompilerParams(
            dimension_semantics=("arbitrary", "arbitrary"),
            vmem_limit_bytes=vmem_limit),
        cost_estimate=pl.CostEstimate(flops=conv_flops, transcendentals=cpad,
                                      bytes_accessed=n_cb * x_bytes + w_bytes
                                      + 4 * cpad * 4),
    )(x_halo, wmat, gamma_p, beta_p)

    # ---------------- pass 2: conv + BN affine + ReLU + 2x2 avg pool ----------
    norm_kernel = functools.partial(_norm_pool_kernel, tile_h=tile_h, width=W,
                                    n_rows=n_rows)
    out_spec = pl.BlockSpec((1, ho_t, wo, cblk), lambda c, t: (t, 0, 0, c))
    pooled = pl.pallas_call(
        norm_kernel,
        out_shape=jax.ShapeDtypeStruct((n_tiles, ho_t, wo, cpad), jnp.bfloat16),
        grid_spec=pltpu.PrefetchScalarGridSpec(
            num_scalar_prefetch=0,
            grid=(n_cb, n_tiles),
            in_specs=[x_spec, w_spec, vec_spec, vec_spec],
            out_specs=out_spec,
            scratch_shapes=[pltpu.VMEM((n_rows, cblk), jnp.float32),
                            pltpu.VMEM((tile_h, wo, cblk), jnp.float32)],
        ),
        compiler_params=pltpu.CompilerParams(
            dimension_semantics=("parallel", "parallel"),   # megacore-shardable
            vmem_limit_bytes=vmem_limit),
        cost_estimate=pl.CostEstimate(flops=conv_flops, transcendentals=0,
                                      bytes_accessed=n_cb * x_bytes + w_bytes
                                      + n_tiles * ho_t * wo * cpad * 2),
    )(x_halo, wmat, scale, shift)

    out_nhwc = pooled.reshape(N, H // 2, wo, cpad)[..., :Cout]
    if out_layout == "NHWC":                 # avoids the extra layout pass
        return out_nhwc.astype(jnp.float32)
    return jnp.transpose(out_nhwc, (0, 3, 1, 2)).astype(jnp.float32)


# ----------------------------------------------------------------------------
# Pure-JAX reference of the PyTorch forward (training-mode BN, avg pool 2x2).
# ----------------------------------------------------------------------------
def _reference_forward(x, weight, gamma, beta):
    y = jax.lax.conv_general_dilated(
        x, weight, window_strides=(1, 1), padding=((2, 2), (2, 2)),
        dimension_numbers=("NCHW", "OIHW", "NCHW"))
    mean = y.mean(axis=(0, 2, 3), keepdims=True)
    var = y.var(axis=(0, 2, 3), keepdims=True)   # biased, like torch training BN
    y = (y - mean) / jnp.sqrt(var + BN_EPS)
    y = y * gamma.reshape(1, -1, 1, 1) + beta.reshape(1, -1, 1, 1)
    y = jnp.maximum(y, 0.0)
    N, C, H, W = y.shape
    return y.reshape(N, C, H // 2, 2, W // 2, 2).mean(axis=(3, 5))


if __name__ == "__main__":
    N, Cin, Cout, H, W = 2, 4, 8, 16, 16

    key = jax.random.PRNGKey(0)
    k_x, k_w = jax.random.split(key)

    # Deterministic parameter init mirroring the module's __init__:
    #   conv1.weight: xavier_uniform_, no bias; bn1.weight=1, bn1.bias=0
    fan_in, fan_out = Cin * 25, Cout * 25
    bound = float(np.sqrt(6.0 / (fan_in + fan_out)))
    weight = jax.random.uniform(k_w, (Cout, Cin, 5, 5),
                                minval=-bound, maxval=bound, dtype=jnp.float32)
    gamma = jnp.ones((Cout,), jnp.float32)
    beta = jnp.zeros((Cout,), jnp.float32)

    x = jax.random.normal(k_x, (N, Cin, H, W), dtype=jnp.float32)

    out = conv_block5x5_forward(x, weight, gamma, beta)
    out = jax.block_until_ready(out)

    ref = _reference_forward(x, weight, gamma, beta)
    np.testing.assert_allclose(np.asarray(out), np.asarray(ref),
                               rtol=2.5e-2, atol=2.5e-2)

    print("KERNEL_OK")
</pallas_src>

<mosaic_0001>
module attributes {stable_mosaic.version = 11 : i64} {
  func.func @_stats_kernel(%arg0: i32, %arg1: i32, %arg2: memref<1x20x20x16xbf16, #tpu.memory_space<vmem>>, %arg3: memref<25x16x128xbf16, #tpu.memory_space<vmem>>, %arg4: memref<1x128xf32, #tpu.memory_space<vmem>>, %arg5: memref<1x128xf32, #tpu.memory_space<vmem>>, %arg6: memref<1x128xf32, #tpu.memory_space<vmem>>, %arg7: memref<1x128xf32, #tpu.memory_space<vmem>>) attributes {dimension_semantics = [#tpu.dimension_semantics<arbitrary>, #tpu.dimension_semantics<arbitrary>], iteration_bounds = array<i64: 1, 2>, scalar_prefetch = 0 : i64, scratch_operands = 0 : i64, tpu.core_type = #tpu.core_type<tc>, window_params = [{transform_indices = @transform_0, window_bounds = array<i64: 1, 20, 20, 16>}, {transform_indices = @transform_1, window_bounds = array<i64: 25, 16, 128>}, {transform_indices = @transform_2, window_bounds = array<i64: 1, 128>}, {transform_indices = @transform_3, window_bounds = array<i64: 1, 128>}, {transform_indices = @transform_4, window_bounds = array<i64: 1, 128>}, {transform_indices = @transform_5, window_bounds = array<i64: 1, 128>}]} {
    %c0_i32 = arith.constant 0 : i32
    %0 = arith.cmpi eq, %arg1, %c0_i32 : i32
    %1 = arith.extui %0 : i1 to i32
    %c0_i32_0 = arith.constant 0 : i32
    %2 = arith.cmpi ne, %1, %c0_i32_0 : i32
    scf.if %2 {
      %cst_187 = arith.constant 0.000000e+00 : f32
      %193 = vector.broadcast %cst_187 : f32 to vector<1x128xf32>
      %c0_188 = arith.constant 0 : index
      %c0_189 = arith.constant 0 : index
      %194 = vector.load %arg6[%c0_188, %c0_189] : memref<1x128xf32, #tpu.memory_space<vmem>>, vector<1x128xf32>
      tpu.vector_store %arg6[%c0_188, %c0_189], %193 {strides = array<i32>} : memref<1x128xf32, #tpu.memory_space<vmem>>, vector<1x128xf32>,
      %cst_190 = arith.constant 0.000000e+00 : f32
      %195 = vector.broadcast %cst_190 : f32 to vector<1x128xf32>
      %c0_191 = arith.constant 0 : index
      %c0_192 = arith.constant 0 : index
      %196 = vector.load %arg7[%c0_191, %c0_192] : memref<1x128xf32, #tpu.memory_space<vmem>>, vector<1x128xf32>
      tpu.vector_store %arg7[%c0_191, %c0_192], %195 {strides = array<i32>} : memref<1x128xf32, #tpu.memory_space<vmem>>, vector<1x128xf32>,
    } else {
    }
    %cst = arith.constant 0.000000e+00 : f32
    %3 = vector.broadcast %cst : f32 to vector<256x128xf32>
    %c0 = arith.constant 0 : index
    %c0_1 = arith.constant 0 : index
    %c0_2 = arith.constant 0 : index
    %c0_3 = arith.constant 0 : index
    %4 = vector.load %arg2[%c0, %c0_1, %c0_2, %c0_3] : memref<1x20x20x16xbf16, #tpu.memory_space<vmem>>, vector<1x16x16x16xbf16>
    %5 = vector.shape_cast %4 : vector<1x16x16x16xbf16> to vector<16x16x16xbf16>
    %6 = vector.shape_cast %5 : vector<16x16x16xbf16> to vector<256x16xbf16>
    %c0_4 = arith.constant 0 : index
    %c0_5 = arith.constant 0 : index
    %c0_6 = arith.constant 0 : index
    %7 = vector.load %arg3[%c0_4, %c0_5, %c0_6] : memref<25x16x128xbf16, #tpu.memory_space<vmem>>, vector<1x16x128xbf16>
    %8 = vector.shape_cast %7 : vector<1x16x128xbf16> to vector<16x128xbf16>
    %cst_7 = arith.constant dense<0.000000e+00> : vector<256x128xf32>
    %9 = tpu.matmul %6, %8, %cst_7 {dimension_numbers = #tpu.dot_dimension_numbers<[1], [0], [0], [1], [0, 0, 1, 1], [], []>} : vector<256x16xbf16>, vector<16x128xbf16>, vector<256x128xf32> -> vector<256x128xf32>
    %10 = arith.addf %3, %9 : vector<256x128xf32>
    %c0_8 = arith.constant 0 : index
    %c0_9 = arith.constant 0 : index
    %c1 = arith.constant 1 : index
    %c0_10 = arith.constant 0 : index
    %11 = vector.load %arg2[%c0_8, %c0_9, %c1, %c0_10] : memref<1x20x20x16xbf16, #tpu.memory_space<vmem>>, vector<1x16x16x16xbf16>
    %12 = vector.shape_cast %11 : vector<1x16x16x16xbf16> to vector<16x16x16xbf16>
    %13 = vector.shape_cast %12 : vector<16x16x16xbf16> to vector<256x16xbf16>
    %c1_11 = arith.constant 1 : index
    %c0_12 = arith.constant 0 : index
    %c0_13 = arith.constant 0 : index
    %14 = vector.load %arg3[%c1_11, %c0_12, %c0_13] : memref<25x16x128xbf16, #tpu.memory_space<vmem>>, vector<1x16x128xbf16>
    %15 = vector.shape_cast %14 : vector<1x16x128xbf16> to vector<16x128xbf16>
    %cst_14 = arith.constant dense<0.000000e+00> : vector<256x128xf32>
    %16 = tpu.matmul %13, %15, %cst_14 {dimension_numbers = #tpu.dot_dimension_numbers<[1], [0], [0], [1], [0, 0, 1, 1], [], []>} : vector<256x16xbf16>, vector<16x128xbf16>, vector<256x128xf32> -> vector<256x128xf32>
    %17 = arith.addf %10, %16 : vector<256x128xf32>
    %c0_15 = arith.constant 0 : index
    %c0_16 = arith.constant 0 : index
    %c2 = arith.constant 2 : index
    %c0_17 = arith.constant 0 : index
    %18 = vector.load %arg2[%c0_15, %c0_16, %c2, %c0_17] : memref<1x20x20x16xbf16, #tpu.memory_space<vmem>>, vector<1x16x16x16xbf16>
    %19 = vector.shape_cast %18 : vector<1x16x16x16xbf16> to vector<16x16x16xbf16>
    %20 = vector.shape_cast %19 : vector<16x16x16xbf16> to vector<256x16xbf16>
    %c2_18 = arith.constant 2 : index
    %c0_19 = arith.constant 0 : index
    %c0_20 = arith.constant 0 : index
    %21 = vector.load %arg3[%c2_18, %c0_19, %c0_20] : memref<25x16x128xbf16, #tpu.memory_space<vmem>>, vector<1x16x128xbf16>
    %22 = vector.shape_cast %21 : vector<1x16x128xbf16> to vector<16x128xbf16>
    %cst_21 = arith.constant dense<0.000000e+00> : vector<256x128xf32>
    %23 = tpu.matmul %20, %22, %cst_21 {dimension_numbers = #tpu.dot_dimension_numbers<[1], [0], [0], [1], [0, 0, 1, 1], [], []>} : vector<256x16xbf16>, vector<16x128xbf16>, vector<256x128xf32> -> vector<256x128xf32>
    %24 = arith.addf %17, %23 : vector<256x128xf32>
    %c0_22 = arith.constant 0 : index
    %c0_23 = arith.constant 0 : index
    %c3 = arith.constant 3 : index
    %c0_24 = arith.constant 0 : index
    %25 = vector.load %arg2[%c0_22, %c0_23, %c3, %c0_24] : memref<1x20x20x16xbf16, #tpu.memory_space<vmem>>, vector<1x16x16x16xbf16>
    %26 = vector.shape_cast %25 : vector<1x16x16x16xbf16> to vector<16x16x16xbf16>
    %27 = vector.shape_cast %26 : vector<16x16x16xbf16> to vector<256x16xbf16>
    %c3_25 = arith.constant 3 : index
    %c0_26 = arith.constant 0 : index
    %c0_27 = arith.constant 0 : index
    %28 = vector.load %arg3[%c3_25, %c0_26, %c0_27] : memref<25x16x128xbf16, #tpu.memory_space<vmem>>, vector<1x16x128xbf16>
    %29 = vector.shape_cast %28 : vector<1x16x128xbf16> to vector<16x128xbf16>
    %cst_28 = arith.constant dense<0.000000e+00> : vector<256x128xf32>
    %30 = tpu.matmul %27, %29, %cst_28 {dimension_numbers = #tpu.dot_dimension_numbers<[1], [0], [0], [1], [0, 0, 1, 1], [], []>} : vector<256x16xbf16>, vector<16x128xbf16>, vector<256x128xf32> -> vector<256x128xf32>
    %31 = arith.addf %24, %30 : vector<256x128xf32>
    %c0_29 = arith.constant 0 : index
    %c0_30 = arith.constant 0 : index
    %c4 = arith.constant 4 : index
    %c0_31 = arith.constant 0 : index
    %32 = vector.load %arg2[%c0_29, %c0_30, %c4, %c0_31] : memref<1x20x20x16xbf16, #tpu.memory_space<vmem>>, vector<1x16x16x16xbf16>
    %33 = vector.shape_cast %32 : vector<1x16x16x16xbf16> to vector<16x16x16xbf16>
    %34 = vector.shape_cast %33 : vector<16x16x16xbf16> to vector<256x16xbf16>
    %c4_32 = arith.constant 4 : index
    %c0_33 = arith.constant 0 : index
    %c0_34 = arith.constant 0 : index
    %35 = vector.load %arg3[%c4_32, %c0_33, %c0_34] : memref<25x16x128xbf16, #tpu.memory_space<vmem>>, vector<1x16x128xbf16>
    %36 = vector.shape_cast %35 : vector<1x16x128xbf16> to vector<16x128xbf16>
    %cst_35 = arith.constant dense<0.000000e+00> : vector<256x128xf32>
    %37 = tpu.matmul %34, %36, %cst_35 {dimension_numbers = #tpu.dot_dimension_numbers<[1], [0], [0], [1], [0, 0, 1, 1], [], []>} : vector<256x16xbf16>, vector<16x128xbf16>, vector<256x128xf32> -> vector<256x128xf32>
    %38 = arith.addf %31, %37 : vector<256x128xf32>
    %c0_36 = arith.constant 0 : index
    %c1_37 = arith.constant 1 : index
    %c0_38 = arith.constant 0 : index
    %c0_39 = arith.constant 0 : index
    %39 = vector.load %arg2[%c0_36, %c1_37, %c0_38, %c0_39] : memref<1x20x20x16xbf16, #tpu.memory_space<vmem>>, vector<1x16x16x16xbf16>
    %40 = vector.shape_cast %39 : vector<1x16x16x16xbf16> to vector<16x16x16xbf16>
    %41 = vector.shape_cast %40 : vector<16x16x16xbf16> to vector<256x16xbf16>
    %c5 = arith.constant 5 : index
    %c0_40 = arith.constant 0 : index
    %c0_41 = arith.constant 0 : index
    %42 = vector.load %arg3[%c5, %c0_40, %c0_41] : memref<25x16x128xbf16, #tpu.memory_space<vmem>>, vector<1x16x128xbf16>
    %43 = vector.shape_cast %42 : vector<1x16x128xbf16> to vector<16x128xbf16>
    %cst_42 = arith.constant dense<0.000000e+00> : vector<256x128xf32>
    %44 = tpu.matmul %41, %43, %cst_42 {dimension_numbers = #tpu.dot_dimension_numbers<[1], [0], [0], [1], [0, 0, 1, 1], [], []>} : vector<256x16xbf16>, vector<16x128xbf16>, vector<256x128xf32> -> vector<256x128xf32>
    %45 = arith.addf %38, %44 : vector<256x128xf32>
    %c0_43 = arith.constant 0 : index
    %c1_44 = arith.constant 1 : index
    %c1_45 = arith.constant 1 : index
    %c0_46 = arith.constant 0 : index
    %46 = vector.load %arg2[%c0_43, %c1_44, %c1_45, %c0_46] : memref<1x20x20x16xbf16, #tpu.memory_space<vmem>>, vector<1x16x16x16xbf16>
    %47 = vector.shape_cast %46 : vector<1x16x16x16xbf16> to vector<16x16x16xbf16>
    %48 = vector.shape_cast %47 : vector<16x16x16xbf16> to vector<256x16xbf16>
    %c6 = arith.constant 6 : index
    %c0_47 = arith.constant 0 : index
    %c0_48 = arith.constant 0 : index
    %49 = vector.load %arg3[%c6, %c0_47, %c0_48] : memref<25x16x128xbf16, #tpu.memory_space<vmem>>, vector<1x16x128xbf16>
    %50 = vector.shape_cast %49 : vector<1x16x128xbf16> to vector<16x128xbf16>
    %cst_49 = arith.constant dense<0.000000e+00> : vector<256x128xf32>
    %51 = tpu.matmul %48, %50, %cst_49 {dimension_numbers = #tpu.dot_dimension_numbers<[1], [0], [0], [1], [0, 0, 1, 1], [], []>} : vector<256x16xbf16>, vector<16x128xbf16>, vector<256x128xf32> -> vector<256x128xf32>
    %52 = arith.addf %45, %51 : vector<256x128xf32>
    %c0_50 = arith.constant 0 : index
    %c1_51 = arith.constant 1 : index
    %c2_52 = arith.constant 2 : index
    %c0_53 = arith.constant 0 : index
    %53 = vector.load %arg2[%c0_50, %c1_51, %c2_52, %c0_53] : memref<1x20x20x16xbf16, #tpu.memory_space<vmem>>, vector<1x16x16x16xbf16>
    %54 = vector.shape_cast %53 : vector<1x16x16x16xbf16> to vector<16x16x16xbf16>
    %55 = vector.shape_cast %54 : vector<16x16x16xbf16> to vector<256x16xbf16>
    %c7 = arith.constant 7 : index
    %c0_54 = arith.constant 0 : index
    %c0_55 = arith.constant 0 : index
    %56 = vector.load %arg3[%c7, %c0_54, %c0_55] : memref<25x16x128xbf16, #tpu.memory_space<vmem>>, vector<1x16x128xbf16>
    %57 = vector.shape_cast %56 : vector<1x16x128xbf16> to vector<16x128xbf16>
    %cst_56 = arith.constant dense<0.000000e+00> : vector<256x128xf32>
    %58 = tpu.matmul %55, %57, %cst_56 {dimension_numbers = #tpu.dot_dimension_numbers<[1], [0], [0], [1], [0, 0, 1, 1], [], []>} : vector<256x16xbf16>, vector<16x128xbf16>, vector<256x128xf32> -> vector<256x128xf32>
    %59 = arith.addf %52, %58 : vector<256x128xf32>
    %c0_57 = arith.constant 0 : index
    %c1_58 = arith.constant 1 : index
    %c3_59 = arith.constant 3 : index
    %c0_60 = arith.constant 0 : index
    %60 = vector.load %arg2[%c0_57, %c1_58, %c3_59, %c0_60] : memref<1x20x20x16xbf16, #tpu.memory_space<vmem>>, vector<1x16x16x16xbf16>
    %61 = vector.shape_cast %60 : vector<1x16x16x16xbf16> to vector<16x16x16xbf16>
    %62 = vector.shape_cast %61 : vector<16x16x16xbf16> to vector<256x16xbf16>
    %c8 = arith.constant 8 : index
    %c0_61 = arith.constant 0 : index
    %c0_62 = arith.constant 0 : index
    %63 = vector.load %arg3[%c8, %c0_61, %c0_62] : memref<25x16x128xbf16, #tpu.memory_space<vmem>>, vector<1x16x128xbf16>
    %64 = vector.shape_cast %63 : vector<1x16x128xbf16> to vector<16x128xbf16>
    %cst_63 = arith.constant dense<0.000000e+00> : vector<256x128xf32>
    %65 = tpu.matmul %62, %64, %cst_63 {dimension_numbers = #tpu.dot_dimension_numbers<[1], [0], [0], [1], [0, 0, 1, 1], [], []>} : vector<256x16xbf16>, vector<16x128xbf16>, vector<256x128xf32> -> vector<256x128xf32>
    %66 = arith.addf %59, %65 : vector<256x128xf32>
    %c0_64 = arith.constant 0 : index
    %c1_65 = arith.constant 1 : index
    %c4_66 = arith.constant 4 : index
    %c0_67 = arith.constant 0 : index
    %67 = vector.load %arg2[%c0_64, %c1_65, %c4_66, %c0_67] : memref<1x20x20x16xbf16, #tpu.memory_space<vmem>>, vector<1x16x16x16xbf16>
    %68 = vector.shape_cast %67 : vector<1x16x16x16xbf16> to vector<16x16x16xbf16>
    %69 = vector.shape_cast %68 : vector<16x16x16xbf16> to vector<256x16xbf16>
    %c9 = arith.constant 9 : index
    %c0_68 = arith.constant 0 : index
    %c0_69 = arith.constant 0 : index
    %70 = vector.load %arg3[%c9, %c0_68, %c0_69] : memref<25x16x128xbf16, #tpu.memory_space<vmem>>, vector<1x16x128xbf16>
    %71 = vector.shape_cast %70 : vector<1x16x128xbf16> to vector<16x128xbf16>
    %cst_70 = arith.constant dense<0.000000e+00> : vector<256x128xf32>
    %72 = tpu.matmul %69, %71, %cst_70 {dimension_numbers = #tpu.dot_dimension_numbers<[1], [0], [0], [1], [0, 0, 1, 1], [], []>} : vector<256x16xbf16>, vector<16x128xbf16>, vector<256x128xf32> -> vector<256x128xf32>
    %73 = arith.addf %66, %72 : vector<256x128xf32>
    %c0_71 = arith.constant 0 : index
    %c2_72 = arith.constant 2 : index
    %c0_73 = arith.constant 0 : index
    %c0_74 = arith.constant 0 : index
    %74 = vector.load %arg2[%c0_71, %c2_72, %c0_73, %c0_74] : memref<1x20x20x16xbf16, #tpu.memory_space<vmem>>, vector<1x16x16x16xbf16>
    %75 = vector.shape_cast %74 : vector<1x16x16x16xbf16> to vector<16x16x16xbf16>
    %76 = vector.shape_cast %75 : vector<16x16x16xbf16> to vector<256x16xbf16>
    %c10 = arith.constant 10 : index
    %c0_75 = arith.constant 0 : index
    %c0_76 = arith.constant 0 : index
    %77 = vector.load %arg3[%c10, %c0_75, %c0_76] : memref<25x16x128xbf16, #tpu.memory_space<vmem>>, vector<1x16x128xbf16>
    %78 = vector.shape_cast %77 : vector<1x16x128xbf16> to vector<16x128xbf16>
    %cst_77 = arith.constant dense<0.000000e+00> : vector<256x128xf32>
    %79 = tpu.matmul %76, %78, %cst_77 {dimension_numbers = #tpu.dot_dimension_numbers<[1], [0], [0], [1], [0, 0, 1, 1], [], []>} : vector<256x16xbf16>, vector<16x128xbf16>, vector<256x128xf32> -> vector<256x128xf32>
    %80 = arith.addf %73, %79 : vector<256x128xf32>
    %c0_78 = arith.constant 0 : index
    %c2_79 = arith.constant 2 : index
    %c1_80 = arith.constant 1 : index
    %c0_81 = arith.constant 0 : index
    %81 = vector.load %arg2[%c0_78, %c2_79, %c1_80, %c0_81] : memref<1x20x20x16xbf16, #tpu.memory_space<vmem>>, vector<1x16x16x16xbf16>
    %82 = vector.shape_cast %81 : vector<1x16x16x16xbf16> to vector<16x16x16xbf16>
    %83 = vector.shape_cast %82 : vector<16x16x16xbf16> to vector<256x16xbf16>
    %c11 = arith.constant 11 : index
    %c0_82 = arith.constant 0 : index
    %c0_83 = arith.constant 0 : index
    %84 = vector.load %arg3[%c11, %c0_82, %c0_83] : memref<25x16x128xbf16, #tpu.memory_space<vmem>>, vector<1x16x128xbf16>
    %85 = vector.shape_cast %84 : vector<1x16x128xbf16> to vector<16x128xbf16>
    %cst_84 = arith.constant dense<0.000000e+00> : vector<256x128xf32>
    %86 = tpu.matmul %83, %85, %cst_84 {dimension_numbers = #tpu.dot_dimension_numbers<[1], [0], [0], [1], [0, 0, 1, 1], [], []>} : vector<256x16xbf16>, vector<16x128xbf16>, vector<256x128xf32> -> vector<256x128xf32>
    %87 = arith.addf %80, %86 : vector<256x128xf32>
    %c0_85 = arith.constant 0 : index
    %c2_86 = arith.constant 2 : index
    %c2_87 = arith.constant 2 : index
    %c0_88 = arith.constant 0 : index
    %88 = vector.load %arg2[%c0_85, %c2_86, %c2_87, %c0_88] : memref<1x20x20x16xbf16, #tpu.memory_space<vmem>>, vector<1x16x16x16xbf16>
    %89 = vector.shape_cast %88 : vector<1x16x16x16xbf16> to vector<16x16x16xbf16>
    %90 = vector.shape_cast %89 : vector<16x16x16xbf16> to vector<256x16xbf16>
    %c12 = arith.constant 12 : index
    %c0_89 = arith.constant 0 : index
    %c0_90 = arith.constant 0 : index
    %91 = vector.load %arg3[%c12, %c0_89, %c0_90] : memref<25x16x128xbf16, #tpu.memory_space<vmem>>, vector<1x16x128xbf16>
    %92 = vector.shape_cast %91 : vector<1x16x128xbf16> to vector<16x128xbf16>
    %cst_91 = arith.constant dense<0.000000e+00> : vector<256x128xf32>
    %93 = tpu.matmul %90, %92, %cst_91 {dimension_numbers = #tpu.dot_dimension_numbers<[1], [0], [0], [1], [0, 0, 1, 1], [], []>} : vector<256x16xbf16>, vector<16x128xbf16>, vector<256x128xf32> -> vector<256x128xf32>
    %94 = arith.addf %87, %93 : vector<256x128xf32>
    %c0_92 = arith.constant 0 : index
    %c2_93 = arith.constant 2 : index
    %c3_94 = arith.constant 3 : index
    %c0_95 = arith.constant 0 : index
    %95 = vector.load %arg2[%c0_92, %c2_93, %c3_94, %c0_95] : memref<1x20x20x16xbf16, #tpu.memory_space<vmem>>, vector<1x16x16x16xbf16>
    %96 = vector.shape_cast %95 : vector<1x16x16x16xbf16> to vector<16x16x16xbf16>
    %97 = vector.shape_cast %96 : vector<16x16x16xbf16> to vector<256x16xbf16>
    %c13 = arith.constant 13 : index
    %c0_96 = arith.constant 0 : index
    %c0_97 = arith.constant 0 : index
    %98 = vector.load %arg3[%c13, %c0_96, %c0_97] : memref<25x16x128xbf16, #tpu.memory_space<vmem>>, vector<1x16x128xbf16>
    %99 = vector.shape_cast %98 : vector<1x16x128xbf16> to vector<16x128xbf16>
    %cst_98 = arith.constant dense<0.000000e+00> : vector<256x128xf32>
    %100 = tpu.matmul %97, %99, %cst_98 {dimension_numbers = #tpu.dot_dimension_numbers<[1], [0], [0], [1], [0, 0, 1, 1], [], []>} : vector<256x16xbf16>, vector<16x128xbf16>, vector<256x128xf32> -> vector<256x128xf32>
    %101 = arith.addf %94, %100 : vector<256x128xf32>
    %c0_99 = arith.constant 0 : index
    %c2_100 = arith.constant 2 : index
    %c4_101 = arith.constant 4 : index
    %c0_102 = arith.constant 0 : index
    %102 = vector.load %arg2[%c0_99, %c2_100, %c4_101, %c0_102] : memref<1x20x20x16xbf16, #tpu.memory_space<vmem>>, vector<1x16x16x16xbf16>
    %103 = vector.shape_cast %102 : vector<1x16x16x16xbf16> to vector<16x16x16xbf16>
    %104 = vector.shape_cast %103 : vector<16x16x16xbf16> to vector<256x16xbf16>
    %c14 = arith.constant 14 : index
    %c0_103 = arith.constant 0 : index
    %c0_104 = arith.constant 0 : index
    %105 = vector.load %arg3[%c14, %c0_103, %c0_104] : memref<25x16x128xbf16, #tpu.memory_space<vmem>>, vector<1x16x128xbf16>
    %106 = vector.shape_cast %105 : vector<1x16x128xbf16> to vector<16x128xbf16>
    %cst_105 = arith.constant dense<0.000000e+00> : vector<256x128xf32>
    %107 = tpu.matmul %104, %106, %cst_105 {dimension_numbers = #tpu.dot_dimension_numbers<[1], [0], [0], [1], [0, 0, 1, 1], [], []>} : vector<256x16xbf16>, vector<16x128xbf16>, vector<256x128xf32> -> vector<256x128xf32>
    %108 = arith.addf %101, %107 : vector<256x128xf32>
    %c0_106 = arith.constant 0 : index
    %c3_107 = arith.constant 3 : index
    %c0_108 = arith.constant 0 : index
    %c0_109 = arith.constant 0 : index
    %109 = vector.load %arg2[%c0_106, %c3_107, %c0_108, %c0_109] : memref<1x20x20x16xbf16, #tpu.memory_space<vmem>>, vector<1x16x16x16xbf16>
    %110 = vector.shape_cast %109 : vector<1x16x16x16xbf16> to vector<16x16x16xbf16>
    %111 = vector.shape_cast %110 : vector<16x16x16xbf16> to vector<256x16xbf16>
    %c15 = arith.constant 15 : index
    %c0_110 = arith.constant 0 : index
    %c0_111 = arith.constant 0 : index
    %112 = vector.load %arg3[%c15, %c0_110, %c0_111] : memref<25x16x128xbf16, #tpu.memory_space<vmem>>, vector<1x16x128xbf16>
    %113 = vector.shape_cast %112 : vector<1x16x128xbf16> to vector<16x128xbf16>
    %cst_112 = arith.constant dense<0.000000e+00> : vector<256x128xf32>
    %114 = tpu.matmul %111, %113, %cst_112 {dimension_numbers = #tpu.dot_dimension_numbers<[1], [0], [0], [1], [0, 0, 1, 1], [], []>} : vector<256x16xbf16>, vector<16x128xbf16>, vector<256x128xf32> -> vector<256x128xf32>
    %115 = arith.addf %108, %114 : vector<256x128xf32>
    %c0_113 = arith.constant 0 : index
    %c3_114 = arith.constant 3 : index
    %c1_115 = arith.constant 1 : index
    %c0_116 = arith.constant 0 : index
    %116 = vector.load %arg2[%c0_113, %c3_114, %c1_115, %c0_116] : memref<1x20x20x16xbf16, #tpu.memory_space<vmem>>, vector<1x16x16x16xbf16>
    %117 = vector.shape_cast %116 : vector<1x16x16x16xbf16> to vector<16x16x16xbf16>
    %118 = vector.shape_cast %117 : vector<16x16x16xbf16> to vector<256x16xbf16>
    %c16 = arith.constant 16 : index
    %c0_117 = arith.constant 0 : index
    %c0_118 = arith.constant 0 : index
    %119 = vector.load %arg3[%c16, %c0_117, %c0_118] : memref<25x16x128xbf16, #tpu.memory_space<vmem>>, vector<1x16x128xbf16>
    %120 = vector.shape_cast %119 : vector<1x16x128xbf16> to vector<16x128xbf16>
    %cst_119 = arith.constant dense<0.000000e+00> : vector<256x128xf32>
    %121 = tpu.matmul %118, %120, %cst_119 {dimension_numbers = #tpu.dot_dimension_numbers<[1], [0], [0], [1], [0, 0, 1, 1], [], []>} : vector<256x16xbf16>, vector<16x128xbf16>, vector<256x128xf32> -> vector<256x128xf32>
    %122 = arith.addf %115, %121 : vector<256x128xf32>
    %c0_120 = arith.constant 0 : index
    %c3_121 = arith.constant 3 : index
    %c2_122 = arith.constant 2 : index
    %c0_123 = arith.constant 0 : index
    %123 = vector.load %arg2[%c0_120, %c3_121, %c2_122, %c0_123] : memref<1x20x20x16xbf16, #tpu.memory_space<vmem>>, vector<1x16x16x16xbf16>
    %124 = vector.shape_cast %123 : vector<1x16x16x16xbf16> to vector<16x16x16xbf16>
    %125 = vector.shape_cast %124 : vector<16x16x16xbf16> to vector<256x16xbf16>
    %c17 = arith.constant 17 : index
    %c0_124 = arith.constant 0 : index
    %c0_125 = arith.constant 0 : index
    %126 = vector.load %arg3[%c17, %c0_124, %c0_125] : memref<25x16x128xbf16, #tpu.memory_space<vmem>>, vector<1x16x128xbf16>
    %127 = vector.shape_cast %126 : vector<1x16x128xbf16> to vector<16x128xbf16>
    %cst_126 = arith.constant dense<0.000000e+00> : vector<256x128xf32>
    %128 = tpu.matmul %125, %127, %cst_126 {dimension_numbers = #tpu.dot_dimension_numbers<[1], [0], [0], [1], [0, 0, 1, 1], [], []>} : vector<256x16xbf16>, vector<16x128xbf16>, vector<256x128xf32> -> vector<256x128xf32>
    %129 = arith.addf %122, %128 : vector<256x128xf32>
    %c0_127 = arith.constant 0 : index
    %c3_128 = arith.constant 3 : index
    %c3_129 = arith.constant 3 : index
    %c0_130 = arith.constant 0 : index
    %130 = vector.load %arg2[%c0_127, %c3_128, %c3_129, %c0_130] : memref<1x20x20x16xbf16, #tpu.memory_space<vmem>>, vector<1x16x16x16xbf16>
    %131 = vector.shape_cast %130 : vector<1x16x16x16xbf16> to vector<16x16x16xbf16>
    %132 = vector.shape_cast %131 : vector<16x16x16xbf16> to vector<256x16xbf16>
    %c18 = arith.constant 18 : index
    %c0_131 = arith.constant 0 : index
    %c0_132 = arith.constant 0 : index
    %133 = vector.load %arg3[%c18, %c0_131, %c0_132] : memref<25x16x128xbf16, #tpu.memory_space<vmem>>, vector<1x16x128xbf16>
    %134 = vector.shape_cast %133 : vector<1x16x128xbf16> to vector<16x128xbf16>
    %cst_133 = arith.constant dense<0.000000e+00> : vector<256x128xf32>
    %135 = tpu.matmul %132, %134, %cst_133 {dimension_numbers = #tpu.dot_dimension_numbers<[1], [0], [0], [1], [0, 0, 1, 1], [], []>} : vector<256x16xbf16>, vector<16x128xbf16>, vector<256x128xf32> -> vector<256x128xf32>
    %136 = arith.addf %129, %135 : vector<256x128xf32>
    %c0_134 = arith.constant 0 : index
    %c3_135 = arith.constant 3 : index
    %c4_136 = arith.constant 4 : index
    %c0_137 = arith.constant 0 : index
    %137 = vector.load %arg2[%c0_134, %c3_135, %c4_136, %c0_137] : memref<1x20x20x16xbf16, #tpu.memory_space<vmem>>, vector<1x16x16x16xbf16>
    %138 = vector.shape_cast %137 : vector<1x16x16x16xbf16> to vector<16x16x16xbf16>
    %139 = vector.shape_cast %138 : vector<16x16x16xbf16> to vector<256x16xbf16>
    %c19 = arith.constant 19 : index
    %c0_138 = arith.constant 0 : index
    %c0_139 = arith.constant 0 : index
    %140 = vector.load %arg3[%c19, %c0_138, %c0_139] : memref<25x16x128xbf16, #tpu.memory_space<vmem>>, vector<1x16x128xbf16>
    %141 = vector.shape_cast %140 : vector<1x16x128xbf16> to vector<16x128xbf16>
    %cst_140 = arith.constant dense<0.000000e+00> : vector<256x128xf32>
    %142 = tpu.matmul %139, %141, %cst_140 {dimension_numbers = #tpu.dot_dimension_numbers<[1], [0], [0], [1], [0, 0, 1, 1], [], []>} : vector<256x16xbf16>, vector<16x128xbf16>, vector<256x128xf32> -> vector<256x128xf32>
    %143 = arith.addf %136, %142 : vector<256x128xf32>
    %c0_141 = arith.constant 0 : index
    %c4_142 = arith.constant 4 : index
    %c0_143 = arith.constant 0 : index
    %c0_144 = arith.constant 0 : index
    %144 = vector.load %arg2[%c0_141, %c4_142, %c0_143, %c0_144] : memref<1x20x20x16xbf16, #tpu.memory_space<vmem>>, vector<1x16x16x16xbf16>
    %145 = vector.shape_cast %144 : vector<1x16x16x16xbf16> to vector<16x16x16xbf16>
    %146 = vector.shape_cast %145 : vector<16x16x16xbf16> to vector<256x16xbf16>
    %c20 = arith.constant 20 : index
    %c0_145 = arith.constant 0 : index
    %c0_146 = arith.constant 0 : index
    %147 = vector.load %arg3[%c20, %c0_145, %c0_146] : memref<25x16x128xbf16, #tpu.memory_space<vmem>>, vector<1x16x128xbf16>
    %148 = vector.shape_cast %147 : vector<1x16x128xbf16> to vector<16x128xbf16>
    %cst_147 = arith.constant dense<0.000000e+00> : vector<256x128xf32>
    %149 = tpu.matmul %146, %148, %cst_147 {dimension_numbers = #tpu.dot_dimension_numbers<[1], [0], [0], [1], [0, 0, 1, 1], [], []>} : vector<256x16xbf16>, vector<16x128xbf16>, vector<256x128xf32> -> vector<256x128xf32>
    %150 = arith.addf %143, %149 : vector<256x128xf32>
    %c0_148 = arith.constant 0 : index
    %c4_149 = arith.constant 4 : index
    %c1_150 = arith.constant 1 : index
    %c0_151 = arith.constant 0 : index
    %151 = vector.load %arg2[%c0_148, %c4_149, %c1_150, %c0_151] : memref<1x20x20x16xbf16, #tpu.memory_space<vmem>>, vector<1x16x16x16xbf16>
    %152 = vector.shape_cast %151 : vector<1x16x16x16xbf16> to vector<16x16x16xbf16>
    %153 = vector.shape_cast %152 : vector<16x16x16xbf16> to vector<256x16xbf16>
    %c21 = arith.constant 21 : index
    %c0_152 = arith.constant 0 : index
    %c0_153 = arith.constant 0 : index
    %154 = vector.load %arg3[%c21, %c0_152, %c0_153] : memref<25x16x128xbf16, #tpu.memory_space<vmem>>, vector<1x16x128xbf16>
    %155 = vector.shape_cast %154 : vector<1x16x128xbf16> to vector<16x128xbf16>
    %cst_154 = arith.constant dense<0.000000e+00> : vector<256x128xf32>
    %156 = tpu.matmul %153, %155, %cst_154 {dimension_numbers = #tpu.dot_dimension_numbers<[1], [0], [0], [1], [0, 0, 1, 1], [], []>} : vector<256x16xbf16>, vector<16x128xbf16>, vector<256x128xf32> -> vector<256x128xf32>
    %157 = arith.addf %150, %156 : vector<256x128xf32>
    %c0_155 = arith.constant 0 : index
    %c4_156 = arith.constant 4 : index
    %c2_157 = arith.constant 2 : index
    %c0_158 = arith.constant 0 : index
    %158 = vector.load %arg2[%c0_155, %c4_156, %c2_157, %c0_158] : memref<1x20x20x16xbf16, #tpu.memory_space<vmem>>, vector<1x16x16x16xbf16>
    %159 = vector.shape_cast %158 : vector<1x16x16x16xbf16> to vector<16x16x16xbf16>
    %160 = vector.shape_cast %159 : vector<16x16x16xbf16> to vector<256x16xbf16>
    %c22 = arith.constant 22 : index
    %c0_159 = arith.constant 0 : index
    %c0_160 = arith.constant 0 : index
    %161 = vector.load %arg3[%c22, %c0_159, %c0_160] : memref<25x16x128xbf16, #tpu.memory_space<vmem>>, vector<1x16x128xbf16>
    %162 = vector.shape_cast %161 : vector<1x16x128xbf16> to vector<16x128xbf16>
    %cst_161 = arith.constant dense<0.000000e+00> : vector<256x128xf32>
    %163 = tpu.matmul %160, %162, %cst_161 {dimension_numbers = #tpu.dot_dimension_numbers<[1], [0], [0], [1], [0, 0, 1, 1], [], []>} : vector<256x16xbf16>, vector<16x128xbf16>, vector<256x128xf32> -> vector<256x128xf32>
    %164 = arith.addf %157, %163 : vector<256x128xf32>
    %c0_162 = arith.constant 0 : index
    %c4_163 = arith.constant 4 : index
    %c3_164 = arith.constant 3 : index
    %c0_165 = arith.constant 0 : index
    %165 = vector.load %arg2[%c0_162, %c4_163, %c3_164, %c0_165] : memref<1x20x20x16xbf16, #tpu.memory_space<vmem>>, vector<1x16x16x16xbf16>
    %166 = vector.shape_cast %165 : vector<1x16x16x16xbf16> to vector<16x16x16xbf16>
    %167 = vector.shape_cast %166 : vector<16x16x16xbf16> to vector<256x16xbf16>
    %c23 = arith.constant 23 : index
    %c0_166 = arith.constant 0 : index
    %c0_167 = arith.constant 0 : index
    %168 = vector.load %arg3[%c23, %c0_166, %c0_167] : memref<25x16x128xbf16, #tpu.memory_space<vmem>>, vector<1x16x128xbf16>
    %169 = vector.shape_cast %168 : vector<1x16x128xbf16> to vector<16x128xbf16>
    %cst_168 = arith.constant dense<0.000000e+00> : vector<256x128xf32>
    %170 = tpu.matmul %167, %169, %cst_168 {dimension_numbers = #tpu.dot_dimension_numbers<[1], [0], [0], [1], [0, 0, 1, 1], [], []>} : vector<256x16xbf16>, vector<16x128xbf16>, vector<256x128xf32> -> vector<256x128xf32>
    %171 = arith.addf %164, %170 : vector<256x128xf32>
    %c0_169 = arith.constant 0 : index
    %c4_170 = arith.constant 4 : index
    %c4_171 = arith.constant 4 : index
    %c0_172 = arith.constant 0 : index
    %172 = vector.load %arg2[%c0_169, %c4_170, %c4_171, %c0_172] : memref<1x20x20x16xbf16, #tpu.memory_space<vmem>>, vector<1x16x16x16xbf16>
    %173 = vector.shape_cast %172 : vector<1x16x16x16xbf16> to vector<16x16x16xbf16>
    %174 = vector.shape_cast %173 : vector<16x16x16xbf16> to vector<256x16xbf16>
    %c24 = arith.constant 24 : index
    %c0_173 = arith.constant 0 : index
    %c0_174 = arith.constant 0 : index
    %175 = vector.load %arg3[%c24, %c0_173, %c0_174] : memref<25x16x128xbf16, #tpu.memory_space<vmem>>, vector<1x16x128xbf16>
    %176 = vector.shape_cast %175 : vector<1x16x128xbf16> to vector<16x128xbf16>
    %cst_175 = arith.constant dense<0.000000e+00> : vector<256x128xf32>
    %177 = tpu.matmul %174, %176, %cst_175 {dimension_numbers = #tpu.dot_dimension_numbers<[1], [0], [0], [1], [0, 0, 1, 1], [], []>} : vector<256x16xbf16>, vector<16x128xbf16>, vector<256x128xf32> -> vector<256x128xf32>
    %178 = arith.addf %171, %177 : vector<256x128xf32>
    %c0_176 = arith.constant 0 : index
    %c0_177 = arith.constant 0 : index
    %179 = vector.load %arg6[%c0_176, %c0_177] : memref<1x128xf32, #tpu.memory_space<vmem>>, vector<1x128xf32>
    %cst_178 = arith.constant dense<0.000000e+00> : vector<128xf32>
    %180 = vector.multi_reduction <add>, %178, %cst_178 [0] : vector<256x128xf32> to vector<128xf32>
    %181 = vector.shape_cast %180 : vector<128xf32> to vector<1x128xf32>
    %182 = arith.addf %179, %181 : vector<1x128xf32>
    %c0_179 = arith.constant 0 : index
    %c0_180 = arith.constant 0 : index
    %183 = vector.load %arg6[%c0_179, %c0_180] : memref<1x128xf32, #tpu.memory_space<vmem>>, vector<1x128xf32>
    tpu.vector_store %arg6[%c0_179, %c0_180], %182 {strides = array<i32>} : memref<1x128xf32, #tpu.memory_space<vmem>>, vector<1x128xf32>,
    %c0_181 = arith.constant 0 : index
    %c0_182 = arith.constant 0 : index
    %184 = vector.load %arg7[%c0_181, %c0_182] : memref<1x128xf32, #tpu.memory_space<vmem>>, vector<1x128xf32>
    %185 = arith.mulf %178, %178 : vector<256x128xf32>
    %cst_183 = arith.constant dense<0.000000e+00> : vector<128xf32>
    %186 = vector.multi_reduction <add>, %185, %cst_183 [0] : vector<256x128xf32> to vector<128xf32>
    %187 = vector.shape_cast %186 : vector<128xf32> to vector<1x128xf32>
    %188 = arith.addf %184, %187 : vector<1x128xf32>
    %c0_184 = arith.constant 0 : index
    %c0_185 = arith.constant 0 : index
    %189 = vector.load %arg7[%c0_184, %c0_185] : memref<1x128xf32, #tpu.memory_space<vmem>>, vector<1x128xf32>
    tpu.vector_store %arg7[%c0_184, %c0_185], %188 {strides = array<i32>} : memref<1x128xf32, #tpu.memory_space<vmem>>, vector<1x128xf32>,
    %c1_i32 = arith.constant 1 : i32
    %190 = arith.cmpi eq, %arg1, %c1_i32 : i32
    %191 = arith.extui %190 : i1 to i32
    %c0_i32_186 = arith.constant 0 : i32
    %192 = arith.cmpi ne, %191, %c0_i32_186 : i32
    scf.if %192 {
      %c0_187 = arith.constant 0 : index
      %c0_188 = arith.constant 0 : index
      %193 = vector.load %arg6[%c0_187, %c0_188] : memref<1x128xf32, #tpu.memory_space<vmem>>, vector<1x128xf32>
      %cst_189 = arith.constant 0.001953125 : f32
      %194 = vector.broadcast %cst_189 : f32 to vector<1x128xf32>
      %195 = arith.mulf %193, %194 : vector<1x128xf32>
      %c0_190 = arith.constant 0 : index
      %c0_191 = arith.constant 0 : index
      %196 = vector.load %arg7[%c0_190, %c0_191] : memref<1x128xf32, #tpu.memory_space<vmem>>, vector<1x128xf32>
      %cst_192 = arith.constant 0.001953125 : f32
      %197 = vector.broadcast %cst_192 : f32 to vector<1x128xf32>
      %198 = arith.mulf %196, %197 : vector<1x128xf32>
      %199 = arith.mulf %195, %195 : vector<1x128xf32>
      %200 = arith.subf %198, %199 : vector<1x128xf32>
      %cst_193 = arith.constant 0.000000e+00 : f32
      %201 = vector.broadcast %cst_193 : f32 to vector<1x128xf32>
      %202 = arith.maximumf %200, %201 : vector<1x128xf32>
      %cst_194 = arith.constant 9.99999974E-6 : f32
      %203 = vector.broadcast %cst_194 : f32 to vector<1x128xf32>
      %204 = arith.addf %202, %203 : vector<1x128xf32>
      %205 = math.rsqrt %204 : vector<1x128xf32>
      %c0_195 = arith.constant 0 : index
      %c0_196 = arith.constant 0 : index
      %206 = vector.load %arg4[%c0_195, %c0_196] : memref<1x128xf32, #tpu.memory_space<vmem>>, vector<1x128xf32>
      %207 = arith.mulf %206, %205 : vector<1x128xf32>
      %c0_197 = arith.constant 0 : index
      %c0_198 = arith.constant 0 : index
      %208 = vector.load %arg6[%c0_197, %c0_198] : memref<1x128xf32, #tpu.memory_space<vmem>>, vector<1x128xf32>
      tpu.vector_store %arg6[%c0_197, %c0_198], %207 {strides = array<i32>} : memref<1x128xf32, #tpu.memory_space<vmem>>, vector<1x128xf32>,
      %c0_199 = arith.constant 0 : index
      %c0_200 = arith.constant 0 : index
      %209 = vector.load %arg5[%c0_199, %c0_200] : memref<1x128xf32, #tpu.memory_space<vmem>>, vector<1x128xf32>
      %210 = arith.mulf %195, %207 : vector<1x128xf32>
      %211 = arith.subf %209, %210 : vector<1x128xf32>
      %c0_201 = arith.constant 0 : index
      %c0_202 = arith.constant 0 : index
      %212 = vector.load %arg7[%c0_201, %c0_202] : memref<1x128xf32, #tpu.memory_space<vmem>>, vector<1x128xf32>
      tpu.vector_store %arg7[%c0_201, %c0_202], %211 {strides = array<i32>} : memref<1x128xf32, #tpu.memory_space<vmem>>, vector<1x128xf32>,
    } else {
    }
    return
  }
  func.func @transform_0(%arg0: i32, %arg1: i32) -> (i32, i32, i32, i32) {
    %c0_i32 = arith.constant 0 : i32
    %c0_i32_0 = arith.constant 0 : i32
    %c0_i32_1 = arith.constant 0 : i32
    %c0_i32_2 = arith.constant 0 : i32
    return %arg1, %c0_i32, %c0_i32_0, %c0_i32_1 : i32, i32, i32, i32
  }
  func.func @transform_1(%arg0: i32, %arg1: i32) -> (i32, i32, i32) {
    %c0_i32 = arith.constant 0 : i32
    %c0_i32_0 = arith.constant 0 : i32
    %c0_i32_1 = arith.constant 0 : i32
    return %c0_i32, %c0_i32_0, %arg0 : i32, i32, i32
  }
  func.func @transform_2(%arg0: i32, %arg1: i32) -> (i32, i32) {
    %c0_i32 = arith.constant 0 : i32
    %c0_i32_0 = arith.constant 0 : i32
    return %c0_i32, %arg0 : i32, i32
  }
  func.func @transform_3(%arg0: i32, %arg1: i32) -> (i32, i32) {
    %c0_i32 = arith.constant 0 : i32
    %c0_i32_0 = arith.constant 0 : i32
    return %c0_i32, %arg0 : i32, i32
  }
  func.func @transform_4(%arg0: i32, %arg1: i32) -> (i32, i32) {
    %c0_i32 = arith.constant 0 : i32
    %c0_i32_0 = arith.constant 0 : i32
    return %c0_i32, %arg0 : i32, i32
  }
  func.func @transform_5(%arg0: i32, %arg1: i32) -> (i32, i32) {
    %c0_i32 = arith.constant 0 : i32
    %c0_i32_0 = arith.constant 0 : i32
    return %c0_i32, %arg0 : i32, i32
  }
}

</mosaic_0001>

<llo_original>
// kernel: tpu_custom_call.1
$region0: #{tpu_custom_call.1}
  #allocation0 [shape = 'u32[]', space=smem, size = 0x4, offset = 0x4, fixed_abs, tag = 'smem constant byte address 0x4 - core index']
  #allocation1 [shape = 'u32[72,128]{1,0:T(1,128)}', space=vmem, size = 0x9000, scoped, tag = 'internal scratch']
  %s0 = inlined_call_operand.vmem [shape: bf16[2,20,20,16], index: 0, kind: input, shape index: {}]
  %s1 = inlined_call_operand.vmem [shape: bf16[25,16,128], index: 1, kind: input, shape index: {}]
  %s2 = inlined_call_operand.vmem [shape: f32[1,128], index: 2, kind: input, shape index: {}]
  %s3 = inlined_call_operand.vmem [shape: f32[1,128], index: 3, kind: input, shape index: {}]
  %s4 = inlined_call_operand.hbm [shape: f32[1,128], index: 4, kind: output, shape index: {0}]
  %s5 = inlined_call_operand.hbm [shape: f32[1,128], index: 5, kind: output, shape index: {1}]
  %6 = xla_tuple %s4, %s5
  %s7 = sld [smem:[#allocation0]]
  $region65: #{tpu_custom_call.1} parent=0
    _
  %s9 = ssub.s32 1, %s7
  %s10 = scalar_select 0, %s9, %s7
  $region1: #{tpu_custom_call.1} parent=0
    #allocation2 [shape = 'u8[512]{0}', space=vmem, size = 0x400, scoped, tag = 'output window, operand 0, single buffered']
    #allocation3 [shape = 's32[2]{0}', space=sflag, size = 0x8, scoped, tag = 'scoped memory for tpu_custom_call.1']
    #allocation4 [shape = 'u8[512]{0}', space=vmem, size = 0x400, scoped, tag = 'output window, operand 1, single buffered']
    #allocation5 [shape = 's32[1]{0}', space=sflag, size = 0x4, scoped, tag = 'scoped memory for tpu_custom_call.1']
    %11 = vsyncpa [#allocation3], 0
    %12 = vsyncpa [#allocation5], 0
    loop: start=0, step=1, limit=4
    $region2: #{tpu_custom_call.1} parent=1 // loop_pre_header
      _
    $region3: #{tpu_custom_call.1} parent=1 // loop_header
      %s14 = sphi 0, %s18
      %p15 = scmp.ge.s32.totalorder %s14, 4
      %s21 = sphi 0, %s33
      %s22 = sphi 0, %s29
      %s23 = sphi 0, %s21
      %s24 = sphi 0, %s22
      %s25 = sphi 0, %s23
      %s26 = sphi 0, %s24
      %s36 = sphi 0, %s38
      %s39 = sphi 0, %s36
      %s40 = sphi 0, %s39
      %s56 = sphi 0, %s40
      %s62 = sphi 0, %s64
      %s65 = sphi 0, %s62
      %s66 = sphi 0, %s65
      %s82 = sphi 0, %s66
      %s88 = sphi 0, %s90
      %s91 = sphi 0, %s88
      %s92 = sphi 0, %s91
      %s108 = sphi 0, %s92
      %s114 = sphi 0, %s116
      %s117 = sphi 0, %s114
      %s118 = sphi 0, %s117
      %s134 = sphi 0, %s118
      %s140 = sphi 0, %s142
      %s143 = sphi 0, %s140
      %s144 = sphi 0, %s143
      %s160 = sphi 0, %s144
      %s166 = sphi 0, %s168
      %s169 = sphi 0, %s166
      %s170 = sphi 0, %s169
      %s186 = sphi 0, %s170
    $region4: #{tpu_custom_call.1} parent=1 // loop_header_branch
      %17 = sbr.rel (%p15) target = $region8
    $region5: #{tpu_custom_call.1} parent=1 // loop_body
      %s19 = ssub.s32 %s14, 1
      %s20 = ssub.s32 %s14, 2
      %s27 = sadd.s32 1, %s22
      %p28 = scmp.ge.s32.totalorder %s27, 2
      %s29 = scalar_select %p28, 0, %s27
      %s30 = sadd.s32 1, %s21
      %s31 = scalar_select %p28, %s30, %s21
      %p32 = scmp.ge.s32.totalorder %s31, 1
      %s33 = scalar_select %p32, 0, %s31
      %s34 = ssub.s32 %s22, %s29
      %p35 = scmp.eq.s32.totalorder %s34, 0
      %s37 = sadd.s32 %s36, 1
      %s38 = scalar_select %p35, %s36, %s37
      %p41 = pneg %p35
      %p42 = scmp.eq.s32.totalorder %s14, 1
      %p43 = por %p41, %p42
      %p44 = scmp.ne.s32.totalorder %s36, %s39
      %p45 = scmp.eq.s32.totalorder %s14, 0
      %p46 = por %p44, %p45
      %p47 = scmp.ne.s32.totalorder %s36, %s39
      %p48 = scmp.eq.s32.totalorder %s19, 1
      %p49 = por %p47, %p48
      %p50 = scmp.ne.s32.totalorder %s39, %s40
      %p51 = scmp.eq.s32.totalorder %s19, 0
      %p52 = por %p50, %p51
      %p53 = scmp.ne.s32.totalorder %s39, %s40
      %p54 = scmp.eq.s32.totalorder %s20, 1
      %p55 = por %p53, %p54
      %p57 = scmp.ne.s32.totalorder %s40, %s56
      %p58 = scmp.eq.s32.totalorder %s20, 0
      %p59 = por %p57, %p58
      %s60 = ssub.s32 %s21, %s33
      %p61 = scmp.eq.s32.totalorder %s60, 0
      %s63 = sadd.s32 %s62, 1
      %s64 = scalar_select %p61, %s62, %s63
      %p67 = pneg %p61
      %p68 = scmp.eq.s32.totalorder %s14, 1
      %p69 = por %p67, %p68
      %p70 = scmp.ne.s32.totalorder %s62, %s65
      %p71 = scmp.eq.s32.totalorder %s14, 0
      %p72 = por %p70, %p71
      %p73 = scmp.ne.s32.totalorder %s62, %s65
      %p74 = scmp.eq.s32.totalorder %s19, 1
      %p75 = por %p73, %p74
      %p76 = scmp.ne.s32.totalorder %s65, %s66
      %p77 = scmp.eq.s32.totalorder %s19, 0
      %p78 = por %p76, %p77
      %p79 = scmp.ne.s32.totalorder %s65, %s66
      %p80 = scmp.eq.s32.totalorder %s20, 1
      %p81 = por %p79, %p80
      %p83 = scmp.ne.s32.totalorder %s66, %s82
      %p84 = scmp.eq.s32.totalorder %s20, 0
      %p85 = por %p83, %p84
      %s86 = ssub.s32 %s21, %s33
      %p87 = scmp.eq.s32.totalorder %s86, 0
      %s89 = sadd.s32 %s88, 1
      %s90 = scalar_select %p87, %s88, %s89
      %p93 = pneg %p87
      %p94 = scmp.eq.s32.totalorder %s14, 1
      %p95 = por %p93, %p94
      %p96 = scmp.ne.s32.totalorder %s88, %s91
      %p97 = scmp.eq.s32.totalorder %s14, 0
      %p98 = por %p96, %p97
      %p99 = scmp.ne.s32.totalorder %s88, %s91
      %p100 = scmp.eq.s32.totalorder %s19, 1
      %p101 = por %p99, %p100
      %p102 = scmp.ne.s32.totalorder %s91, %s92
      %p103 = scmp.eq.s32.totalorder %s19, 0
      %p104 = por %p102, %p103
      %p105 = scmp.ne.s32.totalorder %s91, %s92
      %p106 = scmp.eq.s32.totalorder %s20, 1
      %p107 = por %p105, %p106
      %p109 = scmp.ne.s32.totalorder %s92, %s108
      %p110 = scmp.eq.s32.totalorder %s20, 0
      %p111 = por %p109, %p110
      %s112 = ssub.s32 %s21, %s33
      %p113 = scmp.eq.s32.totalorder %s112, 0
      %s115 = sadd.s32 %s114, 1
      %s116 = scalar_select %p113, %s114, %s115
      %p119 = pneg %p113
      %p120 = scmp.eq.s32.totalorder %s14, 1
      %p121 = por %p119, %p120
      %p122 = scmp.ne.s32.totalorder %s114, %s117
      %p123 = scmp.eq.s32.totalorder %s14, 0
      %p124 = por %p122, %p123
      %p125 = scmp.ne.s32.totalorder %s114, %s117
      %p126 = scmp.eq.s32.totalorder %s19, 1
      %p127 = por %p125, %p126
      %p128 = scmp.ne.s32.totalorder %s117, %s118
      %p129 = scmp.eq.s32.totalorder %s19, 0
      %p130 = por %p128, %p129
      %p131 = scmp.ne.s32.totalorder %s117, %s118
      %p132 = scmp.eq.s32.totalorder %s20, 1
      %p133 = por %p131, %p132
      %p135 = scmp.ne.s32.totalorder %s118, %s134
      %p136 = scmp.eq.s32.totalorder %s20, 0
      %p137 = por %p135, %p136
      %s138 = ssub.s32 %s21, %s33
      %p139 = scmp.eq.s32.totalorder %s138, 0
      %s141 = sadd.s32 %s140, 1
      %s142 = scalar_select %p139, %s140, %s141
      %p145 = pneg %p139
      %p146 = scmp.eq.s32.totalorder %s14, 1
      %p147 = por %p145, %p146
      %p148 = scmp.ne.s32.totalorder %s140, %s143
      %p149 = scmp.eq.s32.totalorder %s14, 0
      %p150 = por %p148, %p149
      %p151 = scmp.ne.s32.totalorder %s140, %s143
      %p152 = scmp.eq.s32.totalorder %s19, 1
      %p153 = por %p151, %p152
      %p154 = scmp.ne.s32.totalorder %s143, %s144
      %p155 = scmp.eq.s32.totalorder %s19, 0
      %p156 = por %p154, %p155
      %p157 = scmp.ne.s32.totalorder %s143, %s144
      %p158 = scmp.eq.s32.totalorder %s20, 1
      %p159 = por %p157, %p158
      %p161 = scmp.ne.s32.totalorder %s144, %s160
      %p162 = scmp.eq.s32.totalorder %s20, 0
      %p163 = por %p161, %p162
      %s164 = ssub.s32 %s21, %s33
      %p165 = scmp.eq.s32.totalorder %s164, 0
      %s167 = sadd.s32 %s166, 1
      %s168 = scalar_select %p165, %s166, %s167
      %p171 = pneg %p165
      %p172 = scmp.eq.s32.totalorder %s14, 1
      %p173 = por %p171, %p172
      %p174 = scmp.ne.s32.totalorder %s166, %s169
      %p175 = scmp.eq.s32.totalorder %s14, 0
      %p176 = por %p174, %p175
      %p177 = scmp.ne.s32.totalorder %s166, %s169
      %p178 = scmp.eq.s32.totalorder %s19, 1
      %p179 = por %p177, %p178
      %p180 = scmp.ne.s32.totalorder %s169, %s170
      %p181 = scmp.eq.s32.totalorder %s19, 0
      %p182 = por %p180, %p181
      %p183 = scmp.ne.s32.totalorder %s169, %s170
      %p184 = scmp.eq.s32.totalorder %s20, 1
      %p185 = por %p183, %p184
      %p187 = scmp.ne.s32.totalorder %s170, %s186
      %p188 = scmp.eq.s32.totalorder %s20, 0
      %p189 = por %p187, %p188
      %p190 = scmp.le.s32.totalorder 1, %s14
      %p191 = scmp.lt.s32.totalorder %s14, 3
      %p192 = pnand %p190, %p191
      %p193 = pneg %p192
      // Predicated region
      $region9: #{tpu_custom_call.1} parent=5 // pred_check
        _
      $region10: #{tpu_custom_call.1} parent=5 // pred_check_branch
        %195 = sbr.rel (%p192) target = $region12
      $region11: #{tpu_custom_call.1} parent=5 // pred_region
        %s196 = ssub.s32 %s14, 1
        // Predicated region
        $region13: #{tpu_custom_call.1} parent=11 // pred_check
          %p197 = pneg %p78
        $region14: #{tpu_custom_call.1} parent=11 // pred_check_branch
          %199 = sbr.rel (%p197) target = $region16
        $region15: #{tpu_custom_call.1} parent=11 // pred_region
          %p200 = scmp.lt.s32.totalorder %s23, 0
          %s201 = scalar_select %p200, %s23, 0
          %s202 = smul.addr %s201, 4
          %s203 = scalar_lea.vmem %s1, %s202
        $region16: #{tpu_custom_call.1} parent=11 // pred_fallthru
          _
        // Predicated region
        $region17: #{tpu_custom_call.1} parent=11 // pred_check
          %p204 = pneg %p104
        $region18: #{tpu_custom_call.1} parent=11 // pred_check_branch
          %206 = sbr.rel (%p204) target = $region20
        $region19: #{tpu_custom_call.1} parent=11 // pred_region
          %p207 = scmp.lt.s32.totalorder %s23, 0
          %s208 = scalar_select %p207, %s23, 0
          %s209 = scalar_lea.vmem %s2, %s208
        $region20: #{tpu_custom_call.1} parent=11 // pred_fallthru
          _
        // Predicated region
        $region21: #{tpu_custom_call.1} parent=11 // pred_check
          %p210 = pneg %p130
        $region22: #{tpu_custom_call.1} parent=11 // pred_check_branch
          %212 = sbr.rel (%p210) target = $region24
        $region23: #{tpu_custom_call.1} parent=11 // pred_region
          %p213 = scmp.lt.s32.totalorder %s23, 0
          %s214 = scalar_select %p213, %s23, 0
          %s215 = scalar_lea.vmem %s3, %s214
        $region24: #{tpu_custom_call.1} parent=11 // pred_fallthru
          _
      $region12: #{tpu_custom_call.1} parent=5 // pred_fallthru
        _
      %p216 = scmp.lt.s32.totalorder %s14, 2
      // Predicated region
      $region25: #{tpu_custom_call.1} parent=5 // pred_check
        %p217 = pneg %p216
      $region26: #{tpu_custom_call.1} parent=5 // pred_check_branch
        %219 = sbr.rel (%p217) target = $region28
      $region27: #{tpu_custom_call.1} parent=5 // pred_region
        // Predicated region
        $region29: #{tpu_custom_call.1} parent=27 // pred_check
          %p220 = pneg %p46
        $region30: #{tpu_custom_call.1} parent=27 // pred_check_branch
          %222 = sbr.rel (%p220) target = $region32
        $region31: #{tpu_custom_call.1} parent=27 // pred_region
          %p223 = scmp.lt.s32.totalorder %s22, 1
          %s224 = scalar_select %p223, %s22, 1
          %s225 = smul.addr %s224, 60
          %s226 = smul.addr %s225, 4
          %s227 = scalar_lea.vmem %s0, %s226
        $region32: #{tpu_custom_call.1} parent=27 // pred_fallthru
          _
      $region28: #{tpu_custom_call.1} parent=5 // pred_fallthru
        _
      %p228 = scmp.le.s32.totalorder 1, %s14
      %p229 = scmp.lt.s32.totalorder %s14, 3
      %p230 = pnand %p228, %p229
      %p231 = pneg %p230
      // Predicated region
      $region33: #{tpu_custom_call.1} parent=5 // pred_check
        _
      $region34: #{tpu_custom_call.1} parent=5 // pred_check_branch
        %233 = sbr.rel (%p230) target = $region36
      $region35: #{tpu_custom_call.1} parent=5 // pred_region
        %s234 = ssub.s32 %s14, 1
        %p235 = scmp.lt.s32.totalorder %s24, 1
        %s236 = scalar_select %p235, %s24, 1
        %s237 = smul.addr %s236, 60
        %s238 = smul.addr %s237, 4
        %s239 = scalar_lea.vmem %s0, %s238
        %p240 = pneg %p52
        %p241 = pneg %p49
        %p242 = scmp.lt.s32.totalorder %s23, 0
        %s243 = scalar_select %p242, %s23, 0
        %s244 = smul.addr %s243, 4
        %s245 = scalar_lea.vmem %s1, %s244
        %p246 = pneg %p78
        %p247 = pneg %p75
        %p248 = scmp.lt.s32.totalorder %s23, 0
        %s249 = scalar_select %p248, %s23, 0
        %s250 = scalar_lea.vmem %s2, %s249
        %p251 = pneg %p104
        %p252 = pneg %p101
        %p253 = scmp.lt.s32.totalorder %s23, 0
        %s254 = scalar_select %p253, %s23, 0
        %s255 = scalar_lea.vmem %s3, %s254
        %p256 = pneg %p130
        %p257 = pneg %p127
        %p258 = pneg %p156
        %p259 = pneg %p153
        %p260 = pneg %p182
        %p261 = pneg %p179
        %p262 = scmp.lt.s32.totalorder %s24, 1
        %s263 = scalar_select %p262, %s24, 1
        %s264 = smul.addr %s263, 60
        %s265 = smul.addr %s264, 4
        %s266 = scalar_lea.vmem %s0, %s265
        %p267 = scmp.lt.s32.totalorder %s23, 0
        %s268 = scalar_select %p267, %s23, 0
        %s269 = smul.addr %s268, 4
        %s270 = scalar_lea.vmem %s1, %s269
        %p271 = scmp.lt.s32.totalorder %s23, 0
        %s272 = scalar_select %p271, %s23, 0
        %s273 = scalar_lea.vmem %s2, %s272
        %p274 = scmp.lt.s32.totalorder %s23, 0
        %s275 = scalar_select %p274, %s23, 0
        %s276 = scalar_lea.vmem %s3, %s275
        %p278 = scmp.eq.s32.totalorder %s24, 0
        // Predicated region
        $region37: #{tpu_custom_call.1} parent=35 // pred_check
          %p279 = pneg %p278
        $region38: #{tpu_custom_call.1} parent=35 // pred_check_branch
          %281 = sbr.rel (%p279) target = $region40
        $region39: #{tpu_custom_call.1} parent=35 // pred_region
          %282 = vst [vmem:[#allocation2] sm:$0x1] 0.0
          %283 = vst [vmem:[#allocation4] sm:$0x1] 0.0
        $region40: #{tpu_custom_call.1} parent=35 // pred_fallthru
          _
        %v284 = vld [vmem:[%s266] sm:$0xf]
        %v285 = vld [vmem:[%s266 + $0x4] sm:$0xf]
        %v286 = vld [vmem:[%s266 + $0xc] sm:$0xf]
        %v287 = vld [vmem:[%s266 + $0x10] sm:$0xf]
        %v288 = vld [vmem:[%s266 + $0x18] sm:$0xf]
        %v289 = vld [vmem:[%s266 + $0x1c] sm:$0xf]
        %v290 = vld [vmem:[%s266 + $0x24] sm:$0xf]
        %v291 = vld [vmem:[%s266 + $0x28] sm:$0xf]
        %v292 = vld [vmem:[%s266 + $0x30] sm:$0xf]
        %v293 = vld [vmem:[%s266 + $0x34] sm:$0xf]
        %v294 = vld [vmem:[%s266 + $0x3c] sm:$0xf]
        %v295 = vld [vmem:[%s266 + $0x40] sm:$0xf]
        %v296 = vld [vmem:[%s266 + $0x48] sm:$0xf]
        %v297 = vld [vmem:[%s266 + $0x4c] sm:$0xf]
        %v298 = vld [vmem:[%s266 + $0x54] sm:$0xf]
        %v299 = vld [vmem:[%s266 + $0x58] sm:$0xf]
        %v300 = vld [vmem:[%s266 + $0x60] sm:$0xf]
        %v301 = vld [vmem:[%s266 + $0x64] sm:$0xf]
        %v302 = vld [vmem:[%s266 + $0x6c] sm:$0xf]
        %v303 = vld [vmem:[%s266 + $0x70] sm:$0xf]
        %v304 = vld [vmem:[%s266 + $0x78] sm:$0xf]
        %v305 = vld [vmem:[%s266 + $0x7c] sm:$0xf]
        %v306 = vld [vmem:[%s266 + $0x84] sm:$0xf]
        %v307 = vld [vmem:[%s266 + $0x88] sm:$0xf]
        %v308 = vld [vmem:[%s266 + $0x90] sm:$0xf]
        %v309 = vld [vmem:[%s266 + $0x94] sm:$0xf]
        %v310 = vld [vmem:[%s266 + $0x9c] sm:$0xf]
        %v311 = vld [vmem:[%s266 + $0xa0] sm:$0xf]
        %v312 = vld [vmem:[%s266 + $0xa8] sm:$0xf]
        %v313 = vld [vmem:[%s266 + $0xac] sm:$0xf]
        %v314 = vld [vmem:[%s266 + $0xb4] sm:$0xf]
        %v315 = vld [vmem:[%s266 + $0xb8] sm:$0xf]
        %v316 = vld [vmem:[%s270] sm:$0xf]
        %v317 = vld [vmem:[%s270 + $0x4] sm:$0xf]
        %v318 = vld [vmem:[%s266 + $0x8] sm:$0x1]
        %v319 = vld [vmem:[%s266 + $0x14] sm:$0x1]
        %v320 = vld [vmem:[%s266 + $0x20] sm:$0x1]
        %v321 = vld [vmem:[%s266 + $0x2c] sm:$0x1]
        %v322 = vld [vmem:[%s266 + $0x38] sm:$0x1]
        %v323 = vld [vmem:[%s266 + $0x44] sm:$0x1]
        %v324 = vld [vmem:[%s266 + $0x50] sm:$0x1]
        %v325 = vld [vmem:[%s266 + $0x5c] sm:$0x1]
        %v326 = vld [vmem:[%s266 + $0x68] sm:$0x1]
        %v327 = vld [vmem:[%s266 + $0x74] sm:$0x1]
        %v328 = vld [vmem:[%s266 + $0x80] sm:$0x1]
        %v329 = vld [vmem:[%s266 + $0x8c] sm:$0x1]
        %v330 = vld [vmem:[%s266 + $0x98] sm:$0x1]
        %v331 = vld [vmem:[%s266 + $0xa4] sm:$0x1]
        %v332 = vld [vmem:[%s266 + $0xb0] sm:$0x1]
        %v333 = vld [vmem:[%s266 + $0xbc] sm:$0x1]
        %vm334 = vsmask.f32 3328
        %vm335 = vsmask.f32 7440
        %vm336 = vmor %vm334, %vm335
        %v338 = vshrl.u32 %v284, 16
        %v340 = vrot.slane %v338, 4
        %v341 = vshll.u32 %v284, 16
        %v343 = vrot.slane %v341, 5
        %v344 = vor.u32 %v340, %v343
        %v345 = vrot.slane %v344, 4
        %v347 = vshll.u32 %v285, 16
        %v349 = vrot.slane %v347, 5
        %v350 = vsel %vm336, %v345, %v349
        %v351 = vshrl.u32 %v285, 16
        %v353 = vrot.slane %v351, 4
        %v354 = vor.u32 %v353, %v349
        %v355 = vrot.slane %v354, 4
        %v357 = vshll.u32 %v318, 16
        %v359 = vrot.slane %v357, 5
        %v360 = vsel %vm336, %v355, %v359
        %v362 = vshrl.u32 %v286, 16
        %v364 = vrot.slane %v362, 4
        %v365 = vshll.u32 %v286, 16
        %v367 = vrot.slane %v365, 5
        %v368 = vor.u32 %v364, %v367
        %v369 = vrot.slane %v368, 4
        %v371 = vshll.u32 %v287, 16
        %v373 = vrot.slane %v371, 5
        %v374 = vsel %vm336, %v369, %v373
        %v375 = vshrl.u32 %v287, 16
        %v377 = vrot.slane %v375, 4
        %v378 = vor.u32 %v377, %v373
        %v379 = vrot.slane %v378, 4
        %v381 = vshll.u32 %v319, 16
        %v383 = vrot.slane %v381, 5
        %v384 = vsel %vm336, %v379, %v383
        %v386 = vshrl.u32 %v288, 16
        %v388 = vrot.slane %v386, 4
        %v389 = vshll.u32 %v288, 16
        %v391 = vrot.slane %v389, 5
        %v392 = vor.u32 %v388, %v391
        %v393 = vrot.slane %v392, 4
        %v395 = vshll.u32 %v289, 16
        %v397 = vrot.slane %v395, 5
        %v398 = vsel %vm336, %v393, %v397
        %v399 = vshrl.u32 %v289, 16
        %v401 = vrot.slane %v399, 4
        %v402 = vor.u32 %v401, %v397
        %v403 = vrot.slane %v402, 4
        %v405 = vshll.u32 %v320, 16
        %v407 = vrot.slane %v405, 5
        %v408 = vsel %vm336, %v403, %v407
        %v410 = vshrl.u32 %v290, 16
        %v412 = vrot.slane %v410, 4
        %v413 = vshll.u32 %v290, 16
        %v415 = vrot.slane %v413, 5
        %v416 = vor.u32 %v412, %v415
        %v417 = vrot.slane %v416, 4
        %v419 = vshll.u32 %v291, 16
        %v421 = vrot.slane %v419, 5
        %v422 = vsel %vm336, %v417, %v421
        %v423 = vshrl.u32 %v291, 16
        %v425 = vrot.slane %v423, 4
        %v426 = vor.u32 %v425, %v421
        %v427 = vrot.slane %v426, 4
        %v429 = vshll.u32 %v321, 16
        %v431 = vrot.slane %v429, 5
        %v432 = vsel %vm336, %v427, %v431
        %v434 = vshrl.u32 %v292, 16
        %v436 = vrot.slane %v434, 4
        %v437 = vshll.u32 %v292, 16
        %v439 = vrot.slane %v437, 5
        %v440 = vor.u32 %v436, %v439
        %v441 = vrot.slane %v440, 4
        %v443 = vshll.u32 %v293, 16
        %v445 = vrot.slane %v443, 5
        %v446 = vsel %vm336, %v441, %v445
        %v447 = vshrl.u32 %v293, 16
        %v449 = vrot.slane %v447, 4
        %v450 = vor.u32 %v449, %v445
        %v451 = vrot.slane %v450, 4
        %v453 = vshll.u32 %v322, 16
        %v455 = vrot.slane %v453, 5
        %v456 = vsel %vm336, %v451, %v455
        %v458 = vshrl.u32 %v294, 16
        %v460 = vrot.slane %v458, 4
        %v461 = vshll.u32 %v294, 16
        %v463 = vrot.slane %v461, 5
        %v464 = vor.u32 %v460, %v463
        %v465 = vrot.slane %v464, 4
        %v467 = vshll.u32 %v295, 16
        %v469 = vrot.slane %v467, 5
        %v470 = vsel %vm336, %v465, %v469
        %v471 = vshrl.u32 %v295, 16
        %v473 = vrot.slane %v471, 4
        %v474 = vor.u32 %v473, %v469
        %v475 = vrot.slane %v474, 4
        %v477 = vshll.u32 %v323, 16
        %v479 = vrot.slane %v477, 5
        %v480 = vsel %vm336, %v475, %v479
        %v482 = vshrl.u32 %v296, 16
        %v484 = vrot.slane %v482, 4
        %v485 = vshll.u32 %v296, 16
        %v487 = vrot.slane %v485, 5
        %v488 = vor.u32 %v484, %v487
        %v489 = vrot.slane %v488, 4
        %v491 = vshll.u32 %v297, 16
        %v493 = vrot.slane %v491, 5
        %v494 = vsel %vm336, %v489, %v493
        %v495 = vshrl.u32 %v297, 16
        %v497 = vrot.slane %v495, 4
        %v498 = vor.u32 %v497, %v493
        %v499 = vrot.slane %v498, 4
        %v501 = vshll.u32 %v324, 16
        %v503 = vrot.slane %v501, 5
        %v504 = vsel %vm336, %v499, %v503
        %v506 = vshrl.u32 %v298, 16
        %v508 = vrot.slane %v506, 4
        %v509 = vshll.u32 %v298, 16
        %v511 = vrot.slane %v509, 5
        %v512 = vor.u32 %v508, %v511
        %v513 = vrot.slane %v512, 4
        %v515 = vshll.u32 %v299, 16
        %v517 = vrot.slane %v515, 5
        %v518 = vsel %vm336, %v513, %v517
        %v519 = vshrl.u32 %v299, 16
        %v521 = vrot.slane %v519, 4
        %v522 = vor.u32 %v521, %v517
        %v523 = vrot.slane %v522, 4
        %v525 = vshll.u32 %v325, 16
        %v527 = vrot.slane %v525, 5
        %v528 = vsel %vm336, %v523, %v527
        %v530 = vshrl.u32 %v300, 16
        %v532 = vrot.slane %v530, 4
        %v533 = vshll.u32 %v300, 16
        %v535 = vrot.slane %v533, 5
        %v536 = vor.u32 %v532, %v535
        %v537 = vrot.slane %v536, 4
        %v539 = vshll.u32 %v301, 16
        %v541 = vrot.slane %v539, 5
        %v542 = vsel %vm336, %v537, %v541
        %v543 = vshrl.u32 %v301, 16
        %v545 = vrot.slane %v543, 4
        %v546 = vor.u32 %v545, %v541
        %v547 = vrot.slane %v546, 4
        %v549 = vshll.u32 %v326, 16
        %v551 = vrot.slane %v549, 5
        %v552 = vsel %vm336, %v547, %v551
        %v554 = vshrl.u32 %v302, 16
        %v556 = vrot.slane %v554, 4
        %v557 = vshll.u32 %v302, 16
        %v559 = vrot.slane %v557, 5
        %v560 = vor.u32 %v556, %v559
        %v561 = vrot.slane %v560, 4
        %v563 = vshll.u32 %v303, 16
        %v565 = vrot.slane %v563, 5
        %v566 = vsel %vm336, %v561, %v565
        %v567 = vshrl.u32 %v303, 16
        %v569 = vrot.slane %v567, 4
        %v570 = vor.u32 %v569, %v565
        %v571 = vrot.slane %v570, 4
        %v573 = vshll.u32 %v327, 16
        %v575 = vrot.slane %v573, 5
        %v576 = vsel %vm336, %v571, %v575
        %v578 = vshrl.u32 %v304, 16
        %v580 = vrot.slane %v578, 4
        %v581 = vshll.u32 %v304, 16
        %v583 = vrot.slane %v581, 5
        %v584 = vor.u32 %v580, %v583
        %v585 = vrot.slane %v584, 4
        %v587 = vshll.u32 %v305, 16
        %v589 = vrot.slane %v587, 5
        %v590 = vsel %vm336, %v585, %v589
        %v591 = vshrl.u32 %v305, 16
        %v593 = vrot.slane %v591, 4
        %v594 = vor.u32 %v593, %v589
        %v595 = vrot.slane %v594, 4
        %v597 = vshll.u32 %v328, 16
        %v599 = vrot.slane %v597, 5
        %v600 = vsel %vm336, %v595, %v599
        %v602 = vshrl.u32 %v306, 16
        %v604 = vrot.slane %v602, 4
        %v605 = vshll.u32 %v306, 16
        %v607 = vrot.slane %v605, 5
        %v608 = vor.u32 %v604, %v607
        %v609 = vrot.slane %v608, 4
        %v611 = vshll.u32 %v307, 16
        %v613 = vrot.slane %v611, 5
        %v614 = vsel %vm336, %v609, %v613
        %v615 = vshrl.u32 %v307, 16
        %v617 = vrot.slane %v615, 4
        %v618 = vor.u32 %v617, %v613
        %v619 = vrot.slane %v618, 4
        %v621 = vshll.u32 %v329, 16
        %v623 = vrot.slane %v621, 5
        %v624 = vsel %vm336, %v619, %v623
        %v626 = vshrl.u32 %v308, 16
        %v628 = vrot.slane %v626, 4
        %v629 = vshll.u32 %v308, 16
        %v631 = vrot.slane %v629, 5
        %v632 = vor.u32 %v628, %v631
        %v633 = vrot.slane %v632, 4
        %v635 = vshll.u32 %v309, 16
        %v637 = vrot.slane %v635, 5
        %v638 = vsel %vm336, %v633, %v637
        %v639 = vshrl.u32 %v309, 16
        %v641 = vrot.slane %v639, 4
        %v642 = vor.u32 %v641, %v637
        %v643 = vrot.slane %v642, 4
        %v645 = vshll.u32 %v330, 16
        %v647 = vrot.slane %v645, 5
        %v648 = vsel %vm336, %v643, %v647
        %v650 = vshrl.u32 %v310, 16
        %v652 = vrot.slane %v650, 4
        %v653 = vshll.u32 %v310, 16
        %v655 = vrot.slane %v653, 5
        %v656 = vor.u32 %v652, %v655
        %v657 = vrot.slane %v656, 4
        %v659 = vshll.u32 %v311, 16
        %v661 = vrot.slane %v659, 5
        %v662 = vsel %vm336, %v657, %v661
        %v663 = vshrl.u32 %v311, 16
        %v665 = vrot.slane %v663, 4
        %v666 = vor.u32 %v665, %v661
        %v667 = vrot.slane %v666, 4
        %v669 = vshll.u32 %v331, 16
        %v671 = vrot.slane %v669, 5
        %v672 = vsel %vm336, %v667, %v671
        %v674 = vshrl.u32 %v312, 16
        %v676 = vrot.slane %v674, 4
        %v677 = vshll.u32 %v312, 16
        %v679 = vrot.slane %v677, 5
        %v680 = vor.u32 %v676, %v679
        %v681 = vrot.slane %v680, 4
        %v683 = vshll.u32 %v313, 16
        %v685 = vrot.slane %v683, 5
        %v686 = vsel %vm336, %v681, %v685
        %v687 = vshrl.u32 %v313, 16
        %v689 = vrot.slane %v687, 4
        %v690 = vor.u32 %v689, %v685
        %v691 = vrot.slane %v690, 4
        %v693 = vshll.u32 %v332, 16
        %v695 = vrot.slane %v693, 5
        %v696 = vsel %vm336, %v691, %v695
        %v698 = vshrl.u32 %v314, 16
        %v700 = vrot.slane %v698, 4
        %v701 = vshll.u32 %v314, 16
        %v703 = vrot.slane %v701, 5
        %v704 = vor.u32 %v700, %v703
        %v705 = vrot.slane %v704, 4
        %v707 = vshll.u32 %v315, 16
        %v709 = vrot.slane %v707, 5
        %v710 = vsel %vm336, %v705, %v709
        %v711 = vshrl.u32 %v315, 16
        %v713 = vrot.slane %v711, 4
        %v714 = vor.u32 %v713, %v709
        %v715 = vrot.slane %v714, 4
        %v717 = vshll.u32 %v333, 16
        %v719 = vrot.slane %v717, 5
        %v720 = vsel %vm336, %v715, %v719
        %s721 = scalar_lea.vmem %s270, 8
        %v722 = vld [vmem:[%s721] sm:$0xf]
        %v723 = vld [vmem:[%s721 + $0x4] sm:$0xf]
        %v724 = vunpack.c.l.b16 %v350
        %v725 = vunpack.c.l.b16 %v360
        %v726 = vunpack.c.l.b16 %v374
        %v727 = vunpack.c.l.b16 %v384
        %v728 = vunpack.c.l.b16 %v398
        %v729 = vunpack.c.l.b16 %v408
        %v730 = vunpack.c.l.b16 %v422
        %v731 = vunpack.c.l.b16 %v432
        %v732 = vunpack.c.l.b16 %v446
        %v733 = vunpack.c.l.b16 %v456
        %v734 = vunpack.c.l.b16 %v470
        %v735 = vunpack.c.l.b16 %v480
        %v736 = vunpack.c.l.b16 %v494
        %v737 = vunpack.c.l.b16 %v504
        %v738 = vunpack.c.l.b16 %v518
        %v739 = vunpack.c.l.b16 %v528
        %v740 = vunpack.c.l.b16 %v542
        %v741 = vunpack.c.l.b16 %v552
        %v742 = vunpack.c.l.b16 %v566
        %v743 = vunpack.c.l.b16 %v576
        %v744 = vunpack.c.l.b16 %v590
        %v745 = vunpack.c.l.b16 %v600
        %v746 = vunpack.c.l.b16 %v614
        %v747 = vunpack.c.l.b16 %v624
        %v748 = vunpack.c.l.b16 %v638
        %v749 = vunpack.c.l.b16 %v648
        %v750 = vunpack.c.l.b16 %v662
        %v751 = vunpack.c.l.b16 %v672
        %v752 = vunpack.c.l.b16 %v686
        %v753 = vunpack.c.l.b16 %v696
        %v754 = vunpack.c.l.b16 %v710
        %v755 = vunpack.c.l.b16 %v720
        %v756 = vpack.c.b16 %v725, %v724
        %v757 = vpack.c.b16 %v727, %v726
        %v758 = vpack.c.b16 %v729, %v728
        %v759 = vpack.c.b16 %v731, %v730
        %v760 = vpack.c.b16 %v733, %v732
        %v761 = vpack.c.b16 %v735, %v734
        %v762 = vpack.c.b16 %v737, %v736
        %v763 = vpack.c.b16 %v739, %v738
        %v764 = vpack.c.b16 %v741, %v740
        %v765 = vpack.c.b16 %v743, %v742
        %v766 = vpack.c.b16 %v745, %v744
        %v767 = vpack.c.b16 %v747, %v746
        %v768 = vpack.c.b16 %v749, %v748
        %v769 = vpack.c.b16 %v751, %v750
        %v770 = vpack.c.b16 %v753, %v752
        %v771 = vpack.c.b16 %v755, %v754
        %v774 = vunpack.c.l.b16 %v722
        %v775 = vunpack.c.l.b16 %v723
        %v776 = vpack.c.b16 %v775, %v774
        %vm778 = vcmask 130048
        %v780 = vsel %vm778, %v756, 0
        %v783 = vsel %vm778, %v757, 0
        %v786 = vsel %vm778, %v758, 0
        %v789 = vsel %vm778, %v759, 0
        %v792 = vsel %vm778, %v760, 0
        %v795 = vsel %vm778, %v761, 0
        %v798 = vsel %vm778, %v762, 0
        %v801 = vsel %vm778, %v763, 0
        %v804 = vsel %vm778, %v764, 0
        %v807 = vsel %vm778, %v765, 0
        %v810 = vsel %vm778, %v766, 0
        %v813 = vsel %vm778, %v767, 0
        %v816 = vsel %vm778, %v768, 0
        %v819 = vsel %vm778, %v769, 0
        %v822 = vsel %vm778, %v770, 0
        %v825 = vsel %vm778, %v771, 0
        %827 = vmatpush.bf16.msra.mxu0 0
        %828 = vmatpush.bf16.msra.mxu0 0
        %829 = vmatpush.bf16.msra.mxu0 0
        %830 = vmatpush.bf16.msra.mxu0 0
        %831 = vmatpush.bf16.msra.mxu0 0
        %832 = vmatpush.bf16.msra.mxu0 0
        %833 = vmatpush.bf16.msra.mxu0 0
        %834 = vmatpush.bf16.msra.mxu0 %v776
        %835 = vmatmul.bf16.gmra.mxu0 %v780
        %v836 = vpop.f32.mrf.mxu0
        %v837 = vadd.f32 0.0, %v836
        %v838 = vpop.f32.mrf.mxu0
        %v839 = vadd.f32 0.0, %v838
        %840 = vmatmul.bf16.gmra.mxu0 %v783
        %v841 = vpop.f32.mrf.mxu0
        %v842 = vadd.f32 0.0, %v841
        %v843 = vpop.f32.mrf.mxu0
        %v844 = vadd.f32 0.0, %v843
        %845 = vmatmul.bf16.gmra.mxu0 %v786
        %v846 = vpop.f32.mrf.mxu0
        %v847 = vadd.f32 0.0, %v846
        %v848 = vpop.f32.mrf.mxu0
        %v849 = vadd.f32 0.0, %v848
        %850 = vmatmul.bf16.gmra.mxu0 %v789
        %v851 = vpop.f32.mrf.mxu0
        %v852 = vadd.f32 0.0, %v851
        %v853 = vpop.f32.mrf.mxu0
        %v854 = vadd.f32 0.0, %v853
        %855 = vmatmul.bf16.gmra.mxu0 %v792
        %v856 = vpop.f32.mrf.mxu0
        %v857 = vadd.f32 0.0, %v856
        %v858 = vpop.f32.mrf.mxu0
        %v859 = vadd.f32 0.0, %v858
        %860 = vmatmul.bf16.gmra.mxu0 %v795
        %v861 = vpop.f32.mrf.mxu0
        %v862 = vadd.f32 0.0, %v861
        %v863 = vpop.f32.mrf.mxu0
        %v864 = vadd.f32 0.0, %v863
        %865 = vmatmul.bf16.gmra.mxu0 %v798
        %v866 = vpop.f32.mrf.mxu0
        %v867 = vadd.f32 0.0, %v866
        %v868 = vpop.f32.mrf.mxu0
        %v869 = vadd.f32 0.0, %v868
        %870 = vmatmul.bf16.gmra.mxu0 %v801
        %v871 = vpop.f32.mrf.mxu0
        %v872 = vadd.f32 0.0, %v871
        %v873 = vpop.f32.mrf.mxu0
        %v874 = vadd.f32 0.0, %v873
        %875 = vmatmul.bf16.gmra.mxu0 %v804
        %v876 = vpop.f32.mrf.mxu0
        %v877 = vadd.f32 0.0, %v876
        %v878 = vpop.f32.mrf.mxu0
        %v879 = vadd.f32 0.0, %v878
        %880 = vmatmul.bf16.gmra.mxu0 %v807
        %v881 = vpop.f32.mrf.mxu0
        %v882 = vadd.f32 0.0, %v881
        %v883 = vpop.f32.mrf.mxu0
        %v884 = vadd.f32 0.0, %v883
        %885 = vmatmul.bf16.gmra.mxu0 %v810
        %v886 = vpop.f32.mrf.mxu0
        %v887 = vadd.f32 0.0, %v886
        %v888 = vpop.f32.mrf.mxu0
        %v889 = vadd.f32 0.0, %v888
        %890 = vmatmul.bf16.gmra.mxu0 %v813
        %v891 = vpop.f32.mrf.mxu0
        %v892 = vadd.f32 0.0, %v891
        %v893 = vpop.f32.mrf.mxu0
        %v894 = vadd.f32 0.0, %v893
        %895 = vmatmul.bf16.gmra.mxu0 %v816
        %v896 = vpop.f32.mrf.mxu0
        %v897 = vadd.f32 0.0, %v896
        %v898 = vpop.f32.mrf.mxu0
        %v899 = vadd.f32 0.0, %v898
        %900 = vmatmul.bf16.gmra.mxu0 %v819
        %v901 = vpop.f32.mrf.mxu0
        %v902 = vadd.f32 0.0, %v901
        %v903 = vpop.f32.mrf.mxu0
        %v904 = vadd.f32 0.0, %v903
        %905 = vmatmul.bf16.gmra.mxu0 %v822
        %v906 = vpop.f32.mrf.mxu0
        %v907 = vadd.f32 0.0, %v906
        %v908 = vpop.f32.mrf.mxu0
        %v909 = vadd.f32 0.0, %v908
        %910 = vmatmul.bf16.gmra.mxu0 %v825
        %v911 = vpop.f32.mrf.mxu0
        %v912 = vadd.f32 0.0, %v911
        %v913 = vpop.f32.mrf.mxu0
        %v914 = vadd.f32 0.0, %v913
        %915 = vdwg.mxu0
        %v948 = vunpack.c.l.b16 %v284
        %v949 = vunpack.c.l.b16 %v285
        %v950 = vunpack.c.l.b16 %v286
        %v951 = vunpack.c.l.b16 %v287
        %v952 = vunpack.c.l.b16 %v288
        %v953 = vunpack.c.l.b16 %v289
        %v954 = vunpack.c.l.b16 %v290
        %v955 = vunpack.c.l.b16 %v291
        %v956 = vunpack.c.l.b16 %v292
        %v957 = vunpack.c.l.b16 %v293
        %v958 = vunpack.c.l.b16 %v294
        %v959 = vunpack.c.l.b16 %v295
        %v960 = vunpack.c.l.b16 %v296
        %v961 = vunpack.c.l.b16 %v297
        %v962 = vunpack.c.l.b16 %v298
        %v963 = vunpack.c.l.b16 %v299
        %v964 = vunpack.c.l.b16 %v300
        %v965 = vunpack.c.l.b16 %v301
        %v966 = vunpack.c.l.b16 %v302
        %v967 = vunpack.c.l.b16 %v303
        %v968 = vunpack.c.l.b16 %v304
        %v969 = vunpack.c.l.b16 %v305
        %v970 = vunpack.c.l.b16 %v306
        %v971 = vunpack.c.l.b16 %v307
        %v972 = vunpack.c.l.b16 %v308
        %v973 = vunpack.c.l.b16 %v309
        %v974 = vunpack.c.l.b16 %v310
        %v975 = vunpack.c.l.b16 %v311
        %v976 = vunpack.c.l.b16 %v312
        %v977 = vunpack.c.l.b16 %v313
        %v978 = vunpack.c.l.b16 %v314
        %v979 = vunpack.c.l.b16 %v315
        %v980 = vpack.c.b16 %v949, %v948
        %v981 = vpack.c.b16 %v951, %v950
        %v982 = vpack.c.b16 %v953, %v952
        %v983 = vpack.c.b16 %v955, %v954
        %v984 = vpack.c.b16 %v957, %v956
        %v985 = vpack.c.b16 %v959, %v958
        %v986 = vpack.c.b16 %v961, %v960
        %v987 = vpack.c.b16 %v963, %v962
        %v988 = vpack.c.b16 %v965, %v964
        %v989 = vpack.c.b16 %v967, %v966
        %v990 = vpack.c.b16 %v969, %v968
        %v991 = vpack.c.b16 %v971, %v970
        %v992 = vpack.c.b16 %v973, %v972
        %v993 = vpack.c.b16 %v975, %v974
        %v994 = vpack.c.b16 %v977, %v976
        %v995 = vpack.c.b16 %v979, %v978
        %v998 = vunpack.c.l.b16 %v316
        %v999 = vunpack.c.l.b16 %v317
        %v1000 = vpack.c.b16 %v999, %v998
        %v1003 = vsel %vm778, %v980, 0
        %v1006 = vsel %vm778, %v981, 0
        %v1009 = vsel %vm778, %v982, 0
        %v1012 = vsel %vm778, %v983, 0
        %v1015 = vsel %vm778, %v984, 0
        %v1018 = vsel %vm778, %v985, 0
        %v1021 = vsel %vm778, %v986, 0
        %v1024 = vsel %vm778, %v987, 0
        %v1027 = vsel %vm778, %v988, 0
        %v1030 = vsel %vm778, %v989, 0
        %v1033 = vsel %vm778, %v990, 0
        %v1036 = vsel %vm778, %v991, 0
        %v1039 = vsel %vm778, %v992, 0
        %v1042 = vsel %vm778, %v993, 0
        %v1045 = vsel %vm778, %v994, 0
        %v1048 = vsel %vm778, %v995, 0
        %1050 = vmatpush.bf16.msra.mxu0 0
        %1051 = vmatpush.bf16.msra.mxu0 0
        %1052 = vmatpush.bf16.msra.mxu0 0
        %1053 = vmatpush.bf16.msra.mxu0 0
        %1054 = vmatpush.bf16.msra.mxu0 0
        %1055 = vmatpush.bf16.msra.mxu0 0
        %1056 = vmatpush.bf16.msra.mxu0 0
        %1057 = vmatpush.bf16.msra.mxu0 %v1000
        %1058 = vmatmul.bf16.gmra.mxu0 %v1003
        %v1059 = vpop.f32.mrf.mxu0
        %v1060 = vadd.f32 %v837, %v1059
        %v1061 = vpop.f32.mrf.mxu0
        %v1062 = vadd.f32 %v839, %v1061
        %1063 = vmatmul.bf16.gmra.mxu0 %v1006
        %v1064 = vpop.f32.mrf.mxu0
        %v1065 = vadd.f32 %v842, %v1064
        %v1066 = vpop.f32.mrf.mxu0
        %v1067 = vadd.f32 %v844, %v1066
        %1068 = vmatmul.bf16.gmra.mxu0 %v1009
        %v1069 = vpop.f32.mrf.mxu0
        %v1070 = vadd.f32 %v847, %v1069
        %v1071 = vpop.f32.mrf.mxu0
        %v1072 = vadd.f32 %v849, %v1071
        %1073 = vmatmul.bf16.gmra.mxu0 %v1012
        %v1074 = vpop.f32.mrf.mxu0
        %v1075 = vadd.f32 %v852, %v1074
        %v1076 = vpop.f32.mrf.mxu0
        %v1077 = vadd.f32 %v854, %v1076
        %1078 = vmatmul.bf16.gmra.mxu0 %v1015
        %v1079 = vpop.f32.mrf.mxu0
        %v1080 = vadd.f32 %v857, %v1079
        %v1081 = vpop.f32.mrf.mxu0
        %v1082 = vadd.f32 %v859, %v1081
        %1083 = vmatmul.bf16.gmra.mxu0 %v1018
        %v1084 = vpop.f32.mrf.mxu0
        %v1085 = vadd.f32 %v862, %v1084
        %v1086 = vpop.f32.mrf.mxu0
        %v1087 = vadd.f32 %v864, %v1086
        %1088 = vmatmul.bf16.gmra.mxu0 %v1021
        %v1089 = vpop.f32.mrf.mxu0
        %v1090 = vadd.f32 %v867, %v1089
        %v1091 = vpop.f32.mrf.mxu0
        %v1092 = vadd.f32 %v869, %v1091
        %1093 = vmatmul.bf16.gmra.mxu0 %v1024
        %v1094 = vpop.f32.mrf.mxu0
        %v1095 = vadd.f32 %v872, %v1094
        %v1096 = vpop.f32.mrf.mxu0
        %v1097 = vadd.f32 %v874, %v1096
        %1098 = vmatmul.bf16.gmra.mxu0 %v1027
        %v1099 = vpop.f32.mrf.mxu0
        %v1100 = vadd.f32 %v877, %v1099
        %v1101 = vpop.f32.mrf.mxu0
        %v1102 = vadd.f32 %v879, %v1101
        %1103 = vmatmul.bf16.gmra.mxu0 %v1030
        %v1104 = vpop.f32.mrf.mxu0
        %v1105 = vadd.f32 %v882, %v1104
        %v1106 = vpop.f32.mrf.mxu0
        %v1107 = vadd.f32 %v884, %v1106
        %1108 = vmatmul.bf16.gmra.mxu0 %v1033
        %v1109 = vpop.f32.mrf.mxu0
        %v1110 = vadd.f32 %v887, %v1109
        %v1111 = vpop.f32.mrf.mxu0
        %v1112 = vadd.f32 %v889, %v1111
        %1113 = vmatmul.bf16.gmra.mxu0 %v1036
        %v1114 = vpop.f32.mrf.mxu0
        %v1115 = vadd.f32 %v892, %v1114
        %v1116 = vpop.f32.mrf.mxu0
        %v1117 = vadd.f32 %v894, %v1116
        %1118 = vmatmul.bf16.gmra.mxu0 %v1039
        %v1119 = vpop.f32.mrf.mxu0
        %v1120 = vadd.f32 %v897, %v1119
        %v1121 = vpop.f32.mrf.mxu0
        %v1122 = vadd.f32 %v899, %v1121
        %1123 = vmatmul.bf16.gmra.mxu0 %v1042
        %v1124 = vpop.f32.mrf.mxu0
        %v1125 = vadd.f32 %v902, %v1124
        %v1126 = vpop.f32.mrf.mxu0
        %v1127 = vadd.f32 %v904, %v1126
        %1128 = vmatmul.bf16.gmra.mxu0 %v1045
        %v1129 = vpop.f32.mrf.mxu0
        %v1130 = vadd.f32 %v907, %v1129
        %v1131 = vpop.f32.mrf.mxu0
        %v1132 = vadd.f32 %v909, %v1131
        %1133 = vmatmul.bf16.gmra.mxu0 %v1048
        %v1134 = vpop.f32.mrf.mxu0
        %v1135 = vadd.f32 %v912, %v1134
        %v1136 = vpop.f32.mrf.mxu0
        %v1137 = vadd.f32 %v914, %v1136
        %1138 = vdwg.mxu0
        %v1139 = vld [vmem:[%s266] sm:$0xe]
        %v1140 = vld [vmem:[%s266 + $0xc] sm:$0xe]
        %v1141 = vld [vmem:[%s266 + $0x18] sm:$0xe]
        %v1142 = vld [vmem:[%s266 + $0x24] sm:$0xe]
        %v1143 = vld [vmem:[%s266 + $0x30] sm:$0xe]
        %v1144 = vld [vmem:[%s266 + $0x3c] sm:$0xe]
        %v1145 = vld [vmem:[%s266 + $0x48] sm:$0xe]
        %v1146 = vld [vmem:[%s266 + $0x54] sm:$0xe]
        %v1147 = vld [vmem:[%s266 + $0x60] sm:$0xe]
        %v1148 = vld [vmem:[%s266 + $0x6c] sm:$0xe]
        %v1149 = vld [vmem:[%s266 + $0x78] sm:$0xe]
        %v1150 = vld [vmem:[%s266 + $0x84] sm:$0xe]
        %v1151 = vld [vmem:[%s266 + $0x90] sm:$0xe]
        %v1152 = vld [vmem:[%s266 + $0x9c] sm:$0xe]
        %v1153 = vld [vmem:[%s266 + $0xa8] sm:$0xe]
        %v1154 = vld [vmem:[%s266 + $0xb4] sm:$0xe]
        %vm1187 = vcmask 1042432
        %vm1188 = vcmask 1046532
        %vm1189 = vmor %vm1187, %vm1188
        %v1190 = vrot.slane %v1139, 5
        %v1191 = vrot.slane %v1190, 4
        %v1192 = vrot.slane %v285, 5
        %v1193 = vsel %vm1189, %v1191, %v1192
        %v1194 = vrot.slane %v1192, 4
        %v1195 = vrot.slane %v318, 5
        %v1196 = vsel %vm1189, %v1194, %v1195
        %v1197 = vrot.slane %v1140, 5
        %v1198 = vrot.slane %v1197, 4
        %v1199 = vrot.slane %v287, 5
        %v1200 = vsel %vm1189, %v1198, %v1199
        %v1201 = vrot.slane %v1199, 4
        %v1202 = vrot.slane %v319, 5
        %v1203 = vsel %vm1189, %v1201, %v1202
        %v1204 = vrot.slane %v1141, 5
        %v1205 = vrot.slane %v1204, 4
        %v1206 = vrot.slane %v289, 5
        %v1207 = vsel %vm1189, %v1205, %v1206
        %v1208 = vrot.slane %v1206, 4
        %v1209 = vrot.slane %v320, 5
        %v1210 = vsel %vm1189, %v1208, %v1209
        %v1211 = vrot.slane %v1142, 5
        %v1212 = vrot.slane %v1211, 4
        %v1213 = vrot.slane %v291, 5
        %v1214 = vsel %vm1189, %v1212, %v1213
        %v1215 = vrot.slane %v1213, 4
        %v1216 = vrot.slane %v321, 5
        %v1217 = vsel %vm1189, %v1215, %v1216
        %v1218 = vrot.slane %v1143, 5
        %v1219 = vrot.slane %v1218, 4
        %v1220 = vrot.slane %v293, 5
        %v1221 = vsel %vm1189, %v1219, %v1220
        %v1222 = vrot.slane %v1220, 4
        %v1223 = vrot.slane %v322, 5
        %v1224 = vsel %vm1189, %v1222, %v1223
        %v1225 = vrot.slane %v1144, 5
        %v1226 = vrot.slane %v1225, 4
        %v1227 = vrot.slane %v295, 5
        %v1228 = vsel %vm1189, %v1226, %v1227
        %v1229 = vrot.slane %v1227, 4
        %v1230 = vrot.slane %v323, 5
        %v1231 = vsel %vm1189, %v1229, %v1230
        %v1232 = vrot.slane %v1145, 5
        %v1233 = vrot.slane %v1232, 4
        %v1234 = vrot.slane %v297, 5
        %v1235 = vsel %vm1189, %v1233, %v1234
        %v1236 = vrot.slane %v1234, 4
        %v1237 = vrot.slane %v324, 5
        %v1238 = vsel %vm1189, %v1236, %v1237
        %v1239 = vrot.slane %v1146, 5
        %v1240 = vrot.slane %v1239, 4
        %v1241 = vrot.slane %v299, 5
        %v1242 = vsel %vm1189, %v1240, %v1241
        %v1243 = vrot.slane %v1241, 4
        %v1244 = vrot.slane %v325, 5
        %v1245 = vsel %vm1189, %v1243, %v1244
        %v1246 = vrot.slane %v1147, 5
        %v1247 = vrot.slane %v1246, 4
        %v1248 = vrot.slane %v301, 5
        %v1249 = vsel %vm1189, %v1247, %v1248
        %v1250 = vrot.slane %v1248, 4
        %v1251 = vrot.slane %v326, 5
        %v1252 = vsel %vm1189, %v1250, %v1251
        %v1253 = vrot.slane %v1148, 5
        %v1254 = vrot.slane %v1253, 4
        %v1255 = vrot.slane %v303, 5
        %v1256 = vsel %vm1189, %v1254, %v1255
        %v1257 = vrot.slane %v1255, 4
        %v1258 = vrot.slane %v327, 5
        %v1259 = vsel %vm1189, %v1257, %v1258
        %v1260 = vrot.slane %v1149, 5
        %v1261 = vrot.slane %v1260, 4
        %v1262 = vrot.slane %v305, 5
        %v1263 = vsel %vm1189, %v1261, %v1262
        %v1264 = vrot.slane %v1262, 4
        %v1265 = vrot.slane %v328, 5
        %v1266 = vsel %vm1189, %v1264, %v1265
        %v1267 = vrot.slane %v1150, 5
        %v1268 = vrot.slane %v1267, 4
        %v1269 = vrot.slane %v307, 5
        %v1270 = vsel %vm1189, %v1268, %v1269
        %v1271 = vrot.slane %v1269, 4
        %v1272 = vrot.slane %v329, 5
        %v1273 = vsel %vm1189, %v1271, %v1272
        %v1274 = vrot.slane %v1151, 5
        %v1275 = vrot.slane %v1274, 4
        %v1276 = vrot.slane %v309, 5
        %v1277 = vsel %vm1189, %v1275, %v1276
        %v1278 = vrot.slane %v1276, 4
        %v1279 = vrot.slane %v330, 5
        %v1280 = vsel %vm1189, %v1278, %v1279
        %v1281 = vrot.slane %v1152, 5
        %v1282 = vrot.slane %v1281, 4
        %v1283 = vrot.slane %v311, 5
        %v1284 = vsel %vm1189, %v1282, %v1283
        %v1285 = vrot.slane %v1283, 4
        %v1286 = vrot.slane %v331, 5
        %v1287 = vsel %vm1189, %v1285, %v1286
        %v1288 = vrot.slane %v1153, 5
        %v1289 = vrot.slane %v1288, 4
        %v1290 = vrot.slane %v313, 5
        %v1291 = vsel %vm1189, %v1289, %v1290
        %v1292 = vrot.slane %v1290, 4
        %v1293 = vrot.slane %v332, 5
        %v1294 = vsel %vm1189, %v1292, %v1293
        %v1295 = vrot.slane %v1154, 5
        %v1296 = vrot.slane %v1295, 4
        %v1297 = vrot.slane %v315, 5
        %v1298 = vsel %vm1189, %v1296, %v1297
        %v1299 = vrot.slane %v1297, 4
        %v1300 = vrot.slane %v333, 5
        %v1301 = vsel %vm1189, %v1299, %v1300
        %s1302 = scalar_lea.vmem %s270, 16
        %v1303 = vld [vmem:[%s1302] sm:$0xf]
        %v1304 = vld [vmem:[%s1302 + $0x4] sm:$0xf]
        %v1305 = vunpack.c.l.b16 %v1193
        %v1306 = vunpack.c.l.b16 %v1196
        %v1307 = vunpack.c.l.b16 %v1200
        %v1308 = vunpack.c.l.b16 %v1203
        %v1309 = vunpack.c.l.b16 %v1207
        %v1310 = vunpack.c.l.b16 %v1210
        %v1311 = vunpack.c.l.b16 %v1214
        %v1312 = vunpack.c.l.b16 %v1217
        %v1313 = vunpack.c.l.b16 %v1221
        %v1314 = vunpack.c.l.b16 %v1224
        %v1315 = vunpack.c.l.b16 %v1228
        %v1316 = vunpack.c.l.b16 %v1231
        %v1317 = vunpack.c.l.b16 %v1235
        %v1318 = vunpack.c.l.b16 %v1238
        %v1319 = vunpack.c.l.b16 %v1242
        %v1320 = vunpack.c.l.b16 %v1245
        %v1321 = vunpack.c.l.b16 %v1249
        %v1322 = vunpack.c.l.b16 %v1252
        %v1323 = vunpack.c.l.b16 %v1256
        %v1324 = vunpack.c.l.b16 %v1259
        %v1325 = vunpack.c.l.b16 %v1263
        %v1326 = vunpack.c.l.b16 %v1266
        %v1327 = vunpack.c.l.b16 %v1270
        %v1328 = vunpack.c.l.b16 %v1273
        %v1329 = vunpack.c.l.b16 %v1277
        %v1330 = vunpack.c.l.b16 %v1280
        %v1331 = vunpack.c.l.b16 %v1284
        %v1332 = vunpack.c.l.b16 %v1287
        %v1333 = vunpack.c.l.b16 %v1291
        %v1334 = vunpack.c.l.b16 %v1294
        %v1335 = vunpack.c.l.b16 %v1298
        %v1336 = vunpack.c.l.b16 %v1301
        %v1337 = vpack.c.b16 %v1306, %v1305
        %v1338 = vpack.c.b16 %v1308, %v1307
        %v1339 = vpack.c.b16 %v1310, %v1309
        %v1340 = vpack.c.b16 %v1312, %v1311
        %v1341 = vpack.c.b16 %v1314, %v1313
        %v1342 = vpack.c.b16 %v1316, %v1315
        %v1343 = vpack.c.b16 %v1318, %v1317
        %v1344 = vpack.c.b16 %v1320, %v1319
        %v1345 = vpack.c.b16 %v1322, %v1321
        %v1346 = vpack.c.b16 %v1324, %v1323
        %v1347 = vpack.c.b16 %v1326, %v1325
        %v1348 = vpack.c.b16 %v1328, %v1327
        %v1349 = vpack.c.b16 %v1330, %v1329
        %v1350 = vpack.c.b16 %v1332, %v1331
        %v1351 = vpack.c.b16 %v1334, %v1333
        %v1352 = vpack.c.b16 %v1336, %v1335
        %v1355 = vunpack.c.l.b16 %v1303
        %v1356 = vunpack.c.l.b16 %v1304
        %v1357 = vpack.c.b16 %v1356, %v1355
        %v1360 = vsel %vm778, %v1337, 0
        %v1363 = vsel %vm778, %v1338, 0
        %v1366 = vsel %vm778, %v1339, 0
        %v1369 = vsel %vm778, %v1340, 0
        %v1372 = vsel %vm778, %v1341, 0
        %v1375 = vsel %vm778, %v1342, 0
        %v1378 = vsel %vm778, %v1343, 0
        %v1381 = vsel %vm778, %v1344, 0
        %v1384 = vsel %vm778, %v1345, 0
        %v1387 = vsel %vm778, %v1346, 0
        %v1390 = vsel %vm778, %v1347, 0
        %v1393 = vsel %vm778, %v1348, 0
        %v1396 = vsel %vm778, %v1349, 0
        %v1399 = vsel %vm778, %v1350, 0
        %v1402 = vsel %vm778, %v1351, 0
        %v1405 = vsel %vm778, %v1352, 0
        %1407 = vmatpush.bf16.msra.mxu0 0
        %1408 = vmatpush.bf16.msra.mxu0 0
        %1409 = vmatpush.bf16.msra.mxu0 0
        %1410 = vmatpush.bf16.msra.mxu0 0
        %1411 = vmatpush.bf16.msra.mxu0 0
        %1412 = vmatpush.bf16.msra.mxu0 0
        %1413 = vmatpush.bf16.msra.mxu0 0
        %1414 = vmatpush.bf16.msra.mxu0 %v1357
        %1415 = vmatmul.bf16.gmra.mxu0 %v1360
        %v1416 = vpop.f32.mrf.mxu0
        %v1417 = vadd.f32 0.0, %v1416
        %v1418 = vpop.f32.mrf.mxu0
        %v1419 = vadd.f32 0.0, %v1418
        %1420 = vmatmul.bf16.gmra.mxu0 %v1363
        %v1421 = vpop.f32.mrf.mxu0
        %v1422 = vadd.f32 0.0, %v1421
        %v1423 = vpop.f32.mrf.mxu0
        %v1424 = vadd.f32 0.0, %v1423
        %1425 = vmatmul.bf16.gmra.mxu0 %v1366
        %v1426 = vpop.f32.mrf.mxu0
        %v1427 = vadd.f32 0.0, %v1426
        %v1428 = vpop.f32.mrf.mxu0
        %v1429 = vadd.f32 0.0, %v1428
        %1430 = vmatmul.bf16.gmra.mxu0 %v1369
        %v1431 = vpop.f32.mrf.mxu0
        %v1432 = vadd.f32 0.0, %v1431
        %v1433 = vpop.f32.mrf.mxu0
        %v1434 = vadd.f32 0.0, %v1433
        %1435 = vmatmul.bf16.gmra.mxu0 %v1372
        %v1436 = vpop.f32.mrf.mxu0
        %v1437 = vadd.f32 0.0, %v1436
        %v1438 = vpop.f32.mrf.mxu0
        %v1439 = vadd.f32 0.0, %v1438
        %1440 = vmatmul.bf16.gmra.mxu0 %v1375
        %v1441 = vpop.f32.mrf.mxu0
        %v1442 = vadd.f32 0.0, %v1441
        %v1443 = vpop.f32.mrf.mxu0
        %v1444 = vadd.f32 0.0, %v1443
        %1445 = vmatmul.bf16.gmra.mxu0 %v1378
        %v1446 = vpop.f32.mrf.mxu0
        %v1447 = vadd.f32 0.0, %v1446
        %v1448 = vpop.f32.mrf.mxu0
        %v1449 = vadd.f32 0.0, %v1448
        %1450 = vmatmul.bf16.gmra.mxu0 %v1381
        %v1451 = vpop.f32.mrf.mxu0
        %v1452 = vadd.f32 0.0, %v1451
        %v1453 = vpop.f32.mrf.mxu0
        %v1454 = vadd.f32 0.0, %v1453
        %1455 = vmatmul.bf16.gmra.mxu0 %v1384
        %v1456 = vpop.f32.mrf.mxu0
        %v1457 = vadd.f32 0.0, %v1456
        %v1458 = vpop.f32.mrf.mxu0
        %v1459 = vadd.f32 0.0, %v1458
        %1460 = vmatmul.bf16.gmra.mxu0 %v1387
        %v1461 = vpop.f32.mrf.mxu0
        %v1462 = vadd.f32 0.0, %v1461
        %v1463 = vpop.f32.mrf.mxu0
        %v1464 = vadd.f32 0.0, %v1463
        %1465 = vmatmul.bf16.gmra.mxu0 %v1390
        %v1466 = vpop.f32.mrf.mxu0
        %v1467 = vadd.f32 0.0, %v1466
        %v1468 = vpop.f32.mrf.mxu0
        %v1469 = vadd.f32 0.0, %v1468
        %1470 = vmatmul.bf16.gmra.mxu0 %v1393
        %v1471 = vpop.f32.mrf.mxu0
        %v1472 = vadd.f32 0.0, %v1471
        %v1473 = vpop.f32.mrf.mxu0
        %v1474 = vadd.f32 0.0, %v1473
        %1475 = vmatmul.bf16.gmra.mxu0 %v1396
        %v1476 = vpop.f32.mrf.mxu0
        %v1477 = vadd.f32 0.0, %v1476
        %v1478 = vpop.f32.mrf.mxu0
        %v1479 = vadd.f32 0.0, %v1478
        %1480 = vmatmul.bf16.gmra.mxu0 %v1399
        %v1481 = vpop.f32.mrf.mxu0
        %v1482 = vadd.f32 0.0, %v1481
        %v1483 = vpop.f32.mrf.mxu0
        %v1484 = vadd.f32 0.0, %v1483
        %1485 = vmatmul.bf16.gmra.mxu0 %v1402
        %v1486 = vpop.f32.mrf.mxu0
        %v1487 = vadd.f32 0.0, %v1486
        %v1488 = vpop.f32.mrf.mxu0
        %v1489 = vadd.f32 0.0, %v1488
        %1490 = vmatmul.bf16.gmra.mxu0 %v1405
        %v1491 = vpop.f32.mrf.mxu0
        %v1492 = vadd.f32 0.0, %v1491
        %v1493 = vpop.f32.mrf.mxu0
        %v1494 = vadd.f32 0.0, %v1493
        %1495 = vdwg.mxu0
        %v1496 = vadd.f32 %v1060, %v1417
        %v1497 = vadd.f32 %v1062, %v1419
        %v1498 = vadd.f32 %v1065, %v1422
        %v1499 = vadd.f32 %v1067, %v1424
        %v1500 = vadd.f32 %v1070, %v1427
        %v1501 = vadd.f32 %v1072, %v1429
        %v1502 = vadd.f32 %v1075, %v1432
        %v1503 = vadd.f32 %v1077, %v1434
        %v1504 = vadd.f32 %v1080, %v1437
        %v1505 = vadd.f32 %v1082, %v1439
        %v1506 = vadd.f32 %v1085, %v1442
        %v1507 = vadd.f32 %v1087, %v1444
        %v1508 = vadd.f32 %v1090, %v1447
        %v1509 = vadd.f32 %v1092, %v1449
        %v1510 = vadd.f32 %v1095, %v1452
        %v1511 = vadd.f32 %v1097, %v1454
        %v1512 = vadd.f32 %v1100, %v1457
        %v1513 = vadd.f32 %v1102, %v1459
        %v1514 = vadd.f32 %v1105, %v1462
        %v1515 = vadd.f32 %v1107, %v1464
        %v1516 = vadd.f32 %v1110, %v1467
        %v1517 = vadd.f32 %v1112, %v1469
        %v1518 = vadd.f32 %v1115, %v1472
        %v1519 = vadd.f32 %v1117, %v1474
        %v1520 = vadd.f32 %v1120, %v1477
        %v1521 = vadd.f32 %v1122, %v1479
        %v1522 = vadd.f32 %v1125, %v1482
        %v1523 = vadd.f32 %v1127, %v1484
        %v1524 = vadd.f32 %v1130, %v1487
        %v1525 = vadd.f32 %v1132, %v1489
        %v1526 = vadd.f32 %v1135, %v1492
        %v1527 = vadd.f32 %v1137, %v1494
        %v1528 = vld [vmem:[%s266 + $0x8] sm:$0x3]
        %v1529 = vld [vmem:[%s266 + $0x14] sm:$0x3]
        %v1530 = vld [vmem:[%s266 + $0x20] sm:$0x3]
        %v1531 = vld [vmem:[%s266 + $0x2c] sm:$0x3]
        %v1532 = vld [vmem:[%s266 + $0x38] sm:$0x3]
        %v1533 = vld [vmem:[%s266 + $0x44] sm:$0x3]
        %v1534 = vld [vmem:[%s266 + $0x50] sm:$0x3]
        %v1535 = vld [vmem:[%s266 + $0x5c] sm:$0x3]
        %v1536 = vld [vmem:[%s266 + $0x68] sm:$0x3]
        %v1537 = vld [vmem:[%s266 + $0x74] sm:$0x3]
        %v1538 = vld [vmem:[%s266 + $0x80] sm:$0x3]
        %v1539 = vld [vmem:[%s266 + $0x8c] sm:$0x3]
        %v1540 = vld [vmem:[%s266 + $0x98] sm:$0x3]
        %v1541 = vld [vmem:[%s266 + $0xa4] sm:$0x3]
        %v1542 = vld [vmem:[%s266 + $0xb0] sm:$0x3]
        %v1543 = vld [vmem:[%s266 + $0xbc] sm:$0x3]
        %vm1544 = vsmask.f32 2304
        %vm1545 = vsmask.f32 6416
        %vm1546 = vmor %vm1544, %vm1545
        %v1548 = vshrl.u32 %v1139, 16
        %v1550 = vrot.slane %v1548, 5
        %v1551 = vshll.u32 %v1139, 16
        %v1553 = vrot.slane %v1551, 6
        %v1554 = vor.u32 %v1550, %v1553
        %v1555 = vrot.slane %v1554, 4
        %v1556 = vrot.slane %v351, 5
        %v1557 = vrot.slane %v347, 6
        %v1558 = vor.u32 %v1556, %v1557
        %v1559 = vsel %vm1546, %v1555, %v1558
        %v1560 = vrot.slane %v1558, 4
        %v1562 = vshrl.u32 %v1528, 16
        %v1564 = vrot.slane %v1562, 5
        %v1565 = vshll.u32 %v1528, 16
        %v1567 = vrot.slane %v1565, 6
        %v1568 = vor.u32 %v1564, %v1567
        %v1569 = vsel %vm1546, %v1560, %v1568
        %v1571 = vshrl.u32 %v1140, 16
        %v1573 = vrot.slane %v1571, 5
        %v1574 = vshll.u32 %v1140, 16
        %v1576 = vrot.slane %v1574, 6
        %v1577 = vor.u32 %v1573, %v1576
        %v1578 = vrot.slane %v1577, 4
        %v1579 = vrot.slane %v375, 5
        %v1580 = vrot.slane %v371, 6
        %v1581 = vor.u32 %v1579, %v1580
        %v1582 = vsel %vm1546, %v1578, %v1581
        %v1583 = vrot.slane %v1581, 4
        %v1585 = vshrl.u32 %v1529, 16
        %v1587 = vrot.slane %v1585, 5
        %v1588 = vshll.u32 %v1529, 16
        %v1590 = vrot.slane %v1588, 6
        %v1591 = vor.u32 %v1587, %v1590
        %v1592 = vsel %vm1546, %v1583, %v1591
        %v1594 = vshrl.u32 %v1141, 16
        %v1596 = vrot.slane %v1594, 5
        %v1597 = vshll.u32 %v1141, 16
        %v1599 = vrot.slane %v1597, 6
        %v1600 = vor.u32 %v1596, %v1599
        %v1601 = vrot.slane %v1600, 4
        %v1602 = vrot.slane %v399, 5
        %v1603 = vrot.slane %v395, 6
        %v1604 = vor.u32 %v1602, %v1603
        %v1605 = vsel %vm1546, %v1601, %v1604
        %v1606 = vrot.slane %v1604, 4
        %v1608 = vshrl.u32 %v1530, 16
        %v1610 = vrot.slane %v1608, 5
        %v1611 = vshll.u32 %v1530, 16
        %v1613 = vrot.slane %v1611, 6
        %v1614 = vor.u32 %v1610, %v1613
        %v1615 = vsel %vm1546, %v1606, %v1614
        %v1617 = vshrl.u32 %v1142, 16
        %v1619 = vrot.slane %v1617, 5
        %v1620 = vshll.u32 %v1142, 16
        %v1622 = vrot.slane %v1620, 6
        %v1623 = vor.u32 %v1619, %v1622
        %v1624 = vrot.slane %v1623, 4
        %v1625 = vrot.slane %v423, 5
        %v1626 = vrot.slane %v419, 6
        %v1627 = vor.u32 %v1625, %v1626
        %v1628 = vsel %vm1546, %v1624, %v1627
        %v1629 = vrot.slane %v1627, 4
        %v1631 = vshrl.u32 %v1531, 16
        %v1633 = vrot.slane %v1631, 5
        %v1634 = vshll.u32 %v1531, 16
        %v1636 = vrot.slane %v1634, 6
        %v1637 = vor.u32 %v1633, %v1636
        %v1638 = vsel %vm1546, %v1629, %v1637
        %v1640 = vshrl.u32 %v1143, 16
        %v1642 = vrot.slane %v1640, 5
        %v1643 = vshll.u32 %v1143, 16
        %v1645 = vrot.slane %v1643, 6
        %v1646 = vor.u32 %v1642, %v1645
        %v1647 = vrot.slane %v1646, 4
        %v1648 = vrot.slane %v447, 5
        %v1649 = vrot.slane %v443, 6
        %v1650 = vor.u32 %v1648, %v1649
        %v1651 = vsel %vm1546, %v1647, %v1650
        %v1652 = vrot.slane %v1650, 4
        %v1654 = vshrl.u32 %v1532, 16
        %v1656 = vrot.slane %v1654, 5
        %v1657 = vshll.u32 %v1532, 16
        %v1659 = vrot.slane %v1657, 6
        %v1660 = vor.u32 %v1656, %v1659
        %v1661 = vsel %vm1546, %v1652, %v1660
        %v1663 = vshrl.u32 %v1144, 16
        %v1665 = vrot.slane %v1663, 5
        %v1666 = vshll.u32 %v1144, 16
        %v1668 = vrot.slane %v1666, 6
        %v1669 = vor.u32 %v1665, %v1668
        %v1670 = vrot.slane %v1669, 4
        %v1671 = vrot.slane %v471, 5
        %v1672 = vrot.slane %v467, 6
        %v1673 = vor.u32 %v1671, %v1672
        %v1674 = vsel %vm1546, %v1670, %v1673
        %v1675 = vrot.slane %v1673, 4
        %v1677 = vshrl.u32 %v1533, 16
        %v1679 = vrot.slane %v1677, 5
        %v1680 = vshll.u32 %v1533, 16
        %v1682 = vrot.slane %v1680, 6
        %v1683 = vor.u32 %v1679, %v1682
        %v1684 = vsel %vm1546, %v1675, %v1683
        %v1686 = vshrl.u32 %v1145, 16
        %v1688 = vrot.slane %v1686, 5
        %v1689 = vshll.u32 %v1145, 16
        %v1691 = vrot.slane %v1689, 6
        %v1692 = vor.u32 %v1688, %v1691
        %v1693 = vrot.slane %v1692, 4
        %v1694 = vrot.slane %v495, 5
        %v1695 = vrot.slane %v491, 6
        %v1696 = vor.u32 %v1694, %v1695
        %v1697 = vsel %vm1546, %v1693, %v1696
        %v1698 = vrot.slane %v1696, 4
        %v1700 = vshrl.u32 %v1534, 16
        %v1702 = vrot.slane %v1700, 5
        %v1703 = vshll.u32 %v1534, 16
        %v1705 = vrot.slane %v1703, 6
        %v1706 = vor.u32 %v1702, %v1705
        %v1707 = vsel %vm1546, %v1698, %v1706
        %v1709 = vshrl.u32 %v1146, 16
        %v1711 = vrot.slane %v1709, 5
        %v1712 = vshll.u32 %v1146, 16
        %v1714 = vrot.slane %v1712, 6
        %v1715 = vor.u32 %v1711, %v1714
        %v1716 = vrot.slane %v1715, 4
        %v1717 = vrot.slane %v519, 5
        %v1718 = vrot.slane %v515, 6
        %v1719 = vor.u32 %v1717, %v1718
        %v1720 = vsel %vm1546, %v1716, %v1719
        %v1721 = vrot.slane %v1719, 4
        %v1723 = vshrl.u32 %v1535, 16
        %v1725 = vrot.slane %v1723, 5
        %v1726 = vshll.u32 %v1535, 16
        %v1728 = vrot.slane %v1726, 6
        %v1729 = vor.u32 %v1725, %v1728
        %v1730 = vsel %vm1546, %v1721, %v1729
        %v1732 = vshrl.u32 %v1147, 16
        %v1734 = vrot.slane %v1732, 5
        %v1735 = vshll.u32 %v1147, 16
        %v1737 = vrot.slane %v1735, 6
        %v1738 = vor.u32 %v1734, %v1737
        %v1739 = vrot.slane %v1738, 4
        %v1740 = vrot.slane %v543, 5
        %v1741 = vrot.slane %v539, 6
        %v1742 = vor.u32 %v1740, %v1741
        %v1743 = vsel %vm1546, %v1739, %v1742
        %v1744 = vrot.slane %v1742, 4
        %v1746 = vshrl.u32 %v1536, 16
        %v1748 = vrot.slane %v1746, 5
        %v1749 = vshll.u32 %v1536, 16
        %v1751 = vrot.slane %v1749, 6
        %v1752 = vor.u32 %v1748, %v1751
        %v1753 = vsel %vm1546, %v1744, %v1752
        %v1755 = vshrl.u32 %v1148, 16
        %v1757 = vrot.slane %v1755, 5
        %v1758 = vshll.u32 %v1148, 16
        %v1760 = vrot.slane %v1758, 6
        %v1761 = vor.u32 %v1757, %v1760
        %v1762 = vrot.slane %v1761, 4
        %v1763 = vrot.slane %v567, 5
        %v1764 = vrot.slane %v563, 6
        %v1765 = vor.u32 %v1763, %v1764
        %v1766 = vsel %vm1546, %v1762, %v1765
        %v1767 = vrot.slane %v1765, 4
        %v1769 = vshrl.u32 %v1537, 16
        %v1771 = vrot.slane %v1769, 5
        %v1772 = vshll.u32 %v1537, 16
        %v1774 = vrot.slane %v1772, 6
        %v1775 = vor.u32 %v1771, %v1774
        %v1776 = vsel %vm1546, %v1767, %v1775
        %v1778 = vshrl.u32 %v1149, 16
        %v1780 = vrot.slane %v1778, 5
        %v1781 = vshll.u32 %v1149, 16
        %v1783 = vrot.slane %v1781, 6
        %v1784 = vor.u32 %v1780, %v1783
        %v1785 = vrot.slane %v1784, 4
        %v1786 = vrot.slane %v591, 5
        %v1787 = vrot.slane %v587, 6
        %v1788 = vor.u32 %v1786, %v1787
        %v1789 = vsel %vm1546, %v1785, %v1788
        %v1790 = vrot.slane %v1788, 4
        %v1792 = vshrl.u32 %v1538, 16
        %v1794 = vrot.slane %v1792, 5
        %v1795 = vshll.u32 %v1538, 16
        %v1797 = vrot.slane %v1795, 6
        %v1798 = vor.u32 %v1794, %v1797
        %v1799 = vsel %vm1546, %v1790, %v1798
        %v1801 = vshrl.u32 %v1150, 16
        %v1803 = vrot.slane %v1801, 5
        %v1804 = vshll.u32 %v1150, 16
        %v1806 = vrot.slane %v1804, 6
        %v1807 = vor.u32 %v1803, %v1806
        %v1808 = vrot.slane %v1807, 4
        %v1809 = vrot.slane %v615, 5
        %v1810 = vrot.slane %v611, 6
        %v1811 = vor.u32 %v1809, %v1810
        %v1812 = vsel %vm1546, %v1808, %v1811
        %v1813 = vrot.slane %v1811, 4
        %v1815 = vshrl.u32 %v1539, 16
        %v1817 = vrot.slane %v1815, 5
        %v1818 = vshll.u32 %v1539, 16
        %v1820 = vrot.slane %v1818, 6
        %v1821 = vor.u32 %v1817, %v1820
        %v1822 = vsel %vm1546, %v1813, %v1821
        %v1824 = vshrl.u32 %v1151, 16
        %v1826 = vrot.slane %v1824, 5
        %v1827 = vshll.u32 %v1151, 16
        %v1829 = vrot.slane %v1827, 6
        %v1830 = vor.u32 %v1826, %v1829
        %v1831 = vrot.slane %v1830, 4
        %v1832 = vrot.slane %v639, 5
        %v1833 = vrot.slane %v635, 6
        %v1834 = vor.u32 %v1832, %v1833
        %v1835 = vsel %vm1546, %v1831, %v1834
        %v1836 = vrot.slane %v1834, 4
        %v1838 = vshrl.u32 %v1540, 16
        %v1840 = vrot.slane %v1838, 5
        %v1841 = vshll.u32 %v1540, 16
        %v1843 = vrot.slane %v1841, 6
        %v1844 = vor.u32 %v1840, %v1843
        %v1845 = vsel %vm1546, %v1836, %v1844
        %v1847 = vshrl.u32 %v1152, 16
        %v1849 = vrot.slane %v1847, 5
        %v1850 = vshll.u32 %v1152, 16
        %v1852 = vrot.slane %v1850, 6
        %v1853 = vor.u32 %v1849, %v1852
        %v1854 = vrot.slane %v1853, 4
        %v1855 = vrot.slane %v663, 5
        %v1856 = vrot.slane %v659, 6
        %v1857 = vor.u32 %v1855, %v1856
        %v1858 = vsel %vm1546, %v1854, %v1857
        %v1859 = vrot.slane %v1857, 4
        %v1861 = vshrl.u32 %v1541, 16
        %v1863 = vrot.slane %v1861, 5
        %v1864 = vshll.u32 %v1541, 16
        %v1866 = vrot.slane %v1864, 6
        %v1867 = vor.u32 %v1863, %v1866
        %v1868 = vsel %vm1546, %v1859, %v1867
        %v1870 = vshrl.u32 %v1153, 16
        %v1872 = vrot.slane %v1870, 5
        %v1873 = vshll.u32 %v1153, 16
        %v1875 = vrot.slane %v1873, 6
        %v1876 = vor.u32 %v1872, %v1875
        %v1877 = vrot.slane %v1876, 4
        %v1878 = vrot.slane %v687, 5
        %v1879 = vrot.slane %v683, 6
        %v1880 = vor.u32 %v1878, %v1879
        %v1881 = vsel %vm1546, %v1877, %v1880
        %v1882 = vrot.slane %v1880, 4
        %v1884 = vshrl.u32 %v1542, 16
        %v1886 = vrot.slane %v1884, 5
        %v1887 = vshll.u32 %v1542, 16
        %v1889 = vrot.slane %v1887, 6
        %v1890 = vor.u32 %v1886, %v1889
        %v1891 = vsel %vm1546, %v1882, %v1890
        %v1893 = vshrl.u32 %v1154, 16
        %v1895 = vrot.slane %v1893, 5
        %v1896 = vshll.u32 %v1154, 16
        %v1898 = vrot.slane %v1896, 6
        %v1899 = vor.u32 %v1895, %v1898
        %v1900 = vrot.slane %v1899, 4
        %v1901 = vrot.slane %v711, 5
        %v1902 = vrot.slane %v707, 6
        %v1903 = vor.u32 %v1901, %v1902
        %v1904 = vsel %vm1546, %v1900, %v1903
        %v1905 = vrot.slane %v1903, 4
        %v1907 = vshrl.u32 %v1543, 16
        %v1909 = vrot.slane %v1907, 5
        %v1910 = vshll.u32 %v1543, 16
        %v1912 = vrot.slane %v1910, 6
        %v1913 = vor.u32 %v1909, %v1912
        %v1914 = vsel %vm1546, %v1905, %v1913
        %s1915 = scalar_lea.vmem %s270, 24
        %v1916 = vld [vmem:[%s1915] sm:$0xf]
        %v1917 = vld [vmem:[%s1915 + $0x4] sm:$0xf]
        %v1918 = vunpack.c.l.b16 %v1559
        %v1919 = vunpack.c.l.b16 %v1569
        %v1920 = vunpack.c.l.b16 %v1582
        %v1921 = vunpack.c.l.b16 %v1592
        %v1922 = vunpack.c.l.b16 %v1605
        %v1923 = vunpack.c.l.b16 %v1615
        %v1924 = vunpack.c.l.b16 %v1628
        %v1925 = vunpack.c.l.b16 %v1638
        %v1926 = vunpack.c.l.b16 %v1651
        %v1927 = vunpack.c.l.b16 %v1661
        %v1928 = vunpack.c.l.b16 %v1674
        %v1929 = vunpack.c.l.b16 %v1684
        %v1930 = vunpack.c.l.b16 %v1697
        %v1931 = vunpack.c.l.b16 %v1707
        %v1932 = vunpack.c.l.b16 %v1720
        %v1933 = vunpack.c.l.b16 %v1730
        %v1934 = vunpack.c.l.b16 %v1743
        %v1935 = vunpack.c.l.b16 %v1753
        %v1936 = vunpack.c.l.b16 %v1766
        %v1937 = vunpack.c.l.b16 %v1776
        %v1938 = vunpack.c.l.b16 %v1789
        %v1939 = vunpack.c.l.b16 %v1799
        %v1940 = vunpack.c.l.b16 %v1812
        %v1941 = vunpack.c.l.b16 %v1822
        %v1942 = vunpack.c.l.b16 %v1835
        %v1943 = vunpack.c.l.b16 %v1845
        %v1944 = vunpack.c.l.b16 %v1858
        %v1945 = vunpack.c.l.b16 %v1868
        %v1946 = vunpack.c.l.b16 %v1881
        %v1947 = vunpack.c.l.b16 %v1891
        %v1948 = vunpack.c.l.b16 %v1904
        %v1949 = vunpack.c.l.b16 %v1914
        %v1950 = vpack.c.b16 %v1919, %v1918
        %v1951 = vpack.c.b16 %v1921, %v1920
        %v1952 = vpack.c.b16 %v1923, %v1922
        %v1953 = vpack.c.b16 %v1925, %v1924
        %v1954 = vpack.c.b16 %v1927, %v1926
        %v1955 = vpack.c.b16 %v1929, %v1928
        %v1956 = vpack.c.b16 %v1931, %v1930
        %v1957 = vpack.c.b16 %v1933, %v1932
        %v1958 = vpack.c.b16 %v1935, %v1934
        %v1959 = vpack.c.b16 %v1937, %v1936
        %v1960 = vpack.c.b16 %v1939, %v1938
        %v1961 = vpack.c.b16 %v1941, %v1940
        %v1962 = vpack.c.b16 %v1943, %v1942
        %v1963 = vpack.c.b16 %v1945, %v1944
        %v1964 = vpack.c.b16 %v1947, %v1946
        %v1965 = vpack.c.b16 %v1949, %v1948
        %v1968 = vunpack.c.l.b16 %v1916
        %v1969 = vunpack.c.l.b16 %v1917
        %v1970 = vpack.c.b16 %v1969, %v1968
        %v1973 = vsel %vm778, %v1950, 0
        %v1976 = vsel %vm778, %v1951, 0
        %v1979 = vsel %vm778, %v1952, 0
        %v1982 = vsel %vm778, %v1953, 0
        %v1985 = vsel %vm778, %v1954, 0
        %v1988 = vsel %vm778, %v1955, 0
        %v1991 = vsel %vm778, %v1956, 0
        %v1994 = vsel %vm778, %v1957, 0
        %v1997 = vsel %vm778, %v1958, 0
        %v2000 = vsel %vm778, %v1959, 0
        %v2003 = vsel %vm778, %v1960, 0
        %v2006 = vsel %vm778, %v1961, 0
        %v2009 = vsel %vm778, %v1962, 0
        %v2012 = vsel %vm778, %v1963, 0
        %v2015 = vsel %vm778, %v1964, 0
        %v2018 = vsel %vm778, %v1965, 0
        %2020 = vmatpush.bf16.msra.mxu0 0
        %2021 = vmatpush.bf16.msra.mxu0 0
        %2022 = vmatpush.bf16.msra.mxu0 0
        %2023 = vmatpush.bf16.msra.mxu0 0
        %2024 = vmatpush.bf16.msra.mxu0 0
        %2025 = vmatpush.bf16.msra.mxu0 0
        %2026 = vmatpush.bf16.msra.mxu0 0
        %2027 = vmatpush.bf16.msra.mxu0 %v1970
        %2028 = vmatmul.bf16.gmra.mxu0 %v1973
        %v2029 = vpop.f32.mrf.mxu0
        %v2030 = vadd.f32 0.0, %v2029
        %v2031 = vpop.f32.mrf.mxu0
        %v2032 = vadd.f32 0.0, %v2031
        %2033 = vmatmul.bf16.gmra.mxu0 %v1976
        %v2034 = vpop.f32.mrf.mxu0
        %v2035 = vadd.f32 0.0, %v2034
        %v2036 = vpop.f32.mrf.mxu0
        %v2037 = vadd.f32 0.0, %v2036
        %2038 = vmatmul.bf16.gmra.mxu0 %v1979
        %v2039 = vpop.f32.mrf.mxu0
        %v2040 = vadd.f32 0.0, %v2039
        %v2041 = vpop.f32.mrf.mxu0
        %v2042 = vadd.f32 0.0, %v2041
        %2043 = vmatmul.bf16.gmra.mxu0 %v1982
        %v2044 = vpop.f32.mrf.mxu0
        %v2045 = vadd.f32 0.0, %v2044
        %v2046 = vpop.f32.mrf.mxu0
        %v2047 = vadd.f32 0.0, %v2046
        %2048 = vmatmul.bf16.gmra.mxu0 %v1985
        %v2049 = vpop.f32.mrf.mxu0
        %v2050 = vadd.f32 0.0, %v2049
        %v2051 = vpop.f32.mrf.mxu0
        %v2052 = vadd.f32 0.0, %v2051
        %2053 = vmatmul.bf16.gmra.mxu0 %v1988
        %v2054 = vpop.f32.mrf.mxu0
        %v2055 = vadd.f32 0.0, %v2054
        %v2056 = vpop.f32.mrf.mxu0
        %v2057 = vadd.f32 0.0, %v2056
        %2058 = vmatmul.bf16.gmra.mxu0 %v1991
        %v2059 = vpop.f32.mrf.mxu0
        %v2060 = vadd.f32 0.0, %v2059
        %v2061 = vpop.f32.mrf.mxu0
        %v2062 = vadd.f32 0.0, %v2061
        %2063 = vmatmul.bf16.gmra.mxu0 %v1994
        %v2064 = vpop.f32.mrf.mxu0
        %v2065 = vadd.f32 0.0, %v2064
        %v2066 = vpop.f32.mrf.mxu0
        %v2067 = vadd.f32 0.0, %v2066
        %2068 = vmatmul.bf16.gmra.mxu0 %v1997
        %v2069 = vpop.f32.mrf.mxu0
        %v2070 = vadd.f32 0.0, %v2069
        %v2071 = vpop.f32.mrf.mxu0
        %v2072 = vadd.f32 0.0, %v2071
        %2073 = vmatmul.bf16.gmra.mxu0 %v2000
        %v2074 = vpop.f32.mrf.mxu0
        %v2075 = vadd.f32 0.0, %v2074
        %v2076 = vpop.f32.mrf.mxu0
        %v2077 = vadd.f32 0.0, %v2076
        %2078 = vmatmul.bf16.gmra.mxu0 %v2003
        %v2079 = vpop.f32.mrf.mxu0
        %v2080 = vadd.f32 0.0, %v2079
        %v2081 = vpop.f32.mrf.mxu0
        %v2082 = vadd.f32 0.0, %v2081
        %2083 = vmatmul.bf16.gmra.mxu0 %v2006
        %v2084 = vpop.f32.mrf.mxu0
        %v2085 = vadd.f32 0.0, %v2084
        %v2086 = vpop.f32.mrf.mxu0
        %v2087 = vadd.f32 0.0, %v2086
        %2088 = vmatmul.bf16.gmra.mxu0 %v2009
        %v2089 = vpop.f32.mrf.mxu0
        %v2090 = vadd.f32 0.0, %v2089
        %v2091 = vpop.f32.mrf.mxu0
        %v2092 = vadd.f32 0.0, %v2091
        %2093 = vmatmul.bf16.gmra.mxu0 %v2012
        %v2094 = vpop.f32.mrf.mxu0
        %v2095 = vadd.f32 0.0, %v2094
        %v2096 = vpop.f32.mrf.mxu0
        %v2097 = vadd.f32 0.0, %v2096
        %2098 = vmatmul.bf16.gmra.mxu0 %v2015
        %v2099 = vpop.f32.mrf.mxu0
        %v2100 = vadd.f32 0.0, %v2099
        %v2101 = vpop.f32.mrf.mxu0
        %v2102 = vadd.f32 0.0, %v2101
        %2103 = vmatmul.bf16.gmra.mxu0 %v2018
        %v2104 = vpop.f32.mrf.mxu0
        %v2105 = vadd.f32 0.0, %v2104
        %v2106 = vpop.f32.mrf.mxu0
        %v2107 = vadd.f32 0.0, %v2106
        %2108 = vdwg.mxu0
        %v2109 = vadd.f32 %v1496, %v2030
        %v2110 = vadd.f32 %v1497, %v2032
        %v2111 = vadd.f32 %v1498, %v2035
        %v2112 = vadd.f32 %v1499, %v2037
        %v2113 = vadd.f32 %v1500, %v2040
        %v2114 = vadd.f32 %v1501, %v2042
        %v2115 = vadd.f32 %v1502, %v2045
        %v2116 = vadd.f32 %v1503, %v2047
        %v2117 = vadd.f32 %v1504, %v2050
        %v2118 = vadd.f32 %v1505, %v2052
        %v2119 = vadd.f32 %v1506, %v2055
        %v2120 = vadd.f32 %v1507, %v2057
        %v2121 = vadd.f32 %v1508, %v2060
        %v2122 = vadd.f32 %v1509, %v2062
        %v2123 = vadd.f32 %v1510, %v2065
        %v2124 = vadd.f32 %v1511, %v2067
        %v2125 = vadd.f32 %v1512, %v2070
        %v2126 = vadd.f32 %v1513, %v2072
        %v2127 = vadd.f32 %v1514, %v2075
        %v2128 = vadd.f32 %v1515, %v2077
        %v2129 = vadd.f32 %v1516, %v2080
        %v2130 = vadd.f32 %v1517, %v2082
        %v2131 = vadd.f32 %v1518, %v2085
        %v2132 = vadd.f32 %v1519, %v2087
        %v2133 = vadd.f32 %v1520, %v2090
        %v2134 = vadd.f32 %v1521, %v2092
        %v2135 = vadd.f32 %v1522, %v2095
        %v2136 = vadd.f32 %v1523, %v2097
        %v2137 = vadd.f32 %v1524, %v2100
        %v2138 = vadd.f32 %v1525, %v2102
        %v2139 = vadd.f32 %v1526, %v2105
        %v2140 = vadd.f32 %v1527, %v2107
        %v2141 = vld [vmem:[%s266] sm:$0xc]
        %v2142 = vld [vmem:[%s266 + $0xc] sm:$0xc]
        %v2143 = vld [vmem:[%s266 + $0x18] sm:$0xc]
        %v2144 = vld [vmem:[%s266 + $0x24] sm:$0xc]
        %v2145 = vld [vmem:[%s266 + $0x30] sm:$0xc]
        %v2146 = vld [vmem:[%s266 + $0x3c] sm:$0xc]
        %v2147 = vld [vmem:[%s266 + $0x48] sm:$0xc]
        %v2148 = vld [vmem:[%s266 + $0x54] sm:$0xc]
        %v2149 = vld [vmem:[%s266 + $0x60] sm:$0xc]
        %v2150 = vld [vmem:[%s266 + $0x6c] sm:$0xc]
        %v2151 = vld [vmem:[%s266 + $0x78] sm:$0xc]
        %v2152 = vld [vmem:[%s266 + $0x84] sm:$0xc]
        %v2153 = vld [vmem:[%s266 + $0x90] sm:$0xc]
        %v2154 = vld [vmem:[%s266 + $0x9c] sm:$0xc]
        %v2155 = vld [vmem:[%s266 + $0xa8] sm:$0xc]
        %v2156 = vld [vmem:[%s266 + $0xb4] sm:$0xc]
        %vm2189 = vcmask 1041408
        %vm2190 = vcmask 1045508
        %vm2191 = vmor %vm2189, %vm2190
        %v2192 = vrot.slane %v2141, 6
        %v2193 = vrot.slane %v2192, 4
        %v2194 = vrot.slane %v285, 6
        %v2195 = vsel %vm2191, %v2193, %v2194
        %v2196 = vrot.slane %v2194, 4
        %v2197 = vrot.slane %v1528, 6
        %v2198 = vsel %vm2191, %v2196, %v2197
        %v2199 = vrot.slane %v2142, 6
        %v2200 = vrot.slane %v2199, 4
        %v2201 = vrot.slane %v287, 6
        %v2202 = vsel %vm2191, %v2200, %v2201
        %v2203 = vrot.slane %v2201, 4
        %v2204 = vrot.slane %v1529, 6
        %v2205 = vsel %vm2191, %v2203, %v2204
        %v2206 = vrot.slane %v2143, 6
        %v2207 = vrot.slane %v2206, 4
        %v2208 = vrot.slane %v289, 6
        %v2209 = vsel %vm2191, %v2207, %v2208
        %v2210 = vrot.slane %v2208, 4
        %v2211 = vrot.slane %v1530, 6
        %v2212 = vsel %vm2191, %v2210, %v2211
        %v2213 = vrot.slane %v2144, 6
        %v2214 = vrot.slane %v2213, 4
        %v2215 = vrot.slane %v291, 6
        %v2216 = vsel %vm2191, %v2214, %v2215
        %v2217 = vrot.slane %v2215, 4
        %v2218 = vrot.slane %v1531, 6
        %v2219 = vsel %vm2191, %v2217, %v2218
        %v2220 = vrot.slane %v2145, 6
        %v2221 = vrot.slane %v2220, 4
        %v2222 = vrot.slane %v293, 6
        %v2223 = vsel %vm2191, %v2221, %v2222
        %v2224 = vrot.slane %v2222, 4
        %v2225 = vrot.slane %v1532, 6
        %v2226 = vsel %vm2191, %v2224, %v2225
        %v2227 = vrot.slane %v2146, 6
        %v2228 = vrot.slane %v2227, 4
        %v2229 = vrot.slane %v295, 6
        %v2230 = vsel %vm2191, %v2228, %v2229
        %v2231 = vrot.slane %v2229, 4
        %v2232 = vrot.slane %v1533, 6
        %v2233 = vsel %vm2191, %v2231, %v2232
        %v2234 = vrot.slane %v2147, 6
        %v2235 = vrot.slane %v2234, 4
        %v2236 = vrot.slane %v297, 6
        %v2237 = vsel %vm2191, %v2235, %v2236
        %v2238 = vrot.slane %v2236, 4
        %v2239 = vrot.slane %v1534, 6
        %v2240 = vsel %vm2191, %v2238, %v2239
        %v2241 = vrot.slane %v2148, 6
        %v2242 = vrot.slane %v2241, 4
        %v2243 = vrot.slane %v299, 6
        %v2244 = vsel %vm2191, %v2242, %v2243
        %v2245 = vrot.slane %v2243, 4
        %v2246 = vrot.slane %v1535, 6
        %v2247 = vsel %vm2191, %v2245, %v2246
        %v2248 = vrot.slane %v2149, 6
        %v2249 = vrot.slane %v2248, 4
        %v2250 = vrot.slane %v301, 6
        %v2251 = vsel %vm2191, %v2249, %v2250
        %v2252 = vrot.slane %v2250, 4
        %v2253 = vrot.slane %v1536, 6
        %v2254 = vsel %vm2191, %v2252, %v2253
        %v2255 = vrot.slane %v2150, 6
        %v2256 = vrot.slane %v2255, 4
        %v2257 = vrot.slane %v303, 6
        %v2258 = vsel %vm2191, %v2256, %v2257
        %v2259 = vrot.slane %v2257, 4
        %v2260 = vrot.slane %v1537, 6
        %v2261 = vsel %vm2191, %v2259, %v2260
        %v2262 = vrot.slane %v2151, 6
        %v2263 = vrot.slane %v2262, 4
        %v2264 = vrot.slane %v305, 6
        %v2265 = vsel %vm2191, %v2263, %v2264
        %v2266 = vrot.slane %v2264, 4
        %v2267 = vrot.slane %v1538, 6
        %v2268 = vsel %vm2191, %v2266, %v2267
        %v2269 = vrot.slane %v2152, 6
        %v2270 = vrot.slane %v2269, 4
        %v2271 = vrot.slane %v307, 6
        %v2272 = vsel %vm2191, %v2270, %v2271
        %v2273 = vrot.slane %v2271, 4
        %v2274 = vrot.slane %v1539, 6
        %v2275 = vsel %vm2191, %v2273, %v2274
        %v2276 = vrot.slane %v2153, 6
        %v2277 = vrot.slane %v2276, 4
        %v2278 = vrot.slane %v309, 6
        %v2279 = vsel %vm2191, %v2277, %v2278
        %v2280 = vrot.slane %v2278, 4
        %v2281 = vrot.slane %v1540, 6
        %v2282 = vsel %vm2191, %v2280, %v2281
        %v2283 = vrot.slane %v2154, 6
        %v2284 = vrot.slane %v2283, 4
        %v2285 = vrot.slane %v311, 6
        %v2286 = vsel %vm2191, %v2284, %v2285
        %v2287 = vrot.slane %v2285, 4
        %v2288 = vrot.slane %v1541, 6
        %v2289 = vsel %vm2191, %v2287, %v2288
        %v2290 = vrot.slane %v2155, 6
        %v2291 = vrot.slane %v2290, 4
        %v2292 = vrot.slane %v313, 6
        %v2293 = vsel %vm2191, %v2291, %v2292
        %v2294 = vrot.slane %v2292, 4
        %v2295 = vrot.slane %v1542, 6
        %v2296 = vsel %vm2191, %v2294, %v2295
        %v2297 = vrot.slane %v2156, 6
        %v2298 = vrot.slane %v2297, 4
        %v2299 = vrot.slane %v315, 6
        %v2300 = vsel %vm2191, %v2298, %v2299
        %v2301 = vrot.slane %v2299, 4
        %v2302 = vrot.slane %v1543, 6
        %v2303 = vsel %vm2191, %v2301, %v2302
        %s2304 = scalar_lea.vmem %s270, 32
        %v2305 = vld [vmem:[%s2304] sm:$0xf]
        %v2306 = vld [vmem:[%s2304 + $0x4] sm:$0xf]
        %v2307 = vunpack.c.l.b16 %v2195
        %v2308 = vunpack.c.l.b16 %v2198
        %v2309 = vunpack.c.l.b16 %v2202
        %v2310 = vunpack.c.l.b16 %v2205
        %v2311 = vunpack.c.l.b16 %v2209
        %v2312 = vunpack.c.l.b16 %v2212
        %v2313 = vunpack.c.l.b16 %v2216
        %v2314 = vunpack.c.l.b16 %v2219
        %v2315 = vunpack.c.l.b16 %v2223
        %v2316 = vunpack.c.l.b16 %v2226
        %v2317 = vunpack.c.l.b16 %v2230
        %v2318 = vunpack.c.l.b16 %v2233
        %v2319 = vunpack.c.l.b16 %v2237
        %v2320 = vunpack.c.l.b16 %v2240
        %v2321 = vunpack.c.l.b16 %v2244
        %v2322 = vunpack.c.l.b16 %v2247
        %v2323 = vunpack.c.l.b16 %v2251
        %v2324 = vunpack.c.l.b16 %v2254
        %v2325 = vunpack.c.l.b16 %v2258
        %v2326 = vunpack.c.l.b16 %v2261
        %v2327 = vunpack.c.l.b16 %v2265
        %v2328 = vunpack.c.l.b16 %v2268
        %v2329 = vunpack.c.l.b16 %v2272
        %v2330 = vunpack.c.l.b16 %v2275
        %v2331 = vunpack.c.l.b16 %v2279
        %v2332 = vunpack.c.l.b16 %v2282
        %v2333 = vunpack.c.l.b16 %v2286
        %v2334 = vunpack.c.l.b16 %v2289
        %v2335 = vunpack.c.l.b16 %v2293
        %v2336 = vunpack.c.l.b16 %v2296
        %v2337 = vunpack.c.l.b16 %v2300
        %v2338 = vunpack.c.l.b16 %v2303
        %v2339 = vpack.c.b16 %v2308, %v2307
        %v2340 = vpack.c.b16 %v2310, %v2309
        %v2341 = vpack.c.b16 %v2312, %v2311
        %v2342 = vpack.c.b16 %v2314, %v2313
        %v2343 = vpack.c.b16 %v2316, %v2315
        %v2344 = vpack.c.b16 %v2318, %v2317
        %v2345 = vpack.c.b16 %v2320, %v2319
        %v2346 = vpack.c.b16 %v2322, %v2321
        %v2347 = vpack.c.b16 %v2324, %v2323
        %v2348 = vpack.c.b16 %v2326, %v2325
        %v2349 = vpack.c.b16 %v2328, %v2327
        %v2350 = vpack.c.b16 %v2330, %v2329
        %v2351 = vpack.c.b16 %v2332, %v2331
        %v2352 = vpack.c.b16 %v2334, %v2333
        %v2353 = vpack.c.b16 %v2336, %v2335
        %v2354 = vpack.c.b16 %v2338, %v2337
        %v2357 = vunpack.c.l.b16 %v2305
        %v2358 = vunpack.c.l.b16 %v2306
        %v2359 = vpack.c.b16 %v2358, %v2357
        %v2362 = vsel %vm778, %v2339, 0
        %v2365 = vsel %vm778, %v2340, 0
        %v2368 = vsel %vm778, %v2341, 0
        %v2371 = vsel %vm778, %v2342, 0
        %v2374 = vsel %vm778, %v2343, 0
        %v2377 = vsel %vm778, %v2344, 0
        %v2380 = vsel %vm778, %v2345, 0
        %v2383 = vsel %vm778, %v2346, 0
        %v2386 = vsel %vm778, %v2347, 0
        %v2389 = vsel %vm778, %v2348, 0
        %v2392 = vsel %vm778, %v2349, 0
        %v2395 = vsel %vm778, %v2350, 0
        %v2398 = vsel %vm778, %v2351, 0
        %v2401 = vsel %vm778, %v2352, 0
        %v2404 = vsel %vm778, %v2353, 0
        %v2407 = vsel %vm778, %v2354, 0
        %2409 = vmatpush.bf16.msra.mxu0 0
        %2410 = vmatpush.bf16.msra.mxu0 0
        %2411 = vmatpush.bf16.msra.mxu0 0
        %2412 = vmatpush.bf16.msra.mxu0 0
        %2413 = vmatpush.bf16.msra.mxu0 0
        %2414 = vmatpush.bf16.msra.mxu0 0
        %2415 = vmatpush.bf16.msra.mxu0 0
        %2416 = vmatpush.bf16.msra.mxu0 %v2359
        %2417 = vmatmul.bf16.gmra.mxu0 %v2362
        %v2418 = vpop.f32.mrf.mxu0
        %v2419 = vadd.f32 0.0, %v2418
        %v2420 = vpop.f32.mrf.mxu0
        %v2421 = vadd.f32 0.0, %v2420
        %2422 = vmatmul.bf16.gmra.mxu0 %v2365
        %v2423 = vpop.f32.mrf.mxu0
        %v2424 = vadd.f32 0.0, %v2423
        %v2425 = vpop.f32.mrf.mxu0
        %v2426 = vadd.f32 0.0, %v2425
        %2427 = vmatmul.bf16.gmra.mxu0 %v2368
        %v2428 = vpop.f32.mrf.mxu0
        %v2429 = vadd.f32 0.0, %v2428
        %v2430 = vpop.f32.mrf.mxu0
        %v2431 = vadd.f32 0.0, %v2430
        %2432 = vmatmul.bf16.gmra.mxu0 %v2371
        %v2433 = vpop.f32.mrf.mxu0
        %v2434 = vadd.f32 0.0, %v2433
        %v2435 = vpop.f32.mrf.mxu0
        %v2436 = vadd.f32 0.0, %v2435
        %2437 = vmatmul.bf16.gmra.mxu0 %v2374
        %v2438 = vpop.f32.mrf.mxu0
        %v2439 = vadd.f32 0.0, %v2438
        %v2440 = vpop.f32.mrf.mxu0
        %v2441 = vadd.f32 0.0, %v2440
        %2442 = vmatmul.bf16.gmra.mxu0 %v2377
        %v2443 = vpop.f32.mrf.mxu0
        %v2444 = vadd.f32 0.0, %v2443
        %v2445 = vpop.f32.mrf.mxu0
        %v2446 = vadd.f32 0.0, %v2445
        %2447 = vmatmul.bf16.gmra.mxu0 %v2380
        %v2448 = vpop.f32.mrf.mxu0
        %v2449 = vadd.f32 0.0, %v2448
        %v2450 = vpop.f32.mrf.mxu0
        %v2451 = vadd.f32 0.0, %v2450
        %2452 = vmatmul.bf16.gmra.mxu0 %v2383
        %v2453 = vpop.f32.mrf.mxu0
        %v2454 = vadd.f32 0.0, %v2453
        %v2455 = vpop.f32.mrf.mxu0
        %v2456 = vadd.f32 0.0, %v2455
        %2457 = vmatmul.bf16.gmra.mxu0 %v2386
        %v2458 = vpop.f32.mrf.mxu0
        %v2459 = vadd.f32 0.0, %v2458
        %v2460 = vpop.f32.mrf.mxu0
        %v2461 = vadd.f32 0.0, %v2460
        %2462 = vmatmul.bf16.gmra.mxu0 %v2389
        %v2463 = vpop.f32.mrf.mxu0
        %v2464 = vadd.f32 0.0, %v2463
        %v2465 = vpop.f32.mrf.mxu0
        %v2466 = vadd.f32 0.0, %v2465
        %2467 = vmatmul.bf16.gmra.mxu0 %v2392
        %v2468 = vpop.f32.mrf.mxu0
        %v2469 = vadd.f32 0.0, %v2468
        %v2470 = vpop.f32.mrf.mxu0
        %v2471 = vadd.f32 0.0, %v2470
        %2472 = vmatmul.bf16.gmra.mxu0 %v2395
        %v2473 = vpop.f32.mrf.mxu0
        %v2474 = vadd.f32 0.0, %v2473
        %v2475 = vpop.f32.mrf.mxu0
        %v2476 = vadd.f32 0.0, %v2475
        %2477 = vmatmul.bf16.gmra.mxu0 %v2398
        %v2478 = vpop.f32.mrf.mxu0
        %v2479 = vadd.f32 0.0, %v2478
        %v2480 = vpop.f32.mrf.mxu0
        %v2481 = vadd.f32 0.0, %v2480
        %2482 = vmatmul.bf16.gmra.mxu0 %v2401
        %v2483 = vpop.f32.mrf.mxu0
        %v2484 = vadd.f32 0.0, %v2483
        %v2485 = vpop.f32.mrf.mxu0
        %v2486 = vadd.f32 0.0, %v2485
        %2487 = vmatmul.bf16.gmra.mxu0 %v2404
        %v2488 = vpop.f32.mrf.mxu0
        %v2489 = vadd.f32 0.0, %v2488
        %v2490 = vpop.f32.mrf.mxu0
        %v2491 = vadd.f32 0.0, %v2490
        %2492 = vmatmul.bf16.gmra.mxu0 %v2407
        %v2493 = vpop.f32.mrf.mxu0
        %v2494 = vadd.f32 0.0, %v2493
        %v2495 = vpop.f32.mrf.mxu0
        %v2496 = vadd.f32 0.0, %v2495
        %2497 = vdwg.mxu0
        %v2498 = vadd.f32 %v2109, %v2419
        %v2499 = vadd.f32 %v2110, %v2421
        %v2500 = vadd.f32 %v2111, %v2424
        %v2501 = vadd.f32 %v2112, %v2426
        %v2502 = vadd.f32 %v2113, %v2429
        %v2503 = vadd.f32 %v2114, %v2431
        %v2504 = vadd.f32 %v2115, %v2434
        %v2505 = vadd.f32 %v2116, %v2436
        %v2506 = vadd.f32 %v2117, %v2439
        %v2507 = vadd.f32 %v2118, %v2441
        %v2508 = vadd.f32 %v2119, %v2444
        %v2509 = vadd.f32 %v2120, %v2446
        %v2510 = vadd.f32 %v2121, %v2449
        %v2511 = vadd.f32 %v2122, %v2451
        %v2512 = vadd.f32 %v2123, %v2454
        %v2513 = vadd.f32 %v2124, %v2456
        %v2514 = vadd.f32 %v2125, %v2459
        %v2515 = vadd.f32 %v2126, %v2461
        %v2516 = vadd.f32 %v2127, %v2464
        %v2517 = vadd.f32 %v2128, %v2466
        %v2518 = vadd.f32 %v2129, %v2469
        %v2519 = vadd.f32 %v2130, %v2471
        %v2520 = vadd.f32 %v2131, %v2474
        %v2521 = vadd.f32 %v2132, %v2476
        %v2522 = vadd.f32 %v2133, %v2479
        %v2523 = vadd.f32 %v2134, %v2481
        %v2524 = vadd.f32 %v2135, %v2484
        %v2525 = vadd.f32 %v2136, %v2486
        %v2526 = vadd.f32 %v2137, %v2489
        %v2527 = vadd.f32 %v2138, %v2491
        %v2528 = vadd.f32 %v2139, %v2494
        %v2529 = vadd.f32 %v2140, %v2496
        %s2530 = scalar_lea.vmem %s266, 12
        %v2531 = vld [vmem:[%s2530] sm:$0xf]
        %v2532 = vld [vmem:[%s2530 + $0x4] sm:$0xf]
        %v2533 = vld [vmem:[%s2530 + $0xc] sm:$0xf]
        %v2534 = vld [vmem:[%s2530 + $0x10] sm:$0xf]
        %v2535 = vld [vmem:[%s2530 + $0x18] sm:$0xf]
        %v2536 = vld [vmem:[%s2530 + $0x1c] sm:$0xf]
        %v2537 = vld [vmem:[%s2530 + $0x24] sm:$0xf]
        %v2538 = vld [vmem:[%s2530 + $0x28] sm:$0xf]
        %v2539 = vld [vmem:[%s2530 + $0x30] sm:$0xf]
        %v2540 = vld [vmem:[%s2530 + $0x34] sm:$0xf]
        %v2541 = vld [vmem:[%s2530 + $0x3c] sm:$0xf]
        %v2542 = vld [vmem:[%s2530 + $0x40] sm:$0xf]
        %v2543 = vld [vmem:[%s2530 + $0x48] sm:$0xf]
        %v2544 = vld [vmem:[%s2530 + $0x4c] sm:$0xf]
        %v2545 = vld [vmem:[%s2530 + $0x54] sm:$0xf]
        %v2546 = vld [vmem:[%s2530 + $0x58] sm:$0xf]
        %v2547 = vld [vmem:[%s2530 + $0x60] sm:$0xf]
        %v2548 = vld [vmem:[%s2530 + $0x64] sm:$0xf]
        %v2549 = vld [vmem:[%s2530 + $0x6c] sm:$0xf]
        %v2550 = vld [vmem:[%s2530 + $0x70] sm:$0xf]
        %v2551 = vld [vmem:[%s2530 + $0x78] sm:$0xf]
        %v2552 = vld [vmem:[%s2530 + $0x7c] sm:$0xf]
        %v2553 = vld [vmem:[%s2530 + $0x84] sm:$0xf]
        %v2554 = vld [vmem:[%s2530 + $0x88] sm:$0xf]
        %v2555 = vld [vmem:[%s2530 + $0x90] sm:$0xf]
        %v2556 = vld [vmem:[%s2530 + $0x94] sm:$0xf]
        %v2557 = vld [vmem:[%s2530 + $0x9c] sm:$0xf]
        %v2558 = vld [vmem:[%s2530 + $0xa0] sm:$0xf]
        %v2559 = vld [vmem:[%s2530 + $0xa8] sm:$0xf]
        %v2560 = vld [vmem:[%s2530 + $0xac] sm:$0xf]
        %v2561 = vld [vmem:[%s2530 + $0xb4] sm:$0xf]
        %v2562 = vld [vmem:[%s2530 + $0xb8] sm:$0xf]
        %s2563 = scalar_lea.vmem %s270, 40
        %v2564 = vld [vmem:[%s2563] sm:$0xf]
        %v2565 = vld [vmem:[%s2563 + $0x4] sm:$0xf]
        %v2598 = vunpack.c.l.b16 %v2531
        %v2599 = vunpack.c.l.b16 %v2532
        %v2600 = vunpack.c.l.b16 %v2533
        %v2601 = vunpack.c.l.b16 %v2534
        %v2602 = vunpack.c.l.b16 %v2535
        %v2603 = vunpack.c.l.b16 %v2536
        %v2604 = vunpack.c.l.b16 %v2537
        %v2605 = vunpack.c.l.b16 %v2538
        %v2606 = vunpack.c.l.b16 %v2539
        %v2607 = vunpack.c.l.b16 %v2540
        %v2608 = vunpack.c.l.b16 %v2541
        %v2609 = vunpack.c.l.b16 %v2542
        %v2610 = vunpack.c.l.b16 %v2543
        %v2611 = vunpack.c.l.b16 %v2544
        %v2612 = vunpack.c.l.b16 %v2545
        %v2613 = vunpack.c.l.b16 %v2546
        %v2614 = vunpack.c.l.b16 %v2547
        %v2615 = vunpack.c.l.b16 %v2548
        %v2616 = vunpack.c.l.b16 %v2549
        %v2617 = vunpack.c.l.b16 %v2550
        %v2618 = vunpack.c.l.b16 %v2551
        %v2619 = vunpack.c.l.b16 %v2552
        %v2620 = vunpack.c.l.b16 %v2553
        %v2621 = vunpack.c.l.b16 %v2554
        %v2622 = vunpack.c.l.b16 %v2555
        %v2623 = vunpack.c.l.b16 %v2556
        %v2624 = vunpack.c.l.b16 %v2557
        %v2625 = vunpack.c.l.b16 %v2558
        %v2626 = vunpack.c.l.b16 %v2559
        %v2627 = vunpack.c.l.b16 %v2560
        %v2628 = vunpack.c.l.b16 %v2561
        %v2629 = vunpack.c.l.b16 %v2562
        %v2630 = vpack.c.b16 %v2599, %v2598
        %v2631 = vpack.c.b16 %v2601, %v2600
        %v2632 = vpack.c.b16 %v2603, %v2602
        %v2633 = vpack.c.b16 %v2605, %v2604
        %v2634 = vpack.c.b16 %v2607, %v2606
        %v2635 = vpack.c.b16 %v2609, %v2608
        %v2636 = vpack.c.b16 %v2611, %v2610
        %v2637 = vpack.c.b16 %v2613, %v2612
        %v2638 = vpack.c.b16 %v2615, %v2614
        %v2639 = vpack.c.b16 %v2617, %v2616
        %v2640 = vpack.c.b16 %v2619, %v2618
        %v2641 = vpack.c.b16 %v2621, %v2620
        %v2642 = vpack.c.b16 %v2623, %v2622
        %v2643 = vpack.c.b16 %v2625, %v2624
        %v2644 = vpack.c.b16 %v2627, %v2626
        %v2645 = vpack.c.b16 %v2629, %v2628
        %v2648 = vunpack.c.l.b16 %v2564
        %v2649 = vunpack.c.l.b16 %v2565
        %v2650 = vpack.c.b16 %v2649, %v2648
        %v2653 = vsel %vm778, %v2630, 0
        %v2656 = vsel %vm778, %v2631, 0
        %v2659 = vsel %vm778, %v2632, 0
        %v2662 = vsel %vm778, %v2633, 0
        %v2665 = vsel %vm778, %v2634, 0
        %v2668 = vsel %vm778, %v2635, 0
        %v2671 = vsel %vm778, %v2636, 0
        %v2674 = vsel %vm778, %v2637, 0
        %v2677 = vsel %vm778, %v2638, 0
        %v2680 = vsel %vm778, %v2639, 0
        %v2683 = vsel %vm778, %v2640, 0
        %v2686 = vsel %vm778, %v2641, 0
        %v2689 = vsel %vm778, %v2642, 0
        %v2692 = vsel %vm778, %v2643, 0
        %v2695 = vsel %vm778, %v2644, 0
        %v2698 = vsel %vm778, %v2645, 0
        %2700 = vmatpush.bf16.msra.mxu0 0
        %2701 = vmatpush.bf16.msra.mxu0 0
        %2702 = vmatpush.bf16.msra.mxu0 0
        %2703 = vmatpush.bf16.msra.mxu0 0
        %2704 = vmatpush.bf16.msra.mxu0 0
        %2705 = vmatpush.bf16.msra.mxu0 0
        %2706 = vmatpush.bf16.msra.mxu0 0
        %2707 = vmatpush.bf16.msra.mxu0 %v2650
        %2708 = vmatmul.bf16.gmra.mxu0 %v2653
        %v2709 = vpop.f32.mrf.mxu0
        %v2710 = vadd.f32 0.0, %v2709
        %v2711 = vpop.f32.mrf.mxu0
        %v2712 = vadd.f32 0.0, %v2711
        %2713 = vmatmul.bf16.gmra.mxu0 %v2656
        %v2714 = vpop.f32.mrf.mxu0
        %v2715 = vadd.f32 0.0, %v2714
        %v2716 = vpop.f32.mrf.mxu0
        %v2717 = vadd.f32 0.0, %v2716
        %2718 = vmatmul.bf16.gmra.mxu0 %v2659
        %v2719 = vpop.f32.mrf.mxu0
        %v2720 = vadd.f32 0.0, %v2719
        %v2721 = vpop.f32.mrf.mxu0
        %v2722 = vadd.f32 0.0, %v2721
        %2723 = vmatmul.bf16.gmra.mxu0 %v2662
        %v2724 = vpop.f32.mrf.mxu0
        %v2725 = vadd.f32 0.0, %v2724
        %v2726 = vpop.f32.mrf.mxu0
        %v2727 = vadd.f32 0.0, %v2726
        %2728 = vmatmul.bf16.gmra.mxu0 %v2665
        %v2729 = vpop.f32.mrf.mxu0
        %v2730 = vadd.f32 0.0, %v2729
        %v2731 = vpop.f32.mrf.mxu0
        %v2732 = vadd.f32 0.0, %v2731
        %2733 = vmatmul.bf16.gmra.mxu0 %v2668
        %v2734 = vpop.f32.mrf.mxu0
        %v2735 = vadd.f32 0.0, %v2734
        %v2736 = vpop.f32.mrf.mxu0
        %v2737 = vadd.f32 0.0, %v2736
        %2738 = vmatmul.bf16.gmra.mxu0 %v2671
        %v2739 = vpop.f32.mrf.mxu0
        %v2740 = vadd.f32 0.0, %v2739
        %v2741 = vpop.f32.mrf.mxu0
        %v2742 = vadd.f32 0.0, %v2741
        %2743 = vmatmul.bf16.gmra.mxu0 %v2674
        %v2744 = vpop.f32.mrf.mxu0
        %v2745 = vadd.f32 0.0, %v2744
        %v2746 = vpop.f32.mrf.mxu0
        %v2747 = vadd.f32 0.0, %v2746
        %2748 = vmatmul.bf16.gmra.mxu0 %v2677
        %v2749 = vpop.f32.mrf.mxu0
        %v2750 = vadd.f32 0.0, %v2749
        %v2751 = vpop.f32.mrf.mxu0
        %v2752 = vadd.f32 0.0, %v2751
        %2753 = vmatmul.bf16.gmra.mxu0 %v2680
        %v2754 = vpop.f32.mrf.mxu0
        %v2755 = vadd.f32 0.0, %v2754
        %v2756 = vpop.f32.mrf.mxu0
        %v2757 = vadd.f32 0.0, %v2756
        %2758 = vmatmul.bf16.gmra.mxu0 %v2683
        %v2759 = vpop.f32.mrf.mxu0
        %v2760 = vadd.f32 0.0, %v2759
        %v2761 = vpop.f32.mrf.mxu0
        %v2762 = vadd.f32 0.0, %v2761
        %2763 = vmatmul.bf16.gmra.mxu0 %v2686
        %v2764 = vpop.f32.mrf.mxu0
        %v2765 = vadd.f32 0.0, %v2764
        %v2766 = vpop.f32.mrf.mxu0
        %v2767 = vadd.f32 0.0, %v2766
        %2768 = vmatmul.bf16.gmra.mxu0 %v2689
        %v2769 = vpop.f32.mrf.mxu0
        %v2770 = vadd.f32 0.0, %v2769
        %v2771 = vpop.f32.mrf.mxu0
        %v2772 = vadd.f32 0.0, %v2771
        %2773 = vmatmul.bf16.gmra.mxu0 %v2692
        %v2774 = vpop.f32.mrf.mxu0
        %v2775 = vadd.f32 0.0, %v2774
        %v2776 = vpop.f32.mrf.mxu0
        %v2777 = vadd.f32 0.0, %v2776
        %2778 = vmatmul.bf16.gmra.mxu0 %v2695
        %v2779 = vpop.f32.mrf.mxu0
        %v2780 = vadd.f32 0.0, %v2779
        %v2781 = vpop.f32.mrf.mxu0
        %v2782 = vadd.f32 0.0, %v2781
        %2783 = vmatmul.bf16.gmra.mxu0 %v2698
        %v2784 = vpop.f32.mrf.mxu0
        %v2785 = vadd.f32 0.0, %v2784
        %v2786 = vpop.f32.mrf.mxu0
        %v2787 = vadd.f32 0.0, %v2786
        %2788 = vdwg.mxu0
        %v2789 = vadd.f32 %v2498, %v2710
        %v2790 = vadd.f32 %v2499, %v2712
        %v2791 = vadd.f32 %v2500, %v2715
        %v2792 = vadd.f32 %v2501, %v2717
        %v2793 = vadd.f32 %v2502, %v2720
        %v2794 = vadd.f32 %v2503, %v2722
        %v2795 = vadd.f32 %v2504, %v2725
        %v2796 = vadd.f32 %v2505, %v2727
        %v2797 = vadd.f32 %v2506, %v2730
        %v2798 = vadd.f32 %v2507, %v2732
        %v2799 = vadd.f32 %v2508, %v2735
        %v2800 = vadd.f32 %v2509, %v2737
        %v2801 = vadd.f32 %v2510, %v2740
        %v2802 = vadd.f32 %v2511, %v2742
        %v2803 = vadd.f32 %v2512, %v2745
        %v2804 = vadd.f32 %v2513, %v2747
        %v2805 = vadd.f32 %v2514, %v2750
        %v2806 = vadd.f32 %v2515, %v2752
        %v2807 = vadd.f32 %v2516, %v2755
        %v2808 = vadd.f32 %v2517, %v2757
        %v2809 = vadd.f32 %v2518, %v2760
        %v2810 = vadd.f32 %v2519, %v2762
        %v2811 = vadd.f32 %v2520, %v2765
        %v2812 = vadd.f32 %v2521, %v2767
        %v2813 = vadd.f32 %v2522, %v2770
        %v2814 = vadd.f32 %v2523, %v2772
        %v2815 = vadd.f32 %v2524, %v2775
        %v2816 = vadd.f32 %v2525, %v2777
        %v2817 = vadd.f32 %v2526, %v2780
        %v2818 = vadd.f32 %v2527, %v2782
        %v2819 = vadd.f32 %v2528, %v2785
        %v2820 = vadd.f32 %v2529, %v2787
        %v2821 = vld [vmem:[%s2530] sm:$0xf]
        %v2822 = vld [vmem:[%s2530 + $0x4] sm:$0xf]
        %v2823 = vld [vmem:[%s2530 + $0x8] sm:$0x1]
        %v2824 = vld [vmem:[%s2530 + $0xc] sm:$0xf]
        %v2825 = vld [vmem:[%s2530 + $0x10] sm:$0xf]
        %v2826 = vld [vmem:[%s2530 + $0x14] sm:$0x1]
        %v2827 = vld [vmem:[%s2530 + $0x18] sm:$0xf]
        %v2828 = vld [vmem:[%s2530 + $0x1c] sm:$0xf]
        %v2829 = vld [vmem:[%s2530 + $0x20] sm:$0x1]
        %v2830 = vld [vmem:[%s2530 + $0x24] sm:$0xf]
        %v2831 = vld [vmem:[%s2530 + $0x28] sm:$0xf]
        %v2832 = vld [vmem:[%s2530 + $0x2c] sm:$0x1]
        %v2833 = vld [vmem:[%s2530 + $0x30] sm:$0xf]
        %v2834 = vld [vmem:[%s2530 + $0x34] sm:$0xf]
        %v2835 = vld [vmem:[%s2530 + $0x38] sm:$0x1]
        %v2836 = vld [vmem:[%s2530 + $0x3c] sm:$0xf]
        %v2837 = vld [vmem:[%s2530 + $0x40] sm:$0xf]
        %v2838 = vld [vmem:[%s2530 + $0x44] sm:$0x1]
        %v2839 = vld [vmem:[%s2530 + $0x48] sm:$0xf]
        %v2840 = vld [vmem:[%s2530 + $0x4c] sm:$0xf]
        %v2841 = vld [vmem:[%s2530 + $0x50] sm:$0x1]
        %v2842 = vld [vmem:[%s2530 + $0x54] sm:$0xf]
        %v2843 = vld [vmem:[%s2530 + $0x58] sm:$0xf]
        %v2844 = vld [vmem:[%s2530 + $0x5c] sm:$0x1]
        %v2845 = vld [vmem:[%s2530 + $0x60] sm:$0xf]
        %v2846 = vld [vmem:[%s2530 + $0x64] sm:$0xf]
        %v2847 = vld [vmem:[%s2530 + $0x68] sm:$0x1]
        %v2848 = vld [vmem:[%s2530 + $0x6c] sm:$0xf]
        %v2849 = vld [vmem:[%s2530 + $0x70] sm:$0xf]
        %v2850 = vld [vmem:[%s2530 + $0x74] sm:$0x1]
        %v2851 = vld [vmem:[%s2530 + $0x78] sm:$0xf]
        %v2852 = vld [vmem:[%s2530 + $0x7c] sm:$0xf]
        %v2853 = vld [vmem:[%s2530 + $0x80] sm:$0x1]
        %v2854 = vld [vmem:[%s2530 + $0x84] sm:$0xf]
        %v2855 = vld [vmem:[%s2530 + $0x88] sm:$0xf]
        %v2856 = vld [vmem:[%s2530 + $0x8c] sm:$0x1]
        %v2857 = vld [vmem:[%s2530 + $0x90] sm:$0xf]
        %v2858 = vld [vmem:[%s2530 + $0x94] sm:$0xf]
        %v2859 = vld [vmem:[%s2530 + $0x98] sm:$0x1]
        %v2860 = vld [vmem:[%s2530 + $0x9c] sm:$0xf]
        %v2861 = vld [vmem:[%s2530 + $0xa0] sm:$0xf]
        %v2862 = vld [vmem:[%s2530 + $0xa4] sm:$0x1]
        %v2863 = vld [vmem:[%s2530 + $0xa8] sm:$0xf]
        %v2864 = vld [vmem:[%s2530 + $0xac] sm:$0xf]
        %v2865 = vld [vmem:[%s2530 + $0xb0] sm:$0x1]
        %v2866 = vld [vmem:[%s2530 + $0xb4] sm:$0xf]
        %v2867 = vld [vmem:[%s2530 + $0xb8] sm:$0xf]
        %v2868 = vld [vmem:[%s2530 + $0xbc] sm:$0x1]
        %v2870 = vshrl.u32 %v2821, 16
        %v2872 = vrot.slane %v2870, 4
        %v2873 = vshll.u32 %v2821, 16
        %v2875 = vrot.slane %v2873, 5
        %v2876 = vor.u32 %v2872, %v2875
        %v2877 = vrot.slane %v2876, 4
        %v2879 = vshll.u32 %v2822, 16
        %v2881 = vrot.slane %v2879, 5
        %v2882 = vsel %vm336, %v2877, %v2881
        %v2883 = vshrl.u32 %v2822, 16
        %v2885 = vrot.slane %v2883, 4
        %v2886 = vor.u32 %v2885, %v2881
        %v2887 = vrot.slane %v2886, 4
        %v2889 = vshll.u32 %v2823, 16
        %v2891 = vrot.slane %v2889, 5
        %v2892 = vsel %vm336, %v2887, %v2891
        %v2894 = vshrl.u32 %v2824, 16
        %v2896 = vrot.slane %v2894, 4
        %v2897 = vshll.u32 %v2824, 16
        %v2899 = vrot.slane %v2897, 5
        %v2900 = vor.u32 %v2896, %v2899
        %v2901 = vrot.slane %v2900, 4
        %v2903 = vshll.u32 %v2825, 16
        %v2905 = vrot.slane %v2903, 5
        %v2906 = vsel %vm336, %v2901, %v2905
        %v2907 = vshrl.u32 %v2825, 16
        %v2909 = vrot.slane %v2907, 4
        %v2910 = vor.u32 %v2909, %v2905
        %v2911 = vrot.slane %v2910, 4
        %v2913 = vshll.u32 %v2826, 16
        %v2915 = vrot.slane %v2913, 5
        %v2916 = vsel %vm336, %v2911, %v2915
        %v2918 = vshrl.u32 %v2827, 16
        %v2920 = vrot.slane %v2918, 4
        %v2921 = vshll.u32 %v2827, 16
        %v2923 = vrot.slane %v2921, 5
        %v2924 = vor.u32 %v2920, %v2923
        %v2925 = vrot.slane %v2924, 4
        %v2927 = vshll.u32 %v2828, 16
        %v2929 = vrot.slane %v2927, 5
        %v2930 = vsel %vm336, %v2925, %v2929
        %v2931 = vshrl.u32 %v2828, 16
        %v2933 = vrot.slane %v2931, 4
        %v2934 = vor.u32 %v2933, %v2929
        %v2935 = vrot.slane %v2934, 4
        %v2937 = vshll.u32 %v2829, 16
        %v2939 = vrot.slane %v2937, 5
        %v2940 = vsel %vm336, %v2935, %v2939
        %v2942 = vshrl.u32 %v2830, 16
        %v2944 = vrot.slane %v2942, 4
        %v2945 = vshll.u32 %v2830, 16
        %v2947 = vrot.slane %v2945, 5
        %v2948 = vor.u32 %v2944, %v2947
        %v2949 = vrot.slane %v2948, 4
        %v2951 = vshll.u32 %v2831, 16
        %v2953 = vrot.slane %v2951, 5
        %v2954 = vsel %vm336, %v2949, %v2953
        %v2955 = vshrl.u32 %v2831, 16
        %v2957 = vrot.slane %v2955, 4
        %v2958 = vor.u32 %v2957, %v2953
        %v2959 = vrot.slane %v2958, 4
        %v2961 = vshll.u32 %v2832, 16
        %v2963 = vrot.slane %v2961, 5
        %v2964 = vsel %vm336, %v2959, %v2963
        %v2966 = vshrl.u32 %v2833, 16
        %v2968 = vrot.slane %v2966, 4
        %v2969 = vshll.u32 %v2833, 16
        %v2971 = vrot.slane %v2969, 5
        %v2972 = vor.u32 %v2968, %v2971
        %v2973 = vrot.slane %v2972, 4
        %v2975 = vshll.u32 %v2834, 16
        %v2977 = vrot.slane %v2975, 5
        %v2978 = vsel %vm336, %v2973, %v2977
        %v2979 = vshrl.u32 %v2834, 16
        %v2981 = vrot.slane %v2979, 4
        %v2982 = vor.u32 %v2981, %v2977
        %v2983 = vrot.slane %v2982, 4
        %v2985 = vshll.u32 %v2835, 16
        %v2987 = vrot.slane %v2985, 5
        %v2988 = vsel %vm336, %v2983, %v2987
        %v2990 = vshrl.u32 %v2836, 16
        %v2992 = vrot.slane %v2990, 4
        %v2993 = vshll.u32 %v2836, 16
        %v2995 = vrot.slane %v2993, 5
        %v2996 = vor.u32 %v2992, %v2995
        %v2997 = vrot.slane %v2996, 4
        %v2999 = vshll.u32 %v2837, 16
        %v3001 = vrot.slane %v2999, 5
        %v3002 = vsel %vm336, %v2997, %v3001
        %v3003 = vshrl.u32 %v2837, 16
        %v3005 = vrot.slane %v3003, 4
        %v3006 = vor.u32 %v3005, %v3001
        %v3007 = vrot.slane %v3006, 4
        %v3009 = vshll.u32 %v2838, 16
        %v3011 = vrot.slane %v3009, 5
        %v3012 = vsel %vm336, %v3007, %v3011
        %v3014 = vshrl.u32 %v2839, 16
        %v3016 = vrot.slane %v3014, 4
        %v3017 = vshll.u32 %v2839, 16
        %v3019 = vrot.slane %v3017, 5
        %v3020 = vor.u32 %v3016, %v3019
        %v3021 = vrot.slane %v3020, 4
        %v3023 = vshll.u32 %v2840, 16
        %v3025 = vrot.slane %v3023, 5
        %v3026 = vsel %vm336, %v3021, %v3025
        %v3027 = vshrl.u32 %v2840, 16
        %v3029 = vrot.slane %v3027, 4
        %v3030 = vor.u32 %v3029, %v3025
        %v3031 = vrot.slane %v3030, 4
        %v3033 = vshll.u32 %v2841, 16
        %v3035 = vrot.slane %v3033, 5
        %v3036 = vsel %vm336, %v3031, %v3035
        %v3038 = vshrl.u32 %v2842, 16
        %v3040 = vrot.slane %v3038, 4
        %v3041 = vshll.u32 %v2842, 16
        %v3043 = vrot.slane %v3041, 5
        %v3044 = vor.u32 %v3040, %v3043
        %v3045 = vrot.slane %v3044, 4
        %v3047 = vshll.u32 %v2843, 16
        %v3049 = vrot.slane %v3047, 5
        %v3050 = vsel %vm336, %v3045, %v3049
        %v3051 = vshrl.u32 %v2843, 16
        %v3053 = vrot.slane %v3051, 4
        %v3054 = vor.u32 %v3053, %v3049
        %v3055 = vrot.slane %v3054, 4
        %v3057 = vshll.u32 %v2844, 16
        %v3059 = vrot.slane %v3057, 5
        %v3060 = vsel %vm336, %v3055, %v3059
        %v3062 = vshrl.u32 %v2845, 16
        %v3064 = vrot.slane %v3062, 4
        %v3065 = vshll.u32 %v2845, 16
        %v3067 = vrot.slane %v3065, 5
        %v3068 = vor.u32 %v3064, %v3067
        %v3069 = vrot.slane %v3068, 4
        %v3071 = vshll.u32 %v2846, 16
        %v3073 = vrot.slane %v3071, 5
        %v3074 = vsel %vm336, %v3069, %v3073
        %v3075 = vshrl.u32 %v2846, 16
        %v3077 = vrot.slane %v3075, 4
        %v3078 = vor.u32 %v3077, %v3073
        %v3079 = vrot.slane %v3078, 4
        %v3081 = vshll.u32 %v2847, 16
        %v3083 = vrot.slane %v3081, 5
        %v3084 = vsel %vm336, %v3079, %v3083
        %v3086 = vshrl.u32 %v2848, 16
        %v3088 = vrot.slane %v3086, 4
        %v3089 = vshll.u32 %v2848, 16
        %v3091 = vrot.slane %v3089, 5
        %v3092 = vor.u32 %v3088, %v3091
        %v3093 = vrot.slane %v3092, 4
        %v3095 = vshll.u32 %v2849, 16
        %v3097 = vrot.slane %v3095, 5
        %v3098 = vsel %vm336, %v3093, %v3097
        %v3099 = vshrl.u32 %v2849, 16
        %v3101 = vrot.slane %v3099, 4
        %v3102 = vor.u32 %v3101, %v3097
        %v3103 = vrot.slane %v3102, 4
        %v3105 = vshll.u32 %v2850, 16
        %v3107 = vrot.slane %v3105, 5
        %v3108 = vsel %vm336, %v3103, %v3107
        %v3110 = vshrl.u32 %v2851, 16
        %v3112 = vrot.slane %v3110, 4
        %v3113 = vshll.u32 %v2851, 16
        %v3115 = vrot.slane %v3113, 5
        %v3116 = vor.u32 %v3112, %v3115
        %v3117 = vrot.slane %v3116, 4
        %v3119 = vshll.u32 %v2852, 16
        %v3121 = vrot.slane %v3119, 5
        %v3122 = vsel %vm336, %v3117, %v3121
        %v3123 = vshrl.u32 %v2852, 16
        %v3125 = vrot.slane %v3123, 4
        %v3126 = vor.u32 %v3125, %v3121
        %v3127 = vrot.slane %v3126, 4
        %v3129 = vshll.u32 %v2853, 16
        %v3131 = vrot.slane %v3129, 5
        %v3132 = vsel %vm336, %v3127, %v3131
        %v3134 = vshrl.u32 %v2854, 16
        %v3136 = vrot.slane %v3134, 4
        %v3137 = vshll.u32 %v2854, 16
        %v3139 = vrot.slane %v3137, 5
        %v3140 = vor.u32 %v3136, %v3139
        %v3141 = vrot.slane %v3140, 4
        %v3143 = vshll.u32 %v2855, 16
        %v3145 = vrot.slane %v3143, 5
        %v3146 = vsel %vm336, %v3141, %v3145
        %v3147 = vshrl.u32 %v2855, 16
        %v3149 = vrot.slane %v3147, 4
        %v3150 = vor.u32 %v3149, %v3145
        %v3151 = vrot.slane %v3150, 4
        %v3153 = vshll.u32 %v2856, 16
        %v3155 = vrot.slane %v3153, 5
        %v3156 = vsel %vm336, %v3151, %v3155
        %v3158 = vshrl.u32 %v2857, 16
        %v3160 = vrot.slane %v3158, 4
        %v3161 = vshll.u32 %v2857, 16
        %v3163 = vrot.slane %v3161, 5
        %v3164 = vor.u32 %v3160, %v3163
        %v3165 = vrot.slane %v3164, 4
        %v3167 = vshll.u32 %v2858, 16
        %v3169 = vrot.slane %v3167, 5
        %v3170 = vsel %vm336, %v3165, %v3169
        %v3171 = vshrl.u32 %v2858, 16
        %v3173 = vrot.slane %v3171, 4
        %v3174 = vor.u32 %v3173, %v3169
        %v3175 = vrot.slane %v3174, 4
        %v3177 = vshll.u32 %v2859, 16
        %v3179 = vrot.slane %v3177, 5
        %v3180 = vsel %vm336, %v3175, %v3179
        %v3182 = vshrl.u32 %v2860, 16
        %v3184 = vrot.slane %v3182, 4
        %v3185 = vshll.u32 %v2860, 16
        %v3187 = vrot.slane %v3185, 5
        %v3188 = vor.u32 %v3184, %v3187
        %v3189 = vrot.slane %v3188, 4
        %v3191 = vshll.u32 %v2861, 16
        %v3193 = vrot.slane %v3191, 5
        %v3194 = vsel %vm336, %v3189, %v3193
        %v3195 = vshrl.u32 %v2861, 16
        %v3197 = vrot.slane %v3195, 4
        %v3198 = vor.u32 %v3197, %v3193
        %v3199 = vrot.slane %v3198, 4
        %v3201 = vshll.u32 %v2862, 16
        %v3203 = vrot.slane %v3201, 5
        %v3204 = vsel %vm336, %v3199, %v3203
        %v3206 = vshrl.u32 %v2863, 16
        %v3208 = vrot.slane %v3206, 4
        %v3209 = vshll.u32 %v2863, 16
        %v3211 = vrot.slane %v3209, 5
        %v3212 = vor.u32 %v3208, %v3211
        %v3213 = vrot.slane %v3212, 4
        %v3215 = vshll.u32 %v2864, 16
        %v3217 = vrot.slane %v3215, 5
        %v3218 = vsel %vm336, %v3213, %v3217
        %v3219 = vshrl.u32 %v2864, 16
        %v3221 = vrot.slane %v3219, 4
        %v3222 = vor.u32 %v3221, %v3217
        %v3223 = vrot.slane %v3222, 4
        %v3225 = vshll.u32 %v2865, 16
        %v3227 = vrot.slane %v3225, 5
        %v3228 = vsel %vm336, %v3223, %v3227
        %v3230 = vshrl.u32 %v2866, 16
        %v3232 = vrot.slane %v3230, 4
        %v3233 = vshll.u32 %v2866, 16
        %v3235 = vrot.slane %v3233, 5
        %v3236 = vor.u32 %v3232, %v3235
        %v3237 = vrot.slane %v3236, 4
        %v3239 = vshll.u32 %v2867, 16
        %v3241 = vrot.slane %v3239, 5
        %v3242 = vsel %vm336, %v3237, %v3241
        %v3243 = vshrl.u32 %v2867, 16
        %v3245 = vrot.slane %v3243, 4
        %v3246 = vor.u32 %v3245, %v3241
        %v3247 = vrot.slane %v3246, 4
        %v3249 = vshll.u32 %v2868, 16
        %v3251 = vrot.slane %v3249, 5
        %v3252 = vsel %vm336, %v3247, %v3251
        %s3253 = scalar_lea.vmem %s270, 48
        %v3254 = vld [vmem:[%s3253] sm:$0xf]
        %v3255 = vld [vmem:[%s3253 + $0x4] sm:$0xf]
        %v3256 = vunpack.c.l.b16 %v2882
        %v3257 = vunpack.c.l.b16 %v2892
        %v3258 = vunpack.c.l.b16 %v2906
        %v3259 = vunpack.c.l.b16 %v2916
        %v3260 = vunpack.c.l.b16 %v2930
        %v3261 = vunpack.c.l.b16 %v2940
        %v3262 = vunpack.c.l.b16 %v2954
        %v3263 = vunpack.c.l.b16 %v2964
        %v3264 = vunpack.c.l.b16 %v2978
        %v3265 = vunpack.c.l.b16 %v2988
        %v3266 = vunpack.c.l.b16 %v3002
        %v3267 = vunpack.c.l.b16 %v3012
        %v3268 = vunpack.c.l.b16 %v3026
        %v3269 = vunpack.c.l.b16 %v3036
        %v3270 = vunpack.c.l.b16 %v3050
        %v3271 = vunpack.c.l.b16 %v3060
        %v3272 = vunpack.c.l.b16 %v3074
        %v3273 = vunpack.c.l.b16 %v3084
        %v3274 = vunpack.c.l.b16 %v3098
        %v3275 = vunpack.c.l.b16 %v3108
        %v3276 = vunpack.c.l.b16 %v3122
        %v3277 = vunpack.c.l.b16 %v3132
        %v3278 = vunpack.c.l.b16 %v3146
        %v3279 = vunpack.c.l.b16 %v3156
        %v3280 = vunpack.c.l.b16 %v3170
        %v3281 = vunpack.c.l.b16 %v3180
        %v3282 = vunpack.c.l.b16 %v3194
        %v3283 = vunpack.c.l.b16 %v3204
        %v3284 = vunpack.c.l.b16 %v3218
        %v3285 = vunpack.c.l.b16 %v3228
        %v3286 = vunpack.c.l.b16 %v3242
        %v3287 = vunpack.c.l.b16 %v3252
        %v3288 = vpack.c.b16 %v3257, %v3256
        %v3289 = vpack.c.b16 %v3259, %v3258
        %v3290 = vpack.c.b16 %v3261, %v3260
        %v3291 = vpack.c.b16 %v3263, %v3262
        %v3292 = vpack.c.b16 %v3265, %v3264
        %v3293 = vpack.c.b16 %v3267, %v3266
        %v3294 = vpack.c.b16 %v3269, %v3268
        %v3295 = vpack.c.b16 %v3271, %v3270
        %v3296 = vpack.c.b16 %v3273, %v3272
        %v3297 = vpack.c.b16 %v3275, %v3274
        %v3298 = vpack.c.b16 %v3277, %v3276
        %v3299 = vpack.c.b16 %v3279, %v3278
        %v3300 = vpack.c.b16 %v3281, %v3280
        %v3301 = vpack.c.b16 %v3283, %v3282
        %v3302 = vpack.c.b16 %v3285, %v3284
        %v3303 = vpack.c.b16 %v3287, %v3286
        %v3306 = vunpack.c.l.b16 %v3254
        %v3307 = vunpack.c.l.b16 %v3255
        %v3308 = vpack.c.b16 %v3307, %v3306
        %v3311 = vsel %vm778, %v3288, 0
        %v3314 = vsel %vm778, %v3289, 0
        %v3317 = vsel %vm778, %v3290, 0
        %v3320 = vsel %vm778, %v3291, 0
        %v3323 = vsel %vm778, %v3292, 0
        %v3326 = vsel %vm778, %v3293, 0
        %v3329 = vsel %vm778, %v3294, 0
        %v3332 = vsel %vm778, %v3295, 0
        %v3335 = vsel %vm778, %v3296, 0
        %v3338 = vsel %vm778, %v3297, 0
        %v3341 = vsel %vm778, %v3298, 0
        %v3344 = vsel %vm778, %v3299, 0
        %v3347 = vsel %vm778, %v3300, 0
        %v3350 = vsel %vm778, %v3301, 0
        %v3353 = vsel %vm778, %v3302, 0
        %v3356 = vsel %vm778, %v3303, 0
        %3358 = vmatpush.bf16.msra.mxu0 0
        %3359 = vmatpush.bf16.msra.mxu0 0
        %3360 = vmatpush.bf16.msra.mxu0 0
        %3361 = vmatpush.bf16.msra.mxu0 0
        %3362 = vmatpush.bf16.msra.mxu0 0
        %3363 = vmatpush.bf16.msra.mxu0 0
        %3364 = vmatpush.bf16.msra.mxu0 0
        %3365 = vmatpush.bf16.msra.mxu0 %v3308
        %3366 = vmatmul.bf16.gmra.mxu0 %v3311
        %v3367 = vpop.f32.mrf.mxu0
        %v3368 = vadd.f32 0.0, %v3367
        %v3369 = vpop.f32.mrf.mxu0
        %v3370 = vadd.f32 0.0, %v3369
        %3371 = vmatmul.bf16.gmra.mxu0 %v3314
        %v3372 = vpop.f32.mrf.mxu0
        %v3373 = vadd.f32 0.0, %v3372
        %v3374 = vpop.f32.mrf.mxu0
        %v3375 = vadd.f32 0.0, %v3374
        %3376 = vmatmul.bf16.gmra.mxu0 %v3317
        %v3377 = vpop.f32.mrf.mxu0
        %v3378 = vadd.f32 0.0, %v3377
        %v3379 = vpop.f32.mrf.mxu0
        %v3380 = vadd.f32 0.0, %v3379
        %3381 = vmatmul.bf16.gmra.mxu0 %v3320
        %v3382 = vpop.f32.mrf.mxu0
        %v3383 = vadd.f32 0.0, %v3382
        %v3384 = vpop.f32.mrf.mxu0
        %v3385 = vadd.f32 0.0, %v3384
        %3386 = vmatmul.bf16.gmra.mxu0 %v3323
        %v3387 = vpop.f32.mrf.mxu0
        %v3388 = vadd.f32 0.0, %v3387
        %v3389 = vpop.f32.mrf.mxu0
        %v3390 = vadd.f32 0.0, %v3389
        %3391 = vmatmul.bf16.gmra.mxu0 %v3326
        %v3392 = vpop.f32.mrf.mxu0
        %v3393 = vadd.f32 0.0, %v3392
        %v3394 = vpop.f32.mrf.mxu0
        %v3395 = vadd.f32 0.0, %v3394
        %3396 = vmatmul.bf16.gmra.mxu0 %v3329
        %v3397 = vpop.f32.mrf.mxu0
        %v3398 = vadd.f32 0.0, %v3397
        %v3399 = vpop.f32.mrf.mxu0
        %v3400 = vadd.f32 0.0, %v3399
        %3401 = vmatmul.bf16.gmra.mxu0 %v3332
        %v3402 = vpop.f32.mrf.mxu0
        %v3403 = vadd.f32 0.0, %v3402
        %v3404 = vpop.f32.mrf.mxu0
        %v3405 = vadd.f32 0.0, %v3404
        %3406 = vmatmul.bf16.gmra.mxu0 %v3335
        %v3407 = vpop.f32.mrf.mxu0
        %v3408 = vadd.f32 0.0, %v3407
        %v3409 = vpop.f32.mrf.mxu0
        %v3410 = vadd.f32 0.0, %v3409
        %3411 = vmatmul.bf16.gmra.mxu0 %v3338
        %v3412 = vpop.f32.mrf.mxu0
        %v3413 = vadd.f32 0.0, %v3412
        %v3414 = vpop.f32.mrf.mxu0
        %v3415 = vadd.f32 0.0, %v3414
        %3416 = vmatmul.bf16.gmra.mxu0 %v3341
        %v3417 = vpop.f32.mrf.mxu0
        %v3418 = vadd.f32 0.0, %v3417
        %v3419 = vpop.f32.mrf.mxu0
        %v3420 = vadd.f32 0.0, %v3419
        %3421 = vmatmul.bf16.gmra.mxu0 %v3344
        %v3422 = vpop.f32.mrf.mxu0
        %v3423 = vadd.f32 0.0, %v3422
        %v3424 = vpop.f32.mrf.mxu0
        %v3425 = vadd.f32 0.0, %v3424
        %3426 = vmatmul.bf16.gmra.mxu0 %v3347
        %v3427 = vpop.f32.mrf.mxu0
        %v3428 = vadd.f32 0.0, %v3427
        %v3429 = vpop.f32.mrf.mxu0
        %v3430 = vadd.f32 0.0, %v3429
        %3431 = vmatmul.bf16.gmra.mxu0 %v3350
        %v3432 = vpop.f32.mrf.mxu0
        %v3433 = vadd.f32 0.0, %v3432
        %v3434 = vpop.f32.mrf.mxu0
        %v3435 = vadd.f32 0.0, %v3434
        %3436 = vmatmul.bf16.gmra.mxu0 %v3353
        %v3437 = vpop.f32.mrf.mxu0
        %v3438 = vadd.f32 0.0, %v3437
        %v3439 = vpop.f32.mrf.mxu0
        %v3440 = vadd.f32 0.0, %v3439
        %3441 = vmatmul.bf16.gmra.mxu0 %v3356
        %v3442 = vpop.f32.mrf.mxu0
        %v3443 = vadd.f32 0.0, %v3442
        %v3444 = vpop.f32.mrf.mxu0
        %v3445 = vadd.f32 0.0, %v3444
        %3446 = vdwg.mxu0
        %v3447 = vadd.f32 %v2789, %v3368
        %v3448 = vadd.f32 %v2790, %v3370
        %v3449 = vadd.f32 %v2791, %v3373
        %v3450 = vadd.f32 %v2792, %v3375
        %v3451 = vadd.f32 %v2793, %v3378
        %v3452 = vadd.f32 %v2794, %v3380
        %v3453 = vadd.f32 %v2795, %v3383
        %v3454 = vadd.f32 %v2796, %v3385
        %v3455 = vadd.f32 %v2797, %v3388
        %v3456 = vadd.f32 %v2798, %v3390
        %v3457 = vadd.f32 %v2799, %v3393
        %v3458 = vadd.f32 %v2800, %v3395
        %v3459 = vadd.f32 %v2801, %v3398
        %v3460 = vadd.f32 %v2802, %v3400
        %v3461 = vadd.f32 %v2803, %v3403
        %v3462 = vadd.f32 %v2804, %v3405
        %v3463 = vadd.f32 %v2805, %v3408
        %v3464 = vadd.f32 %v2806, %v3410
        %v3465 = vadd.f32 %v2807, %v3413
        %v3466 = vadd.f32 %v2808, %v3415
        %v3467 = vadd.f32 %v2809, %v3418
        %v3468 = vadd.f32 %v2810, %v3420
        %v3469 = vadd.f32 %v2811, %v3423
        %v3470 = vadd.f32 %v2812, %v3425
        %v3471 = vadd.f32 %v2813, %v3428
        %v3472 = vadd.f32 %v2814, %v3430
        %v3473 = vadd.f32 %v2815, %v3433
        %v3474 = vadd.f32 %v2816, %v3435
        %v3475 = vadd.f32 %v2817, %v3438
        %v3476 = vadd.f32 %v2818, %v3440
        %v3477 = vadd.f32 %v2819, %v3443
        %v3478 = vadd.f32 %v2820, %v3445
        %v3479 = vld [vmem:[%s2530] sm:$0xe]
        %v3480 = vld [vmem:[%s2530 + $0xc] sm:$0xe]
        %v3481 = vld [vmem:[%s2530 + $0x18] sm:$0xe]
        %v3482 = vld [vmem:[%s2530 + $0x24] sm:$0xe]
        %v3483 = vld [vmem:[%s2530 + $0x30] sm:$0xe]
        %v3484 = vld [vmem:[%s2530 + $0x3c] sm:$0xe]
        %v3485 = vld [vmem:[%s2530 + $0x48] sm:$0xe]
        %v3486 = vld [vmem:[%s2530 + $0x54] sm:$0xe]
        %v3487 = vld [vmem:[%s2530 + $0x60] sm:$0xe]
        %v3488 = vld [vmem:[%s2530 + $0x6c] sm:$0xe]
        %v3489 = vld [vmem:[%s2530 + $0x78] sm:$0xe]
        %v3490 = vld [vmem:[%s2530 + $0x84] sm:$0xe]
        %v3491 = vld [vmem:[%s2530 + $0x90] sm:$0xe]
        %v3492 = vld [vmem:[%s2530 + $0x9c] sm:$0xe]
        %v3493 = vld [vmem:[%s2530 + $0xa8] sm:$0xe]
        %v3494 = vld [vmem:[%s2530 + $0xb4] sm:$0xe]
        %v3543 = vrot.slane %v3479, 5
        %v3544 = vrot.slane %v3543, 4
        %v3545 = vrot.slane %v2822, 5
        %v3546 = vsel %vm1189, %v3544, %v3545
        %v3547 = vrot.slane %v3545, 4
        %v3548 = vrot.slane %v2823, 5
        %v3549 = vsel %vm1189, %v3547, %v3548
        %v3550 = vrot.slane %v3480, 5
        %v3551 = vrot.slane %v3550, 4
        %v3552 = vrot.slane %v2825, 5
        %v3553 = vsel %vm1189, %v3551, %v3552
        %v3554 = vrot.slane %v3552, 4
        %v3555 = vrot.slane %v2826, 5
        %v3556 = vsel %vm1189, %v3554, %v3555
        %v3557 = vrot.slane %v3481, 5
        %v3558 = vrot.slane %v3557, 4
        %v3559 = vrot.slane %v2828, 5
        %v3560 = vsel %vm1189, %v3558, %v3559
        %v3561 = vrot.slane %v3559, 4
        %v3562 = vrot.slane %v2829, 5
        %v3563 = vsel %vm1189, %v3561, %v3562
        %v3564 = vrot.slane %v3482, 5
        %v3565 = vrot.slane %v3564, 4
        %v3566 = vrot.slane %v2831, 5
        %v3567 = vsel %vm1189, %v3565, %v3566
        %v3568 = vrot.slane %v3566, 4
        %v3569 = vrot.slane %v2832, 5
        %v3570 = vsel %vm1189, %v3568, %v3569
        %v3571 = vrot.slane %v3483, 5
        %v3572 = vrot.slane %v3571, 4
        %v3573 = vrot.slane %v2834, 5
        %v3574 = vsel %vm1189, %v3572, %v3573
        %v3575 = vrot.slane %v3573, 4
        %v3576 = vrot.slane %v2835, 5
        %v3577 = vsel %vm1189, %v3575, %v3576
        %v3578 = vrot.slane %v3484, 5
        %v3579 = vrot.slane %v3578, 4
        %v3580 = vrot.slane %v2837, 5
        %v3581 = vsel %vm1189, %v3579, %v3580
        %v3582 = vrot.slane %v3580, 4
        %v3583 = vrot.slane %v2838, 5
        %v3584 = vsel %vm1189, %v3582, %v3583
        %v3585 = vrot.slane %v3485, 5
        %v3586 = vrot.slane %v3585, 4
        %v3587 = vrot.slane %v2840, 5
        %v3588 = vsel %vm1189, %v3586, %v3587
        %v3589 = vrot.slane %v3587, 4
        %v3590 = vrot.slane %v2841, 5
        %v3591 = vsel %vm1189, %v3589, %v3590
        %v3592 = vrot.slane %v3486, 5
        %v3593 = vrot.slane %v3592, 4
        %v3594 = vrot.slane %v2843, 5
        %v3595 = vsel %vm1189, %v3593, %v3594
        %v3596 = vrot.slane %v3594, 4
        %v3597 = vrot.slane %v2844, 5
        %v3598 = vsel %vm1189, %v3596, %v3597
        %v3599 = vrot.slane %v3487, 5
        %v3600 = vrot.slane %v3599, 4
        %v3601 = vrot.slane %v2846, 5
        %v3602 = vsel %vm1189, %v3600, %v3601
        %v3603 = vrot.slane %v3601, 4
        %v3604 = vrot.slane %v2847, 5
        %v3605 = vsel %vm1189, %v3603, %v3604
        %v3606 = vrot.slane %v3488, 5
        %v3607 = vrot.slane %v3606, 4
        %v3608 = vrot.slane %v2849, 5
        %v3609 = vsel %vm1189, %v3607, %v3608
        %v3610 = vrot.slane %v3608, 4
        %v3611 = vrot.slane %v2850, 5
        %v3612 = vsel %vm1189, %v3610, %v3611
        %v3613 = vrot.slane %v3489, 5
        %v3614 = vrot.slane %v3613, 4
        %v3615 = vrot.slane %v2852, 5
        %v3616 = vsel %vm1189, %v3614, %v3615
        %v3617 = vrot.slane %v3615, 4
        %v3618 = vrot.slane %v2853, 5
        %v3619 = vsel %vm1189, %v3617, %v3618
        %v3620 = vrot.slane %v3490, 5
        %v3621 = vrot.slane %v3620, 4
        %v3622 = vrot.slane %v2855, 5
        %v3623 = vsel %vm1189, %v3621, %v3622
        %v3624 = vrot.slane %v3622, 4
        %v3625 = vrot.slane %v2856, 5
        %v3626 = vsel %vm1189, %v3624, %v3625
        %v3627 = vrot.slane %v3491, 5
        %v3628 = vrot.slane %v3627, 4
        %v3629 = vrot.slane %v2858, 5
        %v3630 = vsel %vm1189, %v3628, %v3629
        %v3631 = vrot.slane %v3629, 4
        %v3632 = vrot.slane %v2859, 5
        %v3633 = vsel %vm1189, %v3631, %v3632
        %v3634 = vrot.slane %v3492, 5
        %v3635 = vrot.slane %v3634, 4
        %v3636 = vrot.slane %v2861, 5
        %v3637 = vsel %vm1189, %v3635, %v3636
        %v3638 = vrot.slane %v3636, 4
        %v3639 = vrot.slane %v2862, 5
        %v3640 = vsel %vm1189, %v3638, %v3639
        %v3641 = vrot.slane %v3493, 5
        %v3642 = vrot.slane %v3641, 4
        %v3643 = vrot.slane %v2864, 5
        %v3644 = vsel %vm1189, %v3642, %v3643
        %v3645 = vrot.slane %v3643, 4
        %v3646 = vrot.slane %v2865, 5
        %v3647 = vsel %vm1189, %v3645, %v3646
        %v3648 = vrot.slane %v3494, 5
        %v3649 = vrot.slane %v3648, 4
        %v3650 = vrot.slane %v2867, 5
        %v3651 = vsel %vm1189, %v3649, %v3650
        %v3652 = vrot.slane %v3650, 4
        %v3653 = vrot.slane %v2868, 5
        %v3654 = vsel %vm1189, %v3652, %v3653
        %s3655 = scalar_lea.vmem %s270, 56
        %v3656 = vld [vmem:[%s3655] sm:$0xf]
        %v3657 = vld [vmem:[%s3655 + $0x4] sm:$0xf]
        %v3658 = vunpack.c.l.b16 %v3546
        %v3659 = vunpack.c.l.b16 %v3549
        %v3660 = vunpack.c.l.b16 %v3553
        %v3661 = vunpack.c.l.b16 %v3556
        %v3662 = vunpack.c.l.b16 %v3560
        %v3663 = vunpack.c.l.b16 %v3563
        %v3664 = vunpack.c.l.b16 %v3567
        %v3665 = vunpack.c.l.b16 %v3570
        %v3666 = vunpack.c.l.b16 %v3574
        %v3667 = vunpack.c.l.b16 %v3577
        %v3668 = vunpack.c.l.b16 %v3581
        %v3669 = vunpack.c.l.b16 %v3584
        %v3670 = vunpack.c.l.b16 %v3588
        %v3671 = vunpack.c.l.b16 %v3591
        %v3672 = vunpack.c.l.b16 %v3595
        %v3673 = vunpack.c.l.b16 %v3598
        %v3674 = vunpack.c.l.b16 %v3602
        %v3675 = vunpack.c.l.b16 %v3605
        %v3676 = vunpack.c.l.b16 %v3609
        %v3677 = vunpack.c.l.b16 %v3612
        %v3678 = vunpack.c.l.b16 %v3616
        %v3679 = vunpack.c.l.b16 %v3619
        %v3680 = vunpack.c.l.b16 %v3623
        %v3681 = vunpack.c.l.b16 %v3626
        %v3682 = vunpack.c.l.b16 %v3630
        %v3683 = vunpack.c.l.b16 %v3633
        %v3684 = vunpack.c.l.b16 %v3637
        %v3685 = vunpack.c.l.b16 %v3640
        %v3686 = vunpack.c.l.b16 %v3644
        %v3687 = vunpack.c.l.b16 %v3647
        %v3688 = vunpack.c.l.b16 %v3651
        %v3689 = vunpack.c.l.b16 %v3654
        %v3690 = vpack.c.b16 %v3659, %v3658
        %v3691 = vpack.c.b16 %v3661, %v3660
        %v3692 = vpack.c.b16 %v3663, %v3662
        %v3693 = vpack.c.b16 %v3665, %v3664
        %v3694 = vpack.c.b16 %v3667, %v3666
        %v3695 = vpack.c.b16 %v3669, %v3668
        %v3696 = vpack.c.b16 %v3671, %v3670
        %v3697 = vpack.c.b16 %v3673, %v3672
        %v3698 = vpack.c.b16 %v3675, %v3674
        %v3699 = vpack.c.b16 %v3677, %v3676
        %v3700 = vpack.c.b16 %v3679, %v3678
        %v3701 = vpack.c.b16 %v3681, %v3680
        %v3702 = vpack.c.b16 %v3683, %v3682
        %v3703 = vpack.c.b16 %v3685, %v3684
        %v3704 = vpack.c.b16 %v3687, %v3686
        %v3705 = vpack.c.b16 %v3689, %v3688
        %v3708 = vunpack.c.l.b16 %v3656
        %v3709 = vunpack.c.l.b16 %v3657
        %v3710 = vpack.c.b16 %v3709, %v3708
        %v3713 = vsel %vm778, %v3690, 0
        %v3716 = vsel %vm778, %v3691, 0
        %v3719 = vsel %vm778, %v3692, 0
        %v3722 = vsel %vm778, %v3693, 0
        %v3725 = vsel %vm778, %v3694, 0
        %v3728 = vsel %vm778, %v3695, 0
        %v3731 = vsel %vm778, %v3696, 0
        %v3734 = vsel %vm778, %v3697, 0
        %v3737 = vsel %vm778, %v3698, 0
        %v3740 = vsel %vm778, %v3699, 0
        %v3743 = vsel %vm778, %v3700, 0
        %v3746 = vsel %vm778, %v3701, 0
        %v3749 = vsel %vm778, %v3702, 0
        %v3752 = vsel %vm778, %v3703, 0
        %v3755 = vsel %vm778, %v3704, 0
        %v3758 = vsel %vm778, %v3705, 0
        %3760 = vmatpush.bf16.msra.mxu0 0
        %3761 = vmatpush.bf16.msra.mxu0 0
        %3762 = vmatpush.bf16.msra.mxu0 0
        %3763 = vmatpush.bf16.msra.mxu0 0
        %3764 = vmatpush.bf16.msra.mxu0 0
        %3765 = vmatpush.bf16.msra.mxu0 0
        %3766 = vmatpush.bf16.msra.mxu0 0
        %3767 = vmatpush.bf16.msra.mxu0 %v3710
        %3768 = vmatmul.bf16.gmra.mxu0 %v3713
        %v3769 = vpop.f32.mrf.mxu0
        %v3770 = vadd.f32 0.0, %v3769
        %v3771 = vpop.f32.mrf.mxu0
        %v3772 = vadd.f32 0.0, %v3771
        %3773 = vmatmul.bf16.gmra.mxu0 %v3716
        %v3774 = vpop.f32.mrf.mxu0
        %v3775 = vadd.f32 0.0, %v3774
        %v3776 = vpop.f32.mrf.mxu0
        %v3777 = vadd.f32 0.0, %v3776
        %3778 = vmatmul.bf16.gmra.mxu0 %v3719
        %v3779 = vpop.f32.mrf.mxu0
        %v3780 = vadd.f32 0.0, %v3779
        %v3781 = vpop.f32.mrf.mxu0
        %v3782 = vadd.f32 0.0, %v3781
        %3783 = vmatmul.bf16.gmra.mxu0 %v3722
        %v3784 = vpop.f32.mrf.mxu0
        %v3785 = vadd.f32 0.0, %v3784
        %v3786 = vpop.f32.mrf.mxu0
        %v3787 = vadd.f32 0.0, %v3786
        %3788 = vmatmul.bf16.gmra.mxu0 %v3725
        %v3789 = vpop.f32.mrf.mxu0
        %v3790 = vadd.f32 0.0, %v3789
        %v3791 = vpop.f32.mrf.mxu0
        %v3792 = vadd.f32 0.0, %v3791
        %3793 = vmatmul.bf16.gmra.mxu0 %v3728
        %v3794 = vpop.f32.mrf.mxu0
        %v3795 = vadd.f32 0.0, %v3794
        %v3796 = vpop.f32.mrf.mxu0
        %v3797 = vadd.f32 0.0, %v3796
        %3798 = vmatmul.bf16.gmra.mxu0 %v3731
        %v3799 = vpop.f32.mrf.mxu0
        %v3800 = vadd.f32 0.0, %v3799
        %v3801 = vpop.f32.mrf.mxu0
        %v3802 = vadd.f32 0.0, %v3801
        %3803 = vmatmul.bf16.gmra.mxu0 %v3734
        %v3804 = vpop.f32.mrf.mxu0
        %v3805 = vadd.f32 0.0, %v3804
        %v3806 = vpop.f32.mrf.mxu0
        %v3807 = vadd.f32 0.0, %v3806
        %3808 = vmatmul.bf16.gmra.mxu0 %v3737
        %v3809 = vpop.f32.mrf.mxu0
        %v3810 = vadd.f32 0.0, %v3809
        %v3811 = vpop.f32.mrf.mxu0
        %v3812 = vadd.f32 0.0, %v3811
        %3813 = vmatmul.bf16.gmra.mxu0 %v3740
        %v3814 = vpop.f32.mrf.mxu0
        %v3815 = vadd.f32 0.0, %v3814
        %v3816 = vpop.f32.mrf.mxu0
        %v3817 = vadd.f32 0.0, %v3816
        %3818 = vmatmul.bf16.gmra.mxu0 %v3743
        %v3819 = vpop.f32.mrf.mxu0
        %v3820 = vadd.f32 0.0, %v3819
        %v3821 = vpop.f32.mrf.mxu0
        %v3822 = vadd.f32 0.0, %v3821
        %3823 = vmatmul.bf16.gmra.mxu0 %v3746
        %v3824 = vpop.f32.mrf.mxu0
        %v3825 = vadd.f32 0.0, %v3824
        %v3826 = vpop.f32.mrf.mxu0
        %v3827 = vadd.f32 0.0, %v3826
        %3828 = vmatmul.bf16.gmra.mxu0 %v3749
        %v3829 = vpop.f32.mrf.mxu0
        %v3830 = vadd.f32 0.0, %v3829
        %v3831 = vpop.f32.mrf.mxu0
        %v3832 = vadd.f32 0.0, %v3831
        %3833 = vmatmul.bf16.gmra.mxu0 %v3752
        %v3834 = vpop.f32.mrf.mxu0
        %v3835 = vadd.f32 0.0, %v3834
        %v3836 = vpop.f32.mrf.mxu0
        %v3837 = vadd.f32 0.0, %v3836
        %3838 = vmatmul.bf16.gmra.mxu0 %v3755
        %v3839 = vpop.f32.mrf.mxu0
        %v3840 = vadd.f32 0.0, %v3839
        %v3841 = vpop.f32.mrf.mxu0
        %v3842 = vadd.f32 0.0, %v3841
        %3843 = vmatmul.bf16.gmra.mxu0 %v3758
        %v3844 = vpop.f32.mrf.mxu0
        %v3845 = vadd.f32 0.0, %v3844
        %v3846 = vpop.f32.mrf.mxu0
        %v3847 = vadd.f32 0.0, %v3846
        %3848 = vdwg.mxu0
        %v3849 = vadd.f32 %v3447, %v3770
        %v3850 = vadd.f32 %v3448, %v3772
        %v3851 = vadd.f32 %v3449, %v3775
        %v3852 = vadd.f32 %v3450, %v3777
        %v3853 = vadd.f32 %v3451, %v3780
        %v3854 = vadd.f32 %v3452, %v3782
        %v3855 = vadd.f32 %v3453, %v3785
        %v3856 = vadd.f32 %v3454, %v3787
        %v3857 = vadd.f32 %v3455, %v3790
        %v3858 = vadd.f32 %v3456, %v3792
        %v3859 = vadd.f32 %v3457, %v3795
        %v3860 = vadd.f32 %v3458, %v3797
        %v3861 = vadd.f32 %v3459, %v3800
        %v3862 = vadd.f32 %v3460, %v3802
        %v3863 = vadd.f32 %v3461, %v3805
        %v3864 = vadd.f32 %v3462, %v3807
        %v3865 = vadd.f32 %v3463, %v3810
        %v3866 = vadd.f32 %v3464, %v3812
        %v3867 = vadd.f32 %v3465, %v3815
        %v3868 = vadd.f32 %v3466, %v3817
        %v3869 = vadd.f32 %v3467, %v3820
        %v3870 = vadd.f32 %v3468, %v3822
        %v3871 = vadd.f32 %v3469, %v3825
        %v3872 = vadd.f32 %v3470, %v3827
        %v3873 = vadd.f32 %v3471, %v3830
        %v3874 = vadd.f32 %v3472, %v3832
        %v3875 = vadd.f32 %v3473, %v3835
        %v3876 = vadd.f32 %v3474, %v3837
        %v3877 = vadd.f32 %v3475, %v3840
        %v3878 = vadd.f32 %v3476, %v3842
        %v3879 = vadd.f32 %v3477, %v3845
        %v3880 = vadd.f32 %v3478, %v3847
        %v3881 = vld [vmem:[%s2530 + $0x8] sm:$0x3]
        %v3882 = vld [vmem:[%s2530 + $0x14] sm:$0x3]
        %v3883 = vld [vmem:[%s2530 + $0x20] sm:$0x3]
        %v3884 = vld [vmem:[%s2530 + $0x2c] sm:$0x3]
        %v3885 = vld [vmem:[%s2530 + $0x38] sm:$0x3]
        %v3886 = vld [vmem:[%s2530 + $0x44] sm:$0x3]
        %v3887 = vld [vmem:[%s2530 + $0x50] sm:$0x3]
        %v3888 = vld [vmem:[%s2530 + $0x5c] sm:$0x3]
        %v3889 = vld [vmem:[%s2530 + $0x68] sm:$0x3]
        %v3890 = vld [vmem:[%s2530 + $0x74] sm:$0x3]
        %v3891 = vld [vmem:[%s2530 + $0x80] sm:$0x3]
        %v3892 = vld [vmem:[%s2530 + $0x8c] sm:$0x3]
        %v3893 = vld [vmem:[%s2530 + $0x98] sm:$0x3]
        %v3894 = vld [vmem:[%s2530 + $0xa4] sm:$0x3]
        %v3895 = vld [vmem:[%s2530 + $0xb0] sm:$0x3]
        %v3896 = vld [vmem:[%s2530 + $0xbc] sm:$0x3]
        %v3898 = vshrl.u32 %v3479, 16
        %v3900 = vrot.slane %v3898, 5
        %v3901 = vshll.u32 %v3479, 16
        %v3903 = vrot.slane %v3901, 6
        %v3904 = vor.u32 %v3900, %v3903
        %v3905 = vrot.slane %v3904, 4
        %v3906 = vrot.slane %v2883, 5
        %v3907 = vrot.slane %v2879, 6
        %v3908 = vor.u32 %v3906, %v3907
        %v3909 = vsel %vm1546, %v3905, %v3908
        %v3910 = vrot.slane %v3908, 4
        %v3912 = vshrl.u32 %v3881, 16
        %v3914 = vrot.slane %v3912, 5
        %v3915 = vshll.u32 %v3881, 16
        %v3917 = vrot.slane %v3915, 6
        %v3918 = vor.u32 %v3914, %v3917
        %v3919 = vsel %vm1546, %v3910, %v3918
        %v3921 = vshrl.u32 %v3480, 16
        %v3923 = vrot.slane %v3921, 5
        %v3924 = vshll.u32 %v3480, 16
        %v3926 = vrot.slane %v3924, 6
        %v3927 = vor.u32 %v3923, %v3926
        %v3928 = vrot.slane %v3927, 4
        %v3929 = vrot.slane %v2907, 5
        %v3930 = vrot.slane %v2903, 6
        %v3931 = vor.u32 %v3929, %v3930
        %v3932 = vsel %vm1546, %v3928, %v3931
        %v3933 = vrot.slane %v3931, 4
        %v3935 = vshrl.u32 %v3882, 16
        %v3937 = vrot.slane %v3935, 5
        %v3938 = vshll.u32 %v3882, 16
        %v3940 = vrot.slane %v3938, 6
        %v3941 = vor.u32 %v3937, %v3940
        %v3942 = vsel %vm1546, %v3933, %v3941
        %v3944 = vshrl.u32 %v3481, 16
        %v3946 = vrot.slane %v3944, 5
        %v3947 = vshll.u32 %v3481, 16
        %v3949 = vrot.slane %v3947, 6
        %v3950 = vor.u32 %v3946, %v3949
        %v3951 = vrot.slane %v3950, 4
        %v3952 = vrot.slane %v2931, 5
        %v3953 = vrot.slane %v2927, 6
        %v3954 = vor.u32 %v3952, %v3953
        %v3955 = vsel %vm1546, %v3951, %v3954
        %v3956 = vrot.slane %v3954, 4
        %v3958 = vshrl.u32 %v3883, 16
        %v3960 = vrot.slane %v3958, 5
        %v3961 = vshll.u32 %v3883, 16
        %v3963 = vrot.slane %v3961, 6
        %v3964 = vor.u32 %v3960, %v3963
        %v3965 = vsel %vm1546, %v3956, %v3964
        %v3967 = vshrl.u32 %v3482, 16
        %v3969 = vrot.slane %v3967, 5
        %v3970 = vshll.u32 %v3482, 16
        %v3972 = vrot.slane %v3970, 6
        %v3973 = vor.u32 %v3969, %v3972
        %v3974 = vrot.slane %v3973, 4
        %v3975 = vrot.slane %v2955, 5
        %v3976 = vrot.slane %v2951, 6
        %v3977 = vor.u32 %v3975, %v3976
        %v3978 = vsel %vm1546, %v3974, %v3977
        %v3979 = vrot.slane %v3977, 4
        %v3981 = vshrl.u32 %v3884, 16
        %v3983 = vrot.slane %v3981, 5
        %v3984 = vshll.u32 %v3884, 16
        %v3986 = vrot.slane %v3984, 6
        %v3987 = vor.u32 %v3983, %v3986
        %v3988 = vsel %vm1546, %v3979, %v3987
        %v3990 = vshrl.u32 %v3483, 16
        %v3992 = vrot.slane %v3990, 5
        %v3993 = vshll.u32 %v3483, 16
        %v3995 = vrot.slane %v3993, 6
        %v3996 = vor.u32 %v3992, %v3995
        %v3997 = vrot.slane %v3996, 4
        %v3998 = vrot.slane %v2979, 5
        %v3999 = vrot.slane %v2975, 6
        %v4000 = vor.u32 %v3998, %v3999
        %v4001 = vsel %vm1546, %v3997, %v4000
        %v4002 = vrot.slane %v4000, 4
        %v4004 = vshrl.u32 %v3885, 16
        %v4006 = vrot.slane %v4004, 5
        %v4007 = vshll.u32 %v3885, 16
        %v4009 = vrot.slane %v4007, 6
        %v4010 = vor.u32 %v4006, %v4009
        %v4011 = vsel %vm1546, %v4002, %v4010
        %v4013 = vshrl.u32 %v3484, 16
        %v4015 = vrot.slane %v4013, 5
        %v4016 = vshll.u32 %v3484, 16
        %v4018 = vrot.slane %v4016, 6
        %v4019 = vor.u32 %v4015, %v4018
        %v4020 = vrot.slane %v4019, 4
        %v4021 = vrot.slane %v3003, 5
        %v4022 = vrot.slane %v2999, 6
        %v4023 = vor.u32 %v4021, %v4022
        %v4024 = vsel %vm1546, %v4020, %v4023
        %v4025 = vrot.slane %v4023, 4
        %v4027 = vshrl.u32 %v3886, 16
        %v4029 = vrot.slane %v4027, 5
        %v4030 = vshll.u32 %v3886, 16
        %v4032 = vrot.slane %v4030, 6
        %v4033 = vor.u32 %v4029, %v4032
        %v4034 = vsel %vm1546, %v4025, %v4033
        %v4036 = vshrl.u32 %v3485, 16
        %v4038 = vrot.slane %v4036, 5
        %v4039 = vshll.u32 %v3485, 16
        %v4041 = vrot.slane %v4039, 6
        %v4042 = vor.u32 %v4038, %v4041
        %v4043 = vrot.slane %v4042, 4
        %v4044 = vrot.slane %v3027, 5
        %v4045 = vrot.slane %v3023, 6
        %v4046 = vor.u32 %v4044, %v4045
        %v4047 = vsel %vm1546, %v4043, %v4046
        %v4048 = vrot.slane %v4046, 4
        %v4050 = vshrl.u32 %v3887, 16
        %v4052 = vrot.slane %v4050, 5
        %v4053 = vshll.u32 %v3887, 16
        %v4055 = vrot.slane %v4053, 6
        %v4056 = vor.u32 %v4052, %v4055
        %v4057 = vsel %vm1546, %v4048, %v4056
        %v4059 = vshrl.u32 %v3486, 16
        %v4061 = vrot.slane %v4059, 5
        %v4062 = vshll.u32 %v3486, 16
        %v4064 = vrot.slane %v4062, 6
        %v4065 = vor.u32 %v4061, %v4064
        %v4066 = vrot.slane %v4065, 4
        %v4067 = vrot.slane %v3051, 5
        %v4068 = vrot.slane %v3047, 6
        %v4069 = vor.u32 %v4067, %v4068
        %v4070 = vsel %vm1546, %v4066, %v4069
        %v4071 = vrot.slane %v4069, 4
        %v4073 = vshrl.u32 %v3888, 16
        %v4075 = vrot.slane %v4073, 5
        %v4076 = vshll.u32 %v3888, 16
        %v4078 = vrot.slane %v4076, 6
        %v4079 = vor.u32 %v4075, %v4078
        %v4080 = vsel %vm1546, %v4071, %v4079
        %v4082 = vshrl.u32 %v3487, 16
        %v4084 = vrot.slane %v4082, 5
        %v4085 = vshll.u32 %v3487, 16
        %v4087 = vrot.slane %v4085, 6
        %v4088 = vor.u32 %v4084, %v4087
        %v4089 = vrot.slane %v4088, 4
        %v4090 = vrot.slane %v3075, 5
        %v4091 = vrot.slane %v3071, 6
        %v4092 = vor.u32 %v4090, %v4091
        %v4093 = vsel %vm1546, %v4089, %v4092
        %v4094 = vrot.slane %v4092, 4
        %v4096 = vshrl.u32 %v3889, 16
        %v4098 = vrot.slane %v4096, 5
        %v4099 = vshll.u32 %v3889, 16
        %v4101 = vrot.slane %v4099, 6
        %v4102 = vor.u32 %v4098, %v4101
        %v4103 = vsel %vm1546, %v4094, %v4102
        %v4105 = vshrl.u32 %v3488, 16
        %v4107 = vrot.slane %v4105, 5
        %v4108 = vshll.u32 %v3488, 16
        %v4110 = vrot.slane %v4108, 6
        %v4111 = vor.u32 %v4107, %v4110
        %v4112 = vrot.slane %v4111, 4
        %v4113 = vrot.slane %v3099, 5
        %v4114 = vrot.slane %v3095, 6
        %v4115 = vor.u32 %v4113, %v4114
        %v4116 = vsel %vm1546, %v4112, %v4115
        %v4117 = vrot.slane %v4115, 4
        %v4119 = vshrl.u32 %v3890, 16
        %v4121 = vrot.slane %v4119, 5
        %v4122 = vshll.u32 %v3890, 16
        %v4124 = vrot.slane %v4122, 6
        %v4125 = vor.u32 %v4121, %v4124
        %v4126 = vsel %vm1546, %v4117, %v4125
        %v4128 = vshrl.u32 %v3489, 16
        %v4130 = vrot.slane %v4128, 5
        %v4131 = vshll.u32 %v3489, 16
        %v4133 = vrot.slane %v4131, 6
        %v4134 = vor.u32 %v4130, %v4133
        %v4135 = vrot.slane %v4134, 4
        %v4136 = vrot.slane %v3123, 5
        %v4137 = vrot.slane %v3119, 6
        %v4138 = vor.u32 %v4136, %v4137
        %v4139 = vsel %vm1546, %v4135, %v4138
        %v4140 = vrot.slane %v4138, 4
        %v4142 = vshrl.u32 %v3891, 16
        %v4144 = vrot.slane %v4142, 5
        %v4145 = vshll.u32 %v3891, 16
        %v4147 = vrot.slane %v4145, 6
        %v4148 = vor.u32 %v4144, %v4147
        %v4149 = vsel %vm1546, %v4140, %v4148
        %v4151 = vshrl.u32 %v3490, 16
        %v4153 = vrot.slane %v4151, 5
        %v4154 = vshll.u32 %v3490, 16
        %v4156 = vrot.slane %v4154, 6
        %v4157 = vor.u32 %v4153, %v4156
        %v4158 = vrot.slane %v4157, 4
        %v4159 = vrot.slane %v3147, 5
        %v4160 = vrot.slane %v3143, 6
        %v4161 = vor.u32 %v4159, %v4160
        %v4162 = vsel %vm1546, %v4158, %v4161
        %v4163 = vrot.slane %v4161, 4
        %v4165 = vshrl.u32 %v3892, 16
        %v4167 = vrot.slane %v4165, 5
        %v4168 = vshll.u32 %v3892, 16
        %v4170 = vrot.slane %v4168, 6
        %v4171 = vor.u32 %v4167, %v4170
        %v4172 = vsel %vm1546, %v4163, %v4171
        %v4174 = vshrl.u32 %v3491, 16
        %v4176 = vrot.slane %v4174, 5
        %v4177 = vshll.u32 %v3491, 16
        %v4179 = vrot.slane %v4177, 6
        %v4180 = vor.u32 %v4176, %v4179
        %v4181 = vrot.slane %v4180, 4
        %v4182 = vrot.slane %v3171, 5
        %v4183 = vrot.slane %v3167, 6
        %v4184 = vor.u32 %v4182, %v4183
        %v4185 = vsel %vm1546, %v4181, %v4184
        %v4186 = vrot.slane %v4184, 4
        %v4188 = vshrl.u32 %v3893, 16
        %v4190 = vrot.slane %v4188, 5
        %v4191 = vshll.u32 %v3893, 16
        %v4193 = vrot.slane %v4191, 6
        %v4194 = vor.u32 %v4190, %v4193
        %v4195 = vsel %vm1546, %v4186, %v4194
        %v4197 = vshrl.u32 %v3492, 16
        %v4199 = vrot.slane %v4197, 5
        %v4200 = vshll.u32 %v3492, 16
        %v4202 = vrot.slane %v4200, 6
        %v4203 = vor.u32 %v4199, %v4202
        %v4204 = vrot.slane %v4203, 4
        %v4205 = vrot.slane %v3195, 5
        %v4206 = vrot.slane %v3191, 6
        %v4207 = vor.u32 %v4205, %v4206
        %v4208 = vsel %vm1546, %v4204, %v4207
        %v4209 = vrot.slane %v4207, 4
        %v4211 = vshrl.u32 %v3894, 16
        %v4213 = vrot.slane %v4211, 5
        %v4214 = vshll.u32 %v3894, 16
        %v4216 = vrot.slane %v4214, 6
        %v4217 = vor.u32 %v4213, %v4216
        %v4218 = vsel %vm1546, %v4209, %v4217
        %v4220 = vshrl.u32 %v3493, 16
        %v4222 = vrot.slane %v4220, 5
        %v4223 = vshll.u32 %v3493, 16
        %v4225 = vrot.slane %v4223, 6
        %v4226 = vor.u32 %v4222, %v4225
        %v4227 = vrot.slane %v4226, 4
        %v4228 = vrot.slane %v3219, 5
        %v4229 = vrot.slane %v3215, 6
        %v4230 = vor.u32 %v4228, %v4229
        %v4231 = vsel %vm1546, %v4227, %v4230
        %v4232 = vrot.slane %v4230, 4
        %v4234 = vshrl.u32 %v3895, 16
        %v4236 = vrot.slane %v4234, 5
        %v4237 = vshll.u32 %v3895, 16
        %v4239 = vrot.slane %v4237, 6
        %v4240 = vor.u32 %v4236, %v4239
        %v4241 = vsel %vm1546, %v4232, %v4240
        %v4243 = vshrl.u32 %v3494, 16
        %v4245 = vrot.slane %v4243, 5
        %v4246 = vshll.u32 %v3494, 16
        %v4248 = vrot.slane %v4246, 6
        %v4249 = vor.u32 %v4245, %v4248
        %v4250 = vrot.slane %v4249, 4
        %v4251 = vrot.slane %v3243, 5
        %v4252 = vrot.slane %v3239, 6
        %v4253 = vor.u32 %v4251, %v4252
        %v4254 = vsel %vm1546, %v4250, %v4253
        %v4255 = vrot.slane %v4253, 4
        %v4257 = vshrl.u32 %v3896, 16
        %v4259 = vrot.slane %v4257, 5
        %v4260 = vshll.u32 %v3896, 16
        %v4262 = vrot.slane %v4260, 6
        %v4263 = vor.u32 %v4259, %v4262
        %v4264 = vsel %vm1546, %v4255, %v4263
        %s4265 = scalar_lea.vmem %s270, 64
        %v4266 = vld [vmem:[%s4265] sm:$0xf]
        %v4267 = vld [vmem:[%s4265 + $0x4] sm:$0xf]
        %v4268 = vunpack.c.l.b16 %v3909
        %v4269 = vunpack.c.l.b16 %v3919
        %v4270 = vunpack.c.l.b16 %v3932
        %v4271 = vunpack.c.l.b16 %v3942
        %v4272 = vunpack.c.l.b16 %v3955
        %v4273 = vunpack.c.l.b16 %v3965
        %v4274 = vunpack.c.l.b16 %v3978
        %v4275 = vunpack.c.l.b16 %v3988
        %v4276 = vunpack.c.l.b16 %v4001
        %v4277 = vunpack.c.l.b16 %v4011
        %v4278 = vunpack.c.l.b16 %v4024
        %v4279 = vunpack.c.l.b16 %v4034
        %v4280 = vunpack.c.l.b16 %v4047
        %v4281 = vunpack.c.l.b16 %v4057
        %v4282 = vunpack.c.l.b16 %v4070
        %v4283 = vunpack.c.l.b16 %v4080
        %v4284 = vunpack.c.l.b16 %v4093
        %v4285 = vunpack.c.l.b16 %v4103
        %v4286 = vunpack.c.l.b16 %v4116
        %v4287 = vunpack.c.l.b16 %v4126
        %v4288 = vunpack.c.l.b16 %v4139
        %v4289 = vunpack.c.l.b16 %v4149
        %v4290 = vunpack.c.l.b16 %v4162
        %v4291 = vunpack.c.l.b16 %v4172
        %v4292 = vunpack.c.l.b16 %v4185
        %v4293 = vunpack.c.l.b16 %v4195
        %v4294 = vunpack.c.l.b16 %v4208
        %v4295 = vunpack.c.l.b16 %v4218
        %v4296 = vunpack.c.l.b16 %v4231
        %v4297 = vunpack.c.l.b16 %v4241
        %v4298 = vunpack.c.l.b16 %v4254
        %v4299 = vunpack.c.l.b16 %v4264
        %v4300 = vpack.c.b16 %v4269, %v4268
        %v4301 = vpack.c.b16 %v4271, %v4270
        %v4302 = vpack.c.b16 %v4273, %v4272
        %v4303 = vpack.c.b16 %v4275, %v4274
        %v4304 = vpack.c.b16 %v4277, %v4276
        %v4305 = vpack.c.b16 %v4279, %v4278
        %v4306 = vpack.c.b16 %v4281, %v4280
        %v4307 = vpack.c.b16 %v4283, %v4282
        %v4308 = vpack.c.b16 %v4285, %v4284
        %v4309 = vpack.c.b16 %v4287, %v4286
        %v4310 = vpack.c.b16 %v4289, %v4288
        %v4311 = vpack.c.b16 %v4291, %v4290
        %v4312 = vpack.c.b16 %v4293, %v4292
        %v4313 = vpack.c.b16 %v4295, %v4294
        %v4314 = vpack.c.b16 %v4297, %v4296
        %v4315 = vpack.c.b16 %v4299, %v4298
        %v4318 = vunpack.c.l.b16 %v4266
        %v4319 = vunpack.c.l.b16 %v4267
        %v4320 = vpack.c.b16 %v4319, %v4318
        %v4323 = vsel %vm778, %v4300, 0
        %v4326 = vsel %vm778, %v4301, 0
        %v4329 = vsel %vm778, %v4302, 0
        %v4332 = vsel %vm778, %v4303, 0
        %v4335 = vsel %vm778, %v4304, 0
        %v4338 = vsel %vm778, %v4305, 0
        %v4341 = vsel %vm778, %v4306, 0
        %v4344 = vsel %vm778, %v4307, 0
        %v4347 = vsel %vm778, %v4308, 0
        %v4350 = vsel %vm778, %v4309, 0
        %v4353 = vsel %vm778, %v4310, 0
        %v4356 = vsel %vm778, %v4311, 0
        %v4359 = vsel %vm778, %v4312, 0
        %v4362 = vsel %vm778, %v4313, 0
        %v4365 = vsel %vm778, %v4314, 0
        %v4368 = vsel %vm778, %v4315, 0
        %4370 = vmatpush.bf16.msra.mxu0 0
        %4371 = vmatpush.bf16.msra.mxu0 0
        %4372 = vmatpush.bf16.msra.mxu0 0
        %4373 = vmatpush.bf16.msra.mxu0 0
        %4374 = vmatpush.bf16.msra.mxu0 0
        %4375 = vmatpush.bf16.msra.mxu0 0
        %4376 = vmatpush.bf16.msra.mxu0 0
        %4377 = vmatpush.bf16.msra.mxu0 %v4320
        %4378 = vmatmul.bf16.gmra.mxu0 %v4323
        %v4379 = vpop.f32.mrf.mxu0
        %v4380 = vadd.f32 0.0, %v4379
        %v4381 = vpop.f32.mrf.mxu0
        %v4382 = vadd.f32 0.0, %v4381
        %4383 = vmatmul.bf16.gmra.mxu0 %v4326
        %v4384 = vpop.f32.mrf.mxu0
        %v4385 = vadd.f32 0.0, %v4384
        %v4386 = vpop.f32.mrf.mxu0
        %v4387 = vadd.f32 0.0, %v4386
        %4388 = vmatmul.bf16.gmra.mxu0 %v4329
        %v4389 = vpop.f32.mrf.mxu0
        %v4390 = vadd.f32 0.0, %v4389
        %v4391 = vpop.f32.mrf.mxu0
        %v4392 = vadd.f32 0.0, %v4391
        %4393 = vmatmul.bf16.gmra.mxu0 %v4332
        %v4394 = vpop.f32.mrf.mxu0
        %v4395 = vadd.f32 0.0, %v4394
        %v4396 = vpop.f32.mrf.mxu0
        %v4397 = vadd.f32 0.0, %v4396
        %4398 = vmatmul.bf16.gmra.mxu0 %v4335
        %v4399 = vpop.f32.mrf.mxu0
        %v4400 = vadd.f32 0.0, %v4399
        %v4401 = vpop.f32.mrf.mxu0
        %v4402 = vadd.f32 0.0, %v4401
        %4403 = vmatmul.bf16.gmra.mxu0 %v4338
        %v4404 = vpop.f32.mrf.mxu0
        %v4405 = vadd.f32 0.0, %v4404
        %v4406 = vpop.f32.mrf.mxu0
        %v4407 = vadd.f32 0.0, %v4406
        %4408 = vmatmul.bf16.gmra.mxu0 %v4341
        %v4409 = vpop.f32.mrf.mxu0
        %v4410 = vadd.f32 0.0, %v4409
        %v4411 = vpop.f32.mrf.mxu0
        %v4412 = vadd.f32 0.0, %v4411
        %4413 = vmatmul.bf16.gmra.mxu0 %v4344
        %v4414 = vpop.f32.mrf.mxu0
        %v4415 = vadd.f32 0.0, %v4414
        %v4416 = vpop.f32.mrf.mxu0
        %v4417 = vadd.f32 0.0, %v4416
        %4418 = vmatmul.bf16.gmra.mxu0 %v4347
        %v4419 = vpop.f32.mrf.mxu0
        %v4420 = vadd.f32 0.0, %v4419
        %v4421 = vpop.f32.mrf.mxu0
        %v4422 = vadd.f32 0.0, %v4421
        %4423 = vmatmul.bf16.gmra.mxu0 %v4350
        %v4424 = vpop.f32.mrf.mxu0
        %v4425 = vadd.f32 0.0, %v4424
        %v4426 = vpop.f32.mrf.mxu0
        %v4427 = vadd.f32 0.0, %v4426
        %4428 = vmatmul.bf16.gmra.mxu0 %v4353
        %v4429 = vpop.f32.mrf.mxu0
        %v4430 = vadd.f32 0.0, %v4429
        %v4431 = vpop.f32.mrf.mxu0
        %v4432 = vadd.f32 0.0, %v4431
        %4433 = vmatmul.bf16.gmra.mxu0 %v4356
        %v4434 = vpop.f32.mrf.mxu0
        %v4435 = vadd.f32 0.0, %v4434
        %v4436 = vpop.f32.mrf.mxu0
        %v4437 = vadd.f32 0.0, %v4436
        %4438 = vmatmul.bf16.gmra.mxu0 %v4359
        %v4439 = vpop.f32.mrf.mxu0
        %v4440 = vadd.f32 0.0, %v4439
        %v4441 = vpop.f32.mrf.mxu0
        %v4442 = vadd.f32 0.0, %v4441
        %4443 = vmatmul.bf16.gmra.mxu0 %v4362
        %v4444 = vpop.f32.mrf.mxu0
        %v4445 = vadd.f32 0.0, %v4444
        %v4446 = vpop.f32.mrf.mxu0
        %v4447 = vadd.f32 0.0, %v4446
        %4448 = vmatmul.bf16.gmra.mxu0 %v4365
        %v4449 = vpop.f32.mrf.mxu0
        %v4450 = vadd.f32 0.0, %v4449
        %v4451 = vpop.f32.mrf.mxu0
        %v4452 = vadd.f32 0.0, %v4451
        %4453 = vmatmul.bf16.gmra.mxu0 %v4368
        %v4454 = vpop.f32.mrf.mxu0
        %v4455 = vadd.f32 0.0, %v4454
        %v4456 = vpop.f32.mrf.mxu0
        %v4457 = vadd.f32 0.0, %v4456
        %4458 = vdwg.mxu0
        %v4459 = vadd.f32 %v3849, %v4380
        %v4460 = vadd.f32 %v3850, %v4382
        %v4461 = vadd.f32 %v3851, %v4385
        %v4462 = vadd.f32 %v3852, %v4387
        %v4463 = vadd.f32 %v3853, %v4390
        %v4464 = vadd.f32 %v3854, %v4392
        %v4465 = vadd.f32 %v3855, %v4395
        %v4466 = vadd.f32 %v3856, %v4397
        %v4467 = vadd.f32 %v3857, %v4400
        %v4468 = vadd.f32 %v3858, %v4402
        %v4469 = vadd.f32 %v3859, %v4405
        %v4470 = vadd.f32 %v3860, %v4407
        %v4471 = vadd.f32 %v3861, %v4410
        %v4472 = vadd.f32 %v3862, %v4412
        %v4473 = vadd.f32 %v3863, %v4415
        %v4474 = vadd.f32 %v3864, %v4417
        %v4475 = vadd.f32 %v3865, %v4420
        %v4476 = vadd.f32 %v3866, %v4422
        %v4477 = vadd.f32 %v3867, %v4425
        %v4478 = vadd.f32 %v3868, %v4427
        %v4479 = vadd.f32 %v3869, %v4430
        %v4480 = vadd.f32 %v3870, %v4432
        %v4481 = vadd.f32 %v3871, %v4435
        %v4482 = vadd.f32 %v3872, %v4437
        %v4483 = vadd.f32 %v3873, %v4440
        %v4484 = vadd.f32 %v3874, %v4442
        %v4485 = vadd.f32 %v3875, %v4445
        %v4486 = vadd.f32 %v3876, %v4447
        %v4487 = vadd.f32 %v3877, %v4450
        %v4488 = vadd.f32 %v3878, %v4452
        %v4489 = vadd.f32 %v3879, %v4455
        %v4490 = vadd.f32 %v3880, %v4457
        %v4491 = vld [vmem:[%s2530] sm:$0xc]
        %v4492 = vld [vmem:[%s2530 + $0xc] sm:$0xc]
        %v4493 = vld [vmem:[%s2530 + $0x18] sm:$0xc]
        %v4494 = vld [vmem:[%s2530 + $0x24] sm:$0xc]
        %v4495 = vld [vmem:[%s2530 + $0x30] sm:$0xc]
        %v4496 = vld [vmem:[%s2530 + $0x3c] sm:$0xc]
        %v4497 = vld [vmem:[%s2530 + $0x48] sm:$0xc]
        %v4498 = vld [vmem:[%s2530 + $0x54] sm:$0xc]
        %v4499 = vld [vmem:[%s2530 + $0x60] sm:$0xc]
        %v4500 = vld [vmem:[%s2530 + $0x6c] sm:$0xc]
        %v4501 = vld [vmem:[%s2530 + $0x78] sm:$0xc]
        %v4502 = vld [vmem:[%s2530 + $0x84] sm:$0xc]
        %v4503 = vld [vmem:[%s2530 + $0x90] sm:$0xc]
        %v4504 = vld [vmem:[%s2530 + $0x9c] sm:$0xc]
        %v4505 = vld [vmem:[%s2530 + $0xa8] sm:$0xc]
        %v4506 = vld [vmem:[%s2530 + $0xb4] sm:$0xc]
        %v4539 = vrot.slane %v4491, 6
        %v4540 = vrot.slane %v4539, 4
        %v4541 = vrot.slane %v2822, 6
        %v4542 = vsel %vm2191, %v4540, %v4541
        %v4543 = vrot.slane %v4541, 4
        %v4544 = vrot.slane %v3881, 6
        %v4545 = vsel %vm2191, %v4543, %v4544
        %v4546 = vrot.slane %v4492, 6
        %v4547 = vrot.slane %v4546, 4
        %v4548 = vrot.slane %v2825, 6
        %v4549 = vsel %vm2191, %v4547, %v4548
        %v4550 = vrot.slane %v4548, 4
        %v4551 = vrot.slane %v3882, 6
        %v4552 = vsel %vm2191, %v4550, %v4551
        %v4553 = vrot.slane %v4493, 6
        %v4554 = vrot.slane %v4553, 4
        %v4555 = vrot.slane %v2828, 6
        %v4556 = vsel %vm2191, %v4554, %v4555
        %v4557 = vrot.slane %v4555, 4
        %v4558 = vrot.slane %v3883, 6
        %v4559 = vsel %vm2191, %v4557, %v4558
        %v4560 = vrot.slane %v4494, 6
        %v4561 = vrot.slane %v4560, 4
        %v4562 = vrot.slane %v2831, 6
        %v4563 = vsel %vm2191, %v4561, %v4562
        %v4564 = vrot.slane %v4562, 4
        %v4565 = vrot.slane %v3884, 6
        %v4566 = vsel %vm2191, %v4564, %v4565
        %v4567 = vrot.slane %v4495, 6
        %v4568 = vrot.slane %v4567, 4
        %v4569 = vrot.slane %v2834, 6
        %v4570 = vsel %vm2191, %v4568, %v4569
        %v4571 = vrot.slane %v4569, 4
        %v4572 = vrot.slane %v3885, 6
        %v4573 = vsel %vm2191, %v4571, %v4572
        %v4574 = vrot.slane %v4496, 6
        %v4575 = vrot.slane %v4574, 4
        %v4576 = vrot.slane %v2837, 6
        %v4577 = vsel %vm2191, %v4575, %v4576
        %v4578 = vrot.slane %v4576, 4
        %v4579 = vrot.slane %v3886, 6
        %v4580 = vsel %vm2191, %v4578, %v4579
        %v4581 = vrot.slane %v4497, 6
        %v4582 = vrot.slane %v4581, 4
        %v4583 = vrot.slane %v2840, 6
        %v4584 = vsel %vm2191, %v4582, %v4583
        %v4585 = vrot.slane %v4583, 4
        %v4586 = vrot.slane %v3887, 6
        %v4587 = vsel %vm2191, %v4585, %v4586
        %v4588 = vrot.slane %v4498, 6
        %v4589 = vrot.slane %v4588, 4
        %v4590 = vrot.slane %v2843, 6
        %v4591 = vsel %vm2191, %v4589, %v4590
        %v4592 = vrot.slane %v4590, 4
        %v4593 = vrot.slane %v3888, 6
        %v4594 = vsel %vm2191, %v4592, %v4593
        %v4595 = vrot.slane %v4499, 6
        %v4596 = vrot.slane %v4595, 4
        %v4597 = vrot.slane %v2846, 6
        %v4598 = vsel %vm2191, %v4596, %v4597
        %v4599 = vrot.slane %v4597, 4
        %v4600 = vrot.slane %v3889, 6
        %v4601 = vsel %vm2191, %v4599, %v4600
        %v4602 = vrot.slane %v4500, 6
        %v4603 = vrot.slane %v4602, 4
        %v4604 = vrot.slane %v2849, 6
        %v4605 = vsel %vm2191, %v4603, %v4604
        %v4606 = vrot.slane %v4604, 4
        %v4607 = vrot.slane %v3890, 6
        %v4608 = vsel %vm2191, %v4606, %v4607
        %v4609 = vrot.slane %v4501, 6
        %v4610 = vrot.slane %v4609, 4
        %v4611 = vrot.slane %v2852, 6
        %v4612 = vsel %vm2191, %v4610, %v4611
        %v4613 = vrot.slane %v4611, 4
        %v4614 = vrot.slane %v3891, 6
        %v4615 = vsel %vm2191, %v4613, %v4614
        %v4616 = vrot.slane %v4502, 6
        %v4617 = vrot.slane %v4616, 4
        %v4618 = vrot.slane %v2855, 6
        %v4619 = vsel %vm2191, %v4617, %v4618
        %v4620 = vrot.slane %v4618, 4
        %v4621 = vrot.slane %v3892, 6
        %v4622 = vsel %vm2191, %v4620, %v4621
        %v4623 = vrot.slane %v4503, 6
        %v4624 = vrot.slane %v4623, 4
        %v4625 = vrot.slane %v2858, 6
        %v4626 = vsel %vm2191, %v4624, %v4625
        %v4627 = vrot.slane %v4625, 4
        %v4628 = vrot.slane %v3893, 6
        %v4629 = vsel %vm2191, %v4627, %v4628
        %v4630 = vrot.slane %v4504, 6
        %v4631 = vrot.slane %v4630, 4
        %v4632 = vrot.slane %v2861, 6
        %v4633 = vsel %vm2191, %v4631, %v4632
        %v4634 = vrot.slane %v4632, 4
        %v4635 = vrot.slane %v3894, 6
        %v4636 = vsel %vm2191, %v4634, %v4635
        %v4637 = vrot.slane %v4505, 6
        %v4638 = vrot.slane %v4637, 4
        %v4639 = vrot.slane %v2864, 6
        %v4640 = vsel %vm2191, %v4638, %v4639
        %v4641 = vrot.slane %v4639, 4
        %v4642 = vrot.slane %v3895, 6
        %v4643 = vsel %vm2191, %v4641, %v4642
        %v4644 = vrot.slane %v4506, 6
        %v4645 = vrot.slane %v4644, 4
        %v4646 = vrot.slane %v2867, 6
        %v4647 = vsel %vm2191, %v4645, %v4646
        %v4648 = vrot.slane %v4646, 4
        %v4649 = vrot.slane %v3896, 6
        %v4650 = vsel %vm2191, %v4648, %v4649
        %s4651 = scalar_lea.vmem %s270, 72
        %v4652 = vld [vmem:[%s4651] sm:$0xf]
        %v4653 = vld [vmem:[%s4651 + $0x4] sm:$0xf]
        %v4654 = vunpack.c.l.b16 %v4542
        %v4655 = vunpack.c.l.b16 %v4545
        %v4656 = vunpack.c.l.b16 %v4549
        %v4657 = vunpack.c.l.b16 %v4552
        %v4658 = vunpack.c.l.b16 %v4556
        %v4659 = vunpack.c.l.b16 %v4559
        %v4660 = vunpack.c.l.b16 %v4563
        %v4661 = vunpack.c.l.b16 %v4566
        %v4662 = vunpack.c.l.b16 %v4570
        %v4663 = vunpack.c.l.b16 %v4573
        %v4664 = vunpack.c.l.b16 %v4577
        %v4665 = vunpack.c.l.b16 %v4580
        %v4666 = vunpack.c.l.b16 %v4584
        %v4667 = vunpack.c.l.b16 %v4587
        %v4668 = vunpack.c.l.b16 %v4591
        %v4669 = vunpack.c.l.b16 %v4594
        %v4670 = vunpack.c.l.b16 %v4598
        %v4671 = vunpack.c.l.b16 %v4601
        %v4672 = vunpack.c.l.b16 %v4605
        %v4673 = vunpack.c.l.b16 %v4608
        %v4674 = vunpack.c.l.b16 %v4612
        %v4675 = vunpack.c.l.b16 %v4615
        %v4676 = vunpack.c.l.b16 %v4619
        %v4677 = vunpack.c.l.b16 %v4622
        %v4678 = vunpack.c.l.b16 %v4626
        %v4679 = vunpack.c.l.b16 %v4629
        %v4680 = vunpack.c.l.b16 %v4633
        %v4681 = vunpack.c.l.b16 %v4636
        %v4682 = vunpack.c.l.b16 %v4640
        %v4683 = vunpack.c.l.b16 %v4643
        %v4684 = vunpack.c.l.b16 %v4647
        %v4685 = vunpack.c.l.b16 %v4650
        %v4686 = vpack.c.b16 %v4655, %v4654
        %v4687 = vpack.c.b16 %v4657, %v4656
        %v4688 = vpack.c.b16 %v4659, %v4658
        %v4689 = vpack.c.b16 %v4661, %v4660
        %v4690 = vpack.c.b16 %v4663, %v4662
        %v4691 = vpack.c.b16 %v4665, %v4664
        %v4692 = vpack.c.b16 %v4667, %v4666
        %v4693 = vpack.c.b16 %v4669, %v4668
        %v4694 = vpack.c.b16 %v4671, %v4670
        %v4695 = vpack.c.b16 %v4673, %v4672
        %v4696 = vpack.c.b16 %v4675, %v4674
        %v4697 = vpack.c.b16 %v4677, %v4676
        %v4698 = vpack.c.b16 %v4679, %v4678
        %v4699 = vpack.c.b16 %v4681, %v4680
        %v4700 = vpack.c.b16 %v4683, %v4682
        %v4701 = vpack.c.b16 %v4685, %v4684
        %v4704 = vunpack.c.l.b16 %v4652
        %v4705 = vunpack.c.l.b16 %v4653
        %v4706 = vpack.c.b16 %v4705, %v4704
        %v4709 = vsel %vm778, %v4686, 0
        %v4712 = vsel %vm778, %v4687, 0
        %v4715 = vsel %vm778, %v4688, 0
        %v4718 = vsel %vm778, %v4689, 0
        %v4721 = vsel %vm778, %v4690, 0
        %v4724 = vsel %vm778, %v4691, 0
        %v4727 = vsel %vm778, %v4692, 0
        %v4730 = vsel %vm778, %v4693, 0
        %v4733 = vsel %vm778, %v4694, 0
        %v4736 = vsel %vm778, %v4695, 0
        %v4739 = vsel %vm778, %v4696, 0
        %v4742 = vsel %vm778, %v4697, 0
        %v4745 = vsel %vm778, %v4698, 0
        %v4748 = vsel %vm778, %v4699, 0
        %v4751 = vsel %vm778, %v4700, 0
        %v4754 = vsel %vm778, %v4701, 0
        %4756 = vmatpush.bf16.msra.mxu0 0
        %4757 = vmatpush.bf16.msra.mxu0 0
        %4758 = vmatpush.bf16.msra.mxu0 0
        %4759 = vmatpush.bf16.msra.mxu0 0
        %4760 = vmatpush.bf16.msra.mxu0 0
        %4761 = vmatpush.bf16.msra.mxu0 0
        %4762 = vmatpush.bf16.msra.mxu0 0
        %4763 = vmatpush.bf16.msra.mxu0 %v4706
        %4764 = vmatmul.bf16.gmra.mxu0 %v4709
        %v4765 = vpop.f32.mrf.mxu0
        %v4766 = vadd.f32 0.0, %v4765
        %v4767 = vpop.f32.mrf.mxu0
        %v4768 = vadd.f32 0.0, %v4767
        %4769 = vmatmul.bf16.gmra.mxu0 %v4712
        %v4770 = vpop.f32.mrf.mxu0
        %v4771 = vadd.f32 0.0, %v4770
        %v4772 = vpop.f32.mrf.mxu0
        %v4773 = vadd.f32 0.0, %v4772
        %4774 = vmatmul.bf16.gmra.mxu0 %v4715
        %v4775 = vpop.f32.mrf.mxu0
        %v4776 = vadd.f32 0.0, %v4775
        %v4777 = vpop.f32.mrf.mxu0
        %v4778 = vadd.f32 0.0, %v4777
        %4779 = vmatmul.bf16.gmra.mxu0 %v4718
        %v4780 = vpop.f32.mrf.mxu0
        %v4781 = vadd.f32 0.0, %v4780
        %v4782 = vpop.f32.mrf.mxu0
        %v4783 = vadd.f32 0.0, %v4782
        %4784 = vmatmul.bf16.gmra.mxu0 %v4721
        %v4785 = vpop.f32.mrf.mxu0
        %v4786 = vadd.f32 0.0, %v4785
        %v4787 = vpop.f32.mrf.mxu0
        %v4788 = vadd.f32 0.0, %v4787
        %4789 = vmatmul.bf16.gmra.mxu0 %v4724
        %v4790 = vpop.f32.mrf.mxu0
        %v4791 = vadd.f32 0.0, %v4790
        %v4792 = vpop.f32.mrf.mxu0
        %v4793 = vadd.f32 0.0, %v4792
        %4794 = vmatmul.bf16.gmra.mxu0 %v4727
        %v4795 = vpop.f32.mrf.mxu0
        %v4796 = vadd.f32 0.0, %v4795
        %v4797 = vpop.f32.mrf.mxu0
        %v4798 = vadd.f32 0.0, %v4797
        %4799 = vmatmul.bf16.gmra.mxu0 %v4730
        %v4800 = vpop.f32.mrf.mxu0
        %v4801 = vadd.f32 0.0, %v4800
        %v4802 = vpop.f32.mrf.mxu0
        %v4803 = vadd.f32 0.0, %v4802
        %4804 = vmatmul.bf16.gmra.mxu0 %v4733
        %v4805 = vpop.f32.mrf.mxu0
        %v4806 = vadd.f32 0.0, %v4805
        %v4807 = vpop.f32.mrf.mxu0
        %v4808 = vadd.f32 0.0, %v4807
        %4809 = vmatmul.bf16.gmra.mxu0 %v4736
        %v4810 = vpop.f32.mrf.mxu0
        %v4811 = vadd.f32 0.0, %v4810
        %v4812 = vpop.f32.mrf.mxu0
        %v4813 = vadd.f32 0.0, %v4812
        %4814 = vmatmul.bf16.gmra.mxu0 %v4739
        %v4815 = vpop.f32.mrf.mxu0
        %v4816 = vadd.f32 0.0, %v4815
        %v4817 = vpop.f32.mrf.mxu0
        %v4818 = vadd.f32 0.0, %v4817
        %4819 = vmatmul.bf16.gmra.mxu0 %v4742
        %v4820 = vpop.f32.mrf.mxu0
        %v4821 = vadd.f32 0.0, %v4820
        %v4822 = vpop.f32.mrf.mxu0
        %v4823 = vadd.f32 0.0, %v4822
        %4824 = vmatmul.bf16.gmra.mxu0 %v4745
        %v4825 = vpop.f32.mrf.mxu0
        %v4826 = vadd.f32 0.0, %v4825
        %v4827 = vpop.f32.mrf.mxu0
        %v4828 = vadd.f32 0.0, %v4827
        %4829 = vmatmul.bf16.gmra.mxu0 %v4748
        %v4830 = vpop.f32.mrf.mxu0
        %v4831 = vadd.f32 0.0, %v4830
        %v4832 = vpop.f32.mrf.mxu0
        %v4833 = vadd.f32 0.0, %v4832
        %4834 = vmatmul.bf16.gmra.mxu0 %v4751
        %v4835 = vpop.f32.mrf.mxu0
        %v4836 = vadd.f32 0.0, %v4835
        %v4837 = vpop.f32.mrf.mxu0
        %v4838 = vadd.f32 0.0, %v4837
        %4839 = vmatmul.bf16.gmra.mxu0 %v4754
        %v4840 = vpop.f32.mrf.mxu0
        %v4841 = vadd.f32 0.0, %v4840
        %v4842 = vpop.f32.mrf.mxu0
        %v4843 = vadd.f32 0.0, %v4842
        %4844 = vdwg.mxu0
        %v4845 = vadd.f32 %v4459, %v4766
        %v4846 = vadd.f32 %v4460, %v4768
        %v4847 = vadd.f32 %v4461, %v4771
        %v4848 = vadd.f32 %v4462, %v4773
        %v4849 = vadd.f32 %v4463, %v4776
        %v4850 = vadd.f32 %v4464, %v4778
        %v4851 = vadd.f32 %v4465, %v4781
        %v4852 = vadd.f32 %v4466, %v4783
        %v4853 = vadd.f32 %v4467, %v4786
        %v4854 = vadd.f32 %v4468, %v4788
        %v4855 = vadd.f32 %v4469, %v4791
        %v4856 = vadd.f32 %v4470, %v4793
        %v4857 = vadd.f32 %v4471, %v4796
        %v4858 = vadd.f32 %v4472, %v4798
        %v4859 = vadd.f32 %v4473, %v4801
        %v4860 = vadd.f32 %v4474, %v4803
        %v4861 = vadd.f32 %v4475, %v4806
        %v4862 = vadd.f32 %v4476, %v4808
        %v4863 = vadd.f32 %v4477, %v4811
        %v4864 = vadd.f32 %v4478, %v4813
        %v4865 = vadd.f32 %v4479, %v4816
        %v4866 = vadd.f32 %v4480, %v4818
        %v4867 = vadd.f32 %v4481, %v4821
        %v4868 = vadd.f32 %v4482, %v4823
        %v4869 = vadd.f32 %v4483, %v4826
        %v4870 = vadd.f32 %v4484, %v4828
        %v4871 = vadd.f32 %v4485, %v4831
        %v4872 = vadd.f32 %v4486, %v4833
        %v4873 = vadd.f32 %v4487, %v4836
        %v4874 = vadd.f32 %v4488, %v4838
        %v4875 = vadd.f32 %v4489, %v4841
        %v4876 = vadd.f32 %v4490, %v4843
        %s4877 = scalar_lea.vmem %s266, 24
        %v4878 = vld [vmem:[%s4877] sm:$0xf]
        %v4879 = vld [vmem:[%s4877 + $0x4] sm:$0xf]
        %v4880 = vld [vmem:[%s4877 + $0xc] sm:$0xf]
        %v4881 = vld [vmem:[%s4877 + $0x10] sm:$0xf]
        %v4882 = vld [vmem:[%s4877 + $0x18] sm:$0xf]
        %v4883 = vld [vmem:[%s4877 + $0x1c] sm:$0xf]
        %v4884 = vld [vmem:[%s4877 + $0x24] sm:$0xf]
        %v4885 = vld [vmem:[%s4877 + $0x28] sm:$0xf]
        %v4886 = vld [vmem:[%s4877 + $0x30] sm:$0xf]
        %v4887 = vld [vmem:[%s4877 + $0x34] sm:$0xf]
        %v4888 = vld [vmem:[%s4877 + $0x3c] sm:$0xf]
        %v4889 = vld [vmem:[%s4877 + $0x40] sm:$0xf]
        %v4890 = vld [vmem:[%s4877 + $0x48] sm:$0xf]
        %v4891 = vld [vmem:[%s4877 + $0x4c] sm:$0xf]
        %v4892 = vld [vmem:[%s4877 + $0x54] sm:$0xf]
        %v4893 = vld [vmem:[%s4877 + $0x58] sm:$0xf]
        %v4894 = vld [vmem:[%s4877 + $0x60] sm:$0xf]
        %v4895 = vld [vmem:[%s4877 + $0x64] sm:$0xf]
        %v4896 = vld [vmem:[%s4877 + $0x6c] sm:$0xf]
        %v4897 = vld [vmem:[%s4877 + $0x70] sm:$0xf]
        %v4898 = vld [vmem:[%s4877 + $0x78] sm:$0xf]
        %v4899 = vld [vmem:[%s4877 + $0x7c] sm:$0xf]
        %v4900 = vld [vmem:[%s4877 + $0x84] sm:$0xf]
        %v4901 = vld [vmem:[%s4877 + $0x88] sm:$0xf]
        %v4902 = vld [vmem:[%s4877 + $0x90] sm:$0xf]
        %v4903 = vld [vmem:[%s4877 + $0x94] sm:$0xf]
        %v4904 = vld [vmem:[%s4877 + $0x9c] sm:$0xf]
        %v4905 = vld [vmem:[%s4877 + $0xa0] sm:$0xf]
        %v4906 = vld [vmem:[%s4877 + $0xa8] sm:$0xf]
        %v4907 = vld [vmem:[%s4877 + $0xac] sm:$0xf]
        %v4908 = vld [vmem:[%s4877 + $0xb4] sm:$0xf]
        %v4909 = vld [vmem:[%s4877 + $0xb8] sm:$0xf]
        %s4910 = scalar_lea.vmem %s270, 80
        %v4911 = vld [vmem:[%s4910] sm:$0xf]
        %v4912 = vld [vmem:[%s4910 + $0x4] sm:$0xf]
        %v4945 = vunpack.c.l.b16 %v4878
        %v4946 = vunpack.c.l.b16 %v4879
        %v4947 = vunpack.c.l.b16 %v4880
        %v4948 = vunpack.c.l.b16 %v4881
        %v4949 = vunpack.c.l.b16 %v4882
        %v4950 = vunpack.c.l.b16 %v4883
        %v4951 = vunpack.c.l.b16 %v4884
        %v4952 = vunpack.c.l.b16 %v4885
        %v4953 = vunpack.c.l.b16 %v4886
        %v4954 = vunpack.c.l.b16 %v4887
        %v4955 = vunpack.c.l.b16 %v4888
        %v4956 = vunpack.c.l.b16 %v4889
        %v4957 = vunpack.c.l.b16 %v4890
        %v4958 = vunpack.c.l.b16 %v4891
        %v4959 = vunpack.c.l.b16 %v4892
        %v4960 = vunpack.c.l.b16 %v4893
        %v4961 = vunpack.c.l.b16 %v4894
        %v4962 = vunpack.c.l.b16 %v4895
        %v4963 = vunpack.c.l.b16 %v4896
        %v4964 = vunpack.c.l.b16 %v4897
        %v4965 = vunpack.c.l.b16 %v4898
        %v4966 = vunpack.c.l.b16 %v4899
        %v4967 = vunpack.c.l.b16 %v4900
        %v4968 = vunpack.c.l.b16 %v4901
        %v4969 = vunpack.c.l.b16 %v4902
        %v4970 = vunpack.c.l.b16 %v4903
        %v4971 = vunpack.c.l.b16 %v4904
        %v4972 = vunpack.c.l.b16 %v4905
        %v4973 = vunpack.c.l.b16 %v4906
        %v4974 = vunpack.c.l.b16 %v4907
        %v4975 = vunpack.c.l.b16 %v4908
        %v4976 = vunpack.c.l.b16 %v4909
        %v4977 = vpack.c.b16 %v4946, %v4945
        %v4978 = vpack.c.b16 %v4948, %v4947
        %v4979 = vpack.c.b16 %v4950, %v4949
        %v4980 = vpack.c.b16 %v4952, %v4951
        %v4981 = vpack.c.b16 %v4954, %v4953
        %v4982 = vpack.c.b16 %v4956, %v4955
        %v4983 = vpack.c.b16 %v4958, %v4957
        %v4984 = vpack.c.b16 %v4960, %v4959
        %v4985 = vpack.c.b16 %v4962, %v4961
        %v4986 = vpack.c.b16 %v4964, %v4963
        %v4987 = vpack.c.b16 %v4966, %v4965
        %v4988 = vpack.c.b16 %v4968, %v4967
        %v4989 = vpack.c.b16 %v4970, %v4969
        %v4990 = vpack.c.b16 %v4972, %v4971
        %v4991 = vpack.c.b16 %v4974, %v4973
        %v4992 = vpack.c.b16 %v4976, %v4975
        %v4995 = vunpack.c.l.b16 %v4911
        %v4996 = vunpack.c.l.b16 %v4912
        %v4997 = vpack.c.b16 %v4996, %v4995
        %v5000 = vsel %vm778, %v4977, 0
        %v5003 = vsel %vm778, %v4978, 0
        %v5006 = vsel %vm778, %v4979, 0
        %v5009 = vsel %vm778, %v4980, 0
        %v5012 = vsel %vm778, %v4981, 0
        %v5015 = vsel %vm778, %v4982, 0
        %v5018 = vsel %vm778, %v4983, 0
        %v5021 = vsel %vm778, %v4984, 0
        %v5024 = vsel %vm778, %v4985, 0
        %v5027 = vsel %vm778, %v4986, 0
        %v5030 = vsel %vm778, %v4987, 0
        %v5033 = vsel %vm778, %v4988, 0
        %v5036 = vsel %vm778, %v4989, 0
        %v5039 = vsel %vm778, %v4990, 0
        %v5042 = vsel %vm778, %v4991, 0
        %v5045 = vsel %vm778, %v4992, 0
        %5047 = vmatpush.bf16.msra.mxu0 0
        %5048 = vmatpush.bf16.msra.mxu0 0
        %5049 = vmatpush.bf16.msra.mxu0 0
        %5050 = vmatpush.bf16.msra.mxu0 0
        %5051 = vmatpush.bf16.msra.mxu0 0
        %5052 = vmatpush.bf16.msra.mxu0 0
        %5053 = vmatpush.bf16.msra.mxu0 0
        %5054 = vmatpush.bf16.msra.mxu0 %v4997
        %5055 = vmatmul.bf16.gmra.mxu0 %v5000
        %v5056 = vpop.f32.mrf.mxu0
        %v5057 = vadd.f32 0.0, %v5056
        %v5058 = vpop.f32.mrf.mxu0
        %v5059 = vadd.f32 0.0, %v5058
        %5060 = vmatmul.bf16.gmra.mxu0 %v5003
        %v5061 = vpop.f32.mrf.mxu0
        %v5062 = vadd.f32 0.0, %v5061
        %v5063 = vpop.f32.mrf.mxu0
        %v5064 = vadd.f32 0.0, %v5063
        %5065 = vmatmul.bf16.gmra.mxu0 %v5006
        %v5066 = vpop.f32.mrf.mxu0
        %v5067 = vadd.f32 0.0, %v5066
        %v5068 = vpop.f32.mrf.mxu0
        %v5069 = vadd.f32 0.0, %v5068
        %5070 = vmatmul.bf16.gmra.mxu0 %v5009
        %v5071 = vpop.f32.mrf.mxu0
        %v5072 = vadd.f32 0.0, %v5071
        %v5073 = vpop.f32.mrf.mxu0
        %v5074 = vadd.f32 0.0, %v5073
        %5075 = vmatmul.bf16.gmra.mxu0 %v5012
        %v5076 = vpop.f32.mrf.mxu0
        %v5077 = vadd.f32 0.0, %v5076
        %v5078 = vpop.f32.mrf.mxu0
        %v5079 = vadd.f32 0.0, %v5078
        %5080 = vmatmul.bf16.gmra.mxu0 %v5015
        %v5081 = vpop.f32.mrf.mxu0
        %v5082 = vadd.f32 0.0, %v5081
        %v5083 = vpop.f32.mrf.mxu0
        %v5084 = vadd.f32 0.0, %v5083
        %5085 = vmatmul.bf16.gmra.mxu0 %v5018
        %v5086 = vpop.f32.mrf.mxu0
        %v5087 = vadd.f32 0.0, %v5086
        %v5088 = vpop.f32.mrf.mxu0
        %v5089 = vadd.f32 0.0, %v5088
        %5090 = vmatmul.bf16.gmra.mxu0 %v5021
        %v5091 = vpop.f32.mrf.mxu0
        %v5092 = vadd.f32 0.0, %v5091
        %v5093 = vpop.f32.mrf.mxu0
        %v5094 = vadd.f32 0.0, %v5093
        %5095 = vmatmul.bf16.gmra.mxu0 %v5024
        %v5096 = vpop.f32.mrf.mxu0
        %v5097 = vadd.f32 0.0, %v5096
        %v5098 = vpop.f32.mrf.mxu0
        %v5099 = vadd.f32 0.0, %v5098
        %5100 = vmatmul.bf16.gmra.mxu0 %v5027
        %v5101 = vpop.f32.mrf.mxu0
        %v5102 = vadd.f32 0.0, %v5101
        %v5103 = vpop.f32.mrf.mxu0
        %v5104 = vadd.f32 0.0, %v5103
        %5105 = vmatmul.bf16.gmra.mxu0 %v5030
        %v5106 = vpop.f32.mrf.mxu0
        %v5107 = vadd.f32 0.0, %v5106
        %v5108 = vpop.f32.mrf.mxu0
        %v5109 = vadd.f32 0.0, %v5108
        %5110 = vmatmul.bf16.gmra.mxu0 %v5033
        %v5111 = vpop.f32.mrf.mxu0
        %v5112 = vadd.f32 0.0, %v5111
        %v5113 = vpop.f32.mrf.mxu0
        %v5114 = vadd.f32 0.0, %v5113
        %5115 = vmatmul.bf16.gmra.mxu0 %v5036
        %v5116 = vpop.f32.mrf.mxu0
        %v5117 = vadd.f32 0.0, %v5116
        %v5118 = vpop.f32.mrf.mxu0
        %v5119 = vadd.f32 0.0, %v5118
        %5120 = vmatmul.bf16.gmra.mxu0 %v5039
        %v5121 = vpop.f32.mrf.mxu0
        %v5122 = vadd.f32 0.0, %v5121
        %v5123 = vpop.f32.mrf.mxu0
        %v5124 = vadd.f32 0.0, %v5123
        %5125 = vmatmul.bf16.gmra.mxu0 %v5042
        %v5126 = vpop.f32.mrf.mxu0
        %v5127 = vadd.f32 0.0, %v5126
        %v5128 = vpop.f32.mrf.mxu0
        %v5129 = vadd.f32 0.0, %v5128
        %5130 = vmatmul.bf16.gmra.mxu0 %v5045
        %v5131 = vpop.f32.mrf.mxu0
        %v5132 = vadd.f32 0.0, %v5131
        %v5133 = vpop.f32.mrf.mxu0
        %v5134 = vadd.f32 0.0, %v5133
        %5135 = vdwg.mxu0
        %v5136 = vadd.f32 %v4845, %v5057
        %v5137 = vadd.f32 %v4846, %v5059
        %v5138 = vadd.f32 %v4847, %v5062
        %v5139 = vadd.f32 %v4848, %v5064
        %v5140 = vadd.f32 %v4849, %v5067
        %v5141 = vadd.f32 %v4850, %v5069
        %v5142 = vadd.f32 %v4851, %v5072
        %v5143 = vadd.f32 %v4852, %v5074
        %v5144 = vadd.f32 %v4853, %v5077
        %v5145 = vadd.f32 %v4854, %v5079
        %v5146 = vadd.f32 %v4855, %v5082
        %v5147 = vadd.f32 %v4856, %v5084
        %v5148 = vadd.f32 %v4857, %v5087
        %v5149 = vadd.f32 %v4858, %v5089
        %v5150 = vadd.f32 %v4859, %v5092
        %v5151 = vadd.f32 %v4860, %v5094
        %v5152 = vadd.f32 %v4861, %v5097
        %v5153 = vadd.f32 %v4862, %v5099
        %v5154 = vadd.f32 %v4863, %v5102
        %v5155 = vadd.f32 %v4864, %v5104
        %v5156 = vadd.f32 %v4865, %v5107
        %v5157 = vadd.f32 %v4866, %v5109
        %v5158 = vadd.f32 %v4867, %v5112
        %v5159 = vadd.f32 %v4868, %v5114
        %v5160 = vadd.f32 %v4869, %v5117
        %v5161 = vadd.f32 %v4870, %v5119
        %v5162 = vadd.f32 %v4871, %v5122
        %v5163 = vadd.f32 %v4872, %v5124
        %v5164 = vadd.f32 %v4873, %v5127
        %v5165 = vadd.f32 %v4874, %v5129
        %v5166 = vadd.f32 %v4875, %v5132
        %v5167 = vadd.f32 %v4876, %v5134
        %v5168 = vld [vmem:[%s4877] sm:$0xf]
        %v5169 = vld [vmem:[%s4877 + $0x4] sm:$0xf]
        %v5170 = vld [vmem:[%s4877 + $0x8] sm:$0x1]
        %v5171 = vld [vmem:[%s4877 + $0xc] sm:$0xf]
        %v5172 = vld [vmem:[%s4877 + $0x10] sm:$0xf]
        %v5173 = vld [vmem:[%s4877 + $0x14] sm:$0x1]
        %v5174 = vld [vmem:[%s4877 + $0x18] sm:$0xf]
        %v5175 = vld [vmem:[%s4877 + $0x1c] sm:$0xf]
        %v5176 = vld [vmem:[%s4877 + $0x20] sm:$0x1]
        %v5177 = vld [vmem:[%s4877 + $0x24] sm:$0xf]
        %v5178 = vld [vmem:[%s4877 + $0x28] sm:$0xf]
        %v5179 = vld [vmem:[%s4877 + $0x2c] sm:$0x1]
        %v5180 = vld [vmem:[%s4877 + $0x30] sm:$0xf]
        %v5181 = vld [vmem:[%s4877 + $0x34] sm:$0xf]
        %v5182 = vld [vmem:[%s4877 + $0x38] sm:$0x1]
        %v5183 = vld [vmem:[%s4877 + $0x3c] sm:$0xf]
        %v5184 = vld [vmem:[%s4877 + $0x40] sm:$0xf]
        %v5185 = vld [vmem:[%s4877 + $0x44] sm:$0x1]
        %v5186 = vld [vmem:[%s4877 + $0x48] sm:$0xf]
        %v5187 = vld [vmem:[%s4877 + $0x4c] sm:$0xf]
        %v5188 = vld [vmem:[%s4877 + $0x50] sm:$0x1]
        %v5189 = vld [vmem:[%s4877 + $0x54] sm:$0xf]
        %v5190 = vld [vmem:[%s4877 + $0x58] sm:$0xf]
        %v5191 = vld [vmem:[%s4877 + $0x5c] sm:$0x1]
        %v5192 = vld [vmem:[%s4877 + $0x60] sm:$0xf]
        %v5193 = vld [vmem:[%s4877 + $0x64] sm:$0xf]
        %v5194 = vld [vmem:[%s4877 + $0x68] sm:$0x1]
        %v5195 = vld [vmem:[%s4877 + $0x6c] sm:$0xf]
        %v5196 = vld [vmem:[%s4877 + $0x70] sm:$0xf]
        %v5197 = vld [vmem:[%s4877 + $0x74] sm:$0x1]
        %v5198 = vld [vmem:[%s4877 + $0x78] sm:$0xf]
        %v5199 = vld [vmem:[%s4877 + $0x7c] sm:$0xf]
        %v5200 = vld [vmem:[%s4877 + $0x80] sm:$0x1]
        %v5201 = vld [vmem:[%s4877 + $0x84] sm:$0xf]
        %v5202 = vld [vmem:[%s4877 + $0x88] sm:$0xf]
        %v5203 = vld [vmem:[%s4877 + $0x8c] sm:$0x1]
        %v5204 = vld [vmem:[%s4877 + $0x90] sm:$0xf]
        %v5205 = vld [vmem:[%s4877 + $0x94] sm:$0xf]
        %v5206 = vld [vmem:[%s4877 + $0x98] sm:$0x1]
        %v5207 = vld [vmem:[%s4877 + $0x9c] sm:$0xf]
        %v5208 = vld [vmem:[%s4877 + $0xa0] sm:$0xf]
        %v5209 = vld [vmem:[%s4877 + $0xa4] sm:$0x1]
        %v5210 = vld [vmem:[%s4877 + $0xa8] sm:$0xf]
        %v5211 = vld [vmem:[%s4877 + $0xac] sm:$0xf]
        %v5212 = vld [vmem:[%s4877 + $0xb0] sm:$0x1]
        %v5213 = vld [vmem:[%s4877 + $0xb4] sm:$0xf]
        %v5214 = vld [vmem:[%s4877 + $0xb8] sm:$0xf]
        %v5215 = vld [vmem:[%s4877 + $0xbc] sm:$0x1]
        %v5217 = vshrl.u32 %v5168, 16
        %v5219 = vrot.slane %v5217, 4
        %v5220 = vshll.u32 %v5168, 16
        %v5222 = vrot.slane %v5220, 5
        %v5223 = vor.u32 %v5219, %v5222
        %v5224 = vrot.slane %v5223, 4
        %v5226 = vshll.u32 %v5169, 16
        %v5228 = vrot.slane %v5226, 5
        %v5229 = vsel %vm336, %v5224, %v5228
        %v5230 = vshrl.u32 %v5169, 16
        %v5232 = vrot.slane %v5230, 4
        %v5233 = vor.u32 %v5232, %v5228
        %v5234 = vrot.slane %v5233, 4
        %v5236 = vshll.u32 %v5170, 16
        %v5238 = vrot.slane %v5236, 5
        %v5239 = vsel %vm336, %v5234, %v5238
        %v5241 = vshrl.u32 %v5171, 16
        %v5243 = vrot.slane %v5241, 4
        %v5244 = vshll.u32 %v5171, 16
        %v5246 = vrot.slane %v5244, 5
        %v5247 = vor.u32 %v5243, %v5246
        %v5248 = vrot.slane %v5247, 4
        %v5250 = vshll.u32 %v5172, 16
        %v5252 = vrot.slane %v5250, 5
        %v5253 = vsel %vm336, %v5248, %v5252
        %v5254 = vshrl.u32 %v5172, 16
        %v5256 = vrot.slane %v5254, 4
        %v5257 = vor.u32 %v5256, %v5252
        %v5258 = vrot.slane %v5257, 4
        %v5260 = vshll.u32 %v5173, 16
        %v5262 = vrot.slane %v5260, 5
        %v5263 = vsel %vm336, %v5258, %v5262
        %v5265 = vshrl.u32 %v5174, 16
        %v5267 = vrot.slane %v5265, 4
        %v5268 = vshll.u32 %v5174, 16
        %v5270 = vrot.slane %v5268, 5
        %v5271 = vor.u32 %v5267, %v5270
        %v5272 = vrot.slane %v5271, 4
        %v5274 = vshll.u32 %v5175, 16
        %v5276 = vrot.slane %v5274, 5
        %v5277 = vsel %vm336, %v5272, %v5276
        %v5278 = vshrl.u32 %v5175, 16
        %v5280 = vrot.slane %v5278, 4
        %v5281 = vor.u32 %v5280, %v5276
        %v5282 = vrot.slane %v5281, 4
        %v5284 = vshll.u32 %v5176, 16
        %v5286 = vrot.slane %v5284, 5
        %v5287 = vsel %vm336, %v5282, %v5286
        %v5289 = vshrl.u32 %v5177, 16
        %v5291 = vrot.slane %v5289, 4
        %v5292 = vshll.u32 %v5177, 16
        %v5294 = vrot.slane %v5292, 5
        %v5295 = vor.u32 %v5291, %v5294
        %v5296 = vrot.slane %v5295, 4
        %v5298 = vshll.u32 %v5178, 16
        %v5300 = vrot.slane %v5298, 5
        %v5301 = vsel %vm336, %v5296, %v5300
        %v5302 = vshrl.u32 %v5178, 16
        %v5304 = vrot.slane %v5302, 4
        %v5305 = vor.u32 %v5304, %v5300
        %v5306 = vrot.slane %v5305, 4
        %v5308 = vshll.u32 %v5179, 16
        %v5310 = vrot.slane %v5308, 5
        %v5311 = vsel %vm336, %v5306, %v5310
        %v5313 = vshrl.u32 %v5180, 16
        %v5315 = vrot.slane %v5313, 4
        %v5316 = vshll.u32 %v5180, 16
        %v5318 = vrot.slane %v5316, 5
        %v5319 = vor.u32 %v5315, %v5318
        %v5320 = vrot.slane %v5319, 4
        %v5322 = vshll.u32 %v5181, 16
        %v5324 = vrot.slane %v5322, 5
        %v5325 = vsel %vm336, %v5320, %v5324
        %v5326 = vshrl.u32 %v5181, 16
        %v5328 = vrot.slane %v5326, 4
        %v5329 = vor.u32 %v5328, %v5324
        %v5330 = vrot.slane %v5329, 4
        %v5332 = vshll.u32 %v5182, 16
        %v5334 = vrot.slane %v5332, 5
        %v5335 = vsel %vm336, %v5330, %v5334
        %v5337 = vshrl.u32 %v5183, 16
        %v5339 = vrot.slane %v5337, 4
        %v5340 = vshll.u32 %v5183, 16
        %v5342 = vrot.slane %v5340, 5
        %v5343 = vor.u32 %v5339, %v5342
        %v5344 = vrot.slane %v5343, 4
        %v5346 = vshll.u32 %v5184, 16
        %v5348 = vrot.slane %v5346, 5
        %v5349 = vsel %vm336, %v5344, %v5348
        %v5350 = vshrl.u32 %v5184, 16
        %v5352 = vrot.slane %v5350, 4
        %v5353 = vor.u32 %v5352, %v5348
        %v5354 = vrot.slane %v5353, 4
        %v5356 = vshll.u32 %v5185, 16
        %v5358 = vrot.slane %v5356, 5
        %v5359 = vsel %vm336, %v5354, %v5358
        %v5361 = vshrl.u32 %v5186, 16
        %v5363 = vrot.slane %v5361, 4
        %v5364 = vshll.u32 %v5186, 16
        %v5366 = vrot.slane %v5364, 5
        %v5367 = vor.u32 %v5363, %v5366
        %v5368 = vrot.slane %v5367, 4
        %v5370 = vshll.u32 %v5187, 16
        %v5372 = vrot.slane %v5370, 5
        %v5373 = vsel %vm336, %v5368, %v5372
        %v5374 = vshrl.u32 %v5187, 16
        %v5376 = vrot.slane %v5374, 4
        %v5377 = vor.u32 %v5376, %v5372
        %v5378 = vrot.slane %v5377, 4
        %v5380 = vshll.u32 %v5188, 16
        %v5382 = vrot.slane %v5380, 5
        %v5383 = vsel %vm336, %v5378, %v5382
        %v5385 = vshrl.u32 %v5189, 16
        %v5387 = vrot.slane %v5385, 4
        %v5388 = vshll.u32 %v5189, 16
        %v5390 = vrot.slane %v5388, 5
        %v5391 = vor.u32 %v5387, %v5390
        %v5392 = vrot.slane %v5391, 4
        %v5394 = vshll.u32 %v5190, 16
        %v5396 = vrot.slane %v5394, 5
        %v5397 = vsel %vm336, %v5392, %v5396
        %v5398 = vshrl.u32 %v5190, 16
        %v5400 = vrot.slane %v5398, 4
        %v5401 = vor.u32 %v5400, %v5396
        %v5402 = vrot.slane %v5401, 4
        %v5404 = vshll.u32 %v5191, 16
        %v5406 = vrot.slane %v5404, 5
        %v5407 = vsel %vm336, %v5402, %v5406
        %v5409 = vshrl.u32 %v5192, 16
        %v5411 = vrot.slane %v5409, 4
        %v5412 = vshll.u32 %v5192, 16
        %v5414 = vrot.slane %v5412, 5
        %v5415 = vor.u32 %v5411, %v5414
        %v5416 = vrot.slane %v5415, 4
        %v5418 = vshll.u32 %v5193, 16
        %v5420 = vrot.slane %v5418, 5
        %v5421 = vsel %vm336, %v5416, %v5420
        %v5422 = vshrl.u32 %v5193, 16
        %v5424 = vrot.slane %v5422, 4
        %v5425 = vor.u32 %v5424, %v5420
        %v5426 = vrot.slane %v5425, 4
        %v5428 = vshll.u32 %v5194, 16
        %v5430 = vrot.slane %v5428, 5
        %v5431 = vsel %vm336, %v5426, %v5430
        %v5433 = vshrl.u32 %v5195, 16
        %v5435 = vrot.slane %v5433, 4
        %v5436 = vshll.u32 %v5195, 16
        %v5438 = vrot.slane %v5436, 5
        %v5439 = vor.u32 %v5435, %v5438
        %v5440 = vrot.slane %v5439, 4
        %v5442 = vshll.u32 %v5196, 16
        %v5444 = vrot.slane %v5442, 5
        %v5445 = vsel %vm336, %v5440, %v5444
        %v5446 = vshrl.u32 %v5196, 16
        %v5448 = vrot.slane %v5446, 4
        %v5449 = vor.u32 %v5448, %v5444
        %v5450 = vrot.slane %v5449, 4
        %v5452 = vshll.u32 %v5197, 16
        %v5454 = vrot.slane %v5452, 5
        %v5455 = vsel %vm336, %v5450, %v5454
        %v5457 = vshrl.u32 %v5198, 16
        %v5459 = vrot.slane %v5457, 4
        %v5460 = vshll.u32 %v5198, 16
        %v5462 = vrot.slane %v5460, 5
        %v5463 = vor.u32 %v5459, %v5462
        %v5464 = vrot.slane %v5463, 4
        %v5466 = vshll.u32 %v5199, 16
        %v5468 = vrot.slane %v5466, 5
        %v5469 = vsel %vm336, %v5464, %v5468
        %v5470 = vshrl.u32 %v5199, 16
        %v5472 = vrot.slane %v5470, 4
        %v5473 = vor.u32 %v5472, %v5468
        %v5474 = vrot.slane %v5473, 4
        %v5476 = vshll.u32 %v5200, 16
        %v5478 = vrot.slane %v5476, 5
        %v5479 = vsel %vm336, %v5474, %v5478
        %v5481 = vshrl.u32 %v5201, 16
        %v5483 = vrot.slane %v5481, 4
        %v5484 = vshll.u32 %v5201, 16
        %v5486 = vrot.slane %v5484, 5
        %v5487 = vor.u32 %v5483, %v5486
        %v5488 = vrot.slane %v5487, 4
        %v5490 = vshll.u32 %v5202, 16
        %v5492 = vrot.slane %v5490, 5
        %v5493 = vsel %vm336, %v5488, %v5492
        %v5494 = vshrl.u32 %v5202, 16
        %v5496 = vrot.slane %v5494, 4
        %v5497 = vor.u32 %v5496, %v5492
        %v5498 = vrot.slane %v5497, 4
        %v5500 = vshll.u32 %v5203, 16
        %v5502 = vrot.slane %v5500, 5
        %v5503 = vsel %vm336, %v5498, %v5502
        %v5505 = vshrl.u32 %v5204, 16
        %v5507 = vrot.slane %v5505, 4
        %v5508 = vshll.u32 %v5204, 16
        %v5510 = vrot.slane %v5508, 5
        %v5511 = vor.u32 %v5507, %v5510
        %v5512 = vrot.slane %v5511, 4
        %v5514 = vshll.u32 %v5205, 16
        %v5516 = vrot.slane %v5514, 5
        %v5517 = vsel %vm336, %v5512, %v5516
        %v5518 = vshrl.u32 %v5205, 16
        %v5520 = vrot.slane %v5518, 4
        %v5521 = vor.u32 %v5520, %v5516
        %v5522 = vrot.slane %v5521, 4
        %v5524 = vshll.u32 %v5206, 16
        %v5526 = vrot.slane %v5524, 5
        %v5527 = vsel %vm336, %v5522, %v5526
        %v5529 = vshrl.u32 %v5207, 16
        %v5531 = vrot.slane %v5529, 4
        %v5532 = vshll.u32 %v5207, 16
        %v5534 = vrot.slane %v5532, 5
        %v5535 = vor.u32 %v5531, %v5534
        %v5536 = vrot.slane %v5535, 4
        %v5538 = vshll.u32 %v5208, 16
        %v5540 = vrot.slane %v5538, 5
        %v5541 = vsel %vm336, %v5536, %v5540
        %v5542 = vshrl.u32 %v5208, 16
        %v5544 = vrot.slane %v5542, 4
        %v5545 = vor.u32 %v5544, %v5540
        %v5546 = vrot.slane %v5545, 4
        %v5548 = vshll.u32 %v5209, 16
        %v5550 = vrot.slane %v5548, 5
        %v5551 = vsel %vm336, %v5546, %v5550
        %v5553 = vshrl.u32 %v5210, 16
        %v5555 = vrot.slane %v5553, 4
        %v5556 = vshll.u32 %v5210, 16
        %v5558 = vrot.slane %v5556, 5
        %v5559 = vor.u32 %v5555, %v5558
        %v5560 = vrot.slane %v5559, 4
        %v5562 = vshll.u32 %v5211, 16
        %v5564 = vrot.slane %v5562, 5
        %v5565 = vsel %vm336, %v5560, %v5564
        %v5566 = vshrl.u32 %v5211, 16
        %v5568 = vrot.slane %v5566, 4
        %v5569 = vor.u32 %v5568, %v5564
        %v5570 = vrot.slane %v5569, 4
        %v5572 = vshll.u32 %v5212, 16
        %v5574 = vrot.slane %v5572, 5
        %v5575 = vsel %vm336, %v5570, %v5574
        %v5577 = vshrl.u32 %v5213, 16
        %v5579 = vrot.slane %v5577, 4
        %v5580 = vshll.u32 %v5213, 16
        %v5582 = vrot.slane %v5580, 5
        %v5583 = vor.u32 %v5579, %v5582
        %v5584 = vrot.slane %v5583, 4
        %v5586 = vshll.u32 %v5214, 16
        %v5588 = vrot.slane %v5586, 5
        %v5589 = vsel %vm336, %v5584, %v5588
        %v5590 = vshrl.u32 %v5214, 16
        %v5592 = vrot.slane %v5590, 4
        %v5593 = vor.u32 %v5592, %v5588
        %v5594 = vrot.slane %v5593, 4
        %v5596 = vshll.u32 %v5215, 16
        %v5598 = vrot.slane %v5596, 5
        %v5599 = vsel %vm336, %v5594, %v5598
        %s5600 = scalar_lea.vmem %s270, 88
        %v5601 = vld [vmem:[%s5600] sm:$0xf]
        %v5602 = vld [vmem:[%s5600 + $0x4] sm:$0xf]
        %v5603 = vunpack.c.l.b16 %v5229
        %v5604 = vunpack.c.l.b16 %v5239
        %v5605 = vunpack.c.l.b16 %v5253
        %v5606 = vunpack.c.l.b16 %v5263
        %v5607 = vunpack.c.l.b16 %v5277
        %v5608 = vunpack.c.l.b16 %v5287
        %v5609 = vunpack.c.l.b16 %v5301
        %v5610 = vunpack.c.l.b16 %v5311
        %v5611 = vunpack.c.l.b16 %v5325
        %v5612 = vunpack.c.l.b16 %v5335
        %v5613 = vunpack.c.l.b16 %v5349
        %v5614 = vunpack.c.l.b16 %v5359
        %v5615 = vunpack.c.l.b16 %v5373
        %v5616 = vunpack.c.l.b16 %v5383
        %v5617 = vunpack.c.l.b16 %v5397
        %v5618 = vunpack.c.l.b16 %v5407
        %v5619 = vunpack.c.l.b16 %v5421
        %v5620 = vunpack.c.l.b16 %v5431
        %v5621 = vunpack.c.l.b16 %v5445
        %v5622 = vunpack.c.l.b16 %v5455
        %v5623 = vunpack.c.l.b16 %v5469
        %v5624 = vunpack.c.l.b16 %v5479
        %v5625 = vunpack.c.l.b16 %v5493
        %v5626 = vunpack.c.l.b16 %v5503
        %v5627 = vunpack.c.l.b16 %v5517
        %v5628 = vunpack.c.l.b16 %v5527
        %v5629 = vunpack.c.l.b16 %v5541
        %v5630 = vunpack.c.l.b16 %v5551
        %v5631 = vunpack.c.l.b16 %v5565
        %v5632 = vunpack.c.l.b16 %v5575
        %v5633 = vunpack.c.l.b16 %v5589
        %v5634 = vunpack.c.l.b16 %v5599
        %v5635 = vpack.c.b16 %v5604, %v5603
        %v5636 = vpack.c.b16 %v5606, %v5605
        %v5637 = vpack.c.b16 %v5608, %v5607
        %v5638 = vpack.c.b16 %v5610, %v5609
        %v5639 = vpack.c.b16 %v5612, %v5611
        %v5640 = vpack.c.b16 %v5614, %v5613
        %v5641 = vpack.c.b16 %v5616, %v5615
        %v5642 = vpack.c.b16 %v5618, %v5617
        %v5643 = vpack.c.b16 %v5620, %v5619
        %v5644 = vpack.c.b16 %v5622, %v5621
        %v5645 = vpack.c.b16 %v5624, %v5623
        %v5646 = vpack.c.b16 %v5626, %v5625
        %v5647 = vpack.c.b16 %v5628, %v5627
        %v5648 = vpack.c.b16 %v5630, %v5629
        %v5649 = vpack.c.b16 %v5632, %v5631
        %v5650 = vpack.c.b16 %v5634, %v5633
        %v5653 = vunpack.c.l.b16 %v5601
        %v5654 = vunpack.c.l.b16 %v5602
        %v5655 = vpack.c.b16 %v5654, %v5653
        %v5658 = vsel %vm778, %v5635, 0
        %v5661 = vsel %vm778, %v5636, 0
        %v5664 = vsel %vm778, %v5637, 0
        %v5667 = vsel %vm778, %v5638, 0
        %v5670 = vsel %vm778, %v5639, 0
        %v5673 = vsel %vm778, %v5640, 0
        %v5676 = vsel %vm778, %v5641, 0
        %v5679 = vsel %vm778, %v5642, 0
        %v5682 = vsel %vm778, %v5643, 0
        %v5685 = vsel %vm778, %v5644, 0
        %v5688 = vsel %vm778, %v5645, 0
        %v5691 = vsel %vm778, %v5646, 0
        %v5694 = vsel %vm778, %v5647, 0
        %v5697 = vsel %vm778, %v5648, 0
        %v5700 = vsel %vm778, %v5649, 0
        %v5703 = vsel %vm778, %v5650, 0
        %5705 = vmatpush.bf16.msra.mxu0 0
        %5706 = vmatpush.bf16.msra.mxu0 0
        %5707 = vmatpush.bf16.msra.mxu0 0
        %5708 = vmatpush.bf16.msra.mxu0 0
        %5709 = vmatpush.bf16.msra.mxu0 0
        %5710 = vmatpush.bf16.msra.mxu0 0
        %5711 = vmatpush.bf16.msra.mxu0 0
        %5712 = vmatpush.bf16.msra.mxu0 %v5655
        %5713 = vmatmul.bf16.gmra.mxu0 %v5658
        %v5714 = vpop.f32.mrf.mxu0
        %v5715 = vadd.f32 0.0, %v5714
        %v5716 = vpop.f32.mrf.mxu0
        %v5717 = vadd.f32 0.0, %v5716
        %5718 = vmatmul.bf16.gmra.mxu0 %v5661
        %v5719 = vpop.f32.mrf.mxu0
        %v5720 = vadd.f32 0.0, %v5719
        %v5721 = vpop.f32.mrf.mxu0
        %v5722 = vadd.f32 0.0, %v5721
        %5723 = vmatmul.bf16.gmra.mxu0 %v5664
        %v5724 = vpop.f32.mrf.mxu0
        %v5725 = vadd.f32 0.0, %v5724
        %v5726 = vpop.f32.mrf.mxu0
        %v5727 = vadd.f32 0.0, %v5726
        %5728 = vmatmul.bf16.gmra.mxu0 %v5667
        %v5729 = vpop.f32.mrf.mxu0
        %v5730 = vadd.f32 0.0, %v5729
        %v5731 = vpop.f32.mrf.mxu0
        %v5732 = vadd.f32 0.0, %v5731
        %5733 = vmatmul.bf16.gmra.mxu0 %v5670
        %v5734 = vpop.f32.mrf.mxu0
        %v5735 = vadd.f32 0.0, %v5734
        %v5736 = vpop.f32.mrf.mxu0
        %v5737 = vadd.f32 0.0, %v5736
        %5738 = vmatmul.bf16.gmra.mxu0 %v5673
        %v5739 = vpop.f32.mrf.mxu0
        %v5740 = vadd.f32 0.0, %v5739
        %v5741 = vpop.f32.mrf.mxu0
        %v5742 = vadd.f32 0.0, %v5741
        %5743 = vmatmul.bf16.gmra.mxu0 %v5676
        %v5744 = vpop.f32.mrf.mxu0
        %v5745 = vadd.f32 0.0, %v5744
        %v5746 = vpop.f32.mrf.mxu0
        %v5747 = vadd.f32 0.0, %v5746
        %5748 = vmatmul.bf16.gmra.mxu0 %v5679
        %v5749 = vpop.f32.mrf.mxu0
        %v5750 = vadd.f32 0.0, %v5749
        %v5751 = vpop.f32.mrf.mxu0
        %v5752 = vadd.f32 0.0, %v5751
        %5753 = vmatmul.bf16.gmra.mxu0 %v5682
        %v5754 = vpop.f32.mrf.mxu0
        %v5755 = vadd.f32 0.0, %v5754
        %v5756 = vpop.f32.mrf.mxu0
        %v5757 = vadd.f32 0.0, %v5756
        %5758 = vmatmul.bf16.gmra.mxu0 %v5685
        %v5759 = vpop.f32.mrf.mxu0
        %v5760 = vadd.f32 0.0, %v5759
        %v5761 = vpop.f32.mrf.mxu0
        %v5762 = vadd.f32 0.0, %v5761
        %5763 = vmatmul.bf16.gmra.mxu0 %v5688
        %v5764 = vpop.f32.mrf.mxu0
        %v5765 = vadd.f32 0.0, %v5764
        %v5766 = vpop.f32.mrf.mxu0
        %v5767 = vadd.f32 0.0, %v5766
        %5768 = vmatmul.bf16.gmra.mxu0 %v5691
        %v5769 = vpop.f32.mrf.mxu0
        %v5770 = vadd.f32 0.0, %v5769
        %v5771 = vpop.f32.mrf.mxu0
        %v5772 = vadd.f32 0.0, %v5771
        %5773 = vmatmul.bf16.gmra.mxu0 %v5694
        %v5774 = vpop.f32.mrf.mxu0
        %v5775 = vadd.f32 0.0, %v5774
        %v5776 = vpop.f32.mrf.mxu0
        %v5777 = vadd.f32 0.0, %v5776
        %5778 = vmatmul.bf16.gmra.mxu0 %v5697
        %v5779 = vpop.f32.mrf.mxu0
        %v5780 = vadd.f32 0.0, %v5779
        %v5781 = vpop.f32.mrf.mxu0
        %v5782 = vadd.f32 0.0, %v5781
        %5783 = vmatmul.bf16.gmra.mxu0 %v5700
        %v5784 = vpop.f32.mrf.mxu0
        %v5785 = vadd.f32 0.0, %v5784
        %v5786 = vpop.f32.mrf.mxu0
        %v5787 = vadd.f32 0.0, %v5786
        %5788 = vmatmul.bf16.gmra.mxu0 %v5703
        %v5789 = vpop.f32.mrf.mxu0
        %v5790 = vadd.f32 0.0, %v5789
        %v5791 = vpop.f32.mrf.mxu0
        %v5792 = vadd.f32 0.0, %v5791
        %5793 = vdwg.mxu0
        %v5794 = vadd.f32 %v5136, %v5715
        %v5795 = vadd.f32 %v5137, %v5717
        %v5796 = vadd.f32 %v5138, %v5720
        %v5797 = vadd.f32 %v5139, %v5722
        %v5798 = vadd.f32 %v5140, %v5725
        %v5799 = vadd.f32 %v5141, %v5727
        %v5800 = vadd.f32 %v5142, %v5730
        %v5801 = vadd.f32 %v5143, %v5732
        %v5802 = vadd.f32 %v5144, %v5735
        %v5803 = vadd.f32 %v5145, %v5737
        %v5804 = vadd.f32 %v5146, %v5740
        %v5805 = vadd.f32 %v5147, %v5742
        %v5806 = vadd.f32 %v5148, %v5745
        %v5807 = vadd.f32 %v5149, %v5747
        %v5808 = vadd.f32 %v5150, %v5750
        %v5809 = vadd.f32 %v5151, %v5752
        %v5810 = vadd.f32 %v5152, %v5755
        %v5811 = vadd.f32 %v5153, %v5757
        %v5812 = vadd.f32 %v5154, %v5760
        %v5813 = vadd.f32 %v5155, %v5762
        %v5814 = vadd.f32 %v5156, %v5765
        %v5815 = vadd.f32 %v5157, %v5767
        %v5816 = vadd.f32 %v5158, %v5770
        %v5817 = vadd.f32 %v5159, %v5772
        %v5818 = vadd.f32 %v5160, %v5775
        %v5819 = vadd.f32 %v5161, %v5777
        %v5820 = vadd.f32 %v5162, %v5780
        %v5821 = vadd.f32 %v5163, %v5782
        %v5822 = vadd.f32 %v5164, %v5785
        %v5823 = vadd.f32 %v5165, %v5787
        %v5824 = vadd.f32 %v5166, %v5790
        %v5825 = vadd.f32 %v5167, %v5792
        %v5826 = vld [vmem:[%s4877] sm:$0xe]
        %v5827 = vld [vmem:[%s4877 + $0xc] sm:$0xe]
        %v5828 = vld [vmem:[%s4877 + $0x18] sm:$0xe]
        %v5829 = vld [vmem:[%s4877 + $0x24] sm:$0xe]
        %v5830 = vld [vmem:[%s4877 + $0x30] sm:$0xe]
        %v5831 = vld [vmem:[%s4877 + $0x3c] sm:$0xe]
        %v5832 = vld [vmem:[%s4877 + $0x48] sm:$0xe]
        %v5833 = vld [vmem:[%s4877 + $0x54] sm:$0xe]
        %v5834 = vld [vmem:[%s4877 + $0x60] sm:$0xe]
        %v5835 = vld [vmem:[%s4877 + $0x6c] sm:$0xe]
        %v5836 = vld [vmem:[%s4877 + $0x78] sm:$0xe]
        %v5837 = vld [vmem:[%s4877 + $0x84] sm:$0xe]
        %v5838 = vld [vmem:[%s4877 + $0x90] sm:$0xe]
        %v5839 = vld [vmem:[%s4877 + $0x9c] sm:$0xe]
        %v5840 = vld [vmem:[%s4877 + $0xa8] sm:$0xe]
        %v5841 = vld [vmem:[%s4877 + $0xb4] sm:$0xe]
        %v5890 = vrot.slane %v5826, 5
        %v5891 = vrot.slane %v5890, 4
        %v5892 = vrot.slane %v5169, 5
        %v5893 = vsel %vm1189, %v5891, %v5892
        %v5894 = vrot.slane %v5892, 4
        %v5895 = vrot.slane %v5170, 5
        %v5896 = vsel %vm1189, %v5894, %v5895
        %v5897 = vrot.slane %v5827, 5
        %v5898 = vrot.slane %v5897, 4
        %v5899 = vrot.slane %v5172, 5
        %v5900 = vsel %vm1189, %v5898, %v5899
        %v5901 = vrot.slane %v5899, 4
        %v5902 = vrot.slane %v5173, 5
        %v5903 = vsel %vm1189, %v5901, %v5902
        %v5904 = vrot.slane %v5828, 5
        %v5905 = vrot.slane %v5904, 4
        %v5906 = vrot.slane %v5175, 5
        %v5907 = vsel %vm1189, %v5905, %v5906
        %v5908 = vrot.slane %v5906, 4
        %v5909 = vrot.slane %v5176, 5
        %v5910 = vsel %vm1189, %v5908, %v5909
        %v5911 = vrot.slane %v5829, 5
        %v5912 = vrot.slane %v5911, 4
        %v5913 = vrot.slane %v5178, 5
        %v5914 = vsel %vm1189, %v5912, %v5913
        %v5915 = vrot.slane %v5913, 4
        %v5916 = vrot.slane %v5179, 5
        %v5917 = vsel %vm1189, %v5915, %v5916
        %v5918 = vrot.slane %v5830, 5
        %v5919 = vrot.slane %v5918, 4
        %v5920 = vrot.slane %v5181, 5
        %v5921 = vsel %vm1189, %v5919, %v5920
        %v5922 = vrot.slane %v5920, 4
        %v5923 = vrot.slane %v5182, 5
        %v5924 = vsel %vm1189, %v5922, %v5923
        %v5925 = vrot.slane %v5831, 5
        %v5926 = vrot.slane %v5925, 4
        %v5927 = vrot.slane %v5184, 5
        %v5928 = vsel %vm1189, %v5926, %v5927
        %v5929 = vrot.slane %v5927, 4
        %v5930 = vrot.slane %v5185, 5
        %v5931 = vsel %vm1189, %v5929, %v5930
        %v5932 = vrot.slane %v5832, 5
        %v5933 = vrot.slane %v5932, 4
        %v5934 = vrot.slane %v5187, 5
        %v5935 = vsel %vm1189, %v5933, %v5934
        %v5936 = vrot.slane %v5934, 4
        %v5937 = vrot.slane %v5188, 5
        %v5938 = vsel %vm1189, %v5936, %v5937
        %v5939 = vrot.slane %v5833, 5
        %v5940 = vrot.slane %v5939, 4
        %v5941 = vrot.slane %v5190, 5
        %v5942 = vsel %vm1189, %v5940, %v5941
        %v5943 = vrot.slane %v5941, 4
        %v5944 = vrot.slane %v5191, 5
        %v5945 = vsel %vm1189, %v5943, %v5944
        %v5946 = vrot.slane %v5834, 5
        %v5947 = vrot.slane %v5946, 4
        %v5948 = vrot.slane %v5193, 5
        %v5949 = vsel %vm1189, %v5947, %v5948
        %v5950 = vrot.slane %v5948, 4
        %v5951 = vrot.slane %v5194, 5
        %v5952 = vsel %vm1189, %v5950, %v5951
        %v5953 = vrot.slane %v5835, 5
        %v5954 = vrot.slane %v5953, 4
        %v5955 = vrot.slane %v5196, 5
        %v5956 = vsel %vm1189, %v5954, %v5955
        %v5957 = vrot.slane %v5955, 4
        %v5958 = vrot.slane %v5197, 5
        %v5959 = vsel %vm1189, %v5957, %v5958
        %v5960 = vrot.slane %v5836, 5
        %v5961 = vrot.slane %v5960, 4
        %v5962 = vrot.slane %v5199, 5
        %v5963 = vsel %vm1189, %v5961, %v5962
        %v5964 = vrot.slane %v5962, 4
        %v5965 = vrot.slane %v5200, 5
        %v5966 = vsel %vm1189, %v5964, %v5965
        %v5967 = vrot.slane %v5837, 5
        %v5968 = vrot.slane %v5967, 4
        %v5969 = vrot.slane %v5202, 5
        %v5970 = vsel %vm1189, %v5968, %v5969
        %v5971 = vrot.slane %v5969, 4
        %v5972 = vrot.slane %v5203, 5
        %v5973 = vsel %vm1189, %v5971, %v5972
        %v5974 = vrot.slane %v5838, 5
        %v5975 = vrot.slane %v5974, 4
        %v5976 = vrot.slane %v5205, 5
        %v5977 = vsel %vm1189, %v5975, %v5976
        %v5978 = vrot.slane %v5976, 4
        %v5979 = vrot.slane %v5206, 5
        %v5980 = vsel %vm1189, %v5978, %v5979
        %v5981 = vrot.slane %v5839, 5
        %v5982 = vrot.slane %v5981, 4
        %v5983 = vrot.slane %v5208, 5
        %v5984 = vsel %vm1189, %v5982, %v5983
        %v5985 = vrot.slane %v5983, 4
        %v5986 = vrot.slane %v5209, 5
        %v5987 = vsel %vm1189, %v5985, %v5986
        %v5988 = vrot.slane %v5840, 5
        %v5989 = vrot.slane %v5988, 4
        %v5990 = vrot.slane %v5211, 5
        %v5991 = vsel %vm1189, %v5989, %v5990
        %v5992 = vrot.slane %v5990, 4
        %v5993 = vrot.slane %v5212, 5
        %v5994 = vsel %vm1189, %v5992, %v5993
        %v5995 = vrot.slane %v5841, 5
        %v5996 = vrot.slane %v5995, 4
        %v5997 = vrot.slane %v5214, 5
        %v5998 = vsel %vm1189, %v5996, %v5997
        %v5999 = vrot.slane %v5997, 4
        %v6000 = vrot.slane %v5215, 5
        %v6001 = vsel %vm1189, %v5999, %v6000
        %s6002 = scalar_lea.vmem %s270, 96
        %v6003 = vld [vmem:[%s6002] sm:$0xf]
        %v6004 = vld [vmem:[%s6002 + $0x4] sm:$0xf]
        %v6005 = vunpack.c.l.b16 %v5893
        %v6006 = vunpack.c.l.b16 %v5896
        %v6007 = vunpack.c.l.b16 %v5900
        %v6008 = vunpack.c.l.b16 %v5903
        %v6009 = vunpack.c.l.b16 %v5907
        %v6010 = vunpack.c.l.b16 %v5910
        %v6011 = vunpack.c.l.b16 %v5914
        %v6012 = vunpack.c.l.b16 %v5917
        %v6013 = vunpack.c.l.b16 %v5921
        %v6014 = vunpack.c.l.b16 %v5924
        %v6015 = vunpack.c.l.b16 %v5928
        %v6016 = vunpack.c.l.b16 %v5931
        %v6017 = vunpack.c.l.b16 %v5935
        %v6018 = vunpack.c.l.b16 %v5938
        %v6019 = vunpack.c.l.b16 %v5942
        %v6020 = vunpack.c.l.b16 %v5945
        %v6021 = vunpack.c.l.b16 %v5949
        %v6022 = vunpack.c.l.b16 %v5952
        %v6023 = vunpack.c.l.b16 %v5956
        %v6024 = vunpack.c.l.b16 %v5959
        %v6025 = vunpack.c.l.b16 %v5963
        %v6026 = vunpack.c.l.b16 %v5966
        %v6027 = vunpack.c.l.b16 %v5970
        %v6028 = vunpack.c.l.b16 %v5973
        %v6029 = vunpack.c.l.b16 %v5977
        %v6030 = vunpack.c.l.b16 %v5980
        %v6031 = vunpack.c.l.b16 %v5984
        %v6032 = vunpack.c.l.b16 %v5987
        %v6033 = vunpack.c.l.b16 %v5991
        %v6034 = vunpack.c.l.b16 %v5994
        %v6035 = vunpack.c.l.b16 %v5998
        %v6036 = vunpack.c.l.b16 %v6001
        %v6037 = vpack.c.b16 %v6006, %v6005
        %v6038 = vpack.c.b16 %v6008, %v6007
        %v6039 = vpack.c.b16 %v6010, %v6009
        %v6040 = vpack.c.b16 %v6012, %v6011
        %v6041 = vpack.c.b16 %v6014, %v6013
        %v6042 = vpack.c.b16 %v6016, %v6015
        %v6043 = vpack.c.b16 %v6018, %v6017
        %v6044 = vpack.c.b16 %v6020, %v6019
        %v6045 = vpack.c.b16 %v6022, %v6021
        %v6046 = vpack.c.b16 %v6024, %v6023
        %v6047 = vpack.c.b16 %v6026, %v6025
        %v6048 = vpack.c.b16 %v6028, %v6027
        %v6049 = vpack.c.b16 %v6030, %v6029
        %v6050 = vpack.c.b16 %v6032, %v6031
        %v6051 = vpack.c.b16 %v6034, %v6033
        %v6052 = vpack.c.b16 %v6036, %v6035
        %v6055 = vunpack.c.l.b16 %v6003
        %v6056 = vunpack.c.l.b16 %v6004
        %v6057 = vpack.c.b16 %v6056, %v6055
        %v6060 = vsel %vm778, %v6037, 0
        %v6063 = vsel %vm778, %v6038, 0
        %v6066 = vsel %vm778, %v6039, 0
        %v6069 = vsel %vm778, %v6040, 0
        %v6072 = vsel %vm778, %v6041, 0
        %v6075 = vsel %vm778, %v6042, 0
        %v6078 = vsel %vm778, %v6043, 0
        %v6081 = vsel %vm778, %v6044, 0
        %v6084 = vsel %vm778, %v6045, 0
        %v6087 = vsel %vm778, %v6046, 0
        %v6090 = vsel %vm778, %v6047, 0
        %v6093 = vsel %vm778, %v6048, 0
        %v6096 = vsel %vm778, %v6049, 0
        %v6099 = vsel %vm778, %v6050, 0
        %v6102 = vsel %vm778, %v6051, 0
        %v6105 = vsel %vm778, %v6052, 0
        %6107 = vmatpush.bf16.msra.mxu0 0
        %6108 = vmatpush.bf16.msra.mxu0 0
        %6109 = vmatpush.bf16.msra.mxu0 0
        %6110 = vmatpush.bf16.msra.mxu0 0
        %6111 = vmatpush.bf16.msra.mxu0 0
        %6112 = vmatpush.bf16.msra.mxu0 0
        %6113 = vmatpush.bf16.msra.mxu0 0
        %6114 = vmatpush.bf16.msra.mxu0 %v6057
        %6115 = vmatmul.bf16.gmra.mxu0 %v6060
        %v6116 = vpop.f32.mrf.mxu0
        %v6117 = vadd.f32 0.0, %v6116
        %v6118 = vpop.f32.mrf.mxu0
        %v6119 = vadd.f32 0.0, %v6118
        %6120 = vmatmul.bf16.gmra.mxu0 %v6063
        %v6121 = vpop.f32.mrf.mxu0
        %v6122 = vadd.f32 0.0, %v6121
        %v6123 = vpop.f32.mrf.mxu0
        %v6124 = vadd.f32 0.0, %v6123
        %6125 = vmatmul.bf16.gmra.mxu0 %v6066
        %v6126 = vpop.f32.mrf.mxu0
        %v6127 = vadd.f32 0.0, %v6126
        %v6128 = vpop.f32.mrf.mxu0
        %v6129 = vadd.f32 0.0, %v6128
        %6130 = vmatmul.bf16.gmra.mxu0 %v6069
        %v6131 = vpop.f32.mrf.mxu0
        %v6132 = vadd.f32 0.0, %v6131
        %v6133 = vpop.f32.mrf.mxu0
        %v6134 = vadd.f32 0.0, %v6133
        %6135 = vmatmul.bf16.gmra.mxu0 %v6072
        %v6136 = vpop.f32.mrf.mxu0
        %v6137 = vadd.f32 0.0, %v6136
        %v6138 = vpop.f32.mrf.mxu0
        %v6139 = vadd.f32 0.0, %v6138
        %6140 = vmatmul.bf16.gmra.mxu0 %v6075
        %v6141 = vpop.f32.mrf.mxu0
        %v6142 = vadd.f32 0.0, %v6141
        %v6143 = vpop.f32.mrf.mxu0
        %v6144 = vadd.f32 0.0, %v6143
        %6145 = vmatmul.bf16.gmra.mxu0 %v6078
        %v6146 = vpop.f32.mrf.mxu0
        %v6147 = vadd.f32 0.0, %v6146
        %v6148 = vpop.f32.mrf.mxu0
        %v6149 = vadd.f32 0.0, %v6148
        %6150 = vmatmul.bf16.gmra.mxu0 %v6081
        %v6151 = vpop.f32.mrf.mxu0
        %v6152 = vadd.f32 0.0, %v6151
        %v6153 = vpop.f32.mrf.mxu0
        %v6154 = vadd.f32 0.0, %v6153
        %6155 = vmatmul.bf16.gmra.mxu0 %v6084
        %v6156 = vpop.f32.mrf.mxu0
        %v6157 = vadd.f32 0.0, %v6156
        %v6158 = vpop.f32.mrf.mxu0
        %v6159 = vadd.f32 0.0, %v6158
        %6160 = vmatmul.bf16.gmra.mxu0 %v6087
        %v6161 = vpop.f32.mrf.mxu0
        %v6162 = vadd.f32 0.0, %v6161
        %v6163 = vpop.f32.mrf.mxu0
        %v6164 = vadd.f32 0.0, %v6163
        %6165 = vmatmul.bf16.gmra.mxu0 %v6090
        %v6166 = vpop.f32.mrf.mxu0
        %v6167 = vadd.f32 0.0, %v6166
        %v6168 = vpop.f32.mrf.mxu0
        %v6169 = vadd.f32 0.0, %v6168
        %6170 = vmatmul.bf16.gmra.mxu0 %v6093
        %v6171 = vpop.f32.mrf.mxu0
        %v6172 = vadd.f32 0.0, %v6171
        %v6173 = vpop.f32.mrf.mxu0
        %v6174 = vadd.f32 0.0, %v6173
        %6175 = vmatmul.bf16.gmra.mxu0 %v6096
        %v6176 = vpop.f32.mrf.mxu0
        %v6177 = vadd.f32 0.0, %v6176
        %v6178 = vpop.f32.mrf.mxu0
        %v6179 = vadd.f32 0.0, %v6178
        %6180 = vmatmul.bf16.gmra.mxu0 %v6099
        %v6181 = vpop.f32.mrf.mxu0
        %v6182 = vadd.f32 0.0, %v6181
        %v6183 = vpop.f32.mrf.mxu0
        %v6184 = vadd.f32 0.0, %v6183
        %6185 = vmatmul.bf16.gmra.mxu0 %v6102
        %v6186 = vpop.f32.mrf.mxu0
        %v6187 = vadd.f32 0.0, %v6186
        %v6188 = vpop.f32.mrf.mxu0
        %v6189 = vadd.f32 0.0, %v6188
        %6190 = vmatmul.bf16.gmra.mxu0 %v6105
        %v6191 = vpop.f32.mrf.mxu0
        %v6192 = vadd.f32 0.0, %v6191
        %v6193 = vpop.f32.mrf.mxu0
        %v6194 = vadd.f32 0.0, %v6193
        %6195 = vdwg.mxu0
        %v6196 = vadd.f32 %v5794, %v6117
        %v6197 = vadd.f32 %v5795, %v6119
        %v6198 = vadd.f32 %v5796, %v6122
        %v6199 = vadd.f32 %v5797, %v6124
        %v6200 = vadd.f32 %v5798, %v6127
        %v6201 = vadd.f32 %v5799, %v6129
        %v6202 = vadd.f32 %v5800, %v6132
        %v6203 = vadd.f32 %v5801, %v6134
        %v6204 = vadd.f32 %v5802, %v6137
        %v6205 = vadd.f32 %v5803, %v6139
        %v6206 = vadd.f32 %v5804, %v6142
        %v6207 = vadd.f32 %v5805, %v6144
        %v6208 = vadd.f32 %v5806, %v6147
        %v6209 = vadd.f32 %v5807, %v6149
        %v6210 = vadd.f32 %v5808, %v6152
        %v6211 = vadd.f32 %v5809, %v6154
        %v6212 = vadd.f32 %v5810, %v6157
        %v6213 = vadd.f32 %v5811, %v6159
        %v6214 = vadd.f32 %v5812, %v6162
        %v6215 = vadd.f32 %v5813, %v6164
        %v6216 = vadd.f32 %v5814, %v6167
        %v6217 = vadd.f32 %v5815, %v6169
        %v6218 = vadd.f32 %v5816, %v6172
        %v6219 = vadd.f32 %v5817, %v6174
        %v6220 = vadd.f32 %v5818, %v6177
        %v6221 = vadd.f32 %v5819, %v6179
        %v6222 = vadd.f32 %v5820, %v6182
        %v6223 = vadd.f32 %v5821, %v6184
        %v6224 = vadd.f32 %v5822, %v6187
        %v6225 = vadd.f32 %v5823, %v6189
        %v6226 = vadd.f32 %v5824, %v6192
        %v6227 = vadd.f32 %v5825, %v6194
        %v6228 = vld [vmem:[%s4877 + $0x8] sm:$0x3]
        %v6229 = vld [vmem:[%s4877 + $0x14] sm:$0x3]
        %v6230 = vld [vmem:[%s4877 + $0x20] sm:$0x3]
        %v6231 = vld [vmem:[%s4877 + $0x2c] sm:$0x3]
        %v6232 = vld [vmem:[%s4877 + $0x38] sm:$0x3]
        %v6233 = vld [vmem:[%s4877 + $0x44] sm:$0x3]
        %v6234 = vld [vmem:[%s4877 + $0x50] sm:$0x3]
        %v6235 = vld [vmem:[%s4877 + $0x5c] sm:$0x3]
        %v6236 = vld [vmem:[%s4877 + $0x68] sm:$0x3]
        %v6237 = vld [vmem:[%s4877 + $0x74] sm:$0x3]
        %v6238 = vld [vmem:[%s4877 + $0x80] sm:$0x3]
        %v6239 = vld [vmem:[%s4877 + $0x8c] sm:$0x3]
        %v6240 = vld [vmem:[%s4877 + $0x98] sm:$0x3]
        %v6241 = vld [vmem:[%s4877 + $0xa4] sm:$0x3]
        %v6242 = vld [vmem:[%s4877 + $0xb0] sm:$0x3]
        %v6243 = vld [vmem:[%s4877 + $0xbc] sm:$0x3]
        %v6245 = vshrl.u32 %v5826, 16
        %v6247 = vrot.slane %v6245, 5
        %v6248 = vshll.u32 %v5826, 16
        %v6250 = vrot.slane %v6248, 6
        %v6251 = vor.u32 %v6247, %v6250
        %v6252 = vrot.slane %v6251, 4
        %v6253 = vrot.slane %v5230, 5
        %v6254 = vrot.slane %v5226, 6
        %v6255 = vor.u32 %v6253, %v6254
        %v6256 = vsel %vm1546, %v6252, %v6255
        %v6257 = vrot.slane %v6255, 4
        %v6259 = vshrl.u32 %v6228, 16
        %v6261 = vrot.slane %v6259, 5
        %v6262 = vshll.u32 %v6228, 16
        %v6264 = vrot.slane %v6262, 6
        %v6265 = vor.u32 %v6261, %v6264
        %v6266 = vsel %vm1546, %v6257, %v6265
        %v6268 = vshrl.u32 %v5827, 16
        %v6270 = vrot.slane %v6268, 5
        %v6271 = vshll.u32 %v5827, 16
        %v6273 = vrot.slane %v6271, 6
        %v6274 = vor.u32 %v6270, %v6273
        %v6275 = vrot.slane %v6274, 4
        %v6276 = vrot.slane %v5254, 5
        %v6277 = vrot.slane %v5250, 6
        %v6278 = vor.u32 %v6276, %v6277
        %v6279 = vsel %vm1546, %v6275, %v6278
        %v6280 = vrot.slane %v6278, 4
        %v6282 = vshrl.u32 %v6229, 16
        %v6284 = vrot.slane %v6282, 5
        %v6285 = vshll.u32 %v6229, 16
        %v6287 = vrot.slane %v6285, 6
        %v6288 = vor.u32 %v6284, %v6287
        %v6289 = vsel %vm1546, %v6280, %v6288
        %v6291 = vshrl.u32 %v5828, 16
        %v6293 = vrot.slane %v6291, 5
        %v6294 = vshll.u32 %v5828, 16
        %v6296 = vrot.slane %v6294, 6
        %v6297 = vor.u32 %v6293, %v6296
        %v6298 = vrot.slane %v6297, 4
        %v6299 = vrot.slane %v5278, 5
        %v6300 = vrot.slane %v5274, 6
        %v6301 = vor.u32 %v6299, %v6300
        %v6302 = vsel %vm1546, %v6298, %v6301
        %v6303 = vrot.slane %v6301, 4
        %v6305 = vshrl.u32 %v6230, 16
        %v6307 = vrot.slane %v6305, 5
        %v6308 = vshll.u32 %v6230, 16
        %v6310 = vrot.slane %v6308, 6
        %v6311 = vor.u32 %v6307, %v6310
        %v6312 = vsel %vm1546, %v6303, %v6311
        %v6314 = vshrl.u32 %v5829, 16
        %v6316 = vrot.slane %v6314, 5
        %v6317 = vshll.u32 %v5829, 16
        %v6319 = vrot.slane %v6317, 6
        %v6320 = vor.u32 %v6316, %v6319
        %v6321 = vrot.slane %v6320, 4
        %v6322 = vrot.slane %v5302, 5
        %v6323 = vrot.slane %v5298, 6
        %v6324 = vor.u32 %v6322, %v6323
        %v6325 = vsel %vm1546, %v6321, %v6324
        %v6326 = vrot.slane %v6324, 4
        %v6328 = vshrl.u32 %v6231, 16
        %v6330 = vrot.slane %v6328, 5
        %v6331 = vshll.u32 %v6231, 16
        %v6333 = vrot.slane %v6331, 6
        %v6334 = vor.u32 %v6330, %v6333
        %v6335 = vsel %vm1546, %v6326, %v6334
        %v6337 = vshrl.u32 %v5830, 16
        %v6339 = vrot.slane %v6337, 5
        %v6340 = vshll.u32 %v5830, 16
        %v6342 = vrot.slane %v6340, 6
        %v6343 = vor.u32 %v6339, %v6342
        %v6344 = vrot.slane %v6343, 4
        %v6345 = vrot.slane %v5326, 5
        %v6346 = vrot.slane %v5322, 6
        %v6347 = vor.u32 %v6345, %v6346
        %v6348 = vsel %vm1546, %v6344, %v6347
        %v6349 = vrot.slane %v6347, 4
        %v6351 = vshrl.u32 %v6232, 16
        %v6353 = vrot.slane %v6351, 5
        %v6354 = vshll.u32 %v6232, 16
        %v6356 = vrot.slane %v6354, 6
        %v6357 = vor.u32 %v6353, %v6356
        %v6358 = vsel %vm1546, %v6349, %v6357
        %v6360 = vshrl.u32 %v5831, 16
        %v6362 = vrot.slane %v6360, 5
        %v6363 = vshll.u32 %v5831, 16
        %v6365 = vrot.slane %v6363, 6
        %v6366 = vor.u32 %v6362, %v6365
        %v6367 = vrot.slane %v6366, 4
        %v6368 = vrot.slane %v5350, 5
        %v6369 = vrot.slane %v5346, 6
        %v6370 = vor.u32 %v6368, %v6369
        %v6371 = vsel %vm1546, %v6367, %v6370
        %v6372 = vrot.slane %v6370, 4
        %v6374 = vshrl.u32 %v6233, 16
        %v6376 = vrot.slane %v6374, 5
        %v6377 = vshll.u32 %v6233, 16
        %v6379 = vrot.slane %v6377, 6
        %v6380 = vor.u32 %v6376, %v6379
        %v6381 = vsel %vm1546, %v6372, %v6380
        %v6383 = vshrl.u32 %v5832, 16
        %v6385 = vrot.slane %v6383, 5
        %v6386 = vshll.u32 %v5832, 16
        %v6388 = vrot.slane %v6386, 6
        %v6389 = vor.u32 %v6385, %v6388
        %v6390 = vrot.slane %v6389, 4
        %v6391 = vrot.slane %v5374, 5
        %v6392 = vrot.slane %v5370, 6
        %v6393 = vor.u32 %v6391, %v6392
        %v6394 = vsel %vm1546, %v6390, %v6393
        %v6395 = vrot.slane %v6393, 4
        %v6397 = vshrl.u32 %v6234, 16
        %v6399 = vrot.slane %v6397, 5
        %v6400 = vshll.u32 %v6234, 16
        %v6402 = vrot.slane %v6400, 6
        %v6403 = vor.u32 %v6399, %v6402
        %v6404 = vsel %vm1546, %v6395, %v6403
        %v6406 = vshrl.u32 %v5833, 16
        %v6408 = vrot.slane %v6406, 5
        %v6409 = vshll.u32 %v5833, 16
        %v6411 = vrot.slane %v6409, 6
        %v6412 = vor.u32 %v6408, %v6411
        %v6413 = vrot.slane %v6412, 4
        %v6414 = vrot.slane %v5398, 5
        %v6415 = vrot.slane %v5394, 6
        %v6416 = vor.u32 %v6414, %v6415
        %v6417 = vsel %vm1546, %v6413, %v6416
        %v6418 = vrot.slane %v6416, 4
        %v6420 = vshrl.u32 %v6235, 16
        %v6422 = vrot.slane %v6420, 5
        %v6423 = vshll.u32 %v6235, 16
        %v6425 = vrot.slane %v6423, 6
        %v6426 = vor.u32 %v6422, %v6425
        %v6427 = vsel %vm1546, %v6418, %v6426
        %v6429 = vshrl.u32 %v5834, 16
        %v6431 = vrot.slane %v6429, 5
        %v6432 = vshll.u32 %v5834, 16
        %v6434 = vrot.slane %v6432, 6
        %v6435 = vor.u32 %v6431, %v6434
        %v6436 = vrot.slane %v6435, 4
        %v6437 = vrot.slane %v5422, 5
        %v6438 = vrot.slane %v5418, 6
        %v6439 = vor.u32 %v6437, %v6438
        %v6440 = vsel %vm1546, %v6436, %v6439
        %v6441 = vrot.slane %v6439, 4
        %v6443 = vshrl.u32 %v6236, 16
        %v6445 = vrot.slane %v6443, 5
        %v6446 = vshll.u32 %v6236, 16
        %v6448 = vrot.slane %v6446, 6
        %v6449 = vor.u32 %v6445, %v6448
        %v6450 = vsel %vm1546, %v6441, %v6449
        %v6452 = vshrl.u32 %v5835, 16
        %v6454 = vrot.slane %v6452, 5
        %v6455 = vshll.u32 %v5835, 16
        %v6457 = vrot.slane %v6455, 6
        %v6458 = vor.u32 %v6454, %v6457
        %v6459 = vrot.slane %v6458, 4
        %v6460 = vrot.slane %v5446, 5
        %v6461 = vrot.slane %v5442, 6
        %v6462 = vor.u32 %v6460, %v6461
        %v6463 = vsel %vm1546, %v6459, %v6462
        %v6464 = vrot.slane %v6462, 4
        %v6466 = vshrl.u32 %v6237, 16
        %v6468 = vrot.slane %v6466, 5
        %v6469 = vshll.u32 %v6237, 16
        %v6471 = vrot.slane %v6469, 6
        %v6472 = vor.u32 %v6468, %v6471
        %v6473 = vsel %vm1546, %v6464, %v6472
        %v6475 = vshrl.u32 %v5836, 16
        %v6477 = vrot.slane %v6475, 5
        %v6478 = vshll.u32 %v5836, 16
        %v6480 = vrot.slane %v6478, 6
        %v6481 = vor.u32 %v6477, %v6480
        %v6482 = vrot.slane %v6481, 4
        %v6483 = vrot.slane %v5470, 5
        %v6484 = vrot.slane %v5466, 6
        %v6485 = vor.u32 %v6483, %v6484
        %v6486 = vsel %vm1546, %v6482, %v6485
        %v6487 = vrot.slane %v6485, 4
        %v6489 = vshrl.u32 %v6238, 16
        %v6491 = vrot.slane %v6489, 5
        %v6492 = vshll.u32 %v6238, 16
        %v6494 = vrot.slane %v6492, 6
        %v6495 = vor.u32 %v6491, %v6494
        %v6496 = vsel %vm1546, %v6487, %v6495
        %v6498 = vshrl.u32 %v5837, 16
        %v6500 = vrot.slane %v6498, 5
        %v6501 = vshll.u32 %v5837, 16
        %v6503 = vrot.slane %v6501, 6
        %v6504 = vor.u32 %v6500, %v6503
        %v6505 = vrot.slane %v6504, 4
        %v6506 = vrot.slane %v5494, 5
        %v6507 = vrot.slane %v5490, 6
        %v6508 = vor.u32 %v6506, %v6507
        %v6509 = vsel %vm1546, %v6505, %v6508
        %v6510 = vrot.slane %v6508, 4
        %v6512 = vshrl.u32 %v6239, 16
        %v6514 = vrot.slane %v6512, 5
        %v6515 = vshll.u32 %v6239, 16
        %v6517 = vrot.slane %v6515, 6
        %v6518 = vor.u32 %v6514, %v6517
        %v6519 = vsel %vm1546, %v6510, %v6518
        %v6521 = vshrl.u32 %v5838, 16
        %v6523 = vrot.slane %v6521, 5
        %v6524 = vshll.u32 %v5838, 16
        %v6526 = vrot.slane %v6524, 6
        %v6527 = vor.u32 %v6523, %v6526
        %v6528 = vrot.slane %v6527, 4
        %v6529 = vrot.slane %v5518, 5
        %v6530 = vrot.slane %v5514, 6
        %v6531 = vor.u32 %v6529, %v6530
        %v6532 = vsel %vm1546, %v6528, %v6531
        %v6533 = vrot.slane %v6531, 4
        %v6535 = vshrl.u32 %v6240, 16
        %v6537 = vrot.slane %v6535, 5
        %v6538 = vshll.u32 %v6240, 16
        %v6540 = vrot.slane %v6538, 6
        %v6541 = vor.u32 %v6537, %v6540
        %v6542 = vsel %vm1546, %v6533, %v6541
        %v6544 = vshrl.u32 %v5839, 16
        %v6546 = vrot.slane %v6544, 5
        %v6547 = vshll.u32 %v5839, 16
        %v6549 = vrot.slane %v6547, 6
        %v6550 = vor.u32 %v6546, %v6549
        %v6551 = vrot.slane %v6550, 4
        %v6552 = vrot.slane %v5542, 5
        %v6553 = vrot.slane %v5538, 6
        %v6554 = vor.u32 %v6552, %v6553
        %v6555 = vsel %vm1546, %v6551, %v6554
        %v6556 = vrot.slane %v6554, 4
        %v6558 = vshrl.u32 %v6241, 16
        %v6560 = vrot.slane %v6558, 5
        %v6561 = vshll.u32 %v6241, 16
        %v6563 = vrot.slane %v6561, 6
        %v6564 = vor.u32 %v6560, %v6563
        %v6565 = vsel %vm1546, %v6556, %v6564
        %v6567 = vshrl.u32 %v5840, 16
        %v6569 = vrot.slane %v6567, 5
        %v6570 = vshll.u32 %v5840, 16
        %v6572 = vrot.slane %v6570, 6
        %v6573 = vor.u32 %v6569, %v6572
        %v6574 = vrot.slane %v6573, 4
        %v6575 = vrot.slane %v5566, 5
        %v6576 = vrot.slane %v5562, 6
        %v6577 = vor.u32 %v6575, %v6576
        %v6578 = vsel %vm1546, %v6574, %v6577
        %v6579 = vrot.slane %v6577, 4
        %v6581 = vshrl.u32 %v6242, 16
        %v6583 = vrot.slane %v6581, 5
        %v6584 = vshll.u32 %v6242, 16
        %v6586 = vrot.slane %v6584, 6
        %v6587 = vor.u32 %v6583, %v6586
        %v6588 = vsel %vm1546, %v6579, %v6587
        %v6590 = vshrl.u32 %v5841, 16
        %v6592 = vrot.slane %v6590, 5
        %v6593 = vshll.u32 %v5841, 16
        %v6595 = vrot.slane %v6593, 6
        %v6596 = vor.u32 %v6592, %v6595
        %v6597 = vrot.slane %v6596, 4
        %v6598 = vrot.slane %v5590, 5
        %v6599 = vrot.slane %v5586, 6
        %v6600 = vor.u32 %v6598, %v6599
        %v6601 = vsel %vm1546, %v6597, %v6600
        %v6602 = vrot.slane %v6600, 4
        %v6604 = vshrl.u32 %v6243, 16
        %v6606 = vrot.slane %v6604, 5
        %v6607 = vshll.u32 %v6243, 16
        %v6609 = vrot.slane %v6607, 6
        %v6610 = vor.u32 %v6606, %v6609
        %v6611 = vsel %vm1546, %v6602, %v6610
        %s6612 = scalar_lea.vmem %s270, 104
        %v6613 = vld [vmem:[%s6612] sm:$0xf]
        %v6614 = vld [vmem:[%s6612 + $0x4] sm:$0xf]
        %v6615 = vunpack.c.l.b16 %v6256
        %v6616 = vunpack.c.l.b16 %v6266
        %v6617 = vunpack.c.l.b16 %v6279
        %v6618 = vunpack.c.l.b16 %v6289
        %v6619 = vunpack.c.l.b16 %v6302
        %v6620 = vunpack.c.l.b16 %v6312
        %v6621 = vunpack.c.l.b16 %v6325
        %v6622 = vunpack.c.l.b16 %v6335
        %v6623 = vunpack.c.l.b16 %v6348
        %v6624 = vunpack.c.l.b16 %v6358
        %v6625 = vunpack.c.l.b16 %v6371
        %v6626 = vunpack.c.l.b16 %v6381
        %v6627 = vunpack.c.l.b16 %v6394
        %v6628 = vunpack.c.l.b16 %v6404
        %v6629 = vunpack.c.l.b16 %v6417
        %v6630 = vunpack.c.l.b16 %v6427
        %v6631 = vunpack.c.l.b16 %v6440
        %v6632 = vunpack.c.l.b16 %v6450
        %v6633 = vunpack.c.l.b16 %v6463
        %v6634 = vunpack.c.l.b16 %v6473
        %v6635 = vunpack.c.l.b16 %v6486
        %v6636 = vunpack.c.l.b16 %v6496
        %v6637 = vunpack.c.l.b16 %v6509
        %v6638 = vunpack.c.l.b16 %v6519
        %v6639 = vunpack.c.l.b16 %v6532
        %v6640 = vunpack.c.l.b16 %v6542
        %v6641 = vunpack.c.l.b16 %v6555
        %v6642 = vunpack.c.l.b16 %v6565
        %v6643 = vunpack.c.l.b16 %v6578
        %v6644 = vunpack.c.l.b16 %v6588
        %v6645 = vunpack.c.l.b16 %v6601
        %v6646 = vunpack.c.l.b16 %v6611
        %v6647 = vpack.c.b16 %v6616, %v6615
        %v6648 = vpack.c.b16 %v6618, %v6617
        %v6649 = vpack.c.b16 %v6620, %v6619
        %v6650 = vpack.c.b16 %v6622, %v6621
        %v6651 = vpack.c.b16 %v6624, %v6623
        %v6652 = vpack.c.b16 %v6626, %v6625
        %v6653 = vpack.c.b16 %v6628, %v6627
        %v6654 = vpack.c.b16 %v6630, %v6629
        %v6655 = vpack.c.b16 %v6632, %v6631
        %v6656 = vpack.c.b16 %v6634, %v6633
        %v6657 = vpack.c.b16 %v6636, %v6635
        %v6658 = vpack.c.b16 %v6638, %v6637
        %v6659 = vpack.c.b16 %v6640, %v6639
        %v6660 = vpack.c.b16 %v6642, %v6641
        %v6661 = vpack.c.b16 %v6644, %v6643
        %v6662 = vpack.c.b16 %v6646, %v6645
        %v6665 = vunpack.c.l.b16 %v6613
        %v6666 = vunpack.c.l.b16 %v6614
        %v6667 = vpack.c.b16 %v6666, %v6665
        %v6670 = vsel %vm778, %v6647, 0
        %v6673 = vsel %vm778, %v6648, 0
        %v6676 = vsel %vm778, %v6649, 0
        %v6679 = vsel %vm778, %v6650, 0
        %v6682 = vsel %vm778, %v6651, 0
        %v6685 = vsel %vm778, %v6652, 0
        %v6688 = vsel %vm778, %v6653, 0
        %v6691 = vsel %vm778, %v6654, 0
        %v6694 = vsel %vm778, %v6655, 0
        %v6697 = vsel %vm778, %v6656, 0
        %v6700 = vsel %vm778, %v6657, 0
        %v6703 = vsel %vm778, %v6658, 0
        %v6706 = vsel %vm778, %v6659, 0
        %v6709 = vsel %vm778, %v6660, 0
        %v6712 = vsel %vm778, %v6661, 0
        %v6715 = vsel %vm778, %v6662, 0
        %6717 = vmatpush.bf16.msra.mxu0 0
        %6718 = vmatpush.bf16.msra.mxu0 0
        %6719 = vmatpush.bf16.msra.mxu0 0
        %6720 = vmatpush.bf16.msra.mxu0 0
        %6721 = vmatpush.bf16.msra.mxu0 0
        %6722 = vmatpush.bf16.msra.mxu0 0
        %6723 = vmatpush.bf16.msra.mxu0 0
        %6724 = vmatpush.bf16.msra.mxu0 %v6667
        %6725 = vmatmul.bf16.gmra.mxu0 %v6670
        %v6726 = vpop.f32.mrf.mxu0
        %v6727 = vadd.f32 0.0, %v6726
        %v6728 = vpop.f32.mrf.mxu0
        %v6729 = vadd.f32 0.0, %v6728
        %6730 = vmatmul.bf16.gmra.mxu0 %v6673
        %v6731 = vpop.f32.mrf.mxu0
        %v6732 = vadd.f32 0.0, %v6731
        %v6733 = vpop.f32.mrf.mxu0
        %v6734 = vadd.f32 0.0, %v6733
        %6735 = vmatmul.bf16.gmra.mxu0 %v6676
        %v6736 = vpop.f32.mrf.mxu0
        %v6737 = vadd.f32 0.0, %v6736
        %v6738 = vpop.f32.mrf.mxu0
        %v6739 = vadd.f32 0.0, %v6738
        %6740 = vmatmul.bf16.gmra.mxu0 %v6679
        %v6741 = vpop.f32.mrf.mxu0
        %v6742 = vadd.f32 0.0, %v6741
        %v6743 = vpop.f32.mrf.mxu0
        %v6744 = vadd.f32 0.0, %v6743
        %6745 = vmatmul.bf16.gmra.mxu0 %v6682
        %v6746 = vpop.f32.mrf.mxu0
        %v6747 = vadd.f32 0.0, %v6746
        %v6748 = vpop.f32.mrf.mxu0
        %v6749 = vadd.f32 0.0, %v6748
        %6750 = vmatmul.bf16.gmra.mxu0 %v6685
        %v6751 = vpop.f32.mrf.mxu0
        %v6752 = vadd.f32 0.0, %v6751
        %v6753 = vpop.f32.mrf.mxu0
        %v6754 = vadd.f32 0.0, %v6753
        %6755 = vmatmul.bf16.gmra.mxu0 %v6688
        %v6756 = vpop.f32.mrf.mxu0
        %v6757 = vadd.f32 0.0, %v6756
        %v6758 = vpop.f32.mrf.mxu0
        %v6759 = vadd.f32 0.0, %v6758
        %6760 = vmatmul.bf16.gmra.mxu0 %v6691
        %v6761 = vpop.f32.mrf.mxu0
        %v6762 = vadd.f32 0.0, %v6761
        %v6763 = vpop.f32.mrf.mxu0
        %v6764 = vadd.f32 0.0, %v6763
        %6765 = vmatmul.bf16.gmra.mxu0 %v6694
        %v6766 = vpop.f32.mrf.mxu0
        %v6767 = vadd.f32 0.0, %v6766
        %v6768 = vpop.f32.mrf.mxu0
        %v6769 = vadd.f32 0.0, %v6768
        %6770 = vmatmul.bf16.gmra.mxu0 %v6697
        %v6771 = vpop.f32.mrf.mxu0
        %v6772 = vadd.f32 0.0, %v6771
        %v6773 = vpop.f32.mrf.mxu0
        %v6774 = vadd.f32 0.0, %v6773
        %6775 = vmatmul.bf16.gmra.mxu0 %v6700
        %v6776 = vpop.f32.mrf.mxu0
        %v6777 = vadd.f32 0.0, %v6776
        %v6778 = vpop.f32.mrf.mxu0
        %v6779 = vadd.f32 0.0, %v6778
        %6780 = vmatmul.bf16.gmra.mxu0 %v6703
        %v6781 = vpop.f32.mrf.mxu0
        %v6782 = vadd.f32 0.0, %v6781
        %v6783 = vpop.f32.mrf.mxu0
        %v6784 = vadd.f32 0.0, %v6783
        %6785 = vmatmul.bf16.gmra.mxu0 %v6706
        %v6786 = vpop.f32.mrf.mxu0
        %v6787 = vadd.f32 0.0, %v6786
        %v6788 = vpop.f32.mrf.mxu0
        %v6789 = vadd.f32 0.0, %v6788
        %6790 = vmatmul.bf16.gmra.mxu0 %v6709
        %v6791 = vpop.f32.mrf.mxu0
        %v6792 = vadd.f32 0.0, %v6791
        %v6793 = vpop.f32.mrf.mxu0
        %v6794 = vadd.f32 0.0, %v6793
        %6795 = vmatmul.bf16.gmra.mxu0 %v6712
        %v6796 = vpop.f32.mrf.mxu0
        %v6797 = vadd.f32 0.0, %v6796
        %v6798 = vpop.f32.mrf.mxu0
        %v6799 = vadd.f32 0.0, %v6798
        %6800 = vmatmul.bf16.gmra.mxu0 %v6715
        %v6801 = vpop.f32.mrf.mxu0
        %v6802 = vadd.f32 0.0, %v6801
        %v6803 = vpop.f32.mrf.mxu0
        %v6804 = vadd.f32 0.0, %v6803
        %6805 = vdwg.mxu0
        %v6806 = vadd.f32 %v6196, %v6727
        %v6807 = vadd.f32 %v6197, %v6729
        %v6808 = vadd.f32 %v6198, %v6732
        %v6809 = vadd.f32 %v6199, %v6734
        %v6810 = vadd.f32 %v6200, %v6737
        %v6811 = vadd.f32 %v6201, %v6739
        %v6812 = vadd.f32 %v6202, %v6742
        %v6813 = vadd.f32 %v6203, %v6744
        %v6814 = vadd.f32 %v6204, %v6747
        %v6815 = vadd.f32 %v6205, %v6749
        %v6816 = vadd.f32 %v6206, %v6752
        %v6817 = vadd.f32 %v6207, %v6754
        %v6818 = vadd.f32 %v6208, %v6757
        %v6819 = vadd.f32 %v6209, %v6759
        %v6820 = vadd.f32 %v6210, %v6762
        %v6821 = vadd.f32 %v6211, %v6764
        %v6822 = vadd.f32 %v6212, %v6767
        %v6823 = vadd.f32 %v6213, %v6769
        %v6824 = vadd.f32 %v6214, %v6772
        %v6825 = vadd.f32 %v6215, %v6774
        %v6826 = vadd.f32 %v6216, %v6777
        %v6827 = vadd.f32 %v6217, %v6779
        %v6828 = vadd.f32 %v6218, %v6782
        %v6829 = vadd.f32 %v6219, %v6784
        %v6830 = vadd.f32 %v6220, %v6787
        %v6831 = vadd.f32 %v6221, %v6789
        %v6832 = vadd.f32 %v6222, %v6792
        %v6833 = vadd.f32 %v6223, %v6794
        %v6834 = vadd.f32 %v6224, %v6797
        %v6835 = vadd.f32 %v6225, %v6799
        %v6836 = vadd.f32 %v6226, %v6802
        %v6837 = vadd.f32 %v6227, %v6804
        %v6838 = vld [vmem:[%s4877] sm:$0xc]
        %v6839 = vld [vmem:[%s4877 + $0xc] sm:$0xc]
        %v6840 = vld [vmem:[%s4877 + $0x18] sm:$0xc]
        %v6841 = vld [vmem:[%s4877 + $0x24] sm:$0xc]
        %v6842 = vld [vmem:[%s4877 + $0x30] sm:$0xc]
        %v6843 = vld [vmem:[%s4877 + $0x3c] sm:$0xc]
        %v6844 = vld [vmem:[%s4877 + $0x48] sm:$0xc]
        %v6845 = vld [vmem:[%s4877 + $0x54] sm:$0xc]
        %v6846 = vld [vmem:[%s4877 + $0x60] sm:$0xc]
        %v6847 = vld [vmem:[%s4877 + $0x6c] sm:$0xc]
        %v6848 = vld [vmem:[%s4877 + $0x78] sm:$0xc]
        %v6849 = vld [vmem:[%s4877 + $0x84] sm:$0xc]
        %v6850 = vld [vmem:[%s4877 + $0x90] sm:$0xc]
        %v6851 = vld [vmem:[%s4877 + $0x9c] sm:$0xc]
        %v6852 = vld [vmem:[%s4877 + $0xa8] sm:$0xc]
        %v6853 = vld [vmem:[%s4877 + $0xb4] sm:$0xc]
        %v6886 = vrot.slane %v6838, 6
        %v6887 = vrot.slane %v6886, 4
        %v6888 = vrot.slane %v5169, 6
        %v6889 = vsel %vm2191, %v6887, %v6888
        %v6890 = vrot.slane %v6888, 4
        %v6891 = vrot.slane %v6228, 6
        %v6892 = vsel %vm2191, %v6890, %v6891
        %v6893 = vrot.slane %v6839, 6
        %v6894 = vrot.slane %v6893, 4
        %v6895 = vrot.slane %v5172, 6
        %v6896 = vsel %vm2191, %v6894, %v6895
        %v6897 = vrot.slane %v6895, 4
        %v6898 = vrot.slane %v6229, 6
        %v6899 = vsel %vm2191, %v6897, %v6898
        %v6900 = vrot.slane %v6840, 6
        %v6901 = vrot.slane %v6900, 4
        %v6902 = vrot.slane %v5175, 6
        %v6903 = vsel %vm2191, %v6901, %v6902
        %v6904 = vrot.slane %v6902, 4
        %v6905 = vrot.slane %v6230, 6
        %v6906 = vsel %vm2191, %v6904, %v6905
        %v6907 = vrot.slane %v6841, 6
        %v6908 = vrot.slane %v6907, 4
        %v6909 = vrot.slane %v5178, 6
        %v6910 = vsel %vm2191, %v6908, %v6909
        %v6911 = vrot.slane %v6909, 4
        %v6912 = vrot.slane %v6231, 6
        %v6913 = vsel %vm2191, %v6911, %v6912
        %v6914 = vrot.slane %v6842, 6
        %v6915 = vrot.slane %v6914, 4
        %v6916 = vrot.slane %v5181, 6
        %v6917 = vsel %vm2191, %v6915, %v6916
        %v6918 = vrot.slane %v6916, 4
        %v6919 = vrot.slane %v6232, 6
        %v6920 = vsel %vm2191, %v6918, %v6919
        %v6921 = vrot.slane %v6843, 6
        %v6922 = vrot.slane %v6921, 4
        %v6923 = vrot.slane %v5184, 6
        %v6924 = vsel %vm2191, %v6922, %v6923
        %v6925 = vrot.slane %v6923, 4
        %v6926 = vrot.slane %v6233, 6
        %v6927 = vsel %vm2191, %v6925, %v6926
        %v6928 = vrot.slane %v6844, 6
        %v6929 = vrot.slane %v6928, 4
        %v6930 = vrot.slane %v5187, 6
        %v6931 = vsel %vm2191, %v6929, %v6930
        %v6932 = vrot.slane %v6930, 4
        %v6933 = vrot.slane %v6234, 6
        %v6934 = vsel %vm2191, %v6932, %v6933
        %v6935 = vrot.slane %v6845, 6
        %v6936 = vrot.slane %v6935, 4
        %v6937 = vrot.slane %v5190, 6
        %v6938 = vsel %vm2191, %v6936, %v6937
        %v6939 = vrot.slane %v6937, 4
        %v6940 = vrot.slane %v6235, 6
        %v6941 = vsel %vm2191, %v6939, %v6940
        %v6942 = vrot.slane %v6846, 6
        %v6943 = vrot.slane %v6942, 4
        %v6944 = vrot.slane %v5193, 6
        %v6945 = vsel %vm2191, %v6943, %v6944
        %v6946 = vrot.slane %v6944, 4
        %v6947 = vrot.slane %v6236, 6
        %v6948 = vsel %vm2191, %v6946, %v6947
        %v6949 = vrot.slane %v6847, 6
        %v6950 = vrot.slane %v6949, 4
        %v6951 = vrot.slane %v5196, 6
        %v6952 = vsel %vm2191, %v6950, %v6951
        %v6953 = vrot.slane %v6951, 4
        %v6954 = vrot.slane %v6237, 6
        %v6955 = vsel %vm2191, %v6953, %v6954
        %v6956 = vrot.slane %v6848, 6
        %v6957 = vrot.slane %v6956, 4
        %v6958 = vrot.slane %v5199, 6
        %v6959 = vsel %vm2191, %v6957, %v6958
        %v6960 = vrot.slane %v6958, 4
        %v6961 = vrot.slane %v6238, 6
        %v6962 = vsel %vm2191, %v6960, %v6961
        %v6963 = vrot.slane %v6849, 6
        %v6964 = vrot.slane %v6963, 4
        %v6965 = vrot.slane %v5202, 6
        %v6966 = vsel %vm2191, %v6964, %v6965
        %v6967 = vrot.slane %v6965, 4
        %v6968 = vrot.slane %v6239, 6
        %v6969 = vsel %vm2191, %v6967, %v6968
        %v6970 = vrot.slane %v6850, 6
        %v6971 = vrot.slane %v6970, 4
        %v6972 = vrot.slane %v5205, 6
        %v6973 = vsel %vm2191, %v6971, %v6972
        %v6974 = vrot.slane %v6972, 4
        %v6975 = vrot.slane %v6240, 6
        %v6976 = vsel %vm2191, %v6974, %v6975
        %v6977 = vrot.slane %v6851, 6
        %v6978 = vrot.slane %v6977, 4
        %v6979 = vrot.slane %v5208, 6
        %v6980 = vsel %vm2191, %v6978, %v6979
        %v6981 = vrot.slane %v6979, 4
        %v6982 = vrot.slane %v6241, 6
        %v6983 = vsel %vm2191, %v6981, %v6982
        %v6984 = vrot.slane %v6852, 6
        %v6985 = vrot.slane %v6984, 4
        %v6986 = vrot.slane %v5211, 6
        %v6987 = vsel %vm2191, %v6985, %v6986
        %v6988 = vrot.slane %v6986, 4
        %v6989 = vrot.slane %v6242, 6
        %v6990 = vsel %vm2191, %v6988, %v6989
        %v6991 = vrot.slane %v6853, 6
        %v6992 = vrot.slane %v6991, 4
        %v6993 = vrot.slane %v5214, 6
        %v6994 = vsel %vm2191, %v6992, %v6993
        %v6995 = vrot.slane %v6993, 4
        %v6996 = vrot.slane %v6243, 6
        %v6997 = vsel %vm2191, %v6995, %v6996
        %s6998 = scalar_lea.vmem %s270, 112
        %v6999 = vld [vmem:[%s6998] sm:$0xf]
        %v7000 = vld [vmem:[%s6998 + $0x4] sm:$0xf]
        %v7001 = vunpack.c.l.b16 %v6889
        %v7002 = vunpack.c.l.b16 %v6892
        %v7003 = vunpack.c.l.b16 %v6896
        %v7004 = vunpack.c.l.b16 %v6899
        %v7005 = vunpack.c.l.b16 %v6903
        %v7006 = vunpack.c.l.b16 %v6906
        %v7007 = vunpack.c.l.b16 %v6910
        %v7008 = vunpack.c.l.b16 %v6913
        %v7009 = vunpack.c.l.b16 %v6917
        %v7010 = vunpack.c.l.b16 %v6920
        %v7011 = vunpack.c.l.b16 %v6924
        %v7012 = vunpack.c.l.b16 %v6927
        %v7013 = vunpack.c.l.b16 %v6931
        %v7014 = vunpack.c.l.b16 %v6934
        %v7015 = vunpack.c.l.b16 %v6938
        %v7016 = vunpack.c.l.b16 %v6941
        %v7017 = vunpack.c.l.b16 %v6945
        %v7018 = vunpack.c.l.b16 %v6948
        %v7019 = vunpack.c.l.b16 %v6952
        %v7020 = vunpack.c.l.b16 %v6955
        %v7021 = vunpack.c.l.b16 %v6959
        %v7022 = vunpack.c.l.b16 %v6962
        %v7023 = vunpack.c.l.b16 %v6966
        %v7024 = vunpack.c.l.b16 %v6969
        %v7025 = vunpack.c.l.b16 %v6973
        %v7026 = vunpack.c.l.b16 %v6976
        %v7027 = vunpack.c.l.b16 %v6980
        %v7028 = vunpack.c.l.b16 %v6983
        %v7029 = vunpack.c.l.b16 %v6987
        %v7030 = vunpack.c.l.b16 %v6990
        %v7031 = vunpack.c.l.b16 %v6994
        %v7032 = vunpack.c.l.b16 %v6997
        %v7033 = vpack.c.b16 %v7002, %v7001
        %v7034 = vpack.c.b16 %v7004, %v7003
        %v7035 = vpack.c.b16 %v7006, %v7005
        %v7036 = vpack.c.b16 %v7008, %v7007
        %v7037 = vpack.c.b16 %v7010, %v7009
        %v7038 = vpack.c.b16 %v7012, %v7011
        %v7039 = vpack.c.b16 %v7014, %v7013
        %v7040 = vpack.c.b16 %v7016, %v7015
        %v7041 = vpack.c.b16 %v7018, %v7017
        %v7042 = vpack.c.b16 %v7020, %v7019
        %v7043 = vpack.c.b16 %v7022, %v7021
        %v7044 = vpack.c.b16 %v7024, %v7023
        %v7045 = vpack.c.b16 %v7026, %v7025
        %v7046 = vpack.c.b16 %v7028, %v7027
        %v7047 = vpack.c.b16 %v7030, %v7029
        %v7048 = vpack.c.b16 %v7032, %v7031
        %v7051 = vunpack.c.l.b16 %v6999
        %v7052 = vunpack.c.l.b16 %v7000
        %v7053 = vpack.c.b16 %v7052, %v7051
        %v7056 = vsel %vm778, %v7033, 0
        %v7059 = vsel %vm778, %v7034, 0
        %v7062 = vsel %vm778, %v7035, 0
        %v7065 = vsel %vm778, %v7036, 0
        %v7068 = vsel %vm778, %v7037, 0
        %v7071 = vsel %vm778, %v7038, 0
        %v7074 = vsel %vm778, %v7039, 0
        %v7077 = vsel %vm778, %v7040, 0
        %v7080 = vsel %vm778, %v7041, 0
        %v7083 = vsel %vm778, %v7042, 0
        %v7086 = vsel %vm778, %v7043, 0
        %v7089 = vsel %vm778, %v7044, 0
        %v7092 = vsel %vm778, %v7045, 0
        %v7095 = vsel %vm778, %v7046, 0
        %v7098 = vsel %vm778, %v7047, 0
        %v7101 = vsel %vm778, %v7048, 0
        %7103 = vmatpush.bf16.msra.mxu0 0
        %7104 = vmatpush.bf16.msra.mxu0 0
        %7105 = vmatpush.bf16.msra.mxu0 0
        %7106 = vmatpush.bf16.msra.mxu0 0
        %7107 = vmatpush.bf16.msra.mxu0 0
        %7108 = vmatpush.bf16.msra.mxu0 0
        %7109 = vmatpush.bf16.msra.mxu0 0
        %7110 = vmatpush.bf16.msra.mxu0 %v7053
        %7111 = vmatmul.bf16.gmra.mxu0 %v7056
        %v7112 = vpop.f32.mrf.mxu0
        %v7113 = vadd.f32 0.0, %v7112
        %v7114 = vpop.f32.mrf.mxu0
        %v7115 = vadd.f32 0.0, %v7114
        %7116 = vmatmul.bf16.gmra.mxu0 %v7059
        %v7117 = vpop.f32.mrf.mxu0
        %v7118 = vadd.f32 0.0, %v7117
        %v7119 = vpop.f32.mrf.mxu0
        %v7120 = vadd.f32 0.0, %v7119
        %7121 = vmatmul.bf16.gmra.mxu0 %v7062
        %v7122 = vpop.f32.mrf.mxu0
        %v7123 = vadd.f32 0.0, %v7122
        %v7124 = vpop.f32.mrf.mxu0
        %v7125 = vadd.f32 0.0, %v7124
        %7126 = vmatmul.bf16.gmra.mxu0 %v7065
        %v7127 = vpop.f32.mrf.mxu0
        %v7128 = vadd.f32 0.0, %v7127
        %v7129 = vpop.f32.mrf.mxu0
        %v7130 = vadd.f32 0.0, %v7129
        %7131 = vmatmul.bf16.gmra.mxu0 %v7068
        %v7132 = vpop.f32.mrf.mxu0
        %v7133 = vadd.f32 0.0, %v7132
        %v7134 = vpop.f32.mrf.mxu0
        %v7135 = vadd.f32 0.0, %v7134
        %7136 = vmatmul.bf16.gmra.mxu0 %v7071
        %v7137 = vpop.f32.mrf.mxu0
        %v7138 = vadd.f32 0.0, %v7137
        %v7139 = vpop.f32.mrf.mxu0
        %v7140 = vadd.f32 0.0, %v7139
        %7141 = vmatmul.bf16.gmra.mxu0 %v7074
        %v7142 = vpop.f32.mrf.mxu0
        %v7143 = vadd.f32 0.0, %v7142
        %v7144 = vpop.f32.mrf.mxu0
        %v7145 = vadd.f32 0.0, %v7144
        %7146 = vmatmul.bf16.gmra.mxu0 %v7077
        %v7147 = vpop.f32.mrf.mxu0
        %v7148 = vadd.f32 0.0, %v7147
        %v7149 = vpop.f32.mrf.mxu0
        %v7150 = vadd.f32 0.0, %v7149
        %7151 = vmatmul.bf16.gmra.mxu0 %v7080
        %v7152 = vpop.f32.mrf.mxu0
        %v7153 = vadd.f32 0.0, %v7152
        %v7154 = vpop.f32.mrf.mxu0
        %v7155 = vadd.f32 0.0, %v7154
        %7156 = vmatmul.bf16.gmra.mxu0 %v7083
        %v7157 = vpop.f32.mrf.mxu0
        %v7158 = vadd.f32 0.0, %v7157
        %v7159 = vpop.f32.mrf.mxu0
        %v7160 = vadd.f32 0.0, %v7159
        %7161 = vmatmul.bf16.gmra.mxu0 %v7086
        %v7162 = vpop.f32.mrf.mxu0
        %v7163 = vadd.f32 0.0, %v7162
        %v7164 = vpop.f32.mrf.mxu0
        %v7165 = vadd.f32 0.0, %v7164
        %7166 = vmatmul.bf16.gmra.mxu0 %v7089
        %v7167 = vpop.f32.mrf.mxu0
        %v7168 = vadd.f32 0.0, %v7167
        %v7169 = vpop.f32.mrf.mxu0
        %v7170 = vadd.f32 0.0, %v7169
        %7171 = vmatmul.bf16.gmra.mxu0 %v7092
        %v7172 = vpop.f32.mrf.mxu0
        %v7173 = vadd.f32 0.0, %v7172
        %v7174 = vpop.f32.mrf.mxu0
        %v7175 = vadd.f32 0.0, %v7174
        %7176 = vmatmul.bf16.gmra.mxu0 %v7095
        %v7177 = vpop.f32.mrf.mxu0
        %v7178 = vadd.f32 0.0, %v7177
        %v7179 = vpop.f32.mrf.mxu0
        %v7180 = vadd.f32 0.0, %v7179
        %7181 = vmatmul.bf16.gmra.mxu0 %v7098
        %v7182 = vpop.f32.mrf.mxu0
        %v7183 = vadd.f32 0.0, %v7182
        %v7184 = vpop.f32.mrf.mxu0
        %v7185 = vadd.f32 0.0, %v7184
        %7186 = vmatmul.bf16.gmra.mxu0 %v7101
        %v7187 = vpop.f32.mrf.mxu0
        %v7188 = vadd.f32 0.0, %v7187
        %v7189 = vpop.f32.mrf.mxu0
        %v7190 = vadd.f32 0.0, %v7189
        %7191 = vdwg.mxu0
        %v7192 = vadd.f32 %v6806, %v7113
        %v7193 = vadd.f32 %v6807, %v7115
        %v7194 = vadd.f32 %v6808, %v7118
        %v7195 = vadd.f32 %v6809, %v7120
        %v7196 = vadd.f32 %v6810, %v7123
        %v7197 = vadd.f32 %v6811, %v7125
        %v7198 = vadd.f32 %v6812, %v7128
        %v7199 = vadd.f32 %v6813, %v7130
        %v7200 = vadd.f32 %v6814, %v7133
        %v7201 = vadd.f32 %v6815, %v7135
        %v7202 = vadd.f32 %v6816, %v7138
        %v7203 = vadd.f32 %v6817, %v7140
        %v7204 = vadd.f32 %v6818, %v7143
        %v7205 = vadd.f32 %v6819, %v7145
        %v7206 = vadd.f32 %v6820, %v7148
        %v7207 = vadd.f32 %v6821, %v7150
        %v7208 = vadd.f32 %v6822, %v7153
        %v7209 = vadd.f32 %v6823, %v7155
        %v7210 = vadd.f32 %v6824, %v7158
        %v7211 = vadd.f32 %v6825, %v7160
        %v7212 = vadd.f32 %v6826, %v7163
        %v7213 = vadd.f32 %v6827, %v7165
        %v7214 = vadd.f32 %v6828, %v7168
        %v7215 = vadd.f32 %v6829, %v7170
        %v7216 = vadd.f32 %v6830, %v7173
        %v7217 = vadd.f32 %v6831, %v7175
        %v7218 = vadd.f32 %v6832, %v7178
        %v7219 = vadd.f32 %v6833, %v7180
        %v7220 = vadd.f32 %v6834, %v7183
        %v7221 = vadd.f32 %v6835, %v7185
        %v7222 = vadd.f32 %v6836, %v7188
        %v7223 = vadd.f32 %v6837, %v7190
        %s7224 = scalar_lea.vmem %s266, 36
        %v7225 = vld [vmem:[%s7224] sm:$0xf]
        %v7226 = vld [vmem:[%s7224 + $0x4] sm:$0xf]
        %v7227 = vld [vmem:[%s7224 + $0xc] sm:$0xf]
        %v7228 = vld [vmem:[%s7224 + $0x10] sm:$0xf]
        %v7229 = vld [vmem:[%s7224 + $0x18] sm:$0xf]
        %v7230 = vld [vmem:[%s7224 + $0x1c] sm:$0xf]
        %v7231 = vld [vmem:[%s7224 + $0x24] sm:$0xf]
        %v7232 = vld [vmem:[%s7224 + $0x28] sm:$0xf]
        %v7233 = vld [vmem:[%s7224 + $0x30] sm:$0xf]
        %v7234 = vld [vmem:[%s7224 + $0x34] sm:$0xf]
        %v7235 = vld [vmem:[%s7224 + $0x3c] sm:$0xf]
        %v7236 = vld [vmem:[%s7224 + $0x40] sm:$0xf]
        %v7237 = vld [vmem:[%s7224 + $0x48] sm:$0xf]
        %v7238 = vld [vmem:[%s7224 + $0x4c] sm:$0xf]
        %v7239 = vld [vmem:[%s7224 + $0x54] sm:$0xf]
        %v7240 = vld [vmem:[%s7224 + $0x58] sm:$0xf]
        %v7241 = vld [vmem:[%s7224 + $0x60] sm:$0xf]
        %v7242 = vld [vmem:[%s7224 + $0x64] sm:$0xf]
        %v7243 = vld [vmem:[%s7224 + $0x6c] sm:$0xf]
        %v7244 = vld [vmem:[%s7224 + $0x70] sm:$0xf]
        %v7245 = vld [vmem:[%s7224 + $0x78] sm:$0xf]
        %v7246 = vld [vmem:[%s7224 + $0x7c] sm:$0xf]
        %v7247 = vld [vmem:[%s7224 + $0x84] sm:$0xf]
        %v7248 = vld [vmem:[%s7224 + $0x88] sm:$0xf]
        %v7249 = vld [vmem:[%s7224 + $0x90] sm:$0xf]
        %v7250 = vld [vmem:[%s7224 + $0x94] sm:$0xf]
        %v7251 = vld [vmem:[%s7224 + $0x9c] sm:$0xf]
        %v7252 = vld [vmem:[%s7224 + $0xa0] sm:$0xf]
        %v7253 = vld [vmem:[%s7224 + $0xa8] sm:$0xf]
        %v7254 = vld [vmem:[%s7224 + $0xac] sm:$0xf]
        %v7255 = vld [vmem:[%s7224 + $0xb4] sm:$0xf]
        %v7256 = vld [vmem:[%s7224 + $0xb8] sm:$0xf]
        %s7257 = scalar_lea.vmem %s270, 120
        %v7258 = vld [vmem:[%s7257] sm:$0xf]
        %v7259 = vld [vmem:[%s7257 + $0x4] sm:$0xf]
        %v7292 = vunpack.c.l.b16 %v7225
        %v7293 = vunpack.c.l.b16 %v7226
        %v7294 = vunpack.c.l.b16 %v7227
        %v7295 = vunpack.c.l.b16 %v7228
        %v7296 = vunpack.c.l.b16 %v7229
        %v7297 = vunpack.c.l.b16 %v7230
        %v7298 = vunpack.c.l.b16 %v7231
        %v7299 = vunpack.c.l.b16 %v7232
        %v7300 = vunpack.c.l.b16 %v7233
        %v7301 = vunpack.c.l.b16 %v7234
        %v7302 = vunpack.c.l.b16 %v7235
        %v7303 = vunpack.c.l.b16 %v7236
        %v7304 = vunpack.c.l.b16 %v7237
        %v7305 = vunpack.c.l.b16 %v7238
        %v7306 = vunpack.c.l.b16 %v7239
        %v7307 = vunpack.c.l.b16 %v7240
        %v7308 = vunpack.c.l.b16 %v7241
        %v7309 = vunpack.c.l.b16 %v7242
        %v7310 = vunpack.c.l.b16 %v7243
        %v7311 = vunpack.c.l.b16 %v7244
        %v7312 = vunpack.c.l.b16 %v7245
        %v7313 = vunpack.c.l.b16 %v7246
        %v7314 = vunpack.c.l.b16 %v7247
        %v7315 = vunpack.c.l.b16 %v7248
        %v7316 = vunpack.c.l.b16 %v7249
        %v7317 = vunpack.c.l.b16 %v7250
        %v7318 = vunpack.c.l.b16 %v7251
        %v7319 = vunpack.c.l.b16 %v7252
        %v7320 = vunpack.c.l.b16 %v7253
        %v7321 = vunpack.c.l.b16 %v7254
        %v7322 = vunpack.c.l.b16 %v7255
        %v7323 = vunpack.c.l.b16 %v7256
        %v7324 = vpack.c.b16 %v7293, %v7292
        %v7325 = vpack.c.b16 %v7295, %v7294
        %v7326 = vpack.c.b16 %v7297, %v7296
        %v7327 = vpack.c.b16 %v7299, %v7298
        %v7328 = vpack.c.b16 %v7301, %v7300
        %v7329 = vpack.c.b16 %v7303, %v7302
        %v7330 = vpack.c.b16 %v7305, %v7304
        %v7331 = vpack.c.b16 %v7307, %v7306
        %v7332 = vpack.c.b16 %v7309, %v7308
        %v7333 = vpack.c.b16 %v7311, %v7310
        %v7334 = vpack.c.b16 %v7313, %v7312
        %v7335 = vpack.c.b16 %v7315, %v7314
        %v7336 = vpack.c.b16 %v7317, %v7316
        %v7337 = vpack.c.b16 %v7319, %v7318
        %v7338 = vpack.c.b16 %v7321, %v7320
        %v7339 = vpack.c.b16 %v7323, %v7322
        %v7342 = vunpack.c.l.b16 %v7258
        %v7343 = vunpack.c.l.b16 %v7259
        %v7344 = vpack.c.b16 %v7343, %v7342
        %v7347 = vsel %vm778, %v7324, 0
        %v7350 = vsel %vm778, %v7325, 0
        %v7353 = vsel %vm778, %v7326, 0
        %v7356 = vsel %vm778, %v7327, 0
        %v7359 = vsel %vm778, %v7328, 0
        %v7362 = vsel %vm778, %v7329, 0
        %v7365 = vsel %vm778, %v7330, 0
        %v7368 = vsel %vm778, %v7331, 0
        %v7371 = vsel %vm778, %v7332, 0
        %v7374 = vsel %vm778, %v7333, 0
        %v7377 = vsel %vm778, %v7334, 0
        %v7380 = vsel %vm778, %v7335, 0
        %v7383 = vsel %vm778, %v7336, 0
        %v7386 = vsel %vm778, %v7337, 0
        %v7389 = vsel %vm778, %v7338, 0
        %v7392 = vsel %vm778, %v7339, 0
        %7394 = vmatpush.bf16.msra.mxu0 0
        %7395 = vmatpush.bf16.msra.mxu0 0
        %7396 = vmatpush.bf16.msra.mxu0 0
        %7397 = vmatpush.bf16.msra.mxu0 0
        %7398 = vmatpush.bf16.msra.mxu0 0
        %7399 = vmatpush.bf16.msra.mxu0 0
        %7400 = vmatpush.bf16.msra.mxu0 0
        %7401 = vmatpush.bf16.msra.mxu0 %v7344
        %7402 = vmatmul.bf16.gmra.mxu0 %v7347
        %v7403 = vpop.f32.mrf.mxu0
        %v7404 = vadd.f32 0.0, %v7403
        %v7405 = vpop.f32.mrf.mxu0
        %v7406 = vadd.f32 0.0, %v7405
        %7407 = vmatmul.bf16.gmra.mxu0 %v7350
        %v7408 = vpop.f32.mrf.mxu0
        %v7409 = vadd.f32 0.0, %v7408
        %v7410 = vpop.f32.mrf.mxu0
        %v7411 = vadd.f32 0.0, %v7410
        %7412 = vmatmul.bf16.gmra.mxu0 %v7353
        %v7413 = vpop.f32.mrf.mxu0
        %v7414 = vadd.f32 0.0, %v7413
        %v7415 = vpop.f32.mrf.mxu0
        %v7416 = vadd.f32 0.0, %v7415
        %7417 = vmatmul.bf16.gmra.mxu0 %v7356
        %v7418 = vpop.f32.mrf.mxu0
        %v7419 = vadd.f32 0.0, %v7418
        %v7420 = vpop.f32.mrf.mxu0
        %v7421 = vadd.f32 0.0, %v7420
        %7422 = vmatmul.bf16.gmra.mxu0 %v7359
        %v7423 = vpop.f32.mrf.mxu0
        %v7424 = vadd.f32 0.0, %v7423
        %v7425 = vpop.f32.mrf.mxu0
        %v7426 = vadd.f32 0.0, %v7425
        %7427 = vmatmul.bf16.gmra.mxu0 %v7362
        %v7428 = vpop.f32.mrf.mxu0
        %v7429 = vadd.f32 0.0, %v7428
        %v7430 = vpop.f32.mrf.mxu0
        %v7431 = vadd.f32 0.0, %v7430
        %7432 = vmatmul.bf16.gmra.mxu0 %v7365
        %v7433 = vpop.f32.mrf.mxu0
        %v7434 = vadd.f32 0.0, %v7433
        %v7435 = vpop.f32.mrf.mxu0
        %v7436 = vadd.f32 0.0, %v7435
        %7437 = vmatmul.bf16.gmra.mxu0 %v7368
        %v7438 = vpop.f32.mrf.mxu0
        %v7439 = vadd.f32 0.0, %v7438
        %v7440 = vpop.f32.mrf.mxu0
        %v7441 = vadd.f32 0.0, %v7440
        %7442 = vmatmul.bf16.gmra.mxu0 %v7371
        %v7443 = vpop.f32.mrf.mxu0
        %v7444 = vadd.f32 0.0, %v7443
        %v7445 = vpop.f32.mrf.mxu0
        %v7446 = vadd.f32 0.0, %v7445
        %7447 = vmatmul.bf16.gmra.mxu0 %v7374
        %v7448 = vpop.f32.mrf.mxu0
        %v7449 = vadd.f32 0.0, %v7448
        %v7450 = vpop.f32.mrf.mxu0
        %v7451 = vadd.f32 0.0, %v7450
        %7452 = vmatmul.bf16.gmra.mxu0 %v7377
        %v7453 = vpop.f32.mrf.mxu0
        %v7454 = vadd.f32 0.0, %v7453
        %v7455 = vpop.f32.mrf.mxu0
        %v7456 = vadd.f32 0.0, %v7455
        %7457 = vmatmul.bf16.gmra.mxu0 %v7380
        %v7458 = vpop.f32.mrf.mxu0
        %v7459 = vadd.f32 0.0, %v7458
        %v7460 = vpop.f32.mrf.mxu0
        %v7461 = vadd.f32 0.0, %v7460
        %7462 = vmatmul.bf16.gmra.mxu0 %v7383
        %v7463 = vpop.f32.mrf.mxu0
        %v7464 = vadd.f32 0.0, %v7463
        %v7465 = vpop.f32.mrf.mxu0
        %v7466 = vadd.f32 0.0, %v7465
        %7467 = vmatmul.bf16.gmra.mxu0 %v7386
        %v7468 = vpop.f32.mrf.mxu0
        %v7469 = vadd.f32 0.0, %v7468
        %v7470 = vpop.f32.mrf.mxu0
        %v7471 = vadd.f32 0.0, %v7470
        %7472 = vmatmul.bf16.gmra.mxu0 %v7389
        %v7473 = vpop.f32.mrf.mxu0
        %v7474 = vadd.f32 0.0, %v7473
        %v7475 = vpop.f32.mrf.mxu0
        %v7476 = vadd.f32 0.0, %v7475
        %7477 = vmatmul.bf16.gmra.mxu0 %v7392
        %v7478 = vpop.f32.mrf.mxu0
        %v7479 = vadd.f32 0.0, %v7478
        %v7480 = vpop.f32.mrf.mxu0
        %v7481 = vadd.f32 0.0, %v7480
        %7482 = vdwg.mxu0
        %v7483 = vadd.f32 %v7192, %v7404
        %v7484 = vadd.f32 %v7193, %v7406
        %v7485 = vadd.f32 %v7194, %v7409
        %v7486 = vadd.f32 %v7195, %v7411
        %v7487 = vadd.f32 %v7196, %v7414
        %v7488 = vadd.f32 %v7197, %v7416
        %v7489 = vadd.f32 %v7198, %v7419
        %v7490 = vadd.f32 %v7199, %v7421
        %v7491 = vadd.f32 %v7200, %v7424
        %v7492 = vadd.f32 %v7201, %v7426
        %v7493 = vadd.f32 %v7202, %v7429
        %v7494 = vadd.f32 %v7203, %v7431
        %v7495 = vadd.f32 %v7204, %v7434
        %v7496 = vadd.f32 %v7205, %v7436
        %v7497 = vadd.f32 %v7206, %v7439
        %v7498 = vadd.f32 %v7207, %v7441
        %v7499 = vadd.f32 %v7208, %v7444
        %v7500 = vadd.f32 %v7209, %v7446
        %v7501 = vadd.f32 %v7210, %v7449
        %v7502 = vadd.f32 %v7211, %v7451
        %v7503 = vadd.f32 %v7212, %v7454
        %v7504 = vadd.f32 %v7213, %v7456
        %v7505 = vadd.f32 %v7214, %v7459
        %v7506 = vadd.f32 %v7215, %v7461
        %v7507 = vadd.f32 %v7216, %v7464
        %v7508 = vadd.f32 %v7217, %v7466
        %v7509 = vadd.f32 %v7218, %v7469
        %v7510 = vadd.f32 %v7219, %v7471
        %v7511 = vadd.f32 %v7220, %v7474
        %v7512 = vadd.f32 %v7221, %v7476
        %v7513 = vadd.f32 %v7222, %v7479
        %v7514 = vadd.f32 %v7223, %v7481
        %v7515 = vld [vmem:[%s7224] sm:$0xf]
        %v7516 = vld [vmem:[%s7224 + $0x4] sm:$0xf]
        %v7517 = vld [vmem:[%s7224 + $0x8] sm:$0x1]
        %v7518 = vld [vmem:[%s7224 + $0xc] sm:$0xf]
        %v7519 = vld [vmem:[%s7224 + $0x10] sm:$0xf]
        %v7520 = vld [vmem:[%s7224 + $0x14] sm:$0x1]
        %v7521 = vld [vmem:[%s7224 + $0x18] sm:$0xf]
        %v7522 = vld [vmem:[%s7224 + $0x1c] sm:$0xf]
        %v7523 = vld [vmem:[%s7224 + $0x20] sm:$0x1]
        %v7524 = vld [vmem:[%s7224 + $0x24] sm:$0xf]
        %v7525 = vld [vmem:[%s7224 + $0x28] sm:$0xf]
        %v7526 = vld [vmem:[%s7224 + $0x2c] sm:$0x1]
        %v7527 = vld [vmem:[%s7224 + $0x30] sm:$0xf]
        %v7528 = vld [vmem:[%s7224 + $0x34] sm:$0xf]
        %v7529 = vld [vmem:[%s7224 + $0x38] sm:$0x1]
        %v7530 = vld [vmem:[%s7224 + $0x3c] sm:$0xf]
        %v7531 = vld [vmem:[%s7224 + $0x40] sm:$0xf]
        %v7532 = vld [vmem:[%s7224 + $0x44] sm:$0x1]
        %v7533 = vld [vmem:[%s7224 + $0x48] sm:$0xf]
        %v7534 = vld [vmem:[%s7224 + $0x4c] sm:$0xf]
        %v7535 = vld [vmem:[%s7224 + $0x50] sm:$0x1]
        %v7536 = vld [vmem:[%s7224 + $0x54] sm:$0xf]
        %v7537 = vld [vmem:[%s7224 + $0x58] sm:$0xf]
        %v7538 = vld [vmem:[%s7224 + $0x5c] sm:$0x1]
        %v7539 = vld [vmem:[%s7224 + $0x60] sm:$0xf]
        %v7540 = vld [vmem:[%s7224 + $0x64] sm:$0xf]
        %v7541 = vld [vmem:[%s7224 + $0x68] sm:$0x1]
        %v7542 = vld [vmem:[%s7224 + $0x6c] sm:$0xf]
        %v7543 = vld [vmem:[%s7224 + $0x70] sm:$0xf]
        %v7544 = vld [vmem:[%s7224 + $0x74] sm:$0x1]
        %v7545 = vld [vmem:[%s7224 + $0x78] sm:$0xf]
        %v7546 = vld [vmem:[%s7224 + $0x7c] sm:$0xf]
        %v7547 = vld [vmem:[%s7224 + $0x80] sm:$0x1]
        %v7548 = vld [vmem:[%s7224 + $0x84] sm:$0xf]
        %v7549 = vld [vmem:[%s7224 + $0x88] sm:$0xf]
        %v7550 = vld [vmem:[%s7224 + $0x8c] sm:$0x1]
        %v7551 = vld [vmem:[%s7224 + $0x90] sm:$0xf]
        %v7552 = vld [vmem:[%s7224 + $0x94] sm:$0xf]
        %v7553 = vld [vmem:[%s7224 + $0x98] sm:$0x1]
        %v7554 = vld [vmem:[%s7224 + $0x9c] sm:$0xf]
        %v7555 = vld [vmem:[%s7224 + $0xa0] sm:$0xf]
        %v7556 = vld [vmem:[%s7224 + $0xa4] sm:$0x1]
        %v7557 = vld [vmem:[%s7224 + $0xa8] sm:$0xf]
        %v7558 = vld [vmem:[%s7224 + $0xac] sm:$0xf]
        %v7559 = vld [vmem:[%s7224 + $0xb0] sm:$0x1]
        %v7560 = vld [vmem:[%s7224 + $0xb4] sm:$0xf]
        %v7561 = vld [vmem:[%s7224 + $0xb8] sm:$0xf]
        %v7562 = vld [vmem:[%s7224 + $0xbc] sm:$0x1]
        %v7564 = vshrl.u32 %v7515, 16
        %v7566 = vrot.slane %v7564, 4
        %v7567 = vshll.u32 %v7515, 16
        %v7569 = vrot.slane %v7567, 5
        %v7570 = vor.u32 %v7566, %v7569
        %v7571 = vrot.slane %v7570, 4
        %v7573 = vshll.u32 %v7516, 16
        %v7575 = vrot.slane %v7573, 5
        %v7576 = vsel %vm336, %v7571, %v7575
        %v7577 = vshrl.u32 %v7516, 16
        %v7579 = vrot.slane %v7577, 4
        %v7580 = vor.u32 %v7579, %v7575
        %v7581 = vrot.slane %v7580, 4
        %v7583 = vshll.u32 %v7517, 16
        %v7585 = vrot.slane %v7583, 5
        %v7586 = vsel %vm336, %v7581, %v7585
        %v7588 = vshrl.u32 %v7518, 16
        %v7590 = vrot.slane %v7588, 4
        %v7591 = vshll.u32 %v7518, 16
        %v7593 = vrot.slane %v7591, 5
        %v7594 = vor.u32 %v7590, %v7593
        %v7595 = vrot.slane %v7594, 4
        %v7597 = vshll.u32 %v7519, 16
        %v7599 = vrot.slane %v7597, 5
        %v7600 = vsel %vm336, %v7595, %v7599
        %v7601 = vshrl.u32 %v7519, 16
        %v7603 = vrot.slane %v7601, 4
        %v7604 = vor.u32 %v7603, %v7599
        %v7605 = vrot.slane %v7604, 4
        %v7607 = vshll.u32 %v7520, 16
        %v7609 = vrot.slane %v7607, 5
        %v7610 = vsel %vm336, %v7605, %v7609
        %v7612 = vshrl.u32 %v7521, 16
        %v7614 = vrot.slane %v7612, 4
        %v7615 = vshll.u32 %v7521, 16
        %v7617 = vrot.slane %v7615, 5
        %v7618 = vor.u32 %v7614, %v7617
        %v7619 = vrot.slane %v7618, 4
        %v7621 = vshll.u32 %v7522, 16
        %v7623 = vrot.slane %v7621, 5
        %v7624 = vsel %vm336, %v7619, %v7623
        %v7625 = vshrl.u32 %v7522, 16
        %v7627 = vrot.slane %v7625, 4
        %v7628 = vor.u32 %v7627, %v7623
        %v7629 = vrot.slane %v7628, 4
        %v7631 = vshll.u32 %v7523, 16
        %v7633 = vrot.slane %v7631, 5
        %v7634 = vsel %vm336, %v7629, %v7633
        %v7636 = vshrl.u32 %v7524, 16
        %v7638 = vrot.slane %v7636, 4
        %v7639 = vshll.u32 %v7524, 16
        %v7641 = vrot.slane %v7639, 5
        %v7642 = vor.u32 %v7638, %v7641
        %v7643 = vrot.slane %v7642, 4
        %v7645 = vshll.u32 %v7525, 16
        %v7647 = vrot.slane %v7645, 5
        %v7648 = vsel %vm336, %v7643, %v7647
        %v7649 = vshrl.u32 %v7525, 16
        %v7651 = vrot.slane %v7649, 4
        %v7652 = vor.u32 %v7651, %v7647
        %v7653 = vrot.slane %v7652, 4
        %v7655 = vshll.u32 %v7526, 16
        %v7657 = vrot.slane %v7655, 5
        %v7658 = vsel %vm336, %v7653, %v7657
        %v7660 = vshrl.u32 %v7527, 16
        %v7662 = vrot.slane %v7660, 4
        %v7663 = vshll.u32 %v7527, 16
        %v7665 = vrot.slane %v7663, 5
        %v7666 = vor.u32 %v7662, %v7665
        %v7667 = vrot.slane %v7666, 4
        %v7669 = vshll.u32 %v7528, 16
        %v7671 = vrot.slane %v7669, 5
        %v7672 = vsel %vm336, %v7667, %v7671
        %v7673 = vshrl.u32 %v7528, 16
        %v7675 = vrot.slane %v7673, 4
        %v7676 = vor.u32 %v7675, %v7671
        %v7677 = vrot.slane %v7676, 4
        %v7679 = vshll.u32 %v7529, 16
        %v7681 = vrot.slane %v7679, 5
        %v7682 = vsel %vm336, %v7677, %v7681
        %v7684 = vshrl.u32 %v7530, 16
        %v7686 = vrot.slane %v7684, 4
        %v7687 = vshll.u32 %v7530, 16
        %v7689 = vrot.slane %v7687, 5
        %v7690 = vor.u32 %v7686, %v7689
        %v7691 = vrot.slane %v7690, 4
        %v7693 = vshll.u32 %v7531, 16
        %v7695 = vrot.slane %v7693, 5
        %v7696 = vsel %vm336, %v7691, %v7695
        %v7697 = vshrl.u32 %v7531, 16
        %v7699 = vrot.slane %v7697, 4
        %v7700 = vor.u32 %v7699, %v7695
        %v7701 = vrot.slane %v7700, 4
        %v7703 = vshll.u32 %v7532, 16
        %v7705 = vrot.slane %v7703, 5
        %v7706 = vsel %vm336, %v7701, %v7705
        %v7708 = vshrl.u32 %v7533, 16
        %v7710 = vrot.slane %v7708, 4
        %v7711 = vshll.u32 %v7533, 16
        %v7713 = vrot.slane %v7711, 5
        %v7714 = vor.u32 %v7710, %v7713
        %v7715 = vrot.slane %v7714, 4
        %v7717 = vshll.u32 %v7534, 16
        %v7719 = vrot.slane %v7717, 5
        %v7720 = vsel %vm336, %v7715, %v7719
        %v7721 = vshrl.u32 %v7534, 16
        %v7723 = vrot.slane %v7721, 4
        %v7724 = vor.u32 %v7723, %v7719
        %v7725 = vrot.slane %v7724, 4
        %v7727 = vshll.u32 %v7535, 16
        %v7729 = vrot.slane %v7727, 5
        %v7730 = vsel %vm336, %v7725, %v7729
        %v7732 = vshrl.u32 %v7536, 16
        %v7734 = vrot.slane %v7732, 4
        %v7735 = vshll.u32 %v7536, 16
        %v7737 = vrot.slane %v7735, 5
        %v7738 = vor.u32 %v7734, %v7737
        %v7739 = vrot.slane %v7738, 4
        %v7741 = vshll.u32 %v7537, 16
        %v7743 = vrot.slane %v7741, 5
        %v7744 = vsel %vm336, %v7739, %v7743
        %v7745 = vshrl.u32 %v7537, 16
        %v7747 = vrot.slane %v7745, 4
        %v7748 = vor.u32 %v7747, %v7743
        %v7749 = vrot.slane %v7748, 4
        %v7751 = vshll.u32 %v7538, 16
        %v7753 = vrot.slane %v7751, 5
        %v7754 = vsel %vm336, %v7749, %v7753
        %v7756 = vshrl.u32 %v7539, 16
        %v7758 = vrot.slane %v7756, 4
        %v7759 = vshll.u32 %v7539, 16
        %v7761 = vrot.slane %v7759, 5
        %v7762 = vor.u32 %v7758, %v7761
        %v7763 = vrot.slane %v7762, 4
        %v7765 = vshll.u32 %v7540, 16
        %v7767 = vrot.slane %v7765, 5
        %v7768 = vsel %vm336, %v7763, %v7767
        %v7769 = vshrl.u32 %v7540, 16
        %v7771 = vrot.slane %v7769, 4
        %v7772 = vor.u32 %v7771, %v7767
        %v7773 = vrot.slane %v7772, 4
        %v7775 = vshll.u32 %v7541, 16
        %v7777 = vrot.slane %v7775, 5
        %v7778 = vsel %vm336, %v7773, %v7777
        %v7780 = vshrl.u32 %v7542, 16
        %v7782 = vrot.slane %v7780, 4
        %v7783 = vshll.u32 %v7542, 16
        %v7785 = vrot.slane %v7783, 5
        %v7786 = vor.u32 %v7782, %v7785
        %v7787 = vrot.slane %v7786, 4
        %v7789 = vshll.u32 %v7543, 16
        %v7791 = vrot.slane %v7789, 5
        %v7792 = vsel %vm336, %v7787, %v7791
        %v7793 = vshrl.u32 %v7543, 16
        %v7795 = vrot.slane %v7793, 4
        %v7796 = vor.u32 %v7795, %v7791
        %v7797 = vrot.slane %v7796, 4
        %v7799 = vshll.u32 %v7544, 16
        %v7801 = vrot.slane %v7799, 5
        %v7802 = vsel %vm336, %v7797, %v7801
        %v7804 = vshrl.u32 %v7545, 16
        %v7806 = vrot.slane %v7804, 4
        %v7807 = vshll.u32 %v7545, 16
        %v7809 = vrot.slane %v7807, 5
        %v7810 = vor.u32 %v7806, %v7809
        %v7811 = vrot.slane %v7810, 4
        %v7813 = vshll.u32 %v7546, 16
        %v7815 = vrot.slane %v7813, 5
        %v7816 = vsel %vm336, %v7811, %v7815
        %v7817 = vshrl.u32 %v7546, 16
        %v7819 = vrot.slane %v7817, 4
        %v7820 = vor.u32 %v7819, %v7815
        %v7821 = vrot.slane %v7820, 4
        %v7823 = vshll.u32 %v7547, 16
        %v7825 = vrot.slane %v7823, 5
        %v7826 = vsel %vm336, %v7821, %v7825
        %v7828 = vshrl.u32 %v7548, 16
        %v7830 = vrot.slane %v7828, 4
        %v7831 = vshll.u32 %v7548, 16
        %v7833 = vrot.slane %v7831, 5
        %v7834 = vor.u32 %v7830, %v7833
        %v7835 = vrot.slane %v7834, 4
        %v7837 = vshll.u32 %v7549, 16
        %v7839 = vrot.slane %v7837, 5
        %v7840 = vsel %vm336, %v7835, %v7839
        %v7841 = vshrl.u32 %v7549, 16
        %v7843 = vrot.slane %v7841, 4
        %v7844 = vor.u32 %v7843, %v7839
        %v7845 = vrot.slane %v7844, 4
        %v7847 = vshll.u32 %v7550, 16
        %v7849 = vrot.slane %v7847, 5
        %v7850 = vsel %vm336, %v7845, %v7849
        %v7852 = vshrl.u32 %v7551, 16
        %v7854 = vrot.slane %v7852, 4
        %v7855 = vshll.u32 %v7551, 16
        %v7857 = vrot.slane %v7855, 5
        %v7858 = vor.u32 %v7854, %v7857
        %v7859 = vrot.slane %v7858, 4
        %v7861 = vshll.u32 %v7552, 16
        %v7863 = vrot.slane %v7861, 5
        %v7864 = vsel %vm336, %v7859, %v7863
        %v7865 = vshrl.u32 %v7552, 16
        %v7867 = vrot.slane %v7865, 4
        %v7868 = vor.u32 %v7867, %v7863
        %v7869 = vrot.slane %v7868, 4
        %v7871 = vshll.u32 %v7553, 16
        %v7873 = vrot.slane %v7871, 5
        %v7874 = vsel %vm336, %v7869, %v7873
        %v7876 = vshrl.u32 %v7554, 16
        %v7878 = vrot.slane %v7876, 4
        %v7879 = vshll.u32 %v7554, 16
        %v7881 = vrot.slane %v7879, 5
        %v7882 = vor.u32 %v7878, %v7881
        %v7883 = vrot.slane %v7882, 4
        %v7885 = vshll.u32 %v7555, 16
        %v7887 = vrot.slane %v7885, 5
        %v7888 = vsel %vm336, %v7883, %v7887
        %v7889 = vshrl.u32 %v7555, 16
        %v7891 = vrot.slane %v7889, 4
        %v7892 = vor.u32 %v7891, %v7887
        %v7893 = vrot.slane %v7892, 4
        %v7895 = vshll.u32 %v7556, 16
        %v7897 = vrot.slane %v7895, 5
        %v7898 = vsel %vm336, %v7893, %v7897
        %v7900 = vshrl.u32 %v7557, 16
        %v7902 = vrot.slane %v7900, 4
        %v7903 = vshll.u32 %v7557, 16
        %v7905 = vrot.slane %v7903, 5
        %v7906 = vor.u32 %v7902, %v7905
        %v7907 = vrot.slane %v7906, 4
        %v7909 = vshll.u32 %v7558, 16
        %v7911 = vrot.slane %v7909, 5
        %v7912 = vsel %vm336, %v7907, %v7911
        %v7913 = vshrl.u32 %v7558, 16
        %v7915 = vrot.slane %v7913, 4
        %v7916 = vor.u32 %v7915, %v7911
        %v7917 = vrot.slane %v7916, 4
        %v7919 = vshll.u32 %v7559, 16
        %v7921 = vrot.slane %v7919, 5
        %v7922 = vsel %vm336, %v7917, %v7921
        %v7924 = vshrl.u32 %v7560, 16
        %v7926 = vrot.slane %v7924, 4
        %v7927 = vshll.u32 %v7560, 16
        %v7929 = vrot.slane %v7927, 5
        %v7930 = vor.u32 %v7926, %v7929
        %v7931 = vrot.slane %v7930, 4
        %v7933 = vshll.u32 %v7561, 16
        %v7935 = vrot.slane %v7933, 5
        %v7936 = vsel %vm336, %v7931, %v7935
        %v7937 = vshrl.u32 %v7561, 16
        %v7939 = vrot.slane %v7937, 4
        %v7940 = vor.u32 %v7939, %v7935
        %v7941 = vrot.slane %v7940, 4
        %v7943 = vshll.u32 %v7562, 16
        %v7945 = vrot.slane %v7943, 5
        %v7946 = vsel %vm336, %v7941, %v7945
        %s7947 = scalar_lea.vmem %s270, 128
        %v7948 = vld [vmem:[%s7947] sm:$0xf]
        %v7949 = vld [vmem:[%s7947 + $0x4] sm:$0xf]
        %v7950 = vunpack.c.l.b16 %v7576
        %v7951 = vunpack.c.l.b16 %v7586
        %v7952 = vunpack.c.l.b16 %v7600
        %v7953 = vunpack.c.l.b16 %v7610
        %v7954 = vunpack.c.l.b16 %v7624
        %v7955 = vunpack.c.l.b16 %v7634
        %v7956 = vunpack.c.l.b16 %v7648
        %v7957 = vunpack.c.l.b16 %v7658
        %v7958 = vunpack.c.l.b16 %v7672
        %v7959 = vunpack.c.l.b16 %v7682
        %v7960 = vunpack.c.l.b16 %v7696
        %v7961 = vunpack.c.l.b16 %v7706
        %v7962 = vunpack.c.l.b16 %v7720
        %v7963 = vunpack.c.l.b16 %v7730
        %v7964 = vunpack.c.l.b16 %v7744
        %v7965 = vunpack.c.l.b16 %v7754
        %v7966 = vunpack.c.l.b16 %v7768
        %v7967 = vunpack.c.l.b16 %v7778
        %v7968 = vunpack.c.l.b16 %v7792
        %v7969 = vunpack.c.l.b16 %v7802
        %v7970 = vunpack.c.l.b16 %v7816
        %v7971 = vunpack.c.l.b16 %v7826
        %v7972 = vunpack.c.l.b16 %v7840
        %v7973 = vunpack.c.l.b16 %v7850
        %v7974 = vunpack.c.l.b16 %v7864
        %v7975 = vunpack.c.l.b16 %v7874
        %v7976 = vunpack.c.l.b16 %v7888
        %v7977 = vunpack.c.l.b16 %v7898
        %v7978 = vunpack.c.l.b16 %v7912
        %v7979 = vunpack.c.l.b16 %v7922
        %v7980 = vunpack.c.l.b16 %v7936
        %v7981 = vunpack.c.l.b16 %v7946
        %v7982 = vpack.c.b16 %v7951, %v7950
        %v7983 = vpack.c.b16 %v7953, %v7952
        %v7984 = vpack.c.b16 %v7955, %v7954
        %v7985 = vpack.c.b16 %v7957, %v7956
        %v7986 = vpack.c.b16 %v7959, %v7958
        %v7987 = vpack.c.b16 %v7961, %v7960
        %v7988 = vpack.c.b16 %v7963, %v7962
        %v7989 = vpack.c.b16 %v7965, %v7964
        %v7990 = vpack.c.b16 %v7967, %v7966
        %v7991 = vpack.c.b16 %v7969, %v7968
        %v7992 = vpack.c.b16 %v7971, %v7970
        %v7993 = vpack.c.b16 %v7973, %v7972
        %v7994 = vpack.c.b16 %v7975, %v7974
        %v7995 = vpack.c.b16 %v7977, %v7976
        %v7996 = vpack.c.b16 %v7979, %v7978
        %v7997 = vpack.c.b16 %v7981, %v7980
        %v8000 = vunpack.c.l.b16 %v7948
        %v8001 = vunpack.c.l.b16 %v7949
        %v8002 = vpack.c.b16 %v8001, %v8000
        %v8005 = vsel %vm778, %v7982, 0
        %v8008 = vsel %vm778, %v7983, 0
        %v8011 = vsel %vm778, %v7984, 0
        %v8014 = vsel %vm778, %v7985, 0
        %v8017 = vsel %vm778, %v7986, 0
        %v8020 = vsel %vm778, %v7987, 0
        %v8023 = vsel %vm778, %v7988, 0
        %v8026 = vsel %vm778, %v7989, 0
        %v8029 = vsel %vm778, %v7990, 0
        %v8032 = vsel %vm778, %v7991, 0
        %v8035 = vsel %vm778, %v7992, 0
        %v8038 = vsel %vm778, %v7993, 0
        %v8041 = vsel %vm778, %v7994, 0
        %v8044 = vsel %vm778, %v7995, 0
        %v8047 = vsel %vm778, %v7996, 0
        %v8050 = vsel %vm778, %v7997, 0
        %8052 = vmatpush.bf16.msra.mxu0 0
        %8053 = vmatpush.bf16.msra.mxu0 0
        %8054 = vmatpush.bf16.msra.mxu0 0
        %8055 = vmatpush.bf16.msra.mxu0 0
        %8056 = vmatpush.bf16.msra.mxu0 0
        %8057 = vmatpush.bf16.msra.mxu0 0
        %8058 = vmatpush.bf16.msra.mxu0 0
        %8059 = vmatpush.bf16.msra.mxu0 %v8002
        %8060 = vmatmul.bf16.gmra.mxu0 %v8005
        %v8061 = vpop.f32.mrf.mxu0
        %v8062 = vadd.f32 0.0, %v8061
        %v8063 = vpop.f32.mrf.mxu0
        %v8064 = vadd.f32 0.0, %v8063
        %8065 = vmatmul.bf16.gmra.mxu0 %v8008
        %v8066 = vpop.f32.mrf.mxu0
        %v8067 = vadd.f32 0.0, %v8066
        %v8068 = vpop.f32.mrf.mxu0
        %v8069 = vadd.f32 0.0, %v8068
        %8070 = vmatmul.bf16.gmra.mxu0 %v8011
        %v8071 = vpop.f32.mrf.mxu0
        %v8072 = vadd.f32 0.0, %v8071
        %v8073 = vpop.f32.mrf.mxu0
        %v8074 = vadd.f32 0.0, %v8073
        %8075 = vmatmul.bf16.gmra.mxu0 %v8014
        %v8076 = vpop.f32.mrf.mxu0
        %v8077 = vadd.f32 0.0, %v8076
        %v8078 = vpop.f32.mrf.mxu0
        %v8079 = vadd.f32 0.0, %v8078
        %8080 = vmatmul.bf16.gmra.mxu0 %v8017
        %v8081 = vpop.f32.mrf.mxu0
        %v8082 = vadd.f32 0.0, %v8081
        %v8083 = vpop.f32.mrf.mxu0
        %v8084 = vadd.f32 0.0, %v8083
        %8085 = vmatmul.bf16.gmra.mxu0 %v8020
        %v8086 = vpop.f32.mrf.mxu0
        %v8087 = vadd.f32 0.0, %v8086
        %v8088 = vpop.f32.mrf.mxu0
        %v8089 = vadd.f32 0.0, %v8088
        %8090 = vmatmul.bf16.gmra.mxu0 %v8023
        %v8091 = vpop.f32.mrf.mxu0
        %v8092 = vadd.f32 0.0, %v8091
        %v8093 = vpop.f32.mrf.mxu0
        %v8094 = vadd.f32 0.0, %v8093
        %8095 = vmatmul.bf16.gmra.mxu0 %v8026
        %v8096 = vpop.f32.mrf.mxu0
        %v8097 = vadd.f32 0.0, %v8096
        %v8098 = vpop.f32.mrf.mxu0
        %v8099 = vadd.f32 0.0, %v8098
        %8100 = vmatmul.bf16.gmra.mxu0 %v8029
        %v8101 = vpop.f32.mrf.mxu0
        %v8102 = vadd.f32 0.0, %v8101
        %v8103 = vpop.f32.mrf.mxu0
        %v8104 = vadd.f32 0.0, %v8103
        %8105 = vmatmul.bf16.gmra.mxu0 %v8032
        %v8106 = vpop.f32.mrf.mxu0
        %v8107 = vadd.f32 0.0, %v8106
        %v8108 = vpop.f32.mrf.mxu0
        %v8109 = vadd.f32 0.0, %v8108
        %8110 = vmatmul.bf16.gmra.mxu0 %v8035
        %v8111 = vpop.f32.mrf.mxu0
        %v8112 = vadd.f32 0.0, %v8111
        %v8113 = vpop.f32.mrf.mxu0
        %v8114 = vadd.f32 0.0, %v8113
        %8115 = vmatmul.bf16.gmra.mxu0 %v8038
        %v8116 = vpop.f32.mrf.mxu0
        %v8117 = vadd.f32 0.0, %v8116
        %v8118 = vpop.f32.mrf.mxu0
        %v8119 = vadd.f32 0.0, %v8118
        %8120 = vmatmul.bf16.gmra.mxu0 %v8041
        %v8121 = vpop.f32.mrf.mxu0
        %v8122 = vadd.f32 0.0, %v8121
        %v8123 = vpop.f32.mrf.mxu0
        %v8124 = vadd.f32 0.0, %v8123
        %8125 = vmatmul.bf16.gmra.mxu0 %v8044
        %v8126 = vpop.f32.mrf.mxu0
        %v8127 = vadd.f32 0.0, %v8126
        %v8128 = vpop.f32.mrf.mxu0
        %v8129 = vadd.f32 0.0, %v8128
        %8130 = vmatmul.bf16.gmra.mxu0 %v8047
        %v8131 = vpop.f32.mrf.mxu0
        %v8132 = vadd.f32 0.0, %v8131
        %v8133 = vpop.f32.mrf.mxu0
        %v8134 = vadd.f32 0.0, %v8133
        %8135 = vmatmul.bf16.gmra.mxu0 %v8050
        %v8136 = vpop.f32.mrf.mxu0
        %v8137 = vadd.f32 0.0, %v8136
        %v8138 = vpop.f32.mrf.mxu0
        %v8139 = vadd.f32 0.0, %v8138
        %8140 = vdwg.mxu0
        %v8141 = vadd.f32 %v7483, %v8062
        %v8142 = vadd.f32 %v7484, %v8064
        %v8143 = vadd.f32 %v7485, %v8067
        %v8144 = vadd.f32 %v7486, %v8069
        %v8145 = vadd.f32 %v7487, %v8072
        %v8146 = vadd.f32 %v7488, %v8074
        %v8147 = vadd.f32 %v7489, %v8077
        %v8148 = vadd.f32 %v7490, %v8079
        %v8149 = vadd.f32 %v7491, %v8082
        %v8150 = vadd.f32 %v7492, %v8084
        %v8151 = vadd.f32 %v7493, %v8087
        %v8152 = vadd.f32 %v7494, %v8089
        %v8153 = vadd.f32 %v7495, %v8092
        %v8154 = vadd.f32 %v7496, %v8094
        %v8155 = vadd.f32 %v7497, %v8097
        %v8156 = vadd.f32 %v7498, %v8099
        %v8157 = vadd.f32 %v7499, %v8102
        %v8158 = vadd.f32 %v7500, %v8104
        %v8159 = vadd.f32 %v7501, %v8107
        %v8160 = vadd.f32 %v7502, %v8109
        %v8161 = vadd.f32 %v7503, %v8112
        %v8162 = vadd.f32 %v7504, %v8114
        %v8163 = vadd.f32 %v7505, %v8117
        %v8164 = vadd.f32 %v7506, %v8119
        %v8165 = vadd.f32 %v7507, %v8122
        %v8166 = vadd.f32 %v7508, %v8124
        %v8167 = vadd.f32 %v7509, %v8127
        %v8168 = vadd.f32 %v7510, %v8129
        %v8169 = vadd.f32 %v7511, %v8132
        %v8170 = vadd.f32 %v7512, %v8134
        %v8171 = vadd.f32 %v7513, %v8137
        %v8172 = vadd.f32 %v7514, %v8139
        %v8173 = vld [vmem:[%s7224] sm:$0xe]
        %v8174 = vld [vmem:[%s7224 + $0xc] sm:$0xe]
        %v8175 = vld [vmem:[%s7224 + $0x18] sm:$0xe]
        %v8176 = vld [vmem:[%s7224 + $0x24] sm:$0xe]
        %v8177 = vld [vmem:[%s7224 + $0x30] sm:$0xe]
        %v8178 = vld [vmem:[%s7224 + $0x3c] sm:$0xe]
        %v8179 = vld [vmem:[%s7224 + $0x48] sm:$0xe]
        %v8180 = vld [vmem:[%s7224 + $0x54] sm:$0xe]
        %v8181 = vld [vmem:[%s7224 + $0x60] sm:$0xe]
        %v8182 = vld [vmem:[%s7224 + $0x6c] sm:$0xe]
        %v8183 = vld [vmem:[%s7224 + $0x78] sm:$0xe]
        %v8184 = vld [vmem:[%s7224 + $0x84] sm:$0xe]
        %v8185 = vld [vmem:[%s7224 + $0x90] sm:$0xe]
        %v8186 = vld [vmem:[%s7224 + $0x9c] sm:$0xe]
        %v8187 = vld [vmem:[%s7224 + $0xa8] sm:$0xe]
        %v8188 = vld [vmem:[%s7224 + $0xb4] sm:$0xe]
        %v8237 = vrot.slane %v8173, 5
        %v8238 = vrot.slane %v8237, 4
        %v8239 = vrot.slane %v7516, 5
        %v8240 = vsel %vm1189, %v8238, %v8239
        %v8241 = vrot.slane %v8239, 4
        %v8242 = vrot.slane %v7517, 5
        %v8243 = vsel %vm1189, %v8241, %v8242
        %v8244 = vrot.slane %v8174, 5
        %v8245 = vrot.slane %v8244, 4
        %v8246 = vrot.slane %v7519, 5
        %v8247 = vsel %vm1189, %v8245, %v8246
        %v8248 = vrot.slane %v8246, 4
        %v8249 = vrot.slane %v7520, 5
        %v8250 = vsel %vm1189, %v8248, %v8249
        %v8251 = vrot.slane %v8175, 5
        %v8252 = vrot.slane %v8251, 4
        %v8253 = vrot.slane %v7522, 5
        %v8254 = vsel %vm1189, %v8252, %v8253
        %v8255 = vrot.slane %v8253, 4
        %v8256 = vrot.slane %v7523, 5
        %v8257 = vsel %vm1189, %v8255, %v8256
        %v8258 = vrot.slane %v8176, 5
        %v8259 = vrot.slane %v8258, 4
        %v8260 = vrot.slane %v7525, 5
        %v8261 = vsel %vm1189, %v8259, %v8260
        %v8262 = vrot.slane %v8260, 4
        %v8263 = vrot.slane %v7526, 5
        %v8264 = vsel %vm1189, %v8262, %v8263
        %v8265 = vrot.slane %v8177, 5
        %v8266 = vrot.slane %v8265, 4
        %v8267 = vrot.slane %v7528, 5
        %v8268 = vsel %vm1189, %v8266, %v8267
        %v8269 = vrot.slane %v8267, 4
        %v8270 = vrot.slane %v7529, 5
        %v8271 = vsel %vm1189, %v8269, %v8270
        %v8272 = vrot.slane %v8178, 5
        %v8273 = vrot.slane %v8272, 4
        %v8274 = vrot.slane %v7531, 5
        %v8275 = vsel %vm1189, %v8273, %v8274
        %v8276 = vrot.slane %v8274, 4
        %v8277 = vrot.slane %v7532, 5
        %v8278 = vsel %vm1189, %v8276, %v8277
        %v8279 = vrot.slane %v8179, 5
        %v8280 = vrot.slane %v8279, 4
        %v8281 = vrot.slane %v7534, 5
        %v8282 = vsel %vm1189, %v8280, %v8281
        %v8283 = vrot.slane %v8281, 4
        %v8284 = vrot.slane %v7535, 5
        %v8285 = vsel %vm1189, %v8283, %v8284
        %v8286 = vrot.slane %v8180, 5
        %v8287 = vrot.slane %v8286, 4
        %v8288 = vrot.slane %v7537, 5
        %v8289 = vsel %vm1189, %v8287, %v8288
        %v8290 = vrot.slane %v8288, 4
        %v8291 = vrot.slane %v7538, 5
        %v8292 = vsel %vm1189, %v8290, %v8291
        %v8293 = vrot.slane %v8181, 5
        %v8294 = vrot.slane %v8293, 4
        %v8295 = vrot.slane %v7540, 5
        %v8296 = vsel %vm1189, %v8294, %v8295
        %v8297 = vrot.slane %v8295, 4
        %v8298 = vrot.slane %v7541, 5
        %v8299 = vsel %vm1189, %v8297, %v8298
        %v8300 = vrot.slane %v8182, 5
        %v8301 = vrot.slane %v8300, 4
        %v8302 = vrot.slane %v7543, 5
        %v8303 = vsel %vm1189, %v8301, %v8302
        %v8304 = vrot.slane %v8302, 4
        %v8305 = vrot.slane %v7544, 5
        %v8306 = vsel %vm1189, %v8304, %v8305
        %v8307 = vrot.slane %v8183, 5
        %v8308 = vrot.slane %v8307, 4
        %v8309 = vrot.slane %v7546, 5
        %v8310 = vsel %vm1189, %v8308, %v8309
        %v8311 = vrot.slane %v8309, 4
        %v8312 = vrot.slane %v7547, 5
        %v8313 = vsel %vm1189, %v8311, %v8312
        %v8314 = vrot.slane %v8184, 5
        %v8315 = vrot.slane %v8314, 4
        %v8316 = vrot.slane %v7549, 5
        %v8317 = vsel %vm1189, %v8315, %v8316
        %v8318 = vrot.slane %v8316, 4
        %v8319 = vrot.slane %v7550, 5
        %v8320 = vsel %vm1189, %v8318, %v8319
        %v8321 = vrot.slane %v8185, 5
        %v8322 = vrot.slane %v8321, 4
        %v8323 = vrot.slane %v7552, 5
        %v8324 = vsel %vm1189, %v8322, %v8323
        %v8325 = vrot.slane %v8323, 4
        %v8326 = vrot.slane %v7553, 5
        %v8327 = vsel %vm1189, %v8325, %v8326
        %v8328 = vrot.slane %v8186, 5
        %v8329 = vrot.slane %v8328, 4
        %v8330 = vrot.slane %v7555, 5
        %v8331 = vsel %vm1189, %v8329, %v8330
        %v8332 = vrot.slane %v8330, 4
        %v8333 = vrot.slane %v7556, 5
        %v8334 = vsel %vm1189, %v8332, %v8333
        %v8335 = vrot.slane %v8187, 5
        %v8336 = vrot.slane %v8335, 4
        %v8337 = vrot.slane %v7558, 5
        %v8338 = vsel %vm1189, %v8336, %v8337
        %v8339 = vrot.slane %v8337, 4
        %v8340 = vrot.slane %v7559, 5
        %v8341 = vsel %vm1189, %v8339, %v8340
        %v8342 = vrot.slane %v8188, 5
        %v8343 = vrot.slane %v8342, 4
        %v8344 = vrot.slane %v7561, 5
        %v8345 = vsel %vm1189, %v8343, %v8344
        %v8346 = vrot.slane %v8344, 4
        %v8347 = vrot.slane %v7562, 5
        %v8348 = vsel %vm1189, %v8346, %v8347
        %s8349 = scalar_lea.vmem %s270, 136
        %v8350 = vld [vmem:[%s8349] sm:$0xf]
        %v8351 = vld [vmem:[%s8349 + $0x4] sm:$0xf]
        %v8352 = vunpack.c.l.b16 %v8240
        %v8353 = vunpack.c.l.b16 %v8243
        %v8354 = vunpack.c.l.b16 %v8247
        %v8355 = vunpack.c.l.b16 %v8250
        %v8356 = vunpack.c.l.b16 %v8254
        %v8357 = vunpack.c.l.b16 %v8257
        %v8358 = vunpack.c.l.b16 %v8261
        %v8359 = vunpack.c.l.b16 %v8264
        %v8360 = vunpack.c.l.b16 %v8268
        %v8361 = vunpack.c.l.b16 %v8271
        %v8362 = vunpack.c.l.b16 %v8275
        %v8363 = vunpack.c.l.b16 %v8278
        %v8364 = vunpack.c.l.b16 %v8282
        %v8365 = vunpack.c.l.b16 %v8285
        %v8366 = vunpack.c.l.b16 %v8289
        %v8367 = vunpack.c.l.b16 %v8292
        %v8368 = vunpack.c.l.b16 %v8296
        %v8369 = vunpack.c.l.b16 %v8299
        %v8370 = vunpack.c.l.b16 %v8303
        %v8371 = vunpack.c.l.b16 %v8306
        %v8372 = vunpack.c.l.b16 %v8310
        %v8373 = vunpack.c.l.b16 %v8313
        %v8374 = vunpack.c.l.b16 %v8317
        %v8375 = vunpack.c.l.b16 %v8320
        %v8376 = vunpack.c.l.b16 %v8324
        %v8377 = vunpack.c.l.b16 %v8327
        %v8378 = vunpack.c.l.b16 %v8331
        %v8379 = vunpack.c.l.b16 %v8334
        %v8380 = vunpack.c.l.b16 %v8338
        %v8381 = vunpack.c.l.b16 %v8341
        %v8382 = vunpack.c.l.b16 %v8345
        %v8383 = vunpack.c.l.b16 %v8348
        %v8384 = vpack.c.b16 %v8353, %v8352
        %v8385 = vpack.c.b16 %v8355, %v8354
        %v8386 = vpack.c.b16 %v8357, %v8356
        %v8387 = vpack.c.b16 %v8359, %v8358
        %v8388 = vpack.c.b16 %v8361, %v8360
        %v8389 = vpack.c.b16 %v8363, %v8362
        %v8390 = vpack.c.b16 %v8365, %v8364
        %v8391 = vpack.c.b16 %v8367, %v8366
        %v8392 = vpack.c.b16 %v8369, %v8368
        %v8393 = vpack.c.b16 %v8371, %v8370
        %v8394 = vpack.c.b16 %v8373, %v8372
        %v8395 = vpack.c.b16 %v8375, %v8374
        %v8396 = vpack.c.b16 %v8377, %v8376
        %v8397 = vpack.c.b16 %v8379, %v8378
        %v8398 = vpack.c.b16 %v8381, %v8380
        %v8399 = vpack.c.b16 %v8383, %v8382
        %v8402 = vunpack.c.l.b16 %v8350
        %v8403 = vunpack.c.l.b16 %v8351
        %v8404 = vpack.c.b16 %v8403, %v8402
        %v8407 = vsel %vm778, %v8384, 0
        %v8410 = vsel %vm778, %v8385, 0
        %v8413 = vsel %vm778, %v8386, 0
        %v8416 = vsel %vm778, %v8387, 0
        %v8419 = vsel %vm778, %v8388, 0
        %v8422 = vsel %vm778, %v8389, 0
        %v8425 = vsel %vm778, %v8390, 0
        %v8428 = vsel %vm778, %v8391, 0
        %v8431 = vsel %vm778, %v8392, 0
        %v8434 = vsel %vm778, %v8393, 0
        %v8437 = vsel %vm778, %v8394, 0
        %v8440 = vsel %vm778, %v8395, 0
        %v8443 = vsel %vm778, %v8396, 0
        %v8446 = vsel %vm778, %v8397, 0
        %v8449 = vsel %vm778, %v8398, 0
        %v8452 = vsel %vm778, %v8399, 0
        %8454 = vmatpush.bf16.msra.mxu0 0
        %8455 = vmatpush.bf16.msra.mxu0 0
        %8456 = vmatpush.bf16.msra.mxu0 0
        %8457 = vmatpush.bf16.msra.mxu0 0
        %8458 = vmatpush.bf16.msra.mxu0 0
        %8459 = vmatpush.bf16.msra.mxu0 0
        %8460 = vmatpush.bf16.msra.mxu0 0
        %8461 = vmatpush.bf16.msra.mxu0 %v8404
        %8462 = vmatmul.bf16.gmra.mxu0 %v8407
        %v8463 = vpop.f32.mrf.mxu0
        %v8464 = vadd.f32 0.0, %v8463
        %v8465 = vpop.f32.mrf.mxu0
        %v8466 = vadd.f32 0.0, %v8465
        %8467 = vmatmul.bf16.gmra.mxu0 %v8410
        %v8468 = vpop.f32.mrf.mxu0
        %v8469 = vadd.f32 0.0, %v8468
        %v8470 = vpop.f32.mrf.mxu0
        %v8471 = vadd.f32 0.0, %v8470
        %8472 = vmatmul.bf16.gmra.mxu0 %v8413
        %v8473 = vpop.f32.mrf.mxu0
        %v8474 = vadd.f32 0.0, %v8473
        %v8475 = vpop.f32.mrf.mxu0
        %v8476 = vadd.f32 0.0, %v8475
        %8477 = vmatmul.bf16.gmra.mxu0 %v8416
        %v8478 = vpop.f32.mrf.mxu0
        %v8479 = vadd.f32 0.0, %v8478
        %v8480 = vpop.f32.mrf.mxu0
        %v8481 = vadd.f32 0.0, %v8480
        %8482 = vmatmul.bf16.gmra.mxu0 %v8419
        %v8483 = vpop.f32.mrf.mxu0
        %v8484 = vadd.f32 0.0, %v8483
        %v8485 = vpop.f32.mrf.mxu0
        %v8486 = vadd.f32 0.0, %v8485
        %8487 = vmatmul.bf16.gmra.mxu0 %v8422
        %v8488 = vpop.f32.mrf.mxu0
        %v8489 = vadd.f32 0.0, %v8488
        %v8490 = vpop.f32.mrf.mxu0
        %v8491 = vadd.f32 0.0, %v8490
        %8492 = vmatmul.bf16.gmra.mxu0 %v8425
        %v8493 = vpop.f32.mrf.mxu0
        %v8494 = vadd.f32 0.0, %v8493
        %v8495 = vpop.f32.mrf.mxu0
        %v8496 = vadd.f32 0.0, %v8495
        %8497 = vmatmul.bf16.gmra.mxu0 %v8428
        %v8498 = vpop.f32.mrf.mxu0
        %v8499 = vadd.f32 0.0, %v8498
        %v8500 = vpop.f32.mrf.mxu0
        %v8501 = vadd.f32 0.0, %v8500
        %8502 = vmatmul.bf16.gmra.mxu0 %v8431
        %v8503 = vpop.f32.mrf.mxu0
        %v8504 = vadd.f32 0.0, %v8503
        %v8505 = vpop.f32.mrf.mxu0
        %v8506 = vadd.f32 0.0, %v8505
        %8507 = vmatmul.bf16.gmra.mxu0 %v8434
        %v8508 = vpop.f32.mrf.mxu0
        %v8509 = vadd.f32 0.0, %v8508
        %v8510 = vpop.f32.mrf.mxu0
        %v8511 = vadd.f32 0.0, %v8510
        %8512 = vmatmul.bf16.gmra.mxu0 %v8437
        %v8513 = vpop.f32.mrf.mxu0
        %v8514 = vadd.f32 0.0, %v8513
        %v8515 = vpop.f32.mrf.mxu0
        %v8516 = vadd.f32 0.0, %v8515
        %8517 = vmatmul.bf16.gmra.mxu0 %v8440
        %v8518 = vpop.f32.mrf.mxu0
        %v8519 = vadd.f32 0.0, %v8518
        %v8520 = vpop.f32.mrf.mxu0
        %v8521 = vadd.f32 0.0, %v8520
        %8522 = vmatmul.bf16.gmra.mxu0 %v8443
        %v8523 = vpop.f32.mrf.mxu0
        %v8524 = vadd.f32 0.0, %v8523
        %v8525 = vpop.f32.mrf.mxu0
        %v8526 = vadd.f32 0.0, %v8525
        %8527 = vmatmul.bf16.gmra.mxu0 %v8446
        %v8528 = vpop.f32.mrf.mxu0
        %v8529 = vadd.f32 0.0, %v8528
        %v8530 = vpop.f32.mrf.mxu0
        %v8531 = vadd.f32 0.0, %v8530
        %8532 = vmatmul.bf16.gmra.mxu0 %v8449
        %v8533 = vpop.f32.mrf.mxu0
        %v8534 = vadd.f32 0.0, %v8533
        %v8535 = vpop.f32.mrf.mxu0
        %v8536 = vadd.f32 0.0, %v8535
        %8537 = vmatmul.bf16.gmra.mxu0 %v8452
        %v8538 = vpop.f32.mrf.mxu0
        %v8539 = vadd.f32 0.0, %v8538
        %v8540 = vpop.f32.mrf.mxu0
        %v8541 = vadd.f32 0.0, %v8540
        %8542 = vdwg.mxu0
        %v8543 = vadd.f32 %v8141, %v8464
        %v8544 = vadd.f32 %v8142, %v8466
        %v8545 = vadd.f32 %v8143, %v8469
        %v8546 = vadd.f32 %v8144, %v8471
        %v8547 = vadd.f32 %v8145, %v8474
        %v8548 = vadd.f32 %v8146, %v8476
        %v8549 = vadd.f32 %v8147, %v8479
        %v8550 = vadd.f32 %v8148, %v8481
        %v8551 = vadd.f32 %v8149, %v8484
        %v8552 = vadd.f32 %v8150, %v8486
        %v8553 = vadd.f32 %v8151, %v8489
        %v8554 = vadd.f32 %v8152, %v8491
        %v8555 = vadd.f32 %v8153, %v8494
        %v8556 = vadd.f32 %v8154, %v8496
        %v8557 = vadd.f32 %v8155, %v8499
        %v8558 = vadd.f32 %v8156, %v8501
        %v8559 = vadd.f32 %v8157, %v8504
        %v8560 = vadd.f32 %v8158, %v8506
        %v8561 = vadd.f32 %v8159, %v8509
        %v8562 = vadd.f32 %v8160, %v8511
        %v8563 = vadd.f32 %v8161, %v8514
        %v8564 = vadd.f32 %v8162, %v8516
        %v8565 = vadd.f32 %v8163, %v8519
        %v8566 = vadd.f32 %v8164, %v8521
        %v8567 = vadd.f32 %v8165, %v8524
        %v8568 = vadd.f32 %v8166, %v8526
        %v8569 = vadd.f32 %v8167, %v8529
        %v8570 = vadd.f32 %v8168, %v8531
        %v8571 = vadd.f32 %v8169, %v8534
        %v8572 = vadd.f32 %v8170, %v8536
        %v8573 = vadd.f32 %v8171, %v8539
        %v8574 = vadd.f32 %v8172, %v8541
        %v8575 = vld [vmem:[%s7224 + $0x8] sm:$0x3]
        %v8576 = vld [vmem:[%s7224 + $0x14] sm:$0x3]
        %v8577 = vld [vmem:[%s7224 + $0x20] sm:$0x3]
        %v8578 = vld [vmem:[%s7224 + $0x2c] sm:$0x3]
        %v8579 = vld [vmem:[%s7224 + $0x38] sm:$0x3]
        %v8580 = vld [vmem:[%s7224 + $0x44] sm:$0x3]
        %v8581 = vld [vmem:[%s7224 + $0x50] sm:$0x3]
        %v8582 = vld [vmem:[%s7224 + $0x5c] sm:$0x3]
        %v8583 = vld [vmem:[%s7224 + $0x68] sm:$0x3]
        %v8584 = vld [vmem:[%s7224 + $0x74] sm:$0x3]
        %v8585 = vld [vmem:[%s7224 + $0x80] sm:$0x3]
        %v8586 = vld [vmem:[%s7224 + $0x8c] sm:$0x3]
        %v8587 = vld [vmem:[%s7224 + $0x98] sm:$0x3]
        %v8588 = vld [vmem:[%s7224 + $0xa4] sm:$0x3]
        %v8589 = vld [vmem:[%s7224 + $0xb0] sm:$0x3]
        %v8590 = vld [vmem:[%s7224 + $0xbc] sm:$0x3]
        %v8592 = vshrl.u32 %v8173, 16
        %v8594 = vrot.slane %v8592, 5
        %v8595 = vshll.u32 %v8173, 16
        %v8597 = vrot.slane %v8595, 6
        %v8598 = vor.u32 %v8594, %v8597
        %v8599 = vrot.slane %v8598, 4
        %v8600 = vrot.slane %v7577, 5
        %v8601 = vrot.slane %v7573, 6
        %v8602 = vor.u32 %v8600, %v8601
        %v8603 = vsel %vm1546, %v8599, %v8602
        %v8604 = vrot.slane %v8602, 4
        %v8606 = vshrl.u32 %v8575, 16
        %v8608 = vrot.slane %v8606, 5
        %v8609 = vshll.u32 %v8575, 16
        %v8611 = vrot.slane %v8609, 6
        %v8612 = vor.u32 %v8608, %v8611
        %v8613 = vsel %vm1546, %v8604, %v8612
        %v8615 = vshrl.u32 %v8174, 16
        %v8617 = vrot.slane %v8615, 5
        %v8618 = vshll.u32 %v8174, 16
        %v8620 = vrot.slane %v8618, 6
        %v8621 = vor.u32 %v8617, %v8620
        %v8622 = vrot.slane %v8621, 4
        %v8623 = vrot.slane %v7601, 5
        %v8624 = vrot.slane %v7597, 6
        %v8625 = vor.u32 %v8623, %v8624
        %v8626 = vsel %vm1546, %v8622, %v8625
        %v8627 = vrot.slane %v8625, 4
        %v8629 = vshrl.u32 %v8576, 16
        %v8631 = vrot.slane %v8629, 5
        %v8632 = vshll.u32 %v8576, 16
        %v8634 = vrot.slane %v8632, 6
        %v8635 = vor.u32 %v8631, %v8634
        %v8636 = vsel %vm1546, %v8627, %v8635
        %v8638 = vshrl.u32 %v8175, 16
        %v8640 = vrot.slane %v8638, 5
        %v8641 = vshll.u32 %v8175, 16
        %v8643 = vrot.slane %v8641, 6
        %v8644 = vor.u32 %v8640, %v8643
        %v8645 = vrot.slane %v8644, 4
        %v8646 = vrot.slane %v7625, 5
        %v8647 = vrot.slane %v7621, 6
        %v8648 = vor.u32 %v8646, %v8647
        %v8649 = vsel %vm1546, %v8645, %v8648
        %v8650 = vrot.slane %v8648, 4
        %v8652 = vshrl.u32 %v8577, 16
        %v8654 = vrot.slane %v8652, 5
        %v8655 = vshll.u32 %v8577, 16
        %v8657 = vrot.slane %v8655, 6
        %v8658 = vor.u32 %v8654, %v8657
        %v8659 = vsel %vm1546, %v8650, %v8658
        %v8661 = vshrl.u32 %v8176, 16
        %v8663 = vrot.slane %v8661, 5
        %v8664 = vshll.u32 %v8176, 16
        %v8666 = vrot.slane %v8664, 6
        %v8667 = vor.u32 %v8663, %v8666
        %v8668 = vrot.slane %v8667, 4
        %v8669 = vrot.slane %v7649, 5
        %v8670 = vrot.slane %v7645, 6
        %v8671 = vor.u32 %v8669, %v8670
        %v8672 = vsel %vm1546, %v8668, %v8671
        %v8673 = vrot.slane %v8671, 4
        %v8675 = vshrl.u32 %v8578, 16
        %v8677 = vrot.slane %v8675, 5
        %v8678 = vshll.u32 %v8578, 16
        %v8680 = vrot.slane %v8678, 6
        %v8681 = vor.u32 %v8677, %v8680
        %v8682 = vsel %vm1546, %v8673, %v8681
        %v8684 = vshrl.u32 %v8177, 16
        %v8686 = vrot.slane %v8684, 5
        %v8687 = vshll.u32 %v8177, 16
        %v8689 = vrot.slane %v8687, 6
        %v8690 = vor.u32 %v8686, %v8689
        %v8691 = vrot.slane %v8690, 4
        %v8692 = vrot.slane %v7673, 5
        %v8693 = vrot.slane %v7669, 6
        %v8694 = vor.u32 %v8692, %v8693
        %v8695 = vsel %vm1546, %v8691, %v8694
        %v8696 = vrot.slane %v8694, 4
        %v8698 = vshrl.u32 %v8579, 16
        %v8700 = vrot.slane %v8698, 5
        %v8701 = vshll.u32 %v8579, 16
        %v8703 = vrot.slane %v8701, 6
        %v8704 = vor.u32 %v8700, %v8703
        %v8705 = vsel %vm1546, %v8696, %v8704
        %v8707 = vshrl.u32 %v8178, 16
        %v8709 = vrot.slane %v8707, 5
        %v8710 = vshll.u32 %v8178, 16
        %v8712 = vrot.slane %v8710, 6
        %v8713 = vor.u32 %v8709, %v8712
        %v8714 = vrot.slane %v8713, 4
        %v8715 = vrot.slane %v7697, 5
        %v8716 = vrot.slane %v7693, 6
        %v8717 = vor.u32 %v8715, %v8716
        %v8718 = vsel %vm1546, %v8714, %v8717
        %v8719 = vrot.slane %v8717, 4
        %v8721 = vshrl.u32 %v8580, 16
        %v8723 = vrot.slane %v8721, 5
        %v8724 = vshll.u32 %v8580, 16
        %v8726 = vrot.slane %v8724, 6
        %v8727 = vor.u32 %v8723, %v8726
        %v8728 = vsel %vm1546, %v8719, %v8727
        %v8730 = vshrl.u32 %v8179, 16
        %v8732 = vrot.slane %v8730, 5
        %v8733 = vshll.u32 %v8179, 16
        %v8735 = vrot.slane %v8733, 6
        %v8736 = vor.u32 %v8732, %v8735
        %v8737 = vrot.slane %v8736, 4
        %v8738 = vrot.slane %v7721, 5
        %v8739 = vrot.slane %v7717, 6
        %v8740 = vor.u32 %v8738, %v8739
        %v8741 = vsel %vm1546, %v8737, %v8740
        %v8742 = vrot.slane %v8740, 4
        %v8744 = vshrl.u32 %v8581, 16
        %v8746 = vrot.slane %v8744, 5
        %v8747 = vshll.u32 %v8581, 16
        %v8749 = vrot.slane %v8747, 6
        %v8750 = vor.u32 %v8746, %v8749
        %v8751 = vsel %vm1546, %v8742, %v8750
        %v8753 = vshrl.u32 %v8180, 16
        %v8755 = vrot.slane %v8753, 5
        %v8756 = vshll.u32 %v8180, 16
        %v8758 = vrot.slane %v8756, 6
        %v8759 = vor.u32 %v8755, %v8758
        %v8760 = vrot.slane %v8759, 4
        %v8761 = vrot.slane %v7745, 5
        %v8762 = vrot.slane %v7741, 6
        %v8763 = vor.u32 %v8761, %v8762
        %v8764 = vsel %vm1546, %v8760, %v8763
        %v8765 = vrot.slane %v8763, 4
        %v8767 = vshrl.u32 %v8582, 16
        %v8769 = vrot.slane %v8767, 5
        %v8770 = vshll.u32 %v8582, 16
        %v8772 = vrot.slane %v8770, 6
        %v8773 = vor.u32 %v8769, %v8772
        %v8774 = vsel %vm1546, %v8765, %v8773
        %v8776 = vshrl.u32 %v8181, 16
        %v8778 = vrot.slane %v8776, 5
        %v8779 = vshll.u32 %v8181, 16
        %v8781 = vrot.slane %v8779, 6
        %v8782 = vor.u32 %v8778, %v8781
        %v8783 = vrot.slane %v8782, 4
        %v8784 = vrot.slane %v7769, 5
        %v8785 = vrot.slane %v7765, 6
        %v8786 = vor.u32 %v8784, %v8785
        %v8787 = vsel %vm1546, %v8783, %v8786
        %v8788 = vrot.slane %v8786, 4
        %v8790 = vshrl.u32 %v8583, 16
        %v8792 = vrot.slane %v8790, 5
        %v8793 = vshll.u32 %v8583, 16
        %v8795 = vrot.slane %v8793, 6
        %v8796 = vor.u32 %v8792, %v8795
        %v8797 = vsel %vm1546, %v8788, %v8796
        %v8799 = vshrl.u32 %v8182, 16
        %v8801 = vrot.slane %v8799, 5
        %v8802 = vshll.u32 %v8182, 16
        %v8804 = vrot.slane %v8802, 6
        %v8805 = vor.u32 %v8801, %v8804
        %v8806 = vrot.slane %v8805, 4
        %v8807 = vrot.slane %v7793, 5
        %v8808 = vrot.slane %v7789, 6
        %v8809 = vor.u32 %v8807, %v8808
        %v8810 = vsel %vm1546, %v8806, %v8809
        %v8811 = vrot.slane %v8809, 4
        %v8813 = vshrl.u32 %v8584, 16
        %v8815 = vrot.slane %v8813, 5
        %v8816 = vshll.u32 %v8584, 16
        %v8818 = vrot.slane %v8816, 6
        %v8819 = vor.u32 %v8815, %v8818
        %v8820 = vsel %vm1546, %v8811, %v8819
        %v8822 = vshrl.u32 %v8183, 16
        %v8824 = vrot.slane %v8822, 5
        %v8825 = vshll.u32 %v8183, 16
        %v8827 = vrot.slane %v8825, 6
        %v8828 = vor.u32 %v8824, %v8827
        %v8829 = vrot.slane %v8828, 4
        %v8830 = vrot.slane %v7817, 5
        %v8831 = vrot.slane %v7813, 6
        %v8832 = vor.u32 %v8830, %v8831
        %v8833 = vsel %vm1546, %v8829, %v8832
        %v8834 = vrot.slane %v8832, 4
        %v8836 = vshrl.u32 %v8585, 16
        %v8838 = vrot.slane %v8836, 5
        %v8839 = vshll.u32 %v8585, 16
        %v8841 = vrot.slane %v8839, 6
        %v8842 = vor.u32 %v8838, %v8841
        %v8843 = vsel %vm1546, %v8834, %v8842
        %v8845 = vshrl.u32 %v8184, 16
        %v8847 = vrot.slane %v8845, 5
        %v8848 = vshll.u32 %v8184, 16
        %v8850 = vrot.slane %v8848, 6
        %v8851 = vor.u32 %v8847, %v8850
        %v8852 = vrot.slane %v8851, 4
        %v8853 = vrot.slane %v7841, 5
        %v8854 = vrot.slane %v7837, 6
        %v8855 = vor.u32 %v8853, %v8854
        %v8856 = vsel %vm1546, %v8852, %v8855
        %v8857 = vrot.slane %v8855, 4
        %v8859 = vshrl.u32 %v8586, 16
        %v8861 = vrot.slane %v8859, 5
        %v8862 = vshll.u32 %v8586, 16
        %v8864 = vrot.slane %v8862, 6
        %v8865 = vor.u32 %v8861, %v8864
        %v8866 = vsel %vm1546, %v8857, %v8865
        %v8868 = vshrl.u32 %v8185, 16
        %v8870 = vrot.slane %v8868, 5
        %v8871 = vshll.u32 %v8185, 16
        %v8873 = vrot.slane %v8871, 6
        %v8874 = vor.u32 %v8870, %v8873
        %v8875 = vrot.slane %v8874, 4
        %v8876 = vrot.slane %v7865, 5
        %v8877 = vrot.slane %v7861, 6
        %v8878 = vor.u32 %v8876, %v8877
        %v8879 = vsel %vm1546, %v8875, %v8878
        %v8880 = vrot.slane %v8878, 4
        %v8882 = vshrl.u32 %v8587, 16
        %v8884 = vrot.slane %v8882, 5
        %v8885 = vshll.u32 %v8587, 16
        %v8887 = vrot.slane %v8885, 6
        %v8888 = vor.u32 %v8884, %v8887
        %v8889 = vsel %vm1546, %v8880, %v8888
        %v8891 = vshrl.u32 %v8186, 16
        %v8893 = vrot.slane %v8891, 5
        %v8894 = vshll.u32 %v8186, 16
        %v8896 = vrot.slane %v8894, 6
        %v8897 = vor.u32 %v8893, %v8896
        %v8898 = vrot.slane %v8897, 4
        %v8899 = vrot.slane %v7889, 5
        %v8900 = vrot.slane %v7885, 6
        %v8901 = vor.u32 %v8899, %v8900
        %v8902 = vsel %vm1546, %v8898, %v8901
        %v8903 = vrot.slane %v8901, 4
        %v8905 = vshrl.u32 %v8588, 16
        %v8907 = vrot.slane %v8905, 5
        %v8908 = vshll.u32 %v8588, 16
        %v8910 = vrot.slane %v8908, 6
        %v8911 = vor.u32 %v8907, %v8910
        %v8912 = vsel %vm1546, %v8903, %v8911
        %v8914 = vshrl.u32 %v8187, 16
        %v8916 = vrot.slane %v8914, 5
        %v8917 = vshll.u32 %v8187, 16
        %v8919 = vrot.slane %v8917, 6
        %v8920 = vor.u32 %v8916, %v8919
        %v8921 = vrot.slane %v8920, 4
        %v8922 = vrot.slane %v7913, 5
        %v8923 = vrot.slane %v7909, 6
        %v8924 = vor.u32 %v8922, %v8923
        %v8925 = vsel %vm1546, %v8921, %v8924
        %v8926 = vrot.slane %v8924, 4
        %v8928 = vshrl.u32 %v8589, 16
        %v8930 = vrot.slane %v8928, 5
        %v8931 = vshll.u32 %v8589, 16
        %v8933 = vrot.slane %v8931, 6
        %v8934 = vor.u32 %v8930, %v8933
        %v8935 = vsel %vm1546, %v8926, %v8934
        %v8937 = vshrl.u32 %v8188, 16
        %v8939 = vrot.slane %v8937, 5
        %v8940 = vshll.u32 %v8188, 16
        %v8942 = vrot.slane %v8940, 6
        %v8943 = vor.u32 %v8939, %v8942
        %v8944 = vrot.slane %v8943, 4
        %v8945 = vrot.slane %v7937, 5
        %v8946 = vrot.slane %v7933, 6
        %v8947 = vor.u32 %v8945, %v8946
        %v8948 = vsel %vm1546, %v8944, %v8947
        %v8949 = vrot.slane %v8947, 4
        %v8951 = vshrl.u32 %v8590, 16
        %v8953 = vrot.slane %v8951, 5
        %v8954 = vshll.u32 %v8590, 16
        %v8956 = vrot.slane %v8954, 6
        %v8957 = vor.u32 %v8953, %v8956
        %v8958 = vsel %vm1546, %v8949, %v8957
        %s8959 = scalar_lea.vmem %s270, 144
        %v8960 = vld [vmem:[%s8959] sm:$0xf]
        %v8961 = vld [vmem:[%s8959 + $0x4] sm:$0xf]
        %v8962 = vunpack.c.l.b16 %v8603
        %v8963 = vunpack.c.l.b16 %v8613
        %v8964 = vunpack.c.l.b16 %v8626
        %v8965 = vunpack.c.l.b16 %v8636
        %v8966 = vunpack.c.l.b16 %v8649
        %v8967 = vunpack.c.l.b16 %v8659
        %v8968 = vunpack.c.l.b16 %v8672
        %v8969 = vunpack.c.l.b16 %v8682
        %v8970 = vunpack.c.l.b16 %v8695
        %v8971 = vunpack.c.l.b16 %v8705
        %v8972 = vunpack.c.l.b16 %v8718
        %v8973 = vunpack.c.l.b16 %v8728
        %v8974 = vunpack.c.l.b16 %v8741
        %v8975 = vunpack.c.l.b16 %v8751
        %v8976 = vunpack.c.l.b16 %v8764
        %v8977 = vunpack.c.l.b16 %v8774
        %v8978 = vunpack.c.l.b16 %v8787
        %v8979 = vunpack.c.l.b16 %v8797
        %v8980 = vunpack.c.l.b16 %v8810
        %v8981 = vunpack.c.l.b16 %v8820
        %v8982 = vunpack.c.l.b16 %v8833
        %v8983 = vunpack.c.l.b16 %v8843
        %v8984 = vunpack.c.l.b16 %v8856
        %v8985 = vunpack.c.l.b16 %v8866
        %v8986 = vunpack.c.l.b16 %v8879
        %v8987 = vunpack.c.l.b16 %v8889
        %v8988 = vunpack.c.l.b16 %v8902
        %v8989 = vunpack.c.l.b16 %v8912
        %v8990 = vunpack.c.l.b16 %v8925
        %v8991 = vunpack.c.l.b16 %v8935
        %v8992 = vunpack.c.l.b16 %v8948
        %v8993 = vunpack.c.l.b16 %v8958
        %v8994 = vpack.c.b16 %v8963, %v8962
        %v8995 = vpack.c.b16 %v8965, %v8964
        %v8996 = vpack.c.b16 %v8967, %v8966
        %v8997 = vpack.c.b16 %v8969, %v8968
        %v8998 = vpack.c.b16 %v8971, %v8970
        %v8999 = vpack.c.b16 %v8973, %v8972
        %v9000 = vpack.c.b16 %v8975, %v8974
        %v9001 = vpack.c.b16 %v8977, %v8976
        %v9002 = vpack.c.b16 %v8979, %v8978
        %v9003 = vpack.c.b16 %v8981, %v8980
        %v9004 = vpack.c.b16 %v8983, %v8982
        %v9005 = vpack.c.b16 %v8985, %v8984
        %v9006 = vpack.c.b16 %v8987, %v8986
        %v9007 = vpack.c.b16 %v8989, %v8988
        %v9008 = vpack.c.b16 %v8991, %v8990
        %v9009 = vpack.c.b16 %v8993, %v8992
        %v9012 = vunpack.c.l.b16 %v8960
        %v9013 = vunpack.c.l.b16 %v8961
        %v9014 = vpack.c.b16 %v9013, %v9012
        %v9017 = vsel %vm778, %v8994, 0
        %v9020 = vsel %vm778, %v8995, 0
        %v9023 = vsel %vm778, %v8996, 0
        %v9026 = vsel %vm778, %v8997, 0
        %v9029 = vsel %vm778, %v8998, 0
        %v9032 = vsel %vm778, %v8999, 0
        %v9035 = vsel %vm778, %v9000, 0
        %v9038 = vsel %vm778, %v9001, 0
        %v9041 = vsel %vm778, %v9002, 0
        %v9044 = vsel %vm778, %v9003, 0
        %v9047 = vsel %vm778, %v9004, 0
        %v9050 = vsel %vm778, %v9005, 0
        %v9053 = vsel %vm778, %v9006, 0
        %v9056 = vsel %vm778, %v9007, 0
        %v9059 = vsel %vm778, %v9008, 0
        %v9062 = vsel %vm778, %v9009, 0
        %9064 = vmatpush.bf16.msra.mxu0 0
        %9065 = vmatpush.bf16.msra.mxu0 0
        %9066 = vmatpush.bf16.msra.mxu0 0
        %9067 = vmatpush.bf16.msra.mxu0 0
        %9068 = vmatpush.bf16.msra.mxu0 0
        %9069 = vmatpush.bf16.msra.mxu0 0
        %9070 = vmatpush.bf16.msra.mxu0 0
        %9071 = vmatpush.bf16.msra.mxu0 %v9014
        %9072 = vmatmul.bf16.gmra.mxu0 %v9017
        %v9073 = vpop.f32.mrf.mxu0
        %v9074 = vadd.f32 0.0, %v9073
        %v9075 = vpop.f32.mrf.mxu0
        %v9076 = vadd.f32 0.0, %v9075
        %9077 = vmatmul.bf16.gmra.mxu0 %v9020
        %v9078 = vpop.f32.mrf.mxu0
        %v9079 = vadd.f32 0.0, %v9078
        %v9080 = vpop.f32.mrf.mxu0
        %v9081 = vadd.f32 0.0, %v9080
        %9082 = vmatmul.bf16.gmra.mxu0 %v9023
        %v9083 = vpop.f32.mrf.mxu0
        %v9084 = vadd.f32 0.0, %v9083
        %v9085 = vpop.f32.mrf.mxu0
        %v9086 = vadd.f32 0.0, %v9085
        %9087 = vmatmul.bf16.gmra.mxu0 %v9026
        %v9088 = vpop.f32.mrf.mxu0
        %v9089 = vadd.f32 0.0, %v9088
        %v9090 = vpop.f32.mrf.mxu0
        %v9091 = vadd.f32 0.0, %v9090
        %9092 = vmatmul.bf16.gmra.mxu0 %v9029
        %v9093 = vpop.f32.mrf.mxu0
        %v9094 = vadd.f32 0.0, %v9093
        %v9095 = vpop.f32.mrf.mxu0
        %v9096 = vadd.f32 0.0, %v9095
        %9097 = vmatmul.bf16.gmra.mxu0 %v9032
        %v9098 = vpop.f32.mrf.mxu0
        %v9099 = vadd.f32 0.0, %v9098
        %v9100 = vpop.f32.mrf.mxu0
        %v9101 = vadd.f32 0.0, %v9100
        %9102 = vmatmul.bf16.gmra.mxu0 %v9035
        %v9103 = vpop.f32.mrf.mxu0
        %v9104 = vadd.f32 0.0, %v9103
        %v9105 = vpop.f32.mrf.mxu0
        %v9106 = vadd.f32 0.0, %v9105
        %9107 = vmatmul.bf16.gmra.mxu0 %v9038
        %v9108 = vpop.f32.mrf.mxu0
        %v9109 = vadd.f32 0.0, %v9108
        %v9110 = vpop.f32.mrf.mxu0
        %v9111 = vadd.f32 0.0, %v9110
        %9112 = vmatmul.bf16.gmra.mxu0 %v9041
        %v9113 = vpop.f32.mrf.mxu0
        %v9114 = vadd.f32 0.0, %v9113
        %v9115 = vpop.f32.mrf.mxu0
        %v9116 = vadd.f32 0.0, %v9115
        %9117 = vmatmul.bf16.gmra.mxu0 %v9044
        %v9118 = vpop.f32.mrf.mxu0
        %v9119 = vadd.f32 0.0, %v9118
        %v9120 = vpop.f32.mrf.mxu0
        %v9121 = vadd.f32 0.0, %v9120
        %9122 = vmatmul.bf16.gmra.mxu0 %v9047
        %v9123 = vpop.f32.mrf.mxu0
        %v9124 = vadd.f32 0.0, %v9123
        %v9125 = vpop.f32.mrf.mxu0
        %v9126 = vadd.f32 0.0, %v9125
        %9127 = vmatmul.bf16.gmra.mxu0 %v9050
        %v9128 = vpop.f32.mrf.mxu0
        %v9129 = vadd.f32 0.0, %v9128
        %v9130 = vpop.f32.mrf.mxu0
        %v9131 = vadd.f32 0.0, %v9130
        %9132 = vmatmul.bf16.gmra.mxu0 %v9053
        %v9133 = vpop.f32.mrf.mxu0
        %v9134 = vadd.f32 0.0, %v9133
        %v9135 = vpop.f32.mrf.mxu0
        %v9136 = vadd.f32 0.0, %v9135
        %9137 = vmatmul.bf16.gmra.mxu0 %v9056
        %v9138 = vpop.f32.mrf.mxu0
        %v9139 = vadd.f32 0.0, %v9138
        %v9140 = vpop.f32.mrf.mxu0
        %v9141 = vadd.f32 0.0, %v9140
        %9142 = vmatmul.bf16.gmra.mxu0 %v9059
        %v9143 = vpop.f32.mrf.mxu0
        %v9144 = vadd.f32 0.0, %v9143
        %v9145 = vpop.f32.mrf.mxu0
        %v9146 = vadd.f32 0.0, %v9145
        %9147 = vmatmul.bf16.gmra.mxu0 %v9062
        %v9148 = vpop.f32.mrf.mxu0
        %v9149 = vadd.f32 0.0, %v9148
        %v9150 = vpop.f32.mrf.mxu0
        %v9151 = vadd.f32 0.0, %v9150
        %9152 = vdwg.mxu0
        %v9153 = vadd.f32 %v8543, %v9074
        %v9154 = vadd.f32 %v8544, %v9076
        %v9155 = vadd.f32 %v8545, %v9079
        %v9156 = vadd.f32 %v8546, %v9081
        %v9157 = vadd.f32 %v8547, %v9084
        %v9158 = vadd.f32 %v8548, %v9086
        %v9159 = vadd.f32 %v8549, %v9089
        %v9160 = vadd.f32 %v8550, %v9091
        %v9161 = vadd.f32 %v8551, %v9094
        %v9162 = vadd.f32 %v8552, %v9096
        %v9163 = vadd.f32 %v8553, %v9099
        %v9164 = vadd.f32 %v8554, %v9101
        %v9165 = vadd.f32 %v8555, %v9104
        %v9166 = vadd.f32 %v8556, %v9106
        %v9167 = vadd.f32 %v8557, %v9109
        %v9168 = vadd.f32 %v8558, %v9111
        %v9169 = vadd.f32 %v8559, %v9114
        %v9170 = vadd.f32 %v8560, %v9116
        %v9171 = vadd.f32 %v8561, %v9119
        %v9172 = vadd.f32 %v8562, %v9121
        %v9173 = vadd.f32 %v8563, %v9124
        %v9174 = vadd.f32 %v8564, %v9126
        %v9175 = vadd.f32 %v8565, %v9129
        %v9176 = vadd.f32 %v8566, %v9131
        %v9177 = vadd.f32 %v8567, %v9134
        %v9178 = vadd.f32 %v8568, %v9136
        %v9179 = vadd.f32 %v8569, %v9139
        %v9180 = vadd.f32 %v8570, %v9141
        %v9181 = vadd.f32 %v8571, %v9144
        %v9182 = vadd.f32 %v8572, %v9146
        %v9183 = vadd.f32 %v8573, %v9149
        %v9184 = vadd.f32 %v8574, %v9151
        %v9185 = vld [vmem:[%s7224] sm:$0xc]
        %v9186 = vld [vmem:[%s7224 + $0xc] sm:$0xc]
        %v9187 = vld [vmem:[%s7224 + $0x18] sm:$0xc]
        %v9188 = vld [vmem:[%s7224 + $0x24] sm:$0xc]
        %v9189 = vld [vmem:[%s7224 + $0x30] sm:$0xc]
        %v9190 = vld [vmem:[%s7224 + $0x3c] sm:$0xc]
        %v9191 = vld [vmem:[%s7224 + $0x48] sm:$0xc]
        %v9192 = vld [vmem:[%s7224 + $0x54] sm:$0xc]
        %v9193 = vld [vmem:[%s7224 + $0x60] sm:$0xc]
        %v9194 = vld [vmem:[%s7224 + $0x6c] sm:$0xc]
        %v9195 = vld [vmem:[%s7224 + $0x78] sm:$0xc]
        %v9196 = vld [vmem:[%s7224 + $0x84] sm:$0xc]
        %v9197 = vld [vmem:[%s7224 + $0x90] sm:$0xc]
        %v9198 = vld [vmem:[%s7224 + $0x9c] sm:$0xc]
        %v9199 = vld [vmem:[%s7224 + $0xa8] sm:$0xc]
        %v9200 = vld [vmem:[%s7224 + $0xb4] sm:$0xc]
        %v9233 = vrot.slane %v9185, 6
        %v9234 = vrot.slane %v9233, 4
        %v9235 = vrot.slane %v7516, 6
        %v9236 = vsel %vm2191, %v9234, %v9235
        %v9237 = vrot.slane %v9235, 4
        %v9238 = vrot.slane %v8575, 6
        %v9239 = vsel %vm2191, %v9237, %v9238
        %v9240 = vrot.slane %v9186, 6
        %v9241 = vrot.slane %v9240, 4
        %v9242 = vrot.slane %v7519, 6
        %v9243 = vsel %vm2191, %v9241, %v9242
        %v9244 = vrot.slane %v9242, 4
        %v9245 = vrot.slane %v8576, 6
        %v9246 = vsel %vm2191, %v9244, %v9245
        %v9247 = vrot.slane %v9187, 6
        %v9248 = vrot.slane %v9247, 4
        %v9249 = vrot.slane %v7522, 6
        %v9250 = vsel %vm2191, %v9248, %v9249
        %v9251 = vrot.slane %v9249, 4
        %v9252 = vrot.slane %v8577, 6
        %v9253 = vsel %vm2191, %v9251, %v9252
        %v9254 = vrot.slane %v9188, 6
        %v9255 = vrot.slane %v9254, 4
        %v9256 = vrot.slane %v7525, 6
        %v9257 = vsel %vm2191, %v9255, %v9256
        %v9258 = vrot.slane %v9256, 4
        %v9259 = vrot.slane %v8578, 6
        %v9260 = vsel %vm2191, %v9258, %v9259
        %v9261 = vrot.slane %v9189, 6
        %v9262 = vrot.slane %v9261, 4
        %v9263 = vrot.slane %v7528, 6
        %v9264 = vsel %vm2191, %v9262, %v9263
        %v9265 = vrot.slane %v9263, 4
        %v9266 = vrot.slane %v8579, 6
        %v9267 = vsel %vm2191, %v9265, %v9266
        %v9268 = vrot.slane %v9190, 6
        %v9269 = vrot.slane %v9268, 4
        %v9270 = vrot.slane %v7531, 6
        %v9271 = vsel %vm2191, %v9269, %v9270
        %v9272 = vrot.slane %v9270, 4
        %v9273 = vrot.slane %v8580, 6
        %v9274 = vsel %vm2191, %v9272, %v9273
        %v9275 = vrot.slane %v9191, 6
        %v9276 = vrot.slane %v9275, 4
        %v9277 = vrot.slane %v7534, 6
        %v9278 = vsel %vm2191, %v9276, %v9277
        %v9279 = vrot.slane %v9277, 4
        %v9280 = vrot.slane %v8581, 6
        %v9281 = vsel %vm2191, %v9279, %v9280
        %v9282 = vrot.slane %v9192, 6
        %v9283 = vrot.slane %v9282, 4
        %v9284 = vrot.slane %v7537, 6
        %v9285 = vsel %vm2191, %v9283, %v9284
        %v9286 = vrot.slane %v9284, 4
        %v9287 = vrot.slane %v8582, 6
        %v9288 = vsel %vm2191, %v9286, %v9287
        %v9289 = vrot.slane %v9193, 6
        %v9290 = vrot.slane %v9289, 4
        %v9291 = vrot.slane %v7540, 6
        %v9292 = vsel %vm2191, %v9290, %v9291
        %v9293 = vrot.slane %v9291, 4
        %v9294 = vrot.slane %v8583, 6
        %v9295 = vsel %vm2191, %v9293, %v9294
        %v9296 = vrot.slane %v9194, 6
        %v9297 = vrot.slane %v9296, 4
        %v9298 = vrot.slane %v7543, 6
        %v9299 = vsel %vm2191, %v9297, %v9298
        %v9300 = vrot.slane %v9298, 4
        %v9301 = vrot.slane %v8584, 6
        %v9302 = vsel %vm2191, %v9300, %v9301
        %v9303 = vrot.slane %v9195, 6
        %v9304 = vrot.slane %v9303, 4
        %v9305 = vrot.slane %v7546, 6
        %v9306 = vsel %vm2191, %v9304, %v9305
        %v9307 = vrot.slane %v9305, 4
        %v9308 = vrot.slane %v8585, 6
        %v9309 = vsel %vm2191, %v9307, %v9308
        %v9310 = vrot.slane %v9196, 6
        %v9311 = vrot.slane %v9310, 4
        %v9312 = vrot.slane %v7549, 6
        %v9313 = vsel %vm2191, %v9311, %v9312
        %v9314 = vrot.slane %v9312, 4
        %v9315 = vrot.slane %v8586, 6
        %v9316 = vsel %vm2191, %v9314, %v9315
        %v9317 = vrot.slane %v9197, 6
        %v9318 = vrot.slane %v9317, 4
        %v9319 = vrot.slane %v7552, 6
        %v9320 = vsel %vm2191, %v9318, %v9319
        %v9321 = vrot.slane %v9319, 4
        %v9322 = vrot.slane %v8587, 6
        %v9323 = vsel %vm2191, %v9321, %v9322
        %v9324 = vrot.slane %v9198, 6
        %v9325 = vrot.slane %v9324, 4
        %v9326 = vrot.slane %v7555, 6
        %v9327 = vsel %vm2191, %v9325, %v9326
        %v9328 = vrot.slane %v9326, 4
        %v9329 = vrot.slane %v8588, 6
        %v9330 = vsel %vm2191, %v9328, %v9329
        %v9331 = vrot.slane %v9199, 6
        %v9332 = vrot.slane %v9331, 4
        %v9333 = vrot.slane %v7558, 6
        %v9334 = vsel %vm2191, %v9332, %v9333
        %v9335 = vrot.slane %v9333, 4
        %v9336 = vrot.slane %v8589, 6
        %v9337 = vsel %vm2191, %v9335, %v9336
        %v9338 = vrot.slane %v9200, 6
        %v9339 = vrot.slane %v9338, 4
        %v9340 = vrot.slane %v7561, 6
        %v9341 = vsel %vm2191, %v9339, %v9340
        %v9342 = vrot.slane %v9340, 4
        %v9343 = vrot.slane %v8590, 6
        %v9344 = vsel %vm2191, %v9342, %v9343
        %s9345 = scalar_lea.vmem %s270, 152
        %v9346 = vld [vmem:[%s9345] sm:$0xf]
        %v9347 = vld [vmem:[%s9345 + $0x4] sm:$0xf]
        %v9348 = vunpack.c.l.b16 %v9236
        %v9349 = vunpack.c.l.b16 %v9239
        %v9350 = vunpack.c.l.b16 %v9243
        %v9351 = vunpack.c.l.b16 %v9246
        %v9352 = vunpack.c.l.b16 %v9250
        %v9353 = vunpack.c.l.b16 %v9253
        %v9354 = vunpack.c.l.b16 %v9257
        %v9355 = vunpack.c.l.b16 %v9260
        %v9356 = vunpack.c.l.b16 %v9264
        %v9357 = vunpack.c.l.b16 %v9267
        %v9358 = vunpack.c.l.b16 %v9271
        %v9359 = vunpack.c.l.b16 %v9274
        %v9360 = vunpack.c.l.b16 %v9278
        %v9361 = vunpack.c.l.b16 %v9281
        %v9362 = vunpack.c.l.b16 %v9285
        %v9363 = vunpack.c.l.b16 %v9288
        %v9364 = vunpack.c.l.b16 %v9292
        %v9365 = vunpack.c.l.b16 %v9295
        %v9366 = vunpack.c.l.b16 %v9299
        %v9367 = vunpack.c.l.b16 %v9302
        %v9368 = vunpack.c.l.b16 %v9306
        %v9369 = vunpack.c.l.b16 %v9309
        %v9370 = vunpack.c.l.b16 %v9313
        %v9371 = vunpack.c.l.b16 %v9316
        %v9372 = vunpack.c.l.b16 %v9320
        %v9373 = vunpack.c.l.b16 %v9323
        %v9374 = vunpack.c.l.b16 %v9327
        %v9375 = vunpack.c.l.b16 %v9330
        %v9376 = vunpack.c.l.b16 %v9334
        %v9377 = vunpack.c.l.b16 %v9337
        %v9378 = vunpack.c.l.b16 %v9341
        %v9379 = vunpack.c.l.b16 %v9344
        %v9380 = vpack.c.b16 %v9349, %v9348
        %v9381 = vpack.c.b16 %v9351, %v9350
        %v9382 = vpack.c.b16 %v9353, %v9352
        %v9383 = vpack.c.b16 %v9355, %v9354
        %v9384 = vpack.c.b16 %v9357, %v9356
        %v9385 = vpack.c.b16 %v9359, %v9358
        %v9386 = vpack.c.b16 %v9361, %v9360
        %v9387 = vpack.c.b16 %v9363, %v9362
        %v9388 = vpack.c.b16 %v9365, %v9364
        %v9389 = vpack.c.b16 %v9367, %v9366
        %v9390 = vpack.c.b16 %v9369, %v9368
        %v9391 = vpack.c.b16 %v9371, %v9370
        %v9392 = vpack.c.b16 %v9373, %v9372
        %v9393 = vpack.c.b16 %v9375, %v9374
        %v9394 = vpack.c.b16 %v9377, %v9376
        %v9395 = vpack.c.b16 %v9379, %v9378
        %v9398 = vunpack.c.l.b16 %v9346
        %v9399 = vunpack.c.l.b16 %v9347
        %v9400 = vpack.c.b16 %v9399, %v9398
        %v9403 = vsel %vm778, %v9380, 0
        %v9406 = vsel %vm778, %v9381, 0
        %v9409 = vsel %vm778, %v9382, 0
        %v9412 = vsel %vm778, %v9383, 0
        %v9415 = vsel %vm778, %v9384, 0
        %v9418 = vsel %vm778, %v9385, 0
        %v9421 = vsel %vm778, %v9386, 0
        %v9424 = vsel %vm778, %v9387, 0
        %v9427 = vsel %vm778, %v9388, 0
        %v9430 = vsel %vm778, %v9389, 0
        %v9433 = vsel %vm778, %v9390, 0
        %v9436 = vsel %vm778, %v9391, 0
        %v9439 = vsel %vm778, %v9392, 0
        %v9442 = vsel %vm778, %v9393, 0
        %v9445 = vsel %vm778, %v9394, 0
        %v9448 = vsel %vm778, %v9395, 0
        %9450 = vmatpush.bf16.msra.mxu0 0
        %9451 = vmatpush.bf16.msra.mxu0 0
        %9452 = vmatpush.bf16.msra.mxu0 0
        %9453 = vmatpush.bf16.msra.mxu0 0
        %9454 = vmatpush.bf16.msra.mxu0 0
        %9455 = vmatpush.bf16.msra.mxu0 0
        %9456 = vmatpush.bf16.msra.mxu0 0
        %9457 = vmatpush.bf16.msra.mxu0 %v9400
        %9458 = vmatmul.bf16.gmra.mxu0 %v9403
        %v9459 = vpop.f32.mrf.mxu0
        %v9460 = vadd.f32 0.0, %v9459
        %v9461 = vpop.f32.mrf.mxu0
        %v9462 = vadd.f32 0.0, %v9461
        %9463 = vmatmul.bf16.gmra.mxu0 %v9406
        %v9464 = vpop.f32.mrf.mxu0
        %v9465 = vadd.f32 0.0, %v9464
        %v9466 = vpop.f32.mrf.mxu0
        %v9467 = vadd.f32 0.0, %v9466
        %9468 = vmatmul.bf16.gmra.mxu0 %v9409
        %v9469 = vpop.f32.mrf.mxu0
        %v9470 = vadd.f32 0.0, %v9469
        %v9471 = vpop.f32.mrf.mxu0
        %v9472 = vadd.f32 0.0, %v9471
        %9473 = vmatmul.bf16.gmra.mxu0 %v9412
        %v9474 = vpop.f32.mrf.mxu0
        %v9475 = vadd.f32 0.0, %v9474
        %v9476 = vpop.f32.mrf.mxu0
        %v9477 = vadd.f32 0.0, %v9476
        %9478 = vmatmul.bf16.gmra.mxu0 %v9415
        %v9479 = vpop.f32.mrf.mxu0
        %v9480 = vadd.f32 0.0, %v9479
        %v9481 = vpop.f32.mrf.mxu0
        %v9482 = vadd.f32 0.0, %v9481
        %9483 = vmatmul.bf16.gmra.mxu0 %v9418
        %v9484 = vpop.f32.mrf.mxu0
        %v9485 = vadd.f32 0.0, %v9484
        %v9486 = vpop.f32.mrf.mxu0
        %v9487 = vadd.f32 0.0, %v9486
        %9488 = vmatmul.bf16.gmra.mxu0 %v9421
        %v9489 = vpop.f32.mrf.mxu0
        %v9490 = vadd.f32 0.0, %v9489
        %v9491 = vpop.f32.mrf.mxu0
        %v9492 = vadd.f32 0.0, %v9491
        %9493 = vmatmul.bf16.gmra.mxu0 %v9424
        %v9494 = vpop.f32.mrf.mxu0
        %v9495 = vadd.f32 0.0, %v9494
        %v9496 = vpop.f32.mrf.mxu0
        %v9497 = vadd.f32 0.0, %v9496
        %9498 = vmatmul.bf16.gmra.mxu0 %v9427
        %v9499 = vpop.f32.mrf.mxu0
        %v9500 = vadd.f32 0.0, %v9499
        %v9501 = vpop.f32.mrf.mxu0
        %v9502 = vadd.f32 0.0, %v9501
        %9503 = vmatmul.bf16.gmra.mxu0 %v9430
        %v9504 = vpop.f32.mrf.mxu0
        %v9505 = vadd.f32 0.0, %v9504
        %v9506 = vpop.f32.mrf.mxu0
        %v9507 = vadd.f32 0.0, %v9506
        %9508 = vmatmul.bf16.gmra.mxu0 %v9433
        %v9509 = vpop.f32.mrf.mxu0
        %v9510 = vadd.f32 0.0, %v9509
        %v9511 = vpop.f32.mrf.mxu0
        %v9512 = vadd.f32 0.0, %v9511
        %9513 = vmatmul.bf16.gmra.mxu0 %v9436
        %v9514 = vpop.f32.mrf.mxu0
        %v9515 = vadd.f32 0.0, %v9514
        %v9516 = vpop.f32.mrf.mxu0
        %v9517 = vadd.f32 0.0, %v9516
        %9518 = vmatmul.bf16.gmra.mxu0 %v9439
        %v9519 = vpop.f32.mrf.mxu0
        %v9520 = vadd.f32 0.0, %v9519
        %v9521 = vpop.f32.mrf.mxu0
        %v9522 = vadd.f32 0.0, %v9521
        %9523 = vmatmul.bf16.gmra.mxu0 %v9442
        %v9524 = vpop.f32.mrf.mxu0
        %v9525 = vadd.f32 0.0, %v9524
        %v9526 = vpop.f32.mrf.mxu0
        %v9527 = vadd.f32 0.0, %v9526
        %9528 = vmatmul.bf16.gmra.mxu0 %v9445
        %v9529 = vpop.f32.mrf.mxu0
        %v9530 = vadd.f32 0.0, %v9529
        %v9531 = vpop.f32.mrf.mxu0
        %v9532 = vadd.f32 0.0, %v9531
        %9533 = vmatmul.bf16.gmra.mxu0 %v9448
        %v9534 = vpop.f32.mrf.mxu0
        %v9535 = vadd.f32 0.0, %v9534
        %v9536 = vpop.f32.mrf.mxu0
        %v9537 = vadd.f32 0.0, %v9536
        %9538 = vdwg.mxu0
        %v9539 = vadd.f32 %v9153, %v9460
        %v9540 = vadd.f32 %v9154, %v9462
        %v9541 = vadd.f32 %v9155, %v9465
        %v9542 = vadd.f32 %v9156, %v9467
        %v9543 = vadd.f32 %v9157, %v9470
        %v9544 = vadd.f32 %v9158, %v9472
        %v9545 = vadd.f32 %v9159, %v9475
        %v9546 = vadd.f32 %v9160, %v9477
        %v9547 = vadd.f32 %v9161, %v9480
        %v9548 = vadd.f32 %v9162, %v9482
        %v9549 = vadd.f32 %v9163, %v9485
        %v9550 = vadd.f32 %v9164, %v9487
        %v9551 = vadd.f32 %v9165, %v9490
        %v9552 = vadd.f32 %v9166, %v9492
        %v9553 = vadd.f32 %v9167, %v9495
        %v9554 = vadd.f32 %v9168, %v9497
        %v9555 = vadd.f32 %v9169, %v9500
        %v9556 = vadd.f32 %v9170, %v9502
        %v9557 = vadd.f32 %v9171, %v9505
        %v9558 = vadd.f32 %v9172, %v9507
        %v9559 = vadd.f32 %v9173, %v9510
        %v9560 = vadd.f32 %v9174, %v9512
        %v9561 = vadd.f32 %v9175, %v9515
        %v9562 = vadd.f32 %v9176, %v9517
        %v9563 = vadd.f32 %v9177, %v9520
        %v9564 = vadd.f32 %v9178, %v9522
        %v9565 = vadd.f32 %v9179, %v9525
        %v9566 = vadd.f32 %v9180, %v9527
        %v9567 = vadd.f32 %v9181, %v9530
        %v9568 = vadd.f32 %v9182, %v9532
        %v9569 = vadd.f32 %v9183, %v9535
        %v9570 = vadd.f32 %v9184, %v9537
        %s9571 = scalar_lea.vmem %s266, 48
        %v9572 = vld [vmem:[%s9571] sm:$0xf]
        %v9573 = vld [vmem:[%s9571 + $0x4] sm:$0xf]
        %v9574 = vld [vmem:[%s9571 + $0xc] sm:$0xf]
        %v9575 = vld [vmem:[%s9571 + $0x10] sm:$0xf]
        %v9576 = vld [vmem:[%s9571 + $0x18] sm:$0xf]
        %v9577 = vld [vmem:[%s9571 + $0x1c] sm:$0xf]
        %v9578 = vld [vmem:[%s9571 + $0x24] sm:$0xf]
        %v9579 = vld [vmem:[%s9571 + $0x28] sm:$0xf]
        %v9580 = vld [vmem:[%s9571 + $0x30] sm:$0xf]
        %v9581 = vld [vmem:[%s9571 + $0x34] sm:$0xf]
        %v9582 = vld [vmem:[%s9571 + $0x3c] sm:$0xf]
        %v9583 = vld [vmem:[%s9571 + $0x40] sm:$0xf]
        %v9584 = vld [vmem:[%s9571 + $0x48] sm:$0xf]
        %v9585 = vld [vmem:[%s9571 + $0x4c] sm:$0xf]
        %v9586 = vld [vmem:[%s9571 + $0x54] sm:$0xf]
        %v9587 = vld [vmem:[%s9571 + $0x58] sm:$0xf]
        %v9588 = vld [vmem:[%s9571 + $0x60] sm:$0xf]
        %v9589 = vld [vmem:[%s9571 + $0x64] sm:$0xf]
        %v9590 = vld [vmem:[%s9571 + $0x6c] sm:$0xf]
        %v9591 = vld [vmem:[%s9571 + $0x70] sm:$0xf]
        %v9592 = vld [vmem:[%s9571 + $0x78] sm:$0xf]
        %v9593 = vld [vmem:[%s9571 + $0x7c] sm:$0xf]
        %v9594 = vld [vmem:[%s9571 + $0x84] sm:$0xf]
        %v9595 = vld [vmem:[%s9571 + $0x88] sm:$0xf]
        %v9596 = vld [vmem:[%s9571 + $0x90] sm:$0xf]
        %v9597 = vld [vmem:[%s9571 + $0x94] sm:$0xf]
        %v9598 = vld [vmem:[%s9571 + $0x9c] sm:$0xf]
        %v9599 = vld [vmem:[%s9571 + $0xa0] sm:$0xf]
        %v9600 = vld [vmem:[%s9571 + $0xa8] sm:$0xf]
        %v9601 = vld [vmem:[%s9571 + $0xac] sm:$0xf]
        %v9602 = vld [vmem:[%s9571 + $0xb4] sm:$0xf]
        %v9603 = vld [vmem:[%s9571 + $0xb8] sm:$0xf]
        %s9604 = scalar_lea.vmem %s270, 160
        %v9605 = vld [vmem:[%s9604] sm:$0xf]
        %v9606 = vld [vmem:[%s9604 + $0x4] sm:$0xf]
        %v9639 = vunpack.c.l.b16 %v9572
        %v9640 = vunpack.c.l.b16 %v9573
        %v9641 = vunpack.c.l.b16 %v9574
        %v9642 = vunpack.c.l.b16 %v9575
        %v9643 = vunpack.c.l.b16 %v9576
        %v9644 = vunpack.c.l.b16 %v9577
        %v9645 = vunpack.c.l.b16 %v9578
        %v9646 = vunpack.c.l.b16 %v9579
        %v9647 = vunpack.c.l.b16 %v9580
        %v9648 = vunpack.c.l.b16 %v9581
        %v9649 = vunpack.c.l.b16 %v9582
        %v9650 = vunpack.c.l.b16 %v9583
        %v9651 = vunpack.c.l.b16 %v9584
        %v9652 = vunpack.c.l.b16 %v9585
        %v9653 = vunpack.c.l.b16 %v9586
        %v9654 = vunpack.c.l.b16 %v9587
        %v9655 = vunpack.c.l.b16 %v9588
        %v9656 = vunpack.c.l.b16 %v9589
        %v9657 = vunpack.c.l.b16 %v9590
        %v9658 = vunpack.c.l.b16 %v9591
        %v9659 = vunpack.c.l.b16 %v9592
        %v9660 = vunpack.c.l.b16 %v9593
        %v9661 = vunpack.c.l.b16 %v9594
        %v9662 = vunpack.c.l.b16 %v9595
        %v9663 = vunpack.c.l.b16 %v9596
        %v9664 = vunpack.c.l.b16 %v9597
        %v9665 = vunpack.c.l.b16 %v9598
        %v9666 = vunpack.c.l.b16 %v9599
        %v9667 = vunpack.c.l.b16 %v9600
        %v9668 = vunpack.c.l.b16 %v9601
        %v9669 = vunpack.c.l.b16 %v9602
        %v9670 = vunpack.c.l.b16 %v9603
        %v9671 = vpack.c.b16 %v9640, %v9639
        %v9672 = vpack.c.b16 %v9642, %v9641
        %v9673 = vpack.c.b16 %v9644, %v9643
        %v9674 = vpack.c.b16 %v9646, %v9645
        %v9675 = vpack.c.b16 %v9648, %v9647
        %v9676 = vpack.c.b16 %v9650, %v9649
        %v9677 = vpack.c.b16 %v9652, %v9651
        %v9678 = vpack.c.b16 %v9654, %v9653
        %v9679 = vpack.c.b16 %v9656, %v9655
        %v9680 = vpack.c.b16 %v9658, %v9657
        %v9681 = vpack.c.b16 %v9660, %v9659
        %v9682 = vpack.c.b16 %v9662, %v9661
        %v9683 = vpack.c.b16 %v9664, %v9663
        %v9684 = vpack.c.b16 %v9666, %v9665
        %v9685 = vpack.c.b16 %v9668, %v9667
        %v9686 = vpack.c.b16 %v9670, %v9669
        %v9689 = vunpack.c.l.b16 %v9605
        %v9690 = vunpack.c.l.b16 %v9606
        %v9691 = vpack.c.b16 %v9690, %v9689
        %v9694 = vsel %vm778, %v9671, 0
        %v9697 = vsel %vm778, %v9672, 0
        %v9700 = vsel %vm778, %v9673, 0
        %v9703 = vsel %vm778, %v9674, 0
        %v9706 = vsel %vm778, %v9675, 0
        %v9709 = vsel %vm778, %v9676, 0
        %v9712 = vsel %vm778, %v9677, 0
        %v9715 = vsel %vm778, %v9678, 0
        %v9718 = vsel %vm778, %v9679, 0
        %v9721 = vsel %vm778, %v9680, 0
        %v9724 = vsel %vm778, %v9681, 0
        %v9727 = vsel %vm778, %v9682, 0
        %v9730 = vsel %vm778, %v9683, 0
        %v9733 = vsel %vm778, %v9684, 0
        %v9736 = vsel %vm778, %v9685, 0
        %v9739 = vsel %vm778, %v9686, 0
        %9741 = vmatpush.bf16.msra.mxu0 0
        %9742 = vmatpush.bf16.msra.mxu0 0
        %9743 = vmatpush.bf16.msra.mxu0 0
        %9744 = vmatpush.bf16.msra.mxu0 0
        %9745 = vmatpush.bf16.msra.mxu0 0
        %9746 = vmatpush.bf16.msra.mxu0 0
        %9747 = vmatpush.bf16.msra.mxu0 0
        %9748 = vmatpush.bf16.msra.mxu0 %v9691
        %9749 = vmatmul.bf16.gmra.mxu0 %v9694
        %v9750 = vpop.f32.mrf.mxu0
        %v9751 = vadd.f32 0.0, %v9750
        %v9752 = vpop.f32.mrf.mxu0
        %v9753 = vadd.f32 0.0, %v9752
        %9754 = vmatmul.bf16.gmra.mxu0 %v9697
        %v9755 = vpop.f32.mrf.mxu0
        %v9756 = vadd.f32 0.0, %v9755
        %v9757 = vpop.f32.mrf.mxu0
        %v9758 = vadd.f32 0.0, %v9757
        %9759 = vmatmul.bf16.gmra.mxu0 %v9700
        %v9760 = vpop.f32.mrf.mxu0
        %v9761 = vadd.f32 0.0, %v9760
        %v9762 = vpop.f32.mrf.mxu0
        %v9763 = vadd.f32 0.0, %v9762
        %9764 = vmatmul.bf16.gmra.mxu0 %v9703
        %v9765 = vpop.f32.mrf.mxu0
        %v9766 = vadd.f32 0.0, %v9765
        %v9767 = vpop.f32.mrf.mxu0
        %v9768 = vadd.f32 0.0, %v9767
        %9769 = vmatmul.bf16.gmra.mxu0 %v9706
        %v9770 = vpop.f32.mrf.mxu0
        %v9771 = vadd.f32 0.0, %v9770
        %v9772 = vpop.f32.mrf.mxu0
        %v9773 = vadd.f32 0.0, %v9772
        %9774 = vmatmul.bf16.gmra.mxu0 %v9709
        %v9775 = vpop.f32.mrf.mxu0
        %v9776 = vadd.f32 0.0, %v9775
        %v9777 = vpop.f32.mrf.mxu0
        %v9778 = vadd.f32 0.0, %v9777
        %9779 = vmatmul.bf16.gmra.mxu0 %v9712
        %v9780 = vpop.f32.mrf.mxu0
        %v9781 = vadd.f32 0.0, %v9780
        %v9782 = vpop.f32.mrf.mxu0
        %v9783 = vadd.f32 0.0, %v9782
        %9784 = vmatmul.bf16.gmra.mxu0 %v9715
        %v9785 = vpop.f32.mrf.mxu0
        %v9786 = vadd.f32 0.0, %v9785
        %v9787 = vpop.f32.mrf.mxu0
        %v9788 = vadd.f32 0.0, %v9787
        %9789 = vmatmul.bf16.gmra.mxu0 %v9718
        %v9790 = vpop.f32.mrf.mxu0
        %v9791 = vadd.f32 0.0, %v9790
        %v9792 = vpop.f32.mrf.mxu0
        %v9793 = vadd.f32 0.0, %v9792
        %9794 = vmatmul.bf16.gmra.mxu0 %v9721
        %v9795 = vpop.f32.mrf.mxu0
        %v9796 = vadd.f32 0.0, %v9795
        %v9797 = vpop.f32.mrf.mxu0
        %v9798 = vadd.f32 0.0, %v9797
        %9799 = vmatmul.bf16.gmra.mxu0 %v9724
        %v9800 = vpop.f32.mrf.mxu0
        %v9801 = vadd.f32 0.0, %v9800
        %v9802 = vpop.f32.mrf.mxu0
        %v9803 = vadd.f32 0.0, %v9802
        %9804 = vmatmul.bf16.gmra.mxu0 %v9727
        %v9805 = vpop.f32.mrf.mxu0
        %v9806 = vadd.f32 0.0, %v9805
        %v9807 = vpop.f32.mrf.mxu0
        %v9808 = vadd.f32 0.0, %v9807
        %9809 = vmatmul.bf16.gmra.mxu0 %v9730
        %v9810 = vpop.f32.mrf.mxu0
        %v9811 = vadd.f32 0.0, %v9810
        %v9812 = vpop.f32.mrf.mxu0
        %v9813 = vadd.f32 0.0, %v9812
        %9814 = vmatmul.bf16.gmra.mxu0 %v9733
        %v9815 = vpop.f32.mrf.mxu0
        %v9816 = vadd.f32 0.0, %v9815
        %v9817 = vpop.f32.mrf.mxu0
        %v9818 = vadd.f32 0.0, %v9817
        %9819 = vmatmul.bf16.gmra.mxu0 %v9736
        %v9820 = vpop.f32.mrf.mxu0
        %v9821 = vadd.f32 0.0, %v9820
        %v9822 = vpop.f32.mrf.mxu0
        %v9823 = vadd.f32 0.0, %v9822
        %9824 = vmatmul.bf16.gmra.mxu0 %v9739
        %v9825 = vpop.f32.mrf.mxu0
        %v9826 = vadd.f32 0.0, %v9825
        %v9827 = vpop.f32.mrf.mxu0
        %v9828 = vadd.f32 0.0, %v9827
        %9829 = vdwg.mxu0
        %v9830 = vadd.f32 %v9539, %v9751
        %v9831 = vadd.f32 %v9540, %v9753
        %v9832 = vadd.f32 %v9541, %v9756
        %v9833 = vadd.f32 %v9542, %v9758
        %v9834 = vadd.f32 %v9543, %v9761
        %v9835 = vadd.f32 %v9544, %v9763
        %v9836 = vadd.f32 %v9545, %v9766
        %v9837 = vadd.f32 %v9546, %v9768
        %v9838 = vadd.f32 %v9547, %v9771
        %v9839 = vadd.f32 %v9548, %v9773
        %v9840 = vadd.f32 %v9549, %v9776
        %v9841 = vadd.f32 %v9550, %v9778
        %v9842 = vadd.f32 %v9551, %v9781
        %v9843 = vadd.f32 %v9552, %v9783
        %v9844 = vadd.f32 %v9553, %v9786
        %v9845 = vadd.f32 %v9554, %v9788
        %v9846 = vadd.f32 %v9555, %v9791
        %v9847 = vadd.f32 %v9556, %v9793
        %v9848 = vadd.f32 %v9557, %v9796
        %v9849 = vadd.f32 %v9558, %v9798
        %v9850 = vadd.f32 %v9559, %v9801
        %v9851 = vadd.f32 %v9560, %v9803
        %v9852 = vadd.f32 %v9561, %v9806
        %v9853 = vadd.f32 %v9562, %v9808
        %v9854 = vadd.f32 %v9563, %v9811
        %v9855 = vadd.f32 %v9564, %v9813
        %v9856 = vadd.f32 %v9565, %v9816
        %v9857 = vadd.f32 %v9566, %v9818
        %v9858 = vadd.f32 %v9567, %v9821
        %v9859 = vadd.f32 %v9568, %v9823
        %v9860 = vadd.f32 %v9569, %v9826
        %v9861 = vadd.f32 %v9570, %v9828
        %v9862 = vld [vmem:[%s9571] sm:$0xf]
        %v9863 = vld [vmem:[%s9571 + $0x4] sm:$0xf]
        %v9864 = vld [vmem:[%s9571 + $0x8] sm:$0x1]
        %v9865 = vld [vmem:[%s9571 + $0xc] sm:$0xf]
        %v9866 = vld [vmem:[%s9571 + $0x10] sm:$0xf]
        %v9867 = vld [vmem:[%s9571 + $0x14] sm:$0x1]
        %v9868 = vld [vmem:[%s9571 + $0x18] sm:$0xf]
        %v9869 = vld [vmem:[%s9571 + $0x1c] sm:$0xf]
        %v9870 = vld [vmem:[%s9571 + $0x20] sm:$0x1]
        %v9871 = vld [vmem:[%s9571 + $0x24] sm:$0xf]
        %v9872 = vld [vmem:[%s9571 + $0x28] sm:$0xf]
        %v9873 = vld [vmem:[%s9571 + $0x2c] sm:$0x1]
        %v9874 = vld [vmem:[%s9571 + $0x30] sm:$0xf]
        %v9875 = vld [vmem:[%s9571 + $0x34] sm:$0xf]
        %v9876 = vld [vmem:[%s9571 + $0x38] sm:$0x1]
        %v9877 = vld [vmem:[%s9571 + $0x3c] sm:$0xf]
        %v9878 = vld [vmem:[%s9571 + $0x40] sm:$0xf]
        %v9879 = vld [vmem:[%s9571 + $0x44] sm:$0x1]
        %v9880 = vld [vmem:[%s9571 + $0x48] sm:$0xf]
        %v9881 = vld [vmem:[%s9571 + $0x4c] sm:$0xf]
        %v9882 = vld [vmem:[%s9571 + $0x50] sm:$0x1]
        %v9883 = vld [vmem:[%s9571 + $0x54] sm:$0xf]
        %v9884 = vld [vmem:[%s9571 + $0x58] sm:$0xf]
        %v9885 = vld [vmem:[%s9571 + $0x5c] sm:$0x1]
        %v9886 = vld [vmem:[%s9571 + $0x60] sm:$0xf]
        %v9887 = vld [vmem:[%s9571 + $0x64] sm:$0xf]
        %v9888 = vld [vmem:[%s9571 + $0x68] sm:$0x1]
        %v9889 = vld [vmem:[%s9571 + $0x6c] sm:$0xf]
        %v9890 = vld [vmem:[%s9571 + $0x70] sm:$0xf]
        %v9891 = vld [vmem:[%s9571 + $0x74] sm:$0x1]
        %v9892 = vld [vmem:[%s9571 + $0x78] sm:$0xf]
        %v9893 = vld [vmem:[%s9571 + $0x7c] sm:$0xf]
        %v9894 = vld [vmem:[%s9571 + $0x80] sm:$0x1]
        %v9895 = vld [vmem:[%s9571 + $0x84] sm:$0xf]
        %v9896 = vld [vmem:[%s9571 + $0x88] sm:$0xf]
        %v9897 = vld [vmem:[%s9571 + $0x8c] sm:$0x1]
        %v9898 = vld [vmem:[%s9571 + $0x90] sm:$0xf]
        %v9899 = vld [vmem:[%s9571 + $0x94] sm:$0xf]
        %v9900 = vld [vmem:[%s9571 + $0x98] sm:$0x1]
        %v9901 = vld [vmem:[%s9571 + $0x9c] sm:$0xf]
        %v9902 = vld [vmem:[%s9571 + $0xa0] sm:$0xf]
        %v9903 = vld [vmem:[%s9571 + $0xa4] sm:$0x1]
        %v9904 = vld [vmem:[%s9571 + $0xa8] sm:$0xf]
        %v9905 = vld [vmem:[%s9571 + $0xac] sm:$0xf]
        %v9906 = vld [vmem:[%s9571 + $0xb0] sm:$0x1]
        %v9907 = vld [vmem:[%s9571 + $0xb4] sm:$0xf]
        %v9908 = vld [vmem:[%s9571 + $0xb8] sm:$0xf]
        %v9909 = vld [vmem:[%s9571 + $0xbc] sm:$0x1]
        %v9911 = vshrl.u32 %v9862, 16
        %v9913 = vrot.slane %v9911, 4
        %v9914 = vshll.u32 %v9862, 16
        %v9916 = vrot.slane %v9914, 5
        %v9917 = vor.u32 %v9913, %v9916
        %v9918 = vrot.slane %v9917, 4
        %v9920 = vshll.u32 %v9863, 16
        %v9922 = vrot.slane %v9920, 5
        %v9923 = vsel %vm336, %v9918, %v9922
        %v9924 = vshrl.u32 %v9863, 16
        %v9926 = vrot.slane %v9924, 4
        %v9927 = vor.u32 %v9926, %v9922
        %v9928 = vrot.slane %v9927, 4
        %v9930 = vshll.u32 %v9864, 16
        %v9932 = vrot.slane %v9930, 5
        %v9933 = vsel %vm336, %v9928, %v9932
        %v9935 = vshrl.u32 %v9865, 16
        %v9937 = vrot.slane %v9935, 4
        %v9938 = vshll.u32 %v9865, 16
        %v9940 = vrot.slane %v9938, 5
        %v9941 = vor.u32 %v9937, %v9940
        %v9942 = vrot.slane %v9941, 4
        %v9944 = vshll.u32 %v9866, 16
        %v9946 = vrot.slane %v9944, 5
        %v9947 = vsel %vm336, %v9942, %v9946
        %v9948 = vshrl.u32 %v9866, 16
        %v9950 = vrot.slane %v9948, 4
        %v9951 = vor.u32 %v9950, %v9946
        %v9952 = vrot.slane %v9951, 4
        %v9954 = vshll.u32 %v9867, 16
        %v9956 = vrot.slane %v9954, 5
        %v9957 = vsel %vm336, %v9952, %v9956
        %v9959 = vshrl.u32 %v9868, 16
        %v9961 = vrot.slane %v9959, 4
        %v9962 = vshll.u32 %v9868, 16
        %v9964 = vrot.slane %v9962, 5
        %v9965 = vor.u32 %v9961, %v9964
        %v9966 = vrot.slane %v9965, 4
        %v9968 = vshll.u32 %v9869, 16
        %v9970 = vrot.slane %v9968, 5
        %v9971 = vsel %vm336, %v9966, %v9970
        %v9972 = vshrl.u32 %v9869, 16
        %v9974 = vrot.slane %v9972, 4
        %v9975 = vor.u32 %v9974, %v9970
        %v9976 = vrot.slane %v9975, 4
        %v9978 = vshll.u32 %v9870, 16
        %v9980 = vrot.slane %v9978, 5
        %v9981 = vsel %vm336, %v9976, %v9980
        %v9983 = vshrl.u32 %v9871, 16
        %v9985 = vrot.slane %v9983, 4
        %v9986 = vshll.u32 %v9871, 16
        %v9988 = vrot.slane %v9986, 5
        %v9989 = vor.u32 %v9985, %v9988
        %v9990 = vrot.slane %v9989, 4
        %v9992 = vshll.u32 %v9872, 16
        %v9994 = vrot.slane %v9992, 5
        %v9995 = vsel %vm336, %v9990, %v9994
        %v9996 = vshrl.u32 %v9872, 16
        %v9998 = vrot.slane %v9996, 4
        %v9999 = vor.u32 %v9998, %v9994
        %v10000 = vrot.slane %v9999, 4
        %v10002 = vshll.u32 %v9873, 16
        %v10004 = vrot.slane %v10002, 5
        %v10005 = vsel %vm336, %v10000, %v10004
        %v10007 = vshrl.u32 %v9874, 16
        %v10009 = vrot.slane %v10007, 4
        %v10010 = vshll.u32 %v9874, 16
        %v10012 = vrot.slane %v10010, 5
        %v10013 = vor.u32 %v10009, %v10012
        %v10014 = vrot.slane %v10013, 4
        %v10016 = vshll.u32 %v9875, 16
        %v10018 = vrot.slane %v10016, 5
        %v10019 = vsel %vm336, %v10014, %v10018
        %v10020 = vshrl.u32 %v9875, 16
        %v10022 = vrot.slane %v10020, 4
        %v10023 = vor.u32 %v10022, %v10018
        %v10024 = vrot.slane %v10023, 4
        %v10026 = vshll.u32 %v9876, 16
        %v10028 = vrot.slane %v10026, 5
        %v10029 = vsel %vm336, %v10024, %v10028
        %v10031 = vshrl.u32 %v9877, 16
        %v10033 = vrot.slane %v10031, 4
        %v10034 = vshll.u32 %v9877, 16
        %v10036 = vrot.slane %v10034, 5
        %v10037 = vor.u32 %v10033, %v10036
        %v10038 = vrot.slane %v10037, 4
        %v10040 = vshll.u32 %v9878, 16
        %v10042 = vrot.slane %v10040, 5
        %v10043 = vsel %vm336, %v10038, %v10042
        %v10044 = vshrl.u32 %v9878, 16
        %v10046 = vrot.slane %v10044, 4
        %v10047 = vor.u32 %v10046, %v10042
        %v10048 = vrot.slane %v10047, 4
        %v10050 = vshll.u32 %v9879, 16
        %v10052 = vrot.slane %v10050, 5
        %v10053 = vsel %vm336, %v10048, %v10052
        %v10055 = vshrl.u32 %v9880, 16
        %v10057 = vrot.slane %v10055, 4
        %v10058 = vshll.u32 %v9880, 16
        %v10060 = vrot.slane %v10058, 5
        %v10061 = vor.u32 %v10057, %v10060
        %v10062 = vrot.slane %v10061, 4
        %v10064 = vshll.u32 %v9881, 16
        %v10066 = vrot.slane %v10064, 5
        %v10067 = vsel %vm336, %v10062, %v10066
        %v10068 = vshrl.u32 %v9881, 16
        %v10070 = vrot.slane %v10068, 4
        %v10071 = vor.u32 %v10070, %v10066
        %v10072 = vrot.slane %v10071, 4
        %v10074 = vshll.u32 %v9882, 16
        %v10076 = vrot.slane %v10074, 5
        %v10077 = vsel %vm336, %v10072, %v10076
        %v10079 = vshrl.u32 %v9883, 16
        %v10081 = vrot.slane %v10079, 4
        %v10082 = vshll.u32 %v9883, 16
        %v10084 = vrot.slane %v10082, 5
        %v10085 = vor.u32 %v10081, %v10084
        %v10086 = vrot.slane %v10085, 4
        %v10088 = vshll.u32 %v9884, 16
        %v10090 = vrot.slane %v10088, 5
        %v10091 = vsel %vm336, %v10086, %v10090
        %v10092 = vshrl.u32 %v9884, 16
        %v10094 = vrot.slane %v10092, 4
        %v10095 = vor.u32 %v10094, %v10090
        %v10096 = vrot.slane %v10095, 4
        %v10098 = vshll.u32 %v9885, 16
        %v10100 = vrot.slane %v10098, 5
        %v10101 = vsel %vm336, %v10096, %v10100
        %v10103 = vshrl.u32 %v9886, 16
        %v10105 = vrot.slane %v10103, 4
        %v10106 = vshll.u32 %v9886, 16
        %v10108 = vrot.slane %v10106, 5
        %v10109 = vor.u32 %v10105, %v10108
        %v10110 = vrot.slane %v10109, 4
        %v10112 = vshll.u32 %v9887, 16
        %v10114 = vrot.slane %v10112, 5
        %v10115 = vsel %vm336, %v10110, %v10114
        %v10116 = vshrl.u32 %v9887, 16
        %v10118 = vrot.slane %v10116, 4
        %v10119 = vor.u32 %v10118, %v10114
        %v10120 = vrot.slane %v10119, 4
        %v10122 = vshll.u32 %v9888, 16
        %v10124 = vrot.slane %v10122, 5
        %v10125 = vsel %vm336, %v10120, %v10124
        %v10127 = vshrl.u32 %v9889, 16
        %v10129 = vrot.slane %v10127, 4
        %v10130 = vshll.u32 %v9889, 16
        %v10132 = vrot.slane %v10130, 5
        %v10133 = vor.u32 %v10129, %v10132
        %v10134 = vrot.slane %v10133, 4
        %v10136 = vshll.u32 %v9890, 16
        %v10138 = vrot.slane %v10136, 5
        %v10139 = vsel %vm336, %v10134, %v10138
        %v10140 = vshrl.u32 %v9890, 16
        %v10142 = vrot.slane %v10140, 4
        %v10143 = vor.u32 %v10142, %v10138
        %v10144 = vrot.slane %v10143, 4
        %v10146 = vshll.u32 %v9891, 16
        %v10148 = vrot.slane %v10146, 5
        %v10149 = vsel %vm336, %v10144, %v10148
        %v10151 = vshrl.u32 %v9892, 16
        %v10153 = vrot.slane %v10151, 4
        %v10154 = vshll.u32 %v9892, 16
        %v10156 = vrot.slane %v10154, 5
        %v10157 = vor.u32 %v10153, %v10156
        %v10158 = vrot.slane %v10157, 4
        %v10160 = vshll.u32 %v9893, 16
        %v10162 = vrot.slane %v10160, 5
        %v10163 = vsel %vm336, %v10158, %v10162
        %v10164 = vshrl.u32 %v9893, 16
        %v10166 = vrot.slane %v10164, 4
        %v10167 = vor.u32 %v10166, %v10162
        %v10168 = vrot.slane %v10167, 4
        %v10170 = vshll.u32 %v9894, 16
        %v10172 = vrot.slane %v10170, 5
        %v10173 = vsel %vm336, %v10168, %v10172
        %v10175 = vshrl.u32 %v9895, 16
        %v10177 = vrot.slane %v10175, 4
        %v10178 = vshll.u32 %v9895, 16
        %v10180 = vrot.slane %v10178, 5
        %v10181 = vor.u32 %v10177, %v10180
        %v10182 = vrot.slane %v10181, 4
        %v10184 = vshll.u32 %v9896, 16
        %v10186 = vrot.slane %v10184, 5
        %v10187 = vsel %vm336, %v10182, %v10186
        %v10188 = vshrl.u32 %v9896, 16
        %v10190 = vrot.slane %v10188, 4
        %v10191 = vor.u32 %v10190, %v10186
        %v10192 = vrot.slane %v10191, 4
        %v10194 = vshll.u32 %v9897, 16
        %v10196 = vrot.slane %v10194, 5
        %v10197 = vsel %vm336, %v10192, %v10196
        %v10199 = vshrl.u32 %v9898, 16
        %v10201 = vrot.slane %v10199, 4
        %v10202 = vshll.u32 %v9898, 16
        %v10204 = vrot.slane %v10202, 5
        %v10205 = vor.u32 %v10201, %v10204
        %v10206 = vrot.slane %v10205, 4
        %v10208 = vshll.u32 %v9899, 16
        %v10210 = vrot.slane %v10208, 5
        %v10211 = vsel %vm336, %v10206, %v10210
        %v10212 = vshrl.u32 %v9899, 16
        %v10214 = vrot.slane %v10212, 4
        %v10215 = vor.u32 %v10214, %v10210
        %v10216 = vrot.slane %v10215, 4
        %v10218 = vshll.u32 %v9900, 16
        %v10220 = vrot.slane %v10218, 5
        %v10221 = vsel %vm336, %v10216, %v10220
        %v10223 = vshrl.u32 %v9901, 16
        %v10225 = vrot.slane %v10223, 4
        %v10226 = vshll.u32 %v9901, 16
        %v10228 = vrot.slane %v10226, 5
        %v10229 = vor.u32 %v10225, %v10228
        %v10230 = vrot.slane %v10229, 4
        %v10232 = vshll.u32 %v9902, 16
        %v10234 = vrot.slane %v10232, 5
        %v10235 = vsel %vm336, %v10230, %v10234
        %v10236 = vshrl.u32 %v9902, 16
        %v10238 = vrot.slane %v10236, 4
        %v10239 = vor.u32 %v10238, %v10234
        %v10240 = vrot.slane %v10239, 4
        %v10242 = vshll.u32 %v9903, 16
        %v10244 = vrot.slane %v10242, 5
        %v10245 = vsel %vm336, %v10240, %v10244
        %v10247 = vshrl.u32 %v9904, 16
        %v10249 = vrot.slane %v10247, 4
        %v10250 = vshll.u32 %v9904, 16
        %v10252 = vrot.slane %v10250, 5
        %v10253 = vor.u32 %v10249, %v10252
        %v10254 = vrot.slane %v10253, 4
        %v10256 = vshll.u32 %v9905, 16
        %v10258 = vrot.slane %v10256, 5
        %v10259 = vsel %vm336, %v10254, %v10258
        %v10260 = vshrl.u32 %v9905, 16
        %v10262 = vrot.slane %v10260, 4
        %v10263 = vor.u32 %v10262, %v10258
        %v10264 = vrot.slane %v10263, 4
        %v10266 = vshll.u32 %v9906, 16
        %v10268 = vrot.slane %v10266, 5
        %v10269 = vsel %vm336, %v10264, %v10268
        %v10271 = vshrl.u32 %v9907, 16
        %v10273 = vrot.slane %v10271, 4
        %v10274 = vshll.u32 %v9907, 16
        %v10276 = vrot.slane %v10274, 5
        %v10277 = vor.u32 %v10273, %v10276
        %v10278 = vrot.slane %v10277, 4
        %v10280 = vshll.u32 %v9908, 16
        %v10282 = vrot.slane %v10280, 5
        %v10283 = vsel %vm336, %v10278, %v10282
        %v10284 = vshrl.u32 %v9908, 16
        %v10286 = vrot.slane %v10284, 4
        %v10287 = vor.u32 %v10286, %v10282
        %v10288 = vrot.slane %v10287, 4
        %v10290 = vshll.u32 %v9909, 16
        %v10292 = vrot.slane %v10290, 5
        %v10293 = vsel %vm336, %v10288, %v10292
        %s10294 = scalar_lea.vmem %s270, 168
        %v10295 = vld [vmem:[%s10294] sm:$0xf]
        %v10296 = vld [vmem:[%s10294 + $0x4] sm:$0xf]
        %v10297 = vunpack.c.l.b16 %v9923
        %v10298 = vunpack.c.l.b16 %v9933
        %v10299 = vunpack.c.l.b16 %v9947
        %v10300 = vunpack.c.l.b16 %v9957
        %v10301 = vunpack.c.l.b16 %v9971
        %v10302 = vunpack.c.l.b16 %v9981
        %v10303 = vunpack.c.l.b16 %v9995
        %v10304 = vunpack.c.l.b16 %v10005
        %v10305 = vunpack.c.l.b16 %v10019
        %v10306 = vunpack.c.l.b16 %v10029
        %v10307 = vunpack.c.l.b16 %v10043
        %v10308 = vunpack.c.l.b16 %v10053
        %v10309 = vunpack.c.l.b16 %v10067
        %v10310 = vunpack.c.l.b16 %v10077
        %v10311 = vunpack.c.l.b16 %v10091
        %v10312 = vunpack.c.l.b16 %v10101
        %v10313 = vunpack.c.l.b16 %v10115
        %v10314 = vunpack.c.l.b16 %v10125
        %v10315 = vunpack.c.l.b16 %v10139
        %v10316 = vunpack.c.l.b16 %v10149
        %v10317 = vunpack.c.l.b16 %v10163
        %v10318 = vunpack.c.l.b16 %v10173
        %v10319 = vunpack.c.l.b16 %v10187
        %v10320 = vunpack.c.l.b16 %v10197
        %v10321 = vunpack.c.l.b16 %v10211
        %v10322 = vunpack.c.l.b16 %v10221
        %v10323 = vunpack.c.l.b16 %v10235
        %v10324 = vunpack.c.l.b16 %v10245
        %v10325 = vunpack.c.l.b16 %v10259
        %v10326 = vunpack.c.l.b16 %v10269
        %v10327 = vunpack.c.l.b16 %v10283
        %v10328 = vunpack.c.l.b16 %v10293
        %v10329 = vpack.c.b16 %v10298, %v10297
        %v10330 = vpack.c.b16 %v10300, %v10299
        %v10331 = vpack.c.b16 %v10302, %v10301
        %v10332 = vpack.c.b16 %v10304, %v10303
        %v10333 = vpack.c.b16 %v10306, %v10305
        %v10334 = vpack.c.b16 %v10308, %v10307
        %v10335 = vpack.c.b16 %v10310, %v10309
        %v10336 = vpack.c.b16 %v10312, %v10311
        %v10337 = vpack.c.b16 %v10314, %v10313
        %v10338 = vpack.c.b16 %v10316, %v10315
        %v10339 = vpack.c.b16 %v10318, %v10317
        %v10340 = vpack.c.b16 %v10320, %v10319
        %v10341 = vpack.c.b16 %v10322, %v10321
        %v10342 = vpack.c.b16 %v10324, %v10323
        %v10343 = vpack.c.b16 %v10326, %v10325
        %v10344 = vpack.c.b16 %v10328, %v10327
        %v10347 = vunpack.c.l.b16 %v10295
        %v10348 = vunpack.c.l.b16 %v10296
        %v10349 = vpack.c.b16 %v10348, %v10347
        %v10352 = vsel %vm778, %v10329, 0
        %v10355 = vsel %vm778, %v10330, 0
        %v10358 = vsel %vm778, %v10331, 0
        %v10361 = vsel %vm778, %v10332, 0
        %v10364 = vsel %vm778, %v10333, 0
        %v10367 = vsel %vm778, %v10334, 0
        %v10370 = vsel %vm778, %v10335, 0
        %v10373 = vsel %vm778, %v10336, 0
        %v10376 = vsel %vm778, %v10337, 0
        %v10379 = vsel %vm778, %v10338, 0
        %v10382 = vsel %vm778, %v10339, 0
        %v10385 = vsel %vm778, %v10340, 0
        %v10388 = vsel %vm778, %v10341, 0
        %v10391 = vsel %vm778, %v10342, 0
        %v10394 = vsel %vm778, %v10343, 0
        %v10397 = vsel %vm778, %v10344, 0
        %10399 = vmatpush.bf16.msra.mxu0 0
        %10400 = vmatpush.bf16.msra.mxu0 0
        %10401 = vmatpush.bf16.msra.mxu0 0
        %10402 = vmatpush.bf16.msra.mxu0 0
        %10403 = vmatpush.bf16.msra.mxu0 0
        %10404 = vmatpush.bf16.msra.mxu0 0
        %10405 = vmatpush.bf16.msra.mxu0 0
        %10406 = vmatpush.bf16.msra.mxu0 %v10349
        %10407 = vmatmul.bf16.gmra.mxu0 %v10352
        %v10408 = vpop.f32.mrf.mxu0
        %v10409 = vadd.f32 0.0, %v10408
        %v10410 = vpop.f32.mrf.mxu0
        %v10411 = vadd.f32 0.0, %v10410
        %10412 = vmatmul.bf16.gmra.mxu0 %v10355
        %v10413 = vpop.f32.mrf.mxu0
        %v10414 = vadd.f32 0.0, %v10413
        %v10415 = vpop.f32.mrf.mxu0
        %v10416 = vadd.f32 0.0, %v10415
        %10417 = vmatmul.bf16.gmra.mxu0 %v10358
        %v10418 = vpop.f32.mrf.mxu0
        %v10419 = vadd.f32 0.0, %v10418
        %v10420 = vpop.f32.mrf.mxu0
        %v10421 = vadd.f32 0.0, %v10420
        %10422 = vmatmul.bf16.gmra.mxu0 %v10361
        %v10423 = vpop.f32.mrf.mxu0
        %v10424 = vadd.f32 0.0, %v10423
        %v10425 = vpop.f32.mrf.mxu0
        %v10426 = vadd.f32 0.0, %v10425
        %10427 = vmatmul.bf16.gmra.mxu0 %v10364
        %v10428 = vpop.f32.mrf.mxu0
        %v10429 = vadd.f32 0.0, %v10428
        %v10430 = vpop.f32.mrf.mxu0
        %v10431 = vadd.f32 0.0, %v10430
        %10432 = vmatmul.bf16.gmra.mxu0 %v10367
        %v10433 = vpop.f32.mrf.mxu0
        %v10434 = vadd.f32 0.0, %v10433
        %v10435 = vpop.f32.mrf.mxu0
        %v10436 = vadd.f32 0.0, %v10435
        %10437 = vmatmul.bf16.gmra.mxu0 %v10370
        %v10438 = vpop.f32.mrf.mxu0
        %v10439 = vadd.f32 0.0, %v10438
        %v10440 = vpop.f32.mrf.mxu0
        %v10441 = vadd.f32 0.0, %v10440
        %10442 = vmatmul.bf16.gmra.mxu0 %v10373
        %v10443 = vpop.f32.mrf.mxu0
        %v10444 = vadd.f32 0.0, %v10443
        %v10445 = vpop.f32.mrf.mxu0
        %v10446 = vadd.f32 0.0, %v10445
        %10447 = vmatmul.bf16.gmra.mxu0 %v10376
        %v10448 = vpop.f32.mrf.mxu0
        %v10449 = vadd.f32 0.0, %v10448
        %v10450 = vpop.f32.mrf.mxu0
        %v10451 = vadd.f32 0.0, %v10450
        %10452 = vmatmul.bf16.gmra.mxu0 %v10379
        %v10453 = vpop.f32.mrf.mxu0
        %v10454 = vadd.f32 0.0, %v10453
        %v10455 = vpop.f32.mrf.mxu0
        %v10456 = vadd.f32 0.0, %v10455
        %10457 = vmatmul.bf16.gmra.mxu0 %v10382
        %v10458 = vpop.f32.mrf.mxu0
        %v10459 = vadd.f32 0.0, %v10458
        %v10460 = vpop.f32.mrf.mxu0
        %v10461 = vadd.f32 0.0, %v10460
        %10462 = vmatmul.bf16.gmra.mxu0 %v10385
        %v10463 = vpop.f32.mrf.mxu0
        %v10464 = vadd.f32 0.0, %v10463
        %v10465 = vpop.f32.mrf.mxu0
        %v10466 = vadd.f32 0.0, %v10465
        %10467 = vmatmul.bf16.gmra.mxu0 %v10388
        %v10468 = vpop.f32.mrf.mxu0
        %v10469 = vadd.f32 0.0, %v10468
        %v10470 = vpop.f32.mrf.mxu0
        %v10471 = vadd.f32 0.0, %v10470
        %10472 = vmatmul.bf16.gmra.mxu0 %v10391
        %v10473 = vpop.f32.mrf.mxu0
        %v10474 = vadd.f32 0.0, %v10473
        %v10475 = vpop.f32.mrf.mxu0
        %v10476 = vadd.f32 0.0, %v10475
        %10477 = vmatmul.bf16.gmra.mxu0 %v10394
        %v10478 = vpop.f32.mrf.mxu0
        %v10479 = vadd.f32 0.0, %v10478
        %v10480 = vpop.f32.mrf.mxu0
        %v10481 = vadd.f32 0.0, %v10480
        %10482 = vmatmul.bf16.gmra.mxu0 %v10397
        %v10483 = vpop.f32.mrf.mxu0
        %v10484 = vadd.f32 0.0, %v10483
        %v10485 = vpop.f32.mrf.mxu0
        %v10486 = vadd.f32 0.0, %v10485
        %10487 = vdwg.mxu0
        %v10488 = vadd.f32 %v9830, %v10409
        %v10489 = vadd.f32 %v9831, %v10411
        %v10490 = vadd.f32 %v9832, %v10414
        %v10491 = vadd.f32 %v9833, %v10416
        %v10492 = vadd.f32 %v9834, %v10419
        %v10493 = vadd.f32 %v9835, %v10421
        %v10494 = vadd.f32 %v9836, %v10424
        %v10495 = vadd.f32 %v9837, %v10426
        %v10496 = vadd.f32 %v9838, %v10429
        %v10497 = vadd.f32 %v9839, %v10431
        %v10498 = vadd.f32 %v9840, %v10434
        %v10499 = vadd.f32 %v9841, %v10436
        %v10500 = vadd.f32 %v9842, %v10439
        %v10501 = vadd.f32 %v9843, %v10441
        %v10502 = vadd.f32 %v9844, %v10444
        %v10503 = vadd.f32 %v9845, %v10446
        %v10504 = vadd.f32 %v9846, %v10449
        %v10505 = vadd.f32 %v9847, %v10451
        %v10506 = vadd.f32 %v9848, %v10454
        %v10507 = vadd.f32 %v9849, %v10456
        %v10508 = vadd.f32 %v9850, %v10459
        %v10509 = vadd.f32 %v9851, %v10461
        %v10510 = vadd.f32 %v9852, %v10464
        %v10511 = vadd.f32 %v9853, %v10466
        %v10512 = vadd.f32 %v9854, %v10469
        %v10513 = vadd.f32 %v9855, %v10471
        %v10514 = vadd.f32 %v9856, %v10474
        %v10515 = vadd.f32 %v9857, %v10476
        %v10516 = vadd.f32 %v9858, %v10479
        %v10517 = vadd.f32 %v9859, %v10481
        %v10518 = vadd.f32 %v9860, %v10484
        %v10519 = vadd.f32 %v9861, %v10486
        %v10520 = vld [vmem:[%s9571] sm:$0xe]
        %v10521 = vld [vmem:[%s9571 + $0xc] sm:$0xe]
        %v10522 = vld [vmem:[%s9571 + $0x18] sm:$0xe]
        %v10523 = vld [vmem:[%s9571 + $0x24] sm:$0xe]
        %v10524 = vld [vmem:[%s9571 + $0x30] sm:$0xe]
        %v10525 = vld [vmem:[%s9571 + $0x3c] sm:$0xe]
        %v10526 = vld [vmem:[%s9571 + $0x48] sm:$0xe]
        %v10527 = vld [vmem:[%s9571 + $0x54] sm:$0xe]
        %v10528 = vld [vmem:[%s9571 + $0x60] sm:$0xe]
        %v10529 = vld [vmem:[%s9571 + $0x6c] sm:$0xe]
        %v10530 = vld [vmem:[%s9571 + $0x78] sm:$0xe]
        %v10531 = vld [vmem:[%s9571 + $0x84] sm:$0xe]
        %v10532 = vld [vmem:[%s9571 + $0x90] sm:$0xe]
        %v10533 = vld [vmem:[%s9571 + $0x9c] sm:$0xe]
        %v10534 = vld [vmem:[%s9571 + $0xa8] sm:$0xe]
        %v10535 = vld [vmem:[%s9571 + $0xb4] sm:$0xe]
        %v10584 = vrot.slane %v10520, 5
        %v10585 = vrot.slane %v10584, 4
        %v10586 = vrot.slane %v9863, 5
        %v10587 = vsel %vm1189, %v10585, %v10586
        %v10588 = vrot.slane %v10586, 4
        %v10589 = vrot.slane %v9864, 5
        %v10590 = vsel %vm1189, %v10588, %v10589
        %v10591 = vrot.slane %v10521, 5
        %v10592 = vrot.slane %v10591, 4
        %v10593 = vrot.slane %v9866, 5
        %v10594 = vsel %vm1189, %v10592, %v10593
        %v10595 = vrot.slane %v10593, 4
        %v10596 = vrot.slane %v9867, 5
        %v10597 = vsel %vm1189, %v10595, %v10596
        %v10598 = vrot.slane %v10522, 5
        %v10599 = vrot.slane %v10598, 4
        %v10600 = vrot.slane %v9869, 5
        %v10601 = vsel %vm1189, %v10599, %v10600
        %v10602 = vrot.slane %v10600, 4
        %v10603 = vrot.slane %v9870, 5
        %v10604 = vsel %vm1189, %v10602, %v10603
        %v10605 = vrot.slane %v10523, 5
        %v10606 = vrot.slane %v10605, 4
        %v10607 = vrot.slane %v9872, 5
        %v10608 = vsel %vm1189, %v10606, %v10607
        %v10609 = vrot.slane %v10607, 4
        %v10610 = vrot.slane %v9873, 5
        %v10611 = vsel %vm1189, %v10609, %v10610
        %v10612 = vrot.slane %v10524, 5
        %v10613 = vrot.slane %v10612, 4
        %v10614 = vrot.slane %v9875, 5
        %v10615 = vsel %vm1189, %v10613, %v10614
        %v10616 = vrot.slane %v10614, 4
        %v10617 = vrot.slane %v9876, 5
        %v10618 = vsel %vm1189, %v10616, %v10617
        %v10619 = vrot.slane %v10525, 5
        %v10620 = vrot.slane %v10619, 4
        %v10621 = vrot.slane %v9878, 5
        %v10622 = vsel %vm1189, %v10620, %v10621
        %v10623 = vrot.slane %v10621, 4
        %v10624 = vrot.slane %v9879, 5
        %v10625 = vsel %vm1189, %v10623, %v10624
        %v10626 = vrot.slane %v10526, 5
        %v10627 = vrot.slane %v10626, 4
        %v10628 = vrot.slane %v9881, 5
        %v10629 = vsel %vm1189, %v10627, %v10628
        %v10630 = vrot.slane %v10628, 4
        %v10631 = vrot.slane %v9882, 5
        %v10632 = vsel %vm1189, %v10630, %v10631
        %v10633 = vrot.slane %v10527, 5
        %v10634 = vrot.slane %v10633, 4
        %v10635 = vrot.slane %v9884, 5
        %v10636 = vsel %vm1189, %v10634, %v10635
        %v10637 = vrot.slane %v10635, 4
        %v10638 = vrot.slane %v9885, 5
        %v10639 = vsel %vm1189, %v10637, %v10638
        %v10640 = vrot.slane %v10528, 5
        %v10641 = vrot.slane %v10640, 4
        %v10642 = vrot.slane %v9887, 5
        %v10643 = vsel %vm1189, %v10641, %v10642
        %v10644 = vrot.slane %v10642, 4
        %v10645 = vrot.slane %v9888, 5
        %v10646 = vsel %vm1189, %v10644, %v10645
        %v10647 = vrot.slane %v10529, 5
        %v10648 = vrot.slane %v10647, 4
        %v10649 = vrot.slane %v9890, 5
        %v10650 = vsel %vm1189, %v10648, %v10649
        %v10651 = vrot.slane %v10649, 4
        %v10652 = vrot.slane %v9891, 5
        %v10653 = vsel %vm1189, %v10651, %v10652
        %v10654 = vrot.slane %v10530, 5
        %v10655 = vrot.slane %v10654, 4
        %v10656 = vrot.slane %v9893, 5
        %v10657 = vsel %vm1189, %v10655, %v10656
        %v10658 = vrot.slane %v10656, 4
        %v10659 = vrot.slane %v9894, 5
        %v10660 = vsel %vm1189, %v10658, %v10659
        %v10661 = vrot.slane %v10531, 5
        %v10662 = vrot.slane %v10661, 4
        %v10663 = vrot.slane %v9896, 5
        %v10664 = vsel %vm1189, %v10662, %v10663
        %v10665 = vrot.slane %v10663, 4
        %v10666 = vrot.slane %v9897, 5
        %v10667 = vsel %vm1189, %v10665, %v10666
        %v10668 = vrot.slane %v10532, 5
        %v10669 = vrot.slane %v10668, 4
        %v10670 = vrot.slane %v9899, 5
        %v10671 = vsel %vm1189, %v10669, %v10670
        %v10672 = vrot.slane %v10670, 4
        %v10673 = vrot.slane %v9900, 5
        %v10674 = vsel %vm1189, %v10672, %v10673
        %v10675 = vrot.slane %v10533, 5
        %v10676 = vrot.slane %v10675, 4
        %v10677 = vrot.slane %v9902, 5
        %v10678 = vsel %vm1189, %v10676, %v10677
        %v10679 = vrot.slane %v10677, 4
        %v10680 = vrot.slane %v9903, 5
        %v10681 = vsel %vm1189, %v10679, %v10680
        %v10682 = vrot.slane %v10534, 5
        %v10683 = vrot.slane %v10682, 4
        %v10684 = vrot.slane %v9905, 5
        %v10685 = vsel %vm1189, %v10683, %v10684
        %v10686 = vrot.slane %v10684, 4
        %v10687 = vrot.slane %v9906, 5
        %v10688 = vsel %vm1189, %v10686, %v10687
        %v10689 = vrot.slane %v10535, 5
        %v10690 = vrot.slane %v10689, 4
        %v10691 = vrot.slane %v9908, 5
        %v10692 = vsel %vm1189, %v10690, %v10691
        %v10693 = vrot.slane %v10691, 4
        %v10694 = vrot.slane %v9909, 5
        %v10695 = vsel %vm1189, %v10693, %v10694
        %s10696 = scalar_lea.vmem %s270, 176
        %v10697 = vld [vmem:[%s10696] sm:$0xf]
        %v10698 = vld [vmem:[%s10696 + $0x4] sm:$0xf]
        %v10699 = vunpack.c.l.b16 %v10587
        %v10700 = vunpack.c.l.b16 %v10590
        %v10701 = vunpack.c.l.b16 %v10594
        %v10702 = vunpack.c.l.b16 %v10597
        %v10703 = vunpack.c.l.b16 %v10601
        %v10704 = vunpack.c.l.b16 %v10604
        %v10705 = vunpack.c.l.b16 %v10608
        %v10706 = vunpack.c.l.b16 %v10611
        %v10707 = vunpack.c.l.b16 %v10615
        %v10708 = vunpack.c.l.b16 %v10618
        %v10709 = vunpack.c.l.b16 %v10622
        %v10710 = vunpack.c.l.b16 %v10625
        %v10711 = vunpack.c.l.b16 %v10629
        %v10712 = vunpack.c.l.b16 %v10632
        %v10713 = vunpack.c.l.b16 %v10636
        %v10714 = vunpack.c.l.b16 %v10639
        %v10715 = vunpack.c.l.b16 %v10643
        %v10716 = vunpack.c.l.b16 %v10646
        %v10717 = vunpack.c.l.b16 %v10650
        %v10718 = vunpack.c.l.b16 %v10653
        %v10719 = vunpack.c.l.b16 %v10657
        %v10720 = vunpack.c.l.b16 %v10660
        %v10721 = vunpack.c.l.b16 %v10664
        %v10722 = vunpack.c.l.b16 %v10667
        %v10723 = vunpack.c.l.b16 %v10671
        %v10724 = vunpack.c.l.b16 %v10674
        %v10725 = vunpack.c.l.b16 %v10678
        %v10726 = vunpack.c.l.b16 %v10681
        %v10727 = vunpack.c.l.b16 %v10685
        %v10728 = vunpack.c.l.b16 %v10688
        %v10729 = vunpack.c.l.b16 %v10692
        %v10730 = vunpack.c.l.b16 %v10695
        %v10731 = vpack.c.b16 %v10700, %v10699
        %v10732 = vpack.c.b16 %v10702, %v10701
        %v10733 = vpack.c.b16 %v10704, %v10703
        %v10734 = vpack.c.b16 %v10706, %v10705
        %v10735 = vpack.c.b16 %v10708, %v10707
        %v10736 = vpack.c.b16 %v10710, %v10709
        %v10737 = vpack.c.b16 %v10712, %v10711
        %v10738 = vpack.c.b16 %v10714, %v10713
        %v10739 = vpack.c.b16 %v10716, %v10715
        %v10740 = vpack.c.b16 %v10718, %v10717
        %v10741 = vpack.c.b16 %v10720, %v10719
        %v10742 = vpack.c.b16 %v10722, %v10721
        %v10743 = vpack.c.b16 %v10724, %v10723
        %v10744 = vpack.c.b16 %v10726, %v10725
        %v10745 = vpack.c.b16 %v10728, %v10727
        %v10746 = vpack.c.b16 %v10730, %v10729
        %v10749 = vunpack.c.l.b16 %v10697
        %v10750 = vunpack.c.l.b16 %v10698
        %v10751 = vpack.c.b16 %v10750, %v10749
        %v10754 = vsel %vm778, %v10731, 0
        %v10757 = vsel %vm778, %v10732, 0
        %v10760 = vsel %vm778, %v10733, 0
        %v10763 = vsel %vm778, %v10734, 0
        %v10766 = vsel %vm778, %v10735, 0
        %v10769 = vsel %vm778, %v10736, 0
        %v10772 = vsel %vm778, %v10737, 0
        %v10775 = vsel %vm778, %v10738, 0
        %v10778 = vsel %vm778, %v10739, 0
        %v10781 = vsel %vm778, %v10740, 0
        %v10784 = vsel %vm778, %v10741, 0
        %v10787 = vsel %vm778, %v10742, 0
        %v10790 = vsel %vm778, %v10743, 0
        %v10793 = vsel %vm778, %v10744, 0
        %v10796 = vsel %vm778, %v10745, 0
        %v10799 = vsel %vm778, %v10746, 0
        %10801 = vmatpush.bf16.msra.mxu0 0
        %10802 = vmatpush.bf16.msra.mxu0 0
        %10803 = vmatpush.bf16.msra.mxu0 0
        %10804 = vmatpush.bf16.msra.mxu0 0
        %10805 = vmatpush.bf16.msra.mxu0 0
        %10806 = vmatpush.bf16.msra.mxu0 0
        %10807 = vmatpush.bf16.msra.mxu0 0
        %10808 = vmatpush.bf16.msra.mxu0 %v10751
        %10809 = vmatmul.bf16.gmra.mxu0 %v10754
        %v10810 = vpop.f32.mrf.mxu0
        %v10811 = vadd.f32 0.0, %v10810
        %v10812 = vpop.f32.mrf.mxu0
        %v10813 = vadd.f32 0.0, %v10812
        %10814 = vmatmul.bf16.gmra.mxu0 %v10757
        %v10815 = vpop.f32.mrf.mxu0
        %v10816 = vadd.f32 0.0, %v10815
        %v10817 = vpop.f32.mrf.mxu0
        %v10818 = vadd.f32 0.0, %v10817
        %10819 = vmatmul.bf16.gmra.mxu0 %v10760
        %v10820 = vpop.f32.mrf.mxu0
        %v10821 = vadd.f32 0.0, %v10820
        %v10822 = vpop.f32.mrf.mxu0
        %v10823 = vadd.f32 0.0, %v10822
        %10824 = vmatmul.bf16.gmra.mxu0 %v10763
        %v10825 = vpop.f32.mrf.mxu0
        %v10826 = vadd.f32 0.0, %v10825
        %v10827 = vpop.f32.mrf.mxu0
        %v10828 = vadd.f32 0.0, %v10827
        %10829 = vmatmul.bf16.gmra.mxu0 %v10766
        %v10830 = vpop.f32.mrf.mxu0
        %v10831 = vadd.f32 0.0, %v10830
        %v10832 = vpop.f32.mrf.mxu0
        %v10833 = vadd.f32 0.0, %v10832
        %10834 = vmatmul.bf16.gmra.mxu0 %v10769
        %v10835 = vpop.f32.mrf.mxu0
        %v10836 = vadd.f32 0.0, %v10835
        %v10837 = vpop.f32.mrf.mxu0
        %v10838 = vadd.f32 0.0, %v10837
        %10839 = vmatmul.bf16.gmra.mxu0 %v10772
        %v10840 = vpop.f32.mrf.mxu0
        %v10841 = vadd.f32 0.0, %v10840
        %v10842 = vpop.f32.mrf.mxu0
        %v10843 = vadd.f32 0.0, %v10842
        %10844 = vmatmul.bf16.gmra.mxu0 %v10775
        %v10845 = vpop.f32.mrf.mxu0
        %v10846 = vadd.f32 0.0, %v10845
        %v10847 = vpop.f32.mrf.mxu0
        %v10848 = vadd.f32 0.0, %v10847
        %10849 = vmatmul.bf16.gmra.mxu0 %v10778
        %v10850 = vpop.f32.mrf.mxu0
        %v10851 = vadd.f32 0.0, %v10850
        %v10852 = vpop.f32.mrf.mxu0
        %v10853 = vadd.f32 0.0, %v10852
        %10854 = vmatmul.bf16.gmra.mxu0 %v10781
        %v10855 = vpop.f32.mrf.mxu0
        %v10856 = vadd.f32 0.0, %v10855
        %v10857 = vpop.f32.mrf.mxu0
        %v10858 = vadd.f32 0.0, %v10857
        %10859 = vmatmul.bf16.gmra.mxu0 %v10784
        %v10860 = vpop.f32.mrf.mxu0
        %v10861 = vadd.f32 0.0, %v10860
        %v10862 = vpop.f32.mrf.mxu0
        %v10863 = vadd.f32 0.0, %v10862
        %10864 = vmatmul.bf16.gmra.mxu0 %v10787
        %v10865 = vpop.f32.mrf.mxu0
        %v10866 = vadd.f32 0.0, %v10865
        %v10867 = vpop.f32.mrf.mxu0
        %v10868 = vadd.f32 0.0, %v10867
        %10869 = vmatmul.bf16.gmra.mxu0 %v10790
        %v10870 = vpop.f32.mrf.mxu0
        %v10871 = vadd.f32 0.0, %v10870
        %v10872 = vpop.f32.mrf.mxu0
        %v10873 = vadd.f32 0.0, %v10872
        %10874 = vmatmul.bf16.gmra.mxu0 %v10793
        %v10875 = vpop.f32.mrf.mxu0
        %v10876 = vadd.f32 0.0, %v10875
        %v10877 = vpop.f32.mrf.mxu0
        %v10878 = vadd.f32 0.0, %v10877
        %10879 = vmatmul.bf16.gmra.mxu0 %v10796
        %v10880 = vpop.f32.mrf.mxu0
        %v10881 = vadd.f32 0.0, %v10880
        %v10882 = vpop.f32.mrf.mxu0
        %v10883 = vadd.f32 0.0, %v10882
        %10884 = vmatmul.bf16.gmra.mxu0 %v10799
        %v10885 = vpop.f32.mrf.mxu0
        %v10886 = vadd.f32 0.0, %v10885
        %v10887 = vpop.f32.mrf.mxu0
        %v10888 = vadd.f32 0.0, %v10887
        %10889 = vdwg.mxu0
        %v10890 = vadd.f32 %v10488, %v10811
        %v10891 = vadd.f32 %v10489, %v10813
        %v10892 = vadd.f32 %v10490, %v10816
        %v10893 = vadd.f32 %v10491, %v10818
        %v10894 = vadd.f32 %v10492, %v10821
        %v10895 = vadd.f32 %v10493, %v10823
        %v10896 = vadd.f32 %v10494, %v10826
        %v10897 = vadd.f32 %v10495, %v10828
        %v10898 = vadd.f32 %v10496, %v10831
        %v10899 = vadd.f32 %v10497, %v10833
        %v10900 = vadd.f32 %v10498, %v10836
        %v10901 = vadd.f32 %v10499, %v10838
        %v10902 = vadd.f32 %v10500, %v10841
        %v10903 = vadd.f32 %v10501, %v10843
        %v10904 = vadd.f32 %v10502, %v10846
        %v10905 = vadd.f32 %v10503, %v10848
        %v10906 = vadd.f32 %v10504, %v10851
        %v10907 = vadd.f32 %v10505, %v10853
        %v10908 = vadd.f32 %v10506, %v10856
        %v10909 = vadd.f32 %v10507, %v10858
        %v10910 = vadd.f32 %v10508, %v10861
        %v10911 = vadd.f32 %v10509, %v10863
        %v10912 = vadd.f32 %v10510, %v10866
        %v10913 = vadd.f32 %v10511, %v10868
        %v10914 = vadd.f32 %v10512, %v10871
        %v10915 = vadd.f32 %v10513, %v10873
        %v10916 = vadd.f32 %v10514, %v10876
        %v10917 = vadd.f32 %v10515, %v10878
        %v10918 = vadd.f32 %v10516, %v10881
        %v10919 = vadd.f32 %v10517, %v10883
        %v10920 = vadd.f32 %v10518, %v10886
        %v10921 = vadd.f32 %v10519, %v10888
        %v10922 = vld [vmem:[%s9571 + $0x8] sm:$0x3]
        %v10923 = vld [vmem:[%s9571 + $0x14] sm:$0x3]
        %v10924 = vld [vmem:[%s9571 + $0x20] sm:$0x3]
        %v10925 = vld [vmem:[%s9571 + $0x2c] sm:$0x3]
        %v10926 = vld [vmem:[%s9571 + $0x38] sm:$0x3]
        %v10927 = vld [vmem:[%s9571 + $0x44] sm:$0x3]
        %v10928 = vld [vmem:[%s9571 + $0x50] sm:$0x3]
        %v10929 = vld [vmem:[%s9571 + $0x5c] sm:$0x3]
        %v10930 = vld [vmem:[%s9571 + $0x68] sm:$0x3]
        %v10931 = vld [vmem:[%s9571 + $0x74] sm:$0x3]
        %v10932 = vld [vmem:[%s9571 + $0x80] sm:$0x3]
        %v10933 = vld [vmem:[%s9571 + $0x8c] sm:$0x3]
        %v10934 = vld [vmem:[%s9571 + $0x98] sm:$0x3]
        %v10935 = vld [vmem:[%s9571 + $0xa4] sm:$0x3]
        %v10936 = vld [vmem:[%s9571 + $0xb0] sm:$0x3]
        %v10937 = vld [vmem:[%s9571 + $0xbc] sm:$0x3]
        %v10939 = vshrl.u32 %v10520, 16
        %v10941 = vrot.slane %v10939, 5
        %v10942 = vshll.u32 %v10520, 16
        %v10944 = vrot.slane %v10942, 6
        %v10945 = vor.u32 %v10941, %v10944
        %v10946 = vrot.slane %v10945, 4
        %v10947 = vrot.slane %v9924, 5
        %v10948 = vrot.slane %v9920, 6
        %v10949 = vor.u32 %v10947, %v10948
        %v10950 = vsel %vm1546, %v10946, %v10949
        %v10951 = vrot.slane %v10949, 4
        %v10953 = vshrl.u32 %v10922, 16
        %v10955 = vrot.slane %v10953, 5
        %v10956 = vshll.u32 %v10922, 16
        %v10958 = vrot.slane %v10956, 6
        %v10959 = vor.u32 %v10955, %v10958
        %v10960 = vsel %vm1546, %v10951, %v10959
        %v10962 = vshrl.u32 %v10521, 16
        %v10964 = vrot.slane %v10962, 5
        %v10965 = vshll.u32 %v10521, 16
        %v10967 = vrot.slane %v10965, 6
        %v10968 = vor.u32 %v10964, %v10967
        %v10969 = vrot.slane %v10968, 4
        %v10970 = vrot.slane %v9948, 5
        %v10971 = vrot.slane %v9944, 6
        %v10972 = vor.u32 %v10970, %v10971
        %v10973 = vsel %vm1546, %v10969, %v10972
        %v10974 = vrot.slane %v10972, 4
        %v10976 = vshrl.u32 %v10923, 16
        %v10978 = vrot.slane %v10976, 5
        %v10979 = vshll.u32 %v10923, 16
        %v10981 = vrot.slane %v10979, 6
        %v10982 = vor.u32 %v10978, %v10981
        %v10983 = vsel %vm1546, %v10974, %v10982
        %v10985 = vshrl.u32 %v10522, 16
        %v10987 = vrot.slane %v10985, 5
        %v10988 = vshll.u32 %v10522, 16
        %v10990 = vrot.slane %v10988, 6
        %v10991 = vor.u32 %v10987, %v10990
        %v10992 = vrot.slane %v10991, 4
        %v10993 = vrot.slane %v9972, 5
        %v10994 = vrot.slane %v9968, 6
        %v10995 = vor.u32 %v10993, %v10994
        %v10996 = vsel %vm1546, %v10992, %v10995
        %v10997 = vrot.slane %v10995, 4
        %v10999 = vshrl.u32 %v10924, 16
        %v11001 = vrot.slane %v10999, 5
        %v11002 = vshll.u32 %v10924, 16
        %v11004 = vrot.slane %v11002, 6
        %v11005 = vor.u32 %v11001, %v11004
        %v11006 = vsel %vm1546, %v10997, %v11005
        %v11008 = vshrl.u32 %v10523, 16
        %v11010 = vrot.slane %v11008, 5
        %v11011 = vshll.u32 %v10523, 16
        %v11013 = vrot.slane %v11011, 6
        %v11014 = vor.u32 %v11010, %v11013
        %v11015 = vrot.slane %v11014, 4
        %v11016 = vrot.slane %v9996, 5
        %v11017 = vrot.slane %v9992, 6
        %v11018 = vor.u32 %v11016, %v11017
        %v11019 = vsel %vm1546, %v11015, %v11018
        %v11020 = vrot.slane %v11018, 4
        %v11022 = vshrl.u32 %v10925, 16
        %v11024 = vrot.slane %v11022, 5
        %v11025 = vshll.u32 %v10925, 16
        %v11027 = vrot.slane %v11025, 6
        %v11028 = vor.u32 %v11024, %v11027
        %v11029 = vsel %vm1546, %v11020, %v11028
        %v11031 = vshrl.u32 %v10524, 16
        %v11033 = vrot.slane %v11031, 5
        %v11034 = vshll.u32 %v10524, 16
        %v11036 = vrot.slane %v11034, 6
        %v11037 = vor.u32 %v11033, %v11036
        %v11038 = vrot.slane %v11037, 4
        %v11039 = vrot.slane %v10020, 5
        %v11040 = vrot.slane %v10016, 6
        %v11041 = vor.u32 %v11039, %v11040
        %v11042 = vsel %vm1546, %v11038, %v11041
        %v11043 = vrot.slane %v11041, 4
        %v11045 = vshrl.u32 %v10926, 16
        %v11047 = vrot.slane %v11045, 5
        %v11048 = vshll.u32 %v10926, 16
        %v11050 = vrot.slane %v11048, 6
        %v11051 = vor.u32 %v11047, %v11050
        %v11052 = vsel %vm1546, %v11043, %v11051
        %v11054 = vshrl.u32 %v10525, 16
        %v11056 = vrot.slane %v11054, 5
        %v11057 = vshll.u32 %v10525, 16
        %v11059 = vrot.slane %v11057, 6
        %v11060 = vor.u32 %v11056, %v11059
        %v11061 = vrot.slane %v11060, 4
        %v11062 = vrot.slane %v10044, 5
        %v11063 = vrot.slane %v10040, 6
        %v11064 = vor.u32 %v11062, %v11063
        %v11065 = vsel %vm1546, %v11061, %v11064
        %v11066 = vrot.slane %v11064, 4
        %v11068 = vshrl.u32 %v10927, 16
        %v11070 = vrot.slane %v11068, 5
        %v11071 = vshll.u32 %v10927, 16
        %v11073 = vrot.slane %v11071, 6
        %v11074 = vor.u32 %v11070, %v11073
        %v11075 = vsel %vm1546, %v11066, %v11074
        %v11077 = vshrl.u32 %v10526, 16
        %v11079 = vrot.slane %v11077, 5
        %v11080 = vshll.u32 %v10526, 16
        %v11082 = vrot.slane %v11080, 6
        %v11083 = vor.u32 %v11079, %v11082
        %v11084 = vrot.slane %v11083, 4
        %v11085 = vrot.slane %v10068, 5
        %v11086 = vrot.slane %v10064, 6
        %v11087 = vor.u32 %v11085, %v11086
        %v11088 = vsel %vm1546, %v11084, %v11087
        %v11089 = vrot.slane %v11087, 4
        %v11091 = vshrl.u32 %v10928, 16
        %v11093 = vrot.slane %v11091, 5
        %v11094 = vshll.u32 %v10928, 16
        %v11096 = vrot.slane %v11094, 6
        %v11097 = vor.u32 %v11093, %v11096
        %v11098 = vsel %vm1546, %v11089, %v11097
        %v11100 = vshrl.u32 %v10527, 16
        %v11102 = vrot.slane %v11100, 5
        %v11103 = vshll.u32 %v10527, 16
        %v11105 = vrot.slane %v11103, 6
        %v11106 = vor.u32 %v11102, %v11105
        %v11107 = vrot.slane %v11106, 4
        %v11108 = vrot.slane %v10092, 5
        %v11109 = vrot.slane %v10088, 6
        %v11110 = vor.u32 %v11108, %v11109
        %v11111 = vsel %vm1546, %v11107, %v11110
        %v11112 = vrot.slane %v11110, 4
        %v11114 = vshrl.u32 %v10929, 16
        %v11116 = vrot.slane %v11114, 5
        %v11117 = vshll.u32 %v10929, 16
        %v11119 = vrot.slane %v11117, 6
        %v11120 = vor.u32 %v11116, %v11119
        %v11121 = vsel %vm1546, %v11112, %v11120
        %v11123 = vshrl.u32 %v10528, 16
        %v11125 = vrot.slane %v11123, 5
        %v11126 = vshll.u32 %v10528, 16
        %v11128 = vrot.slane %v11126, 6
        %v11129 = vor.u32 %v11125, %v11128
        %v11130 = vrot.slane %v11129, 4
        %v11131 = vrot.slane %v10116, 5
        %v11132 = vrot.slane %v10112, 6
        %v11133 = vor.u32 %v11131, %v11132
        %v11134 = vsel %vm1546, %v11130, %v11133
        %v11135 = vrot.slane %v11133, 4
        %v11137 = vshrl.u32 %v10930, 16
        %v11139 = vrot.slane %v11137, 5
        %v11140 = vshll.u32 %v10930, 16
        %v11142 = vrot.slane %v11140, 6
        %v11143 = vor.u32 %v11139, %v11142
        %v11144 = vsel %vm1546, %v11135, %v11143
        %v11146 = vshrl.u32 %v10529, 16
        %v11148 = vrot.slane %v11146, 5
        %v11149 = vshll.u32 %v10529, 16
        %v11151 = vrot.slane %v11149, 6
        %v11152 = vor.u32 %v11148, %v11151
        %v11153 = vrot.slane %v11152, 4
        %v11154 = vrot.slane %v10140, 5
        %v11155 = vrot.slane %v10136, 6
        %v11156 = vor.u32 %v11154, %v11155
        %v11157 = vsel %vm1546, %v11153, %v11156
        %v11158 = vrot.slane %v11156, 4
        %v11160 = vshrl.u32 %v10931, 16
        %v11162 = vrot.slane %v11160, 5
        %v11163 = vshll.u32 %v10931, 16
        %v11165 = vrot.slane %v11163, 6
        %v11166 = vor.u32 %v11162, %v11165
        %v11167 = vsel %vm1546, %v11158, %v11166
        %v11169 = vshrl.u32 %v10530, 16
        %v11171 = vrot.slane %v11169, 5
        %v11172 = vshll.u32 %v10530, 16
        %v11174 = vrot.slane %v11172, 6
        %v11175 = vor.u32 %v11171, %v11174
        %v11176 = vrot.slane %v11175, 4
        %v11177 = vrot.slane %v10164, 5
        %v11178 = vrot.slane %v10160, 6
        %v11179 = vor.u32 %v11177, %v11178
        %v11180 = vsel %vm1546, %v11176, %v11179
        %v11181 = vrot.slane %v11179, 4
        %v11183 = vshrl.u32 %v10932, 16
        %v11185 = vrot.slane %v11183, 5
        %v11186 = vshll.u32 %v10932, 16
        %v11188 = vrot.slane %v11186, 6
        %v11189 = vor.u32 %v11185, %v11188
        %v11190 = vsel %vm1546, %v11181, %v11189
        %v11192 = vshrl.u32 %v10531, 16
        %v11194 = vrot.slane %v11192, 5
        %v11195 = vshll.u32 %v10531, 16
        %v11197 = vrot.slane %v11195, 6
        %v11198 = vor.u32 %v11194, %v11197
        %v11199 = vrot.slane %v11198, 4
        %v11200 = vrot.slane %v10188, 5
        %v11201 = vrot.slane %v10184, 6
        %v11202 = vor.u32 %v11200, %v11201
        %v11203 = vsel %vm1546, %v11199, %v11202
        %v11204 = vrot.slane %v11202, 4
        %v11206 = vshrl.u32 %v10933, 16
        %v11208 = vrot.slane %v11206, 5
        %v11209 = vshll.u32 %v10933, 16
        %v11211 = vrot.slane %v11209, 6
        %v11212 = vor.u32 %v11208, %v11211
        %v11213 = vsel %vm1546, %v11204, %v11212
        %v11215 = vshrl.u32 %v10532, 16
        %v11217 = vrot.slane %v11215, 5
        %v11218 = vshll.u32 %v10532, 16
        %v11220 = vrot.slane %v11218, 6
        %v11221 = vor.u32 %v11217, %v11220
        %v11222 = vrot.slane %v11221, 4
        %v11223 = vrot.slane %v10212, 5
        %v11224 = vrot.slane %v10208, 6
        %v11225 = vor.u32 %v11223, %v11224
        %v11226 = vsel %vm1546, %v11222, %v11225
        %v11227 = vrot.slane %v11225, 4
        %v11229 = vshrl.u32 %v10934, 16
        %v11231 = vrot.slane %v11229, 5
        %v11232 = vshll.u32 %v10934, 16
        %v11234 = vrot.slane %v11232, 6
        %v11235 = vor.u32 %v11231, %v11234
        %v11236 = vsel %vm1546, %v11227, %v11235
        %v11238 = vshrl.u32 %v10533, 16
        %v11240 = vrot.slane %v11238, 5
        %v11241 = vshll.u32 %v10533, 16
        %v11243 = vrot.slane %v11241, 6
        %v11244 = vor.u32 %v11240, %v11243
        %v11245 = vrot.slane %v11244, 4
        %v11246 = vrot.slane %v10236, 5
        %v11247 = vrot.slane %v10232, 6
        %v11248 = vor.u32 %v11246, %v11247
        %v11249 = vsel %vm1546, %v11245, %v11248
        %v11250 = vrot.slane %v11248, 4
        %v11252 = vshrl.u32 %v10935, 16
        %v11254 = vrot.slane %v11252, 5
        %v11255 = vshll.u32 %v10935, 16
        %v11257 = vrot.slane %v11255, 6
        %v11258 = vor.u32 %v11254, %v11257
        %v11259 = vsel %vm1546, %v11250, %v11258
        %v11261 = vshrl.u32 %v10534, 16
        %v11263 = vrot.slane %v11261, 5
        %v11264 = vshll.u32 %v10534, 16
        %v11266 = vrot.slane %v11264, 6
        %v11267 = vor.u32 %v11263, %v11266
        %v11268 = vrot.slane %v11267, 4
        %v11269 = vrot.slane %v10260, 5
        %v11270 = vrot.slane %v10256, 6
        %v11271 = vor.u32 %v11269, %v11270
        %v11272 = vsel %vm1546, %v11268, %v11271
        %v11273 = vrot.slane %v11271, 4
        %v11275 = vshrl.u32 %v10936, 16
        %v11277 = vrot.slane %v11275, 5
        %v11278 = vshll.u32 %v10936, 16
        %v11280 = vrot.slane %v11278, 6
        %v11281 = vor.u32 %v11277, %v11280
        %v11282 = vsel %vm1546, %v11273, %v11281
        %v11284 = vshrl.u32 %v10535, 16
        %v11286 = vrot.slane %v11284, 5
        %v11287 = vshll.u32 %v10535, 16
        %v11289 = vrot.slane %v11287, 6
        %v11290 = vor.u32 %v11286, %v11289
        %v11291 = vrot.slane %v11290, 4
        %v11292 = vrot.slane %v10284, 5
        %v11293 = vrot.slane %v10280, 6
        %v11294 = vor.u32 %v11292, %v11293
        %v11295 = vsel %vm1546, %v11291, %v11294
        %v11296 = vrot.slane %v11294, 4
        %v11298 = vshrl.u32 %v10937, 16
        %v11300 = vrot.slane %v11298, 5
        %v11301 = vshll.u32 %v10937, 16
        %v11303 = vrot.slane %v11301, 6
        %v11304 = vor.u32 %v11300, %v11303
        %v11305 = vsel %vm1546, %v11296, %v11304
        %s11306 = scalar_lea.vmem %s270, 184
        %v11307 = vld [vmem:[%s11306] sm:$0xf]
        %v11308 = vld [vmem:[%s11306 + $0x4] sm:$0xf]
        %v11309 = vunpack.c.l.b16 %v10950
        %v11310 = vunpack.c.l.b16 %v10960
        %v11311 = vunpack.c.l.b16 %v10973
        %v11312 = vunpack.c.l.b16 %v10983
        %v11313 = vunpack.c.l.b16 %v10996
        %v11314 = vunpack.c.l.b16 %v11006
        %v11315 = vunpack.c.l.b16 %v11019
        %v11316 = vunpack.c.l.b16 %v11029
        %v11317 = vunpack.c.l.b16 %v11042
        %v11318 = vunpack.c.l.b16 %v11052
        %v11319 = vunpack.c.l.b16 %v11065
        %v11320 = vunpack.c.l.b16 %v11075
        %v11321 = vunpack.c.l.b16 %v11088
        %v11322 = vunpack.c.l.b16 %v11098
        %v11323 = vunpack.c.l.b16 %v11111
        %v11324 = vunpack.c.l.b16 %v11121
        %v11325 = vunpack.c.l.b16 %v11134
        %v11326 = vunpack.c.l.b16 %v11144
        %v11327 = vunpack.c.l.b16 %v11157
        %v11328 = vunpack.c.l.b16 %v11167
        %v11329 = vunpack.c.l.b16 %v11180
        %v11330 = vunpack.c.l.b16 %v11190
        %v11331 = vunpack.c.l.b16 %v11203
        %v11332 = vunpack.c.l.b16 %v11213
        %v11333 = vunpack.c.l.b16 %v11226
        %v11334 = vunpack.c.l.b16 %v11236
        %v11335 = vunpack.c.l.b16 %v11249
        %v11336 = vunpack.c.l.b16 %v11259
        %v11337 = vunpack.c.l.b16 %v11272
        %v11338 = vunpack.c.l.b16 %v11282
        %v11339 = vunpack.c.l.b16 %v11295
        %v11340 = vunpack.c.l.b16 %v11305
        %v11341 = vpack.c.b16 %v11310, %v11309
        %v11342 = vpack.c.b16 %v11312, %v11311
        %v11343 = vpack.c.b16 %v11314, %v11313
        %v11344 = vpack.c.b16 %v11316, %v11315
        %v11345 = vpack.c.b16 %v11318, %v11317
        %v11346 = vpack.c.b16 %v11320, %v11319
        %v11347 = vpack.c.b16 %v11322, %v11321
        %v11348 = vpack.c.b16 %v11324, %v11323
        %v11349 = vpack.c.b16 %v11326, %v11325
        %v11350 = vpack.c.b16 %v11328, %v11327
        %v11351 = vpack.c.b16 %v11330, %v11329
        %v11352 = vpack.c.b16 %v11332, %v11331
        %v11353 = vpack.c.b16 %v11334, %v11333
        %v11354 = vpack.c.b16 %v11336, %v11335
        %v11355 = vpack.c.b16 %v11338, %v11337
        %v11356 = vpack.c.b16 %v11340, %v11339
        %v11359 = vunpack.c.l.b16 %v11307
        %v11360 = vunpack.c.l.b16 %v11308
        %v11361 = vpack.c.b16 %v11360, %v11359
        %v11364 = vsel %vm778, %v11341, 0
        %v11367 = vsel %vm778, %v11342, 0
        %v11370 = vsel %vm778, %v11343, 0
        %v11373 = vsel %vm778, %v11344, 0
        %v11376 = vsel %vm778, %v11345, 0
        %v11379 = vsel %vm778, %v11346, 0
        %v11382 = vsel %vm778, %v11347, 0
        %v11385 = vsel %vm778, %v11348, 0
        %v11388 = vsel %vm778, %v11349, 0
        %v11391 = vsel %vm778, %v11350, 0
        %v11394 = vsel %vm778, %v11351, 0
        %v11397 = vsel %vm778, %v11352, 0
        %v11400 = vsel %vm778, %v11353, 0
        %v11403 = vsel %vm778, %v11354, 0
        %v11406 = vsel %vm778, %v11355, 0
        %v11409 = vsel %vm778, %v11356, 0
        %11411 = vmatpush.bf16.msra.mxu0 0
        %11412 = vmatpush.bf16.msra.mxu0 0
        %11413 = vmatpush.bf16.msra.mxu0 0
        %11414 = vmatpush.bf16.msra.mxu0 0
        %11415 = vmatpush.bf16.msra.mxu0 0
        %11416 = vmatpush.bf16.msra.mxu0 0
        %11417 = vmatpush.bf16.msra.mxu0 0
        %11418 = vmatpush.bf16.msra.mxu0 %v11361
        %11419 = vmatmul.bf16.gmra.mxu0 %v11364
        %v11420 = vpop.f32.mrf.mxu0
        %v11421 = vadd.f32 0.0, %v11420
        %v11422 = vpop.f32.mrf.mxu0
        %v11423 = vadd.f32 0.0, %v11422
        %11424 = vmatmul.bf16.gmra.mxu0 %v11367
        %v11425 = vpop.f32.mrf.mxu0
        %v11426 = vadd.f32 0.0, %v11425
        %v11427 = vpop.f32.mrf.mxu0
        %v11428 = vadd.f32 0.0, %v11427
        %11429 = vmatmul.bf16.gmra.mxu0 %v11370
        %v11430 = vpop.f32.mrf.mxu0
        %v11431 = vadd.f32 0.0, %v11430
        %v11432 = vpop.f32.mrf.mxu0
        %v11433 = vadd.f32 0.0, %v11432
        %11434 = vmatmul.bf16.gmra.mxu0 %v11373
        %v11435 = vpop.f32.mrf.mxu0
        %v11436 = vadd.f32 0.0, %v11435
        %v11437 = vpop.f32.mrf.mxu0
        %v11438 = vadd.f32 0.0, %v11437
        %11439 = vmatmul.bf16.gmra.mxu0 %v11376
        %v11440 = vpop.f32.mrf.mxu0
        %v11441 = vadd.f32 0.0, %v11440
        %v11442 = vpop.f32.mrf.mxu0
        %v11443 = vadd.f32 0.0, %v11442
        %11444 = vmatmul.bf16.gmra.mxu0 %v11379
        %v11445 = vpop.f32.mrf.mxu0
        %v11446 = vadd.f32 0.0, %v11445
        %v11447 = vpop.f32.mrf.mxu0
        %v11448 = vadd.f32 0.0, %v11447
        %11449 = vmatmul.bf16.gmra.mxu0 %v11382
        %v11450 = vpop.f32.mrf.mxu0
        %v11451 = vadd.f32 0.0, %v11450
        %v11452 = vpop.f32.mrf.mxu0
        %v11453 = vadd.f32 0.0, %v11452
        %11454 = vmatmul.bf16.gmra.mxu0 %v11385
        %v11455 = vpop.f32.mrf.mxu0
        %v11456 = vadd.f32 0.0, %v11455
        %v11457 = vpop.f32.mrf.mxu0
        %v11458 = vadd.f32 0.0, %v11457
        %11459 = vmatmul.bf16.gmra.mxu0 %v11388
        %v11460 = vpop.f32.mrf.mxu0
        %v11461 = vadd.f32 0.0, %v11460
        %v11462 = vpop.f32.mrf.mxu0
        %v11463 = vadd.f32 0.0, %v11462
        %11464 = vmatmul.bf16.gmra.mxu0 %v11391
        %v11465 = vpop.f32.mrf.mxu0
        %v11466 = vadd.f32 0.0, %v11465
        %v11467 = vpop.f32.mrf.mxu0
        %v11468 = vadd.f32 0.0, %v11467
        %11469 = vmatmul.bf16.gmra.mxu0 %v11394
        %v11470 = vpop.f32.mrf.mxu0
        %v11471 = vadd.f32 0.0, %v11470
        %v11472 = vpop.f32.mrf.mxu0
        %v11473 = vadd.f32 0.0, %v11472
        %11474 = vmatmul.bf16.gmra.mxu0 %v11397
        %v11475 = vpop.f32.mrf.mxu0
        %v11476 = vadd.f32 0.0, %v11475
        %v11477 = vpop.f32.mrf.mxu0
        %v11478 = vadd.f32 0.0, %v11477
        %11479 = vmatmul.bf16.gmra.mxu0 %v11400
        %v11480 = vpop.f32.mrf.mxu0
        %v11481 = vadd.f32 0.0, %v11480
        %v11482 = vpop.f32.mrf.mxu0
        %v11483 = vadd.f32 0.0, %v11482
        %11484 = vmatmul.bf16.gmra.mxu0 %v11403
        %v11485 = vpop.f32.mrf.mxu0
        %v11486 = vadd.f32 0.0, %v11485
        %v11487 = vpop.f32.mrf.mxu0
        %v11488 = vadd.f32 0.0, %v11487
        %11489 = vmatmul.bf16.gmra.mxu0 %v11406
        %v11490 = vpop.f32.mrf.mxu0
        %v11491 = vadd.f32 0.0, %v11490
        %v11492 = vpop.f32.mrf.mxu0
        %v11493 = vadd.f32 0.0, %v11492
        %11494 = vmatmul.bf16.gmra.mxu0 %v11409
        %v11495 = vpop.f32.mrf.mxu0
        %v11496 = vadd.f32 0.0, %v11495
        %v11497 = vpop.f32.mrf.mxu0
        %v11498 = vadd.f32 0.0, %v11497
        %11499 = vdwg.mxu0
        %v11500 = vadd.f32 %v10890, %v11421
        %v11501 = vadd.f32 %v10891, %v11423
        %v11502 = vadd.f32 %v10892, %v11426
        %v11503 = vadd.f32 %v10893, %v11428
        %v11504 = vadd.f32 %v10894, %v11431
        %v11505 = vadd.f32 %v10895, %v11433
        %v11506 = vadd.f32 %v10896, %v11436
        %v11507 = vadd.f32 %v10897, %v11438
        %v11508 = vadd.f32 %v10898, %v11441
        %v11509 = vadd.f32 %v10899, %v11443
        %v11510 = vadd.f32 %v10900, %v11446
        %v11511 = vadd.f32 %v10901, %v11448
        %v11512 = vadd.f32 %v10902, %v11451
        %v11513 = vadd.f32 %v10903, %v11453
        %v11514 = vadd.f32 %v10904, %v11456
        %v11515 = vadd.f32 %v10905, %v11458
        %v11516 = vadd.f32 %v10906, %v11461
        %v11517 = vadd.f32 %v10907, %v11463
        %v11518 = vadd.f32 %v10908, %v11466
        %v11519 = vadd.f32 %v10909, %v11468
        %v11520 = vadd.f32 %v10910, %v11471
        %v11521 = vadd.f32 %v10911, %v11473
        %v11522 = vadd.f32 %v10912, %v11476
        %v11523 = vadd.f32 %v10913, %v11478
        %v11524 = vadd.f32 %v10914, %v11481
        %v11525 = vadd.f32 %v10915, %v11483
        %v11526 = vadd.f32 %v10916, %v11486
        %v11527 = vadd.f32 %v10917, %v11488
        %v11528 = vadd.f32 %v10918, %v11491
        %v11529 = vadd.f32 %v10919, %v11493
        %v11530 = vadd.f32 %v10920, %v11496
        %v11531 = vadd.f32 %v10921, %v11498
        %v11532 = vld [vmem:[%s9571] sm:$0xc]
        %v11533 = vld [vmem:[%s9571 + $0xc] sm:$0xc]
        %v11534 = vld [vmem:[%s9571 + $0x18] sm:$0xc]
        %v11535 = vld [vmem:[%s9571 + $0x24] sm:$0xc]
        %v11536 = vld [vmem:[%s9571 + $0x30] sm:$0xc]
        %v11537 = vld [vmem:[%s9571 + $0x3c] sm:$0xc]
        %v11538 = vld [vmem:[%s9571 + $0x48] sm:$0xc]
        %v11539 = vld [vmem:[%s9571 + $0x54] sm:$0xc]
        %v11540 = vld [vmem:[%s9571 + $0x60] sm:$0xc]
        %v11541 = vld [vmem:[%s9571 + $0x6c] sm:$0xc]
        %v11542 = vld [vmem:[%s9571 + $0x78] sm:$0xc]
        %v11543 = vld [vmem:[%s9571 + $0x84] sm:$0xc]
        %v11544 = vld [vmem:[%s9571 + $0x90] sm:$0xc]
        %v11545 = vld [vmem:[%s9571 + $0x9c] sm:$0xc]
        %v11546 = vld [vmem:[%s9571 + $0xa8] sm:$0xc]
        %v11547 = vld [vmem:[%s9571 + $0xb4] sm:$0xc]
        %v11580 = vrot.slane %v11532, 6
        %v11581 = vrot.slane %v11580, 4
        %v11582 = vrot.slane %v9863, 6
        %v11583 = vsel %vm2191, %v11581, %v11582
        %v11584 = vrot.slane %v11582, 4
        %v11585 = vrot.slane %v10922, 6
        %v11586 = vsel %vm2191, %v11584, %v11585
        %v11587 = vrot.slane %v11533, 6
        %v11588 = vrot.slane %v11587, 4
        %v11589 = vrot.slane %v9866, 6
        %v11590 = vsel %vm2191, %v11588, %v11589
        %v11591 = vrot.slane %v11589, 4
        %v11592 = vrot.slane %v10923, 6
        %v11593 = vsel %vm2191, %v11591, %v11592
        %v11594 = vrot.slane %v11534, 6
        %v11595 = vrot.slane %v11594, 4
        %v11596 = vrot.slane %v9869, 6
        %v11597 = vsel %vm2191, %v11595, %v11596
        %v11598 = vrot.slane %v11596, 4
        %v11599 = vrot.slane %v10924, 6
        %v11600 = vsel %vm2191, %v11598, %v11599
        %v11601 = vrot.slane %v11535, 6
        %v11602 = vrot.slane %v11601, 4
        %v11603 = vrot.slane %v9872, 6
        %v11604 = vsel %vm2191, %v11602, %v11603
        %v11605 = vrot.slane %v11603, 4
        %v11606 = vrot.slane %v10925, 6
        %v11607 = vsel %vm2191, %v11605, %v11606
        %v11608 = vrot.slane %v11536, 6
        %v11609 = vrot.slane %v11608, 4
        %v11610 = vrot.slane %v9875, 6
        %v11611 = vsel %vm2191, %v11609, %v11610
        %v11612 = vrot.slane %v11610, 4
        %v11613 = vrot.slane %v10926, 6
        %v11614 = vsel %vm2191, %v11612, %v11613
        %v11615 = vrot.slane %v11537, 6
        %v11616 = vrot.slane %v11615, 4
        %v11617 = vrot.slane %v9878, 6
        %v11618 = vsel %vm2191, %v11616, %v11617
        %v11619 = vrot.slane %v11617, 4
        %v11620 = vrot.slane %v10927, 6
        %v11621 = vsel %vm2191, %v11619, %v11620
        %v11622 = vrot.slane %v11538, 6
        %v11623 = vrot.slane %v11622, 4
        %v11624 = vrot.slane %v9881, 6
        %v11625 = vsel %vm2191, %v11623, %v11624
        %v11626 = vrot.slane %v11624, 4
        %v11627 = vrot.slane %v10928, 6
        %v11628 = vsel %vm2191, %v11626, %v11627
        %v11629 = vrot.slane %v11539, 6
        %v11630 = vrot.slane %v11629, 4
        %v11631 = vrot.slane %v9884, 6
        %v11632 = vsel %vm2191, %v11630, %v11631
        %v11633 = vrot.slane %v11631, 4
        %v11634 = vrot.slane %v10929, 6
        %v11635 = vsel %vm2191, %v11633, %v11634
        %v11636 = vrot.slane %v11540, 6
        %v11637 = vrot.slane %v11636, 4
        %v11638 = vrot.slane %v9887, 6
        %v11639 = vsel %vm2191, %v11637, %v11638
        %v11640 = vrot.slane %v11638, 4
        %v11641 = vrot.slane %v10930, 6
        %v11642 = vsel %vm2191, %v11640, %v11641
        %v11643 = vrot.slane %v11541, 6
        %v11644 = vrot.slane %v11643, 4
        %v11645 = vrot.slane %v9890, 6
        %v11646 = vsel %vm2191, %v11644, %v11645
        %v11647 = vrot.slane %v11645, 4
        %v11648 = vrot.slane %v10931, 6
        %v11649 = vsel %vm2191, %v11647, %v11648
        %v11650 = vrot.slane %v11542, 6
        %v11651 = vrot.slane %v11650, 4
        %v11652 = vrot.slane %v9893, 6
        %v11653 = vsel %vm2191, %v11651, %v11652
        %v11654 = vrot.slane %v11652, 4
        %v11655 = vrot.slane %v10932, 6
        %v11656 = vsel %vm2191, %v11654, %v11655
        %v11657 = vrot.slane %v11543, 6
        %v11658 = vrot.slane %v11657, 4
        %v11659 = vrot.slane %v9896, 6
        %v11660 = vsel %vm2191, %v11658, %v11659
        %v11661 = vrot.slane %v11659, 4
        %v11662 = vrot.slane %v10933, 6
        %v11663 = vsel %vm2191, %v11661, %v11662
        %v11664 = vrot.slane %v11544, 6
        %v11665 = vrot.slane %v11664, 4
        %v11666 = vrot.slane %v9899, 6
        %v11667 = vsel %vm2191, %v11665, %v11666
        %v11668 = vrot.slane %v11666, 4
        %v11669 = vrot.slane %v10934, 6
        %v11670 = vsel %vm2191, %v11668, %v11669
        %v11671 = vrot.slane %v11545, 6
        %v11672 = vrot.slane %v11671, 4
        %v11673 = vrot.slane %v9902, 6
        %v11674 = vsel %vm2191, %v11672, %v11673
        %v11675 = vrot.slane %v11673, 4
        %v11676 = vrot.slane %v10935, 6
        %v11677 = vsel %vm2191, %v11675, %v11676
        %v11678 = vrot.slane %v11546, 6
        %v11679 = vrot.slane %v11678, 4
        %v11680 = vrot.slane %v9905, 6
        %v11681 = vsel %vm2191, %v11679, %v11680
        %v11682 = vrot.slane %v11680, 4
        %v11683 = vrot.slane %v10936, 6
        %v11684 = vsel %vm2191, %v11682, %v11683
        %v11685 = vrot.slane %v11547, 6
        %v11686 = vrot.slane %v11685, 4
        %v11687 = vrot.slane %v9908, 6
        %v11688 = vsel %vm2191, %v11686, %v11687
        %v11689 = vrot.slane %v11687, 4
        %v11690 = vrot.slane %v10937, 6
        %v11691 = vsel %vm2191, %v11689, %v11690
        %s11692 = scalar_lea.vmem %s270, 192
        %v11693 = vld [vmem:[%s11692] sm:$0xf]
        %v11694 = vld [vmem:[%s11692 + $0x4] sm:$0xf]
        %v11695 = vunpack.c.l.b16 %v11583
        %v11696 = vunpack.c.l.b16 %v11586
        %v11697 = vunpack.c.l.b16 %v11590
        %v11698 = vunpack.c.l.b16 %v11593
        %v11699 = vunpack.c.l.b16 %v11597
        %v11700 = vunpack.c.l.b16 %v11600
        %v11701 = vunpack.c.l.b16 %v11604
        %v11702 = vunpack.c.l.b16 %v11607
        %v11703 = vunpack.c.l.b16 %v11611
        %v11704 = vunpack.c.l.b16 %v11614
        %v11705 = vunpack.c.l.b16 %v11618
        %v11706 = vunpack.c.l.b16 %v11621
        %v11707 = vunpack.c.l.b16 %v11625
        %v11708 = vunpack.c.l.b16 %v11628
        %v11709 = vunpack.c.l.b16 %v11632
        %v11710 = vunpack.c.l.b16 %v11635
        %v11711 = vunpack.c.l.b16 %v11639
        %v11712 = vunpack.c.l.b16 %v11642
        %v11713 = vunpack.c.l.b16 %v11646
        %v11714 = vunpack.c.l.b16 %v11649
        %v11715 = vunpack.c.l.b16 %v11653
        %v11716 = vunpack.c.l.b16 %v11656
        %v11717 = vunpack.c.l.b16 %v11660
        %v11718 = vunpack.c.l.b16 %v11663
        %v11719 = vunpack.c.l.b16 %v11667
        %v11720 = vunpack.c.l.b16 %v11670
        %v11721 = vunpack.c.l.b16 %v11674
        %v11722 = vunpack.c.l.b16 %v11677
        %v11723 = vunpack.c.l.b16 %v11681
        %v11724 = vunpack.c.l.b16 %v11684
        %v11725 = vunpack.c.l.b16 %v11688
        %v11726 = vunpack.c.l.b16 %v11691
        %v11727 = vpack.c.b16 %v11696, %v11695
        %v11728 = vpack.c.b16 %v11698, %v11697
        %v11729 = vpack.c.b16 %v11700, %v11699
        %v11730 = vpack.c.b16 %v11702, %v11701
        %v11731 = vpack.c.b16 %v11704, %v11703
        %v11732 = vpack.c.b16 %v11706, %v11705
        %v11733 = vpack.c.b16 %v11708, %v11707
        %v11734 = vpack.c.b16 %v11710, %v11709
        %v11735 = vpack.c.b16 %v11712, %v11711
        %v11736 = vpack.c.b16 %v11714, %v11713
        %v11737 = vpack.c.b16 %v11716, %v11715
        %v11738 = vpack.c.b16 %v11718, %v11717
        %v11739 = vpack.c.b16 %v11720, %v11719
        %v11740 = vpack.c.b16 %v11722, %v11721
        %v11741 = vpack.c.b16 %v11724, %v11723
        %v11742 = vpack.c.b16 %v11726, %v11725
        %v11745 = vunpack.c.l.b16 %v11693
        %v11746 = vunpack.c.l.b16 %v11694
        %v11747 = vpack.c.b16 %v11746, %v11745
        %v11750 = vsel %vm778, %v11727, 0
        %v11753 = vsel %vm778, %v11728, 0
        %v11756 = vsel %vm778, %v11729, 0
        %v11759 = vsel %vm778, %v11730, 0
        %v11762 = vsel %vm778, %v11731, 0
        %v11765 = vsel %vm778, %v11732, 0
        %v11768 = vsel %vm778, %v11733, 0
        %v11771 = vsel %vm778, %v11734, 0
        %v11774 = vsel %vm778, %v11735, 0
        %v11777 = vsel %vm778, %v11736, 0
        %v11780 = vsel %vm778, %v11737, 0
        %v11783 = vsel %vm778, %v11738, 0
        %v11786 = vsel %vm778, %v11739, 0
        %v11789 = vsel %vm778, %v11740, 0
        %v11792 = vsel %vm778, %v11741, 0
        %v11795 = vsel %vm778, %v11742, 0
        %11797 = vmatpush.bf16.msra.mxu0 0
        %11798 = vmatpush.bf16.msra.mxu0 0
        %11799 = vmatpush.bf16.msra.mxu0 0
        %11800 = vmatpush.bf16.msra.mxu0 0
        %11801 = vmatpush.bf16.msra.mxu0 0
        %11802 = vmatpush.bf16.msra.mxu0 0
        %11803 = vmatpush.bf16.msra.mxu0 0
        %11804 = vmatpush.bf16.msra.mxu0 %v11747
        %11805 = vmatmul.bf16.gmra.mxu0 %v11750
        %v11806 = vpop.f32.mrf.mxu0
        %v11807 = vadd.f32 0.0, %v11806
        %v11808 = vpop.f32.mrf.mxu0
        %v11809 = vadd.f32 0.0, %v11808
        %11810 = vmatmul.bf16.gmra.mxu0 %v11753
        %v11811 = vpop.f32.mrf.mxu0
        %v11812 = vadd.f32 0.0, %v11811
        %v11813 = vpop.f32.mrf.mxu0
        %v11814 = vadd.f32 0.0, %v11813
        %11815 = vmatmul.bf16.gmra.mxu0 %v11756
        %v11816 = vpop.f32.mrf.mxu0
        %v11817 = vadd.f32 0.0, %v11816
        %v11818 = vpop.f32.mrf.mxu0
        %v11819 = vadd.f32 0.0, %v11818
        %11820 = vmatmul.bf16.gmra.mxu0 %v11759
        %v11821 = vpop.f32.mrf.mxu0
        %v11822 = vadd.f32 0.0, %v11821
        %v11823 = vpop.f32.mrf.mxu0
        %v11824 = vadd.f32 0.0, %v11823
        %11825 = vmatmul.bf16.gmra.mxu0 %v11762
        %v11826 = vpop.f32.mrf.mxu0
        %v11827 = vadd.f32 0.0, %v11826
        %v11828 = vpop.f32.mrf.mxu0
        %v11829 = vadd.f32 0.0, %v11828
        %11830 = vmatmul.bf16.gmra.mxu0 %v11765
        %v11831 = vpop.f32.mrf.mxu0
        %v11832 = vadd.f32 0.0, %v11831
        %v11833 = vpop.f32.mrf.mxu0
        %v11834 = vadd.f32 0.0, %v11833
        %11835 = vmatmul.bf16.gmra.mxu0 %v11768
        %v11836 = vpop.f32.mrf.mxu0
        %v11837 = vadd.f32 0.0, %v11836
        %v11838 = vpop.f32.mrf.mxu0
        %v11839 = vadd.f32 0.0, %v11838
        %11840 = vmatmul.bf16.gmra.mxu0 %v11771
        %v11841 = vpop.f32.mrf.mxu0
        %v11842 = vadd.f32 0.0, %v11841
        %v11843 = vpop.f32.mrf.mxu0
        %v11844 = vadd.f32 0.0, %v11843
        %11845 = vmatmul.bf16.gmra.mxu0 %v11774
        %v11846 = vpop.f32.mrf.mxu0
        %v11847 = vadd.f32 0.0, %v11846
        %v11848 = vpop.f32.mrf.mxu0
        %v11849 = vadd.f32 0.0, %v11848
        %11850 = vmatmul.bf16.gmra.mxu0 %v11777
        %v11851 = vpop.f32.mrf.mxu0
        %v11852 = vadd.f32 0.0, %v11851
        %v11853 = vpop.f32.mrf.mxu0
        %v11854 = vadd.f32 0.0, %v11853
        %11855 = vmatmul.bf16.gmra.mxu0 %v11780
        %v11856 = vpop.f32.mrf.mxu0
        %v11857 = vadd.f32 0.0, %v11856
        %v11858 = vpop.f32.mrf.mxu0
        %v11859 = vadd.f32 0.0, %v11858
        %11860 = vmatmul.bf16.gmra.mxu0 %v11783
        %v11861 = vpop.f32.mrf.mxu0
        %v11862 = vadd.f32 0.0, %v11861
        %v11863 = vpop.f32.mrf.mxu0
        %v11864 = vadd.f32 0.0, %v11863
        %11865 = vmatmul.bf16.gmra.mxu0 %v11786
        %v11866 = vpop.f32.mrf.mxu0
        %v11867 = vadd.f32 0.0, %v11866
        %v11868 = vpop.f32.mrf.mxu0
        %v11869 = vadd.f32 0.0, %v11868
        %11870 = vmatmul.bf16.gmra.mxu0 %v11789
        %v11871 = vpop.f32.mrf.mxu0
        %v11872 = vadd.f32 0.0, %v11871
        %v11873 = vpop.f32.mrf.mxu0
        %v11874 = vadd.f32 0.0, %v11873
        %11875 = vmatmul.bf16.gmra.mxu0 %v11792
        %v11876 = vpop.f32.mrf.mxu0
        %v11877 = vadd.f32 0.0, %v11876
        %v11878 = vpop.f32.mrf.mxu0
        %v11879 = vadd.f32 0.0, %v11878
        %11880 = vmatmul.bf16.gmra.mxu0 %v11795
        %v11881 = vpop.f32.mrf.mxu0
        %v11882 = vadd.f32 0.0, %v11881
        %v11883 = vpop.f32.mrf.mxu0
        %v11884 = vadd.f32 0.0, %v11883
        %11885 = vdwg.mxu0
        %v11886 = vadd.f32 %v11500, %v11807
        %v11887 = vadd.f32 %v11501, %v11809
        %v11888 = vadd.f32 %v11502, %v11812
        %v11889 = vadd.f32 %v11503, %v11814
        %v11890 = vadd.f32 %v11504, %v11817
        %v11891 = vadd.f32 %v11505, %v11819
        %v11892 = vadd.f32 %v11506, %v11822
        %v11893 = vadd.f32 %v11507, %v11824
        %v11894 = vadd.f32 %v11508, %v11827
        %v11895 = vadd.f32 %v11509, %v11829
        %v11896 = vadd.f32 %v11510, %v11832
        %v11897 = vadd.f32 %v11511, %v11834
        %v11898 = vadd.f32 %v11512, %v11837
        %v11899 = vadd.f32 %v11513, %v11839
        %v11900 = vadd.f32 %v11514, %v11842
        %v11901 = vadd.f32 %v11515, %v11844
        %v11902 = vadd.f32 %v11516, %v11847
        %v11903 = vadd.f32 %v11517, %v11849
        %v11904 = vadd.f32 %v11518, %v11852
        %v11905 = vadd.f32 %v11519, %v11854
        %v11906 = vadd.f32 %v11520, %v11857
        %v11907 = vadd.f32 %v11521, %v11859
        %v11908 = vadd.f32 %v11522, %v11862
        %v11909 = vadd.f32 %v11523, %v11864
        %v11910 = vadd.f32 %v11524, %v11867
        %v11911 = vadd.f32 %v11525, %v11869
        %v11912 = vadd.f32 %v11526, %v11872
        %v11913 = vadd.f32 %v11527, %v11874
        %v11914 = vadd.f32 %v11528, %v11877
        %v11915 = vadd.f32 %v11529, %v11879
        %v11916 = vadd.f32 %v11530, %v11882
        %v11917 = vadd.f32 %v11531, %v11884
        %v11918 = vld [vmem:[#allocation2] sm:$0x1]
        %v11919 = vadd.f32 %v11886, %v11887
        %v11920 = vadd.f32 %v11919, %v11888
        %v11921 = vadd.f32 %v11920, %v11889
        %v11922 = vadd.f32 %v11921, %v11890
        %v11923 = vadd.f32 %v11922, %v11891
        %v11924 = vadd.f32 %v11923, %v11892
        %v11925 = vadd.f32 %v11924, %v11893
        %v11926 = vadd.f32 %v11925, %v11894
        %v11927 = vadd.f32 %v11926, %v11895
        %v11928 = vadd.f32 %v11927, %v11896
        %v11929 = vadd.f32 %v11928, %v11897
        %v11930 = vadd.f32 %v11929, %v11898
        %v11931 = vadd.f32 %v11930, %v11899
        %v11932 = vadd.f32 %v11931, %v11900
        %v11933 = vadd.f32 %v11932, %v11901
        %v11934 = vadd.f32 %v11933, %v11902
        %v11935 = vadd.f32 %v11934, %v11903
        %v11936 = vadd.f32 %v11935, %v11904
        %v11937 = vadd.f32 %v11936, %v11905
        %v11938 = vadd.f32 %v11937, %v11906
        %v11939 = vadd.f32 %v11938, %v11907
        %v11940 = vadd.f32 %v11939, %v11908
        %v11941 = vadd.f32 %v11940, %v11909
        %v11942 = vadd.f32 %v11941, %v11910
        %v11943 = vadd.f32 %v11942, %v11911
        %v11944 = vadd.f32 %v11943, %v11912
        %v11945 = vadd.f32 %v11944, %v11913
        %v11946 = vadd.f32 %v11945, %v11914
        %v11947 = vadd.f32 %v11946, %v11915
        %v11948 = vadd.f32 %v11947, %v11916
        %v11949 = vadd.f32 %v11948, %v11917
        %v11950 = vrot.slane %v11949, 4
        %v11951 = vadd.f32 %v11949, %v11950
        %v11952 = vrot.slane %v11951, 2
        %v11953 = vadd.f32 %v11951, %v11952
        %v11954 = vrot.slane %v11953, 1
        %v11955 = vadd.f32 %v11953, %v11954
        %v11956 = vadd.f32 %v11918, %v11955
        %11957 = vst [vmem:[#allocation2] sm:$0x1] %v11956
        %v11958 = vld [vmem:[#allocation4] sm:$0x1]
        %v11959 = vmul.f32 %v11886, %v11886
        %v11960 = vmul.f32 %v11887, %v11887
        %v11961 = vmul.f32 %v11888, %v11888
        %v11962 = vmul.f32 %v11889, %v11889
        %v11963 = vmul.f32 %v11890, %v11890
        %v11964 = vmul.f32 %v11891, %v11891
        %v11965 = vmul.f32 %v11892, %v11892
        %v11966 = vmul.f32 %v11893, %v11893
        %v11967 = vmul.f32 %v11894, %v11894
        %v11968 = vmul.f32 %v11895, %v11895
        %v11969 = vmul.f32 %v11896, %v11896
        %v11970 = vmul.f32 %v11897, %v11897
        %v11971 = vmul.f32 %v11898, %v11898
        %v11972 = vmul.f32 %v11899, %v11899
        %v11973 = vmul.f32 %v11900, %v11900
        %v11974 = vmul.f32 %v11901, %v11901
        %v11975 = vmul.f32 %v11902, %v11902
        %v11976 = vmul.f32 %v11903, %v11903
        %v11977 = vmul.f32 %v11904, %v11904
        %v11978 = vmul.f32 %v11905, %v11905
        %v11979 = vmul.f32 %v11906, %v11906
        %v11980 = vmul.f32 %v11907, %v11907
        %v11981 = vmul.f32 %v11908, %v11908
        %v11982 = vmul.f32 %v11909, %v11909
        %v11983 = vmul.f32 %v11910, %v11910
        %v11984 = vmul.f32 %v11911, %v11911
        %v11985 = vmul.f32 %v11912, %v11912
        %v11986 = vmul.f32 %v11913, %v11913
        %v11987 = vmul.f32 %v11914, %v11914
        %v11988 = vmul.f32 %v11915, %v11915
        %v11989 = vmul.f32 %v11916, %v11916
        %v11990 = vmul.f32 %v11917, %v11917
        %v11991 = vadd.f32 %v11959, %v11960
        %v11992 = vadd.f32 %v11991, %v11961
        %v11993 = vadd.f32 %v11992, %v11962
        %v11994 = vadd.f32 %v11993, %v11963
        %v11995 = vadd.f32 %v11994, %v11964
        %v11996 = vadd.f32 %v11995, %v11965
        %v11997 = vadd.f32 %v11996, %v11966
        %v11998 = vadd.f32 %v11997, %v11967
        %v11999 = vadd.f32 %v11998, %v11968
        %v12000 = vadd.f32 %v11999, %v11969
        %v12001 = vadd.f32 %v12000, %v11970
        %v12002 = vadd.f32 %v12001, %v11971
        %v12003 = vadd.f32 %v12002, %v11972
        %v12004 = vadd.f32 %v12003, %v11973
        %v12005 = vadd.f32 %v12004, %v11974
        %v12006 = vadd.f32 %v12005, %v11975
        %v12007 = vadd.f32 %v12006, %v11976
        %v12008 = vadd.f32 %v12007, %v11977
        %v12009 = vadd.f32 %v12008, %v11978
        %v12010 = vadd.f32 %v12009, %v11979
        %v12011 = vadd.f32 %v12010, %v11980
        %v12012 = vadd.f32 %v12011, %v11981
        %v12013 = vadd.f32 %v12012, %v11982
        %v12014 = vadd.f32 %v12013, %v11983
        %v12015 = vadd.f32 %v12014, %v11984
        %v12016 = vadd.f32 %v12015, %v11985
        %v12017 = vadd.f32 %v12016, %v11986
        %v12018 = vadd.f32 %v12017, %v11987
        %v12019 = vadd.f32 %v12018, %v11988
        %v12020 = vadd.f32 %v12019, %v11989
        %v12021 = vadd.f32 %v12020, %v11990
        %v12022 = vrot.slane %v12021, 4
        %v12023 = vadd.f32 %v12021, %v12022
        %v12024 = vrot.slane %v12023, 2
        %v12025 = vadd.f32 %v12023, %v12024
        %v12026 = vrot.slane %v12025, 1
        %v12027 = vadd.f32 %v12025, %v12026
        %v12028 = vadd.f32 %v11958, %v12027
        %12029 = vst [vmem:[#allocation4] sm:$0x1] %v12028
        %p12030 = scmp.eq.s32.totalorder %s24, 1
        // Predicated region
        $region41: #{tpu_custom_call.1} parent=35 // pred_check
          %p12031 = pneg %p12030
        $region42: #{tpu_custom_call.1} parent=35 // pred_check_branch
          %12033 = sbr.rel (%p12031) target = $region44
        $region43: #{tpu_custom_call.1} parent=35 // pred_region
          %v12034 = vld [vmem:[#allocation2] sm:$0x1]
          %v12035 = vmul.f32 %v12034, 0.001953125
          %v12036 = vld [vmem:[#allocation4] sm:$0x1]
          %v12037 = vmul.f32 %v12036, 0.001953125
          %v12038 = vmul.f32 %v12035, %v12035
          %v12039 = vsub.f32 %v12037, %v12038
          %v12040 = vmax.f32 %v12039, 0.0
          %v12041 = vadd.f32 %v12040, 1e-05
          %v12042 = vrsqrt.pop %v12041
          %v12043 = vmul.f32 %v12042, %v12041
          %v12044 = vmul.f32 %v12043, %v12042
          %v12045 = vmul.f32 0.5, %v12044
          %v12046 = vsub.f32 1.5, %v12045
          %v12047 = vmul.f32 %v12042, %v12046
          %vm12048 = vweird.f32 %v12041
          %vm12049 = vweird.f32 %v12042
          %vm12050 = vmor %vm12048, %vm12049
          %v12051 = vsel %vm12050, %v12042, %v12047
          %v12052 = vld [vmem:[%s273] sm:$0x1]
          %v12053 = vmul.f32 %v12052, %v12051
          %12054 = vst [vmem:[#allocation2] sm:$0x1] %v12053
          %v12055 = vld [vmem:[%s276] sm:$0x1]
          %v12056 = vmul.f32 %v12035, %v12053
          %v12057 = vsub.f32 %v12055, %v12056
          %12058 = vst [vmem:[#allocation4] sm:$0x1] %v12057
        $region44: #{tpu_custom_call.1} parent=35 // pred_fallthru
          _
        // Predicated region
        $region45: #{tpu_custom_call.1} parent=35 // pred_check
          %p12059 = pneg %p153
        $region46: #{tpu_custom_call.1} parent=35 // pred_check_branch
          %12061 = sbr.rel (%p12059) target = $region48
        $region47: #{tpu_custom_call.1} parent=35 // pred_region
          %12063 = vsyncadd [#allocation3], 0
          %s12064 = scalar_lea.hbm %s4, %s23
          %s12066 = sshll.u32 [#allocation2], 4
          %s12067 = int_to_ptr.vmem [resolvable:$true] %s12066
          %s12068 = sshll.u32 %s12064, 4
          %s12069 = int_to_ptr.hbm [resolvable:$true] %s12068
          %12071 = dma.vmem_to_hbm [thread:$0]  %s12067, 16, %s12069, [#allocation3]
        $region48: #{tpu_custom_call.1} parent=35 // pred_fallthru
          _
        // Predicated region
        $region49: #{tpu_custom_call.1} parent=35 // pred_check
          %p12072 = pneg %p179
        $region50: #{tpu_custom_call.1} parent=35 // pred_check_branch
          %12074 = sbr.rel (%p12072) target = $region52
        $region51: #{tpu_custom_call.1} parent=35 // pred_region
          %12076 = vsyncadd [#allocation5], 0
          %s12077 = scalar_lea.hbm %s5, %s23
          %s12079 = sshll.u32 [#allocation4], 4
          %s12080 = int_to_ptr.vmem [resolvable:$true] %s12079
          %s12081 = sshll.u32 %s12077, 4
          %s12082 = int_to_ptr.hbm [resolvable:$true] %s12081
          %12084 = dma.vmem_to_hbm [thread:$0]  %s12080, 16, %s12082, [#allocation5]
        $region52: #{tpu_custom_call.1} parent=35 // pred_fallthru
          _
        // Predicated region
        $region53: #{tpu_custom_call.1} parent=35 // pred_check
          %p12085 = pneg %p153
        $region54: #{tpu_custom_call.1} parent=35 // pred_check_branch
          %12087 = sbr.rel (%p12085) target = $region56
        $region55: #{tpu_custom_call.1} parent=35 // pred_region
          %12089 = dma.done [#allocation3], 16
        $region56: #{tpu_custom_call.1} parent=35 // pred_fallthru
          _
        // Predicated region
        $region57: #{tpu_custom_call.1} parent=35 // pred_check
          %p12090 = pneg %p179
        $region58: #{tpu_custom_call.1} parent=35 // pred_check_branch
          %12092 = sbr.rel (%p12090) target = $region60
        $region59: #{tpu_custom_call.1} parent=35 // pred_region
          %12094 = dma.done [#allocation5], 16
        $region60: #{tpu_custom_call.1} parent=35 // pred_fallthru
          _
      $region36: #{tpu_custom_call.1} parent=5 // pred_fallthru
        _
      %p12095 = scmp.le.s32.totalorder 2, %s14
      // Predicated region
      $region61: #{tpu_custom_call.1} parent=5 // pred_check
        %p12096 = pneg %p12095
      $region62: #{tpu_custom_call.1} parent=5 // pred_check_branch
        %12098 = sbr.rel (%p12096) target = $region64
      $region63: #{tpu_custom_call.1} parent=5 // pred_region
        %s12099 = ssub.s32 %s14, 2
      $region64: #{tpu_custom_call.1} parent=5 // pred_fallthru
        _
    $region6: #{tpu_custom_call.1} parent=1 // loop_footer
      %s18 = sadd.s32 1, %s14
    $region7: #{tpu_custom_call.1} parent=1 // loop_footer_branch
      %13 = sbr.rel target = $region3
    $region8: #{tpu_custom_call.1} parent=1 // loop_exit
      _
    %12100 = vsyncpa [#allocation3], 1
    %s12101 = scalar_lea.sflag [#allocation3], 1
    %12102 = vsyncpa %s12101, 1
    %12103 = vsyncpa [#allocation5], 1

</llo_original>
